<compile_context>
chip_gen: v7x
topology: tpu7x:2x2x1
jax: 0.10.0
libtpu: 0.0.40
codegen_flags: <defaults>
</compile_context>

<pallas_src>
import functools

import jax
import jax.numpy as jnp
from jax.experimental import pallas as pl
from jax.experimental.pallas import tpu as pltpu


def fused_attention_kernel(x_full_ref, x_res_ref, wq_ref, wk_ref, bq_ref, bk_ref,
                           o_ref, q_sc, k_sc, *, H, W, TC):
    """Fused 1x1-conv (q,k) + per-channel spatial attention + residual.

    Layout is channels-last with spatial flattened (channels on the lane axis).

    x_full_ref : [1, H*W, C ]  all input channels of one batch element (conv input)
    x_res_ref  : [1, H*W, TC]  this step's output-channel slice of x (residual)
    wq_ref     : [C, TC] bf16  conv1.weight^T tile
    wk_ref     : [C, TC] bf16  conv2.weight^T tile
    bq_ref     : [1, TC] f32   conv1.bias tile (lane-dense row)
    bk_ref     : [1, TC] f32   conv2.bias tile
    o_ref      : [1, H*W, TC]  output tile
    q_sc, k_sc : [H*W, TC] f32 VMEM scratch for q / k (never hit HBM)
    """
    # ---- 1x1 convs == channel-mixing matmuls. bf16 operands, f32 accumulation.
    xb = x_full_ref[0].astype(jnp.bfloat16)                                   # [HW, C]
    q_sc[...] = (jnp.dot(xb, wq_ref[...], preferred_element_type=jnp.float32)
                 + bq_ref[...])                                               # [HW, TC]
    k_sc[...] = (jnp.dot(xb, wk_ref[...], preferred_element_type=jnp.float32)
                 + bk_ref[...])                                               # [HW, TC]

    # ---- Per-channel spatial attention on the VPU (channels stay on lanes).
    # Layout-preserving reshape: splits the sublane axis only (W is a multiple of 8).
    k3 = k_sc[...].reshape(H, W, TC)                                          # [H, W, TC]

    for h in range(H):                             # static unroll, H is small (8/16)
        qh = q_sc[h * W:(h + 1) * W, :]                                       # [W, TC]
        # s[v, c] = sum_w q[h, w, c] * k[v, w, c]
        s = jnp.sum(qh[None, :, :] * k3, axis=1)                              # [H, TC]
        # numerically-stable softmax over v (matches torch.nn.Softmax(dim=-1))
        s = s - jnp.max(s, axis=0, keepdims=True)
        p = jnp.exp(s)
        a = p / jnp.sum(p, axis=0, keepdims=True)                             # [H, TC]
        # out[w, c] = sum_v a[v, c] * k[v, w, c]
        out_h = jnp.sum(a[:, None, :] * k3, axis=0)                           # [W, TC]
        # residual add; lane-dense store of a full sublane-aligned slab
        o_ref[0, h * W:(h + 1) * W, :] = out_h + x_res_ref[0, h * W:(h + 1) * W, :]


def attention_module_forward(x, w1, b1, w2, b2, *, tile_c=256):
    """Pallas implementation of AttentionModule.forward. x: [B, C, H, W] float32."""
    B, C, H, W = x.shape
    HW = H * W
    TC = tile_c if C % tile_c == 0 else C          # output-channel tile
    n_ct = C // TC

    # Wrapper-side layout plumbing (free relative to the kernel):
    # channels-last + flattened spatial so the lane axis is the channel axis.
    x_cl = jnp.transpose(x, (0, 2, 3, 1)).reshape(B, HW, C)
    # 1x1 conv == channel mix; pre-transpose weights so the matmul is [HW,C] @ [C,TC].
    wq = jnp.transpose(w1).astype(jnp.bfloat16)    # [C_in, C_out]
    wk = jnp.transpose(w2).astype(jnp.bfloat16)
    bq = b1.reshape(1, C).astype(jnp.float32)
    bk = b2.reshape(1, C).astype(jnp.float32)

    kernel = functools.partial(fused_attention_kernel, H=H, W=W, TC=TC)

    cost = pl.CostEstimate(
        flops=4 * B * HW * C * C + 4 * B * C * H * H * W,
        transcendentals=B * C * H * H,
        bytes_accessed=(n_ct + 1) * B * HW * C * 4 + 2 * C * C * 2 + 2 * C * 4,
    )

    out_cl = pl.pallas_call(
        kernel,
        out_shape=jax.ShapeDtypeStruct((B, HW, C), jnp.float32),
        # channel-tile outer, batch INNER: weight tiles are fetched once per tile and
        # reused across all B batch elements (block index unchanged -> no re-DMA).
        grid=(n_ct, B),
        in_specs=[
            pl.BlockSpec((1, HW, C), lambda ci, b: (b, 0, 0)),    # x, all in-channels
            pl.BlockSpec((1, HW, TC), lambda ci, b: (b, 0, ci)),  # x residual slice
            pl.BlockSpec((C, TC), lambda ci, b: (0, ci)),         # conv1 weight tile
            pl.BlockSpec((C, TC), lambda ci, b: (0, ci)),         # conv2 weight tile
            pl.BlockSpec((1, TC), lambda ci, b: (0, ci)),         # conv1 bias tile
            pl.BlockSpec((1, TC), lambda ci, b: (0, ci)),         # conv2 bias tile
        ],
        out_specs=pl.BlockSpec((1, HW, TC), lambda ci, b: (b, 0, ci)),
        scratch_shapes=[pltpu.VMEM((HW, TC), jnp.float32),        # q
                        pltpu.VMEM((HW, TC), jnp.float32)],       # k
        compiler_params=pltpu.CompilerParams(
            dimension_semantics=("parallel", "parallel"),
            # Derived need at the real shape (C=2048, TC=256, HW=64) is ~7 MiB incl.
            # double buffering; 32 MiB leaves headroom and fits every generation.
            vmem_limit_bytes=32 * 1024 * 1024,
        ),
        cost_estimate=cost,
    )(x_cl, x_cl, wq, wk, bq, bk)

    return jnp.transpose(out_cl.reshape(B, H, W, C), (0, 3, 1, 2))


def ref_forward(x, w1, b1, w2, b2, conv_dtype=jnp.float32):
    """Pure-JAX reference matching PyTorch AttentionModule.forward.

    `conv_dtype=jnp.bfloat16` mirrors the kernel's mixed precision (conv inputs/weights
    rounded to bf16, accumulation / softmax / residual in f32).
    """
    B, C, H, W = x.shape
    xq = x.astype(conv_dtype).astype(jnp.float32)
    w1q = w1.astype(conv_dtype).astype(jnp.float32)
    w2q = w2.astype(conv_dtype).astype(jnp.float32)
    q = jnp.einsum('oc,bchw->bohw', w1q, xq) + b1.reshape(1, C, 1, 1)
    k = jnp.einsum('oc,bchw->bohw', w2q, xq) + b2.reshape(1, C, 1, 1)
    s = jnp.einsum('bchw,bcvw->bchv', q, k)
    attn = jax.nn.softmax(s, axis=-1)
    out = jnp.einsum('bchv,bcvw->bchw', attn, k)
    return out + x


if __name__ == "__main__":
    # Small test shape consistent with the module (real bottleneck is C=2048, H=W=8).
    B, C, H, W = 2, 4, 16, 16   # in_channels == out_channels == C (module requirement)

    key = jax.random.PRNGKey(0)
    kx, kw1, kb1, kw2, kb2 = jax.random.split(key, 5)

    x = jax.random.normal(kx, (B, C, H, W), dtype=jnp.float32)
    # Deterministic Conv2d(1x1)-style init: uniform(-1/sqrt(fan_in), 1/sqrt(fan_in))
    bound = 1.0 / jnp.sqrt(jnp.float32(C))
    w1 = jax.random.uniform(kw1, (C, C), jnp.float32, -bound, bound)
    b1 = jax.random.uniform(kb1, (C,), jnp.float32, -bound, bound)
    w2 = jax.random.uniform(kw2, (C, C), jnp.float32, -bound, bound)
    b2 = jax.random.uniform(kb2, (C,), jnp.float32, -bound, bound)

    out = attention_module_forward(x, w1, b1, w2, b2)
    out = jax.block_until_ready(out)

    # Compare against a reference with the same numerics (bf16 conv, f32 everything
    # else); softmax now uses an exact divide so the match is tight.
    ref = ref_forward(x, w1, b1, w2, b2, conv_dtype=jnp.bfloat16)
    assert out.shape == (B, C, H, W)
    assert jnp.allclose(out, ref, atol=1e-3, rtol=1e-3), "mismatch vs reference"

    print("KERNEL_OK")
</pallas_src>

<mosaic_0001>
module attributes {stable_mosaic.version = 11 : i64} {
  func.func @fused_attention_kernel(%arg0: i32, %arg1: i32, %arg2: memref<1x256x4xf32, #tpu.memory_space<vmem>>, %arg3: memref<1x256x4xf32, #tpu.memory_space<vmem>>, %arg4: memref<4x4xbf16, #tpu.memory_space<vmem>>, %arg5: memref<4x4xbf16, #tpu.memory_space<vmem>>, %arg6: memref<1x4xf32, #tpu.memory_space<vmem>>, %arg7: memref<1x4xf32, #tpu.memory_space<vmem>>, %arg8: memref<1x256x4xf32, #tpu.memory_space<vmem>>, %arg9: memref<256x4xf32, #tpu.memory_space<vmem>>, %arg10: memref<256x4xf32, #tpu.memory_space<vmem>>) attributes {dimension_semantics = [#tpu.dimension_semantics<parallel>, #tpu.dimension_semantics<parallel>], iteration_bounds = array<i64: 1, 2>, scalar_prefetch = 0 : i64, scratch_operands = 2 : i64, tpu.core_type = #tpu.core_type<tc>, window_params = [{transform_indices = @transform_0, window_bounds = array<i64: 1, 256, 4>}, {transform_indices = @transform_1, window_bounds = array<i64: 1, 256, 4>}, {transform_indices = @transform_2, window_bounds = array<i64: 4, 4>}, {transform_indices = @transform_3, window_bounds = array<i64: 4, 4>}, {transform_indices = @transform_4, window_bounds = array<i64: 1, 4>}, {transform_indices = @transform_5, window_bounds = array<i64: 1, 4>}, {transform_indices = @transform_6, window_bounds = array<i64: 1, 256, 4>}]} {
    %c0 = arith.constant 0 : index
    %c0_0 = arith.constant 0 : index
    %c0_1 = arith.constant 0 : index
    %0 = vector.load %arg2[%c0, %c0_0, %c0_1] : memref<1x256x4xf32, #tpu.memory_space<vmem>>, vector<1x256x4xf32>
    %1 = vector.shape_cast %0 : vector<1x256x4xf32> to vector<256x4xf32>
    %2 = arith.truncf %1 : vector<256x4xf32> to vector<256x4xbf16>
    %c0_2 = arith.constant 0 : index
    %c0_3 = arith.constant 0 : index
    %3 = vector.load %arg4[%c0_2, %c0_3] : memref<4x4xbf16, #tpu.memory_space<vmem>>, vector<4x4xbf16>
    %cst = arith.constant dense<0.000000e+00> : vector<256x4xf32>
    %4 = tpu.matmul %2, %3, %cst {dimension_numbers = #tpu.dot_dimension_numbers<[1], [0], [0], [1], [0, 0, 1, 1], [], []>} : vector<256x4xbf16>, vector<4x4xbf16>, vector<256x4xf32> -> vector<256x4xf32>
    %c0_4 = arith.constant 0 : index
    %c0_5 = arith.constant 0 : index
    %5 = vector.load %arg6[%c0_4, %c0_5] : memref<1x4xf32, #tpu.memory_space<vmem>>, vector<1x4xf32>
    %6 = vector.broadcast %5 : vector<1x4xf32> to vector<256x4xf32>
    %7 = arith.addf %4, %6 : vector<256x4xf32>
    %c0_6 = arith.constant 0 : index
    %c0_7 = arith.constant 0 : index
    %8 = vector.load %arg9[%c0_6, %c0_7] : memref<256x4xf32, #tpu.memory_space<vmem>>, vector<256x4xf32>
    tpu.vector_store %arg9[%c0_6, %c0_7], %7 {strides = array<i32>} : memref<256x4xf32, #tpu.memory_space<vmem>>, vector<256x4xf32>,
    %c0_8 = arith.constant 0 : index
    %c0_9 = arith.constant 0 : index
    %9 = vector.load %arg5[%c0_8, %c0_9] : memref<4x4xbf16, #tpu.memory_space<vmem>>, vector<4x4xbf16>
    %cst_10 = arith.constant dense<0.000000e+00> : vector<256x4xf32>
    %10 = tpu.matmul %2, %9, %cst_10 {dimension_numbers = #tpu.dot_dimension_numbers<[1], [0], [0], [1], [0, 0, 1, 1], [], []>} : vector<256x4xbf16>, vector<4x4xbf16>, vector<256x4xf32> -> vector<256x4xf32>
    %c0_11 = arith.constant 0 : index
    %c0_12 = arith.constant 0 : index
    %11 = vector.load %arg7[%c0_11, %c0_12] : memref<1x4xf32, #tpu.memory_space<vmem>>, vector<1x4xf32>
    %12 = vector.broadcast %11 : vector<1x4xf32> to vector<256x4xf32>
    %13 = arith.addf %10, %12 : vector<256x4xf32>
    %c0_13 = arith.constant 0 : index
    %c0_14 = arith.constant 0 : index
    %14 = vector.load %arg10[%c0_13, %c0_14] : memref<256x4xf32, #tpu.memory_space<vmem>>, vector<256x4xf32>
    tpu.vector_store %arg10[%c0_13, %c0_14], %13 {strides = array<i32>} : memref<256x4xf32, #tpu.memory_space<vmem>>, vector<256x4xf32>,
    %c0_15 = arith.constant 0 : index
    %c0_16 = arith.constant 0 : index
    %15 = vector.load %arg10[%c0_15, %c0_16] : memref<256x4xf32, #tpu.memory_space<vmem>>, vector<256x4xf32>
    %16 = vector.shape_cast %15 : vector<256x4xf32> to vector<16x16x4xf32>
    %c0_17 = arith.constant 0 : index
    %c0_18 = arith.constant 0 : index
    %17 = vector.load %arg9[%c0_17, %c0_18] : memref<256x4xf32, #tpu.memory_space<vmem>>, vector<16x4xf32>
    %18 = vector.shape_cast %17 : vector<16x4xf32> to vector<1x16x4xf32>
    %19 = vector.broadcast %18 : vector<1x16x4xf32> to vector<16x16x4xf32>
    %20 = arith.mulf %19, %16 : vector<16x16x4xf32>
    %cst_19 = arith.constant dense<0.000000e+00> : vector<16x4xf32>
    %21 = vector.multi_reduction <add>, %20, %cst_19 [1] : vector<16x16x4xf32> to vector<16x4xf32>
    %cst_20 = arith.constant dense<0xFF800000> : vector<4xf32>
    %22 = vector.multi_reduction <maximumf>, %21, %cst_20 [0] : vector<16x4xf32> to vector<4xf32>
    %23 = vector.shape_cast %22 : vector<4xf32> to vector<1x4xf32>
    %24 = vector.broadcast %23 : vector<1x4xf32> to vector<16x4xf32>
    %25 = arith.subf %21, %24 : vector<16x4xf32>
    %26 = math.exp %25 : vector<16x4xf32>
    %cst_21 = arith.constant dense<0.000000e+00> : vector<4xf32>
    %27 = vector.multi_reduction <add>, %26, %cst_21 [0] : vector<16x4xf32> to vector<4xf32>
    %28 = vector.shape_cast %27 : vector<4xf32> to vector<1x4xf32>
    %29 = vector.broadcast %28 : vector<1x4xf32> to vector<16x4xf32>
    %30 = arith.divf %26, %29 : vector<16x4xf32>
    %31 = vector.shape_cast %30 : vector<16x4xf32> to vector<16x1x4xf32>
    %32 = vector.broadcast %31 : vector<16x1x4xf32> to vector<16x16x4xf32>
    %33 = arith.mulf %32, %16 : vector<16x16x4xf32>
    %cst_22 = arith.constant dense<0.000000e+00> : vector<16x4xf32>
    %34 = vector.multi_reduction <add>, %33, %cst_22 [0] : vector<16x16x4xf32> to vector<16x4xf32>
    %c0_23 = arith.constant 0 : index
    %c0_24 = arith.constant 0 : index
    %c0_25 = arith.constant 0 : index
    %35 = vector.load %arg3[%c0_23, %c0_24, %c0_25] : memref<1x256x4xf32, #tpu.memory_space<vmem>>, vector<1x16x4xf32>
    %36 = vector.shape_cast %35 : vector<1x16x4xf32> to vector<16x4xf32>
    %37 = arith.addf %34, %36 : vector<16x4xf32>
    %c0_26 = arith.constant 0 : index
    %c0_27 = arith.constant 0 : index
    %c0_28 = arith.constant 0 : index
    %38 = vector.load %arg8[%c0_26, %c0_27, %c0_28] : memref<1x256x4xf32, #tpu.memory_space<vmem>>, vector<1x16x4xf32>
    %39 = vector.shape_cast %38 : vector<1x16x4xf32> to vector<16x4xf32>
    %40 = vector.shape_cast %37 : vector<16x4xf32> to vector<1x16x4xf32>
    tpu.vector_store %arg8[%c0_26, %c0_27, %c0_28], %40 {strides = array<i32>} : memref<1x256x4xf32, #tpu.memory_space<vmem>>, vector<1x16x4xf32>,
    %c16 = arith.constant 16 : index
    %c0_29 = arith.constant 0 : index
    %41 = vector.load %arg9[%c16, %c0_29] : memref<256x4xf32, #tpu.memory_space<vmem>>, vector<16x4xf32>
    %42 = vector.shape_cast %41 : vector<16x4xf32> to vector<1x16x4xf32>
    %43 = vector.broadcast %42 : vector<1x16x4xf32> to vector<16x16x4xf32>
    %44 = arith.mulf %43, %16 : vector<16x16x4xf32>
    %cst_30 = arith.constant dense<0.000000e+00> : vector<16x4xf32>
    %45 = vector.multi_reduction <add>, %44, %cst_30 [1] : vector<16x16x4xf32> to vector<16x4xf32>
    %cst_31 = arith.constant dense<0xFF800000> : vector<4xf32>
    %46 = vector.multi_reduction <maximumf>, %45, %cst_31 [0] : vector<16x4xf32> to vector<4xf32>
    %47 = vector.shape_cast %46 : vector<4xf32> to vector<1x4xf32>
    %48 = vector.broadcast %47 : vector<1x4xf32> to vector<16x4xf32>
    %49 = arith.subf %45, %48 : vector<16x4xf32>
    %50 = math.exp %49 : vector<16x4xf32>
    %cst_32 = arith.constant dense<0.000000e+00> : vector<4xf32>
    %51 = vector.multi_reduction <add>, %50, %cst_32 [0] : vector<16x4xf32> to vector<4xf32>
    %52 = vector.shape_cast %51 : vector<4xf32> to vector<1x4xf32>
    %53 = vector.broadcast %52 : vector<1x4xf32> to vector<16x4xf32>
    %54 = arith.divf %50, %53 : vector<16x4xf32>
    %55 = vector.shape_cast %54 : vector<16x4xf32> to vector<16x1x4xf32>
    %56 = vector.broadcast %55 : vector<16x1x4xf32> to vector<16x16x4xf32>
    %57 = arith.mulf %56, %16 : vector<16x16x4xf32>
    %cst_33 = arith.constant dense<0.000000e+00> : vector<16x4xf32>
    %58 = vector.multi_reduction <add>, %57, %cst_33 [0] : vector<16x16x4xf32> to vector<16x4xf32>
    %c0_34 = arith.constant 0 : index
    %c16_35 = arith.constant 16 : index
    %c0_36 = arith.constant 0 : index
    %59 = vector.load %arg3[%c0_34, %c16_35, %c0_36] : memref<1x256x4xf32, #tpu.memory_space<vmem>>, vector<1x16x4xf32>
    %60 = vector.shape_cast %59 : vector<1x16x4xf32> to vector<16x4xf32>
    %61 = arith.addf %58, %60 : vector<16x4xf32>
    %c0_37 = arith.constant 0 : index
    %c16_38 = arith.constant 16 : index
    %c0_39 = arith.constant 0 : index
    %62 = vector.load %arg8[%c0_37, %c16_38, %c0_39] : memref<1x256x4xf32, #tpu.memory_space<vmem>>, vector<1x16x4xf32>
    %63 = vector.shape_cast %62 : vector<1x16x4xf32> to vector<16x4xf32>
    %64 = vector.shape_cast %61 : vector<16x4xf32> to vector<1x16x4xf32>
    tpu.vector_store %arg8[%c0_37, %c16_38, %c0_39], %64 {strides = array<i32>} : memref<1x256x4xf32, #tpu.memory_space<vmem>>, vector<1x16x4xf32>,
    %c32 = arith.constant 32 : index
    %c0_40 = arith.constant 0 : index
    %65 = vector.load %arg9[%c32, %c0_40] : memref<256x4xf32, #tpu.memory_space<vmem>>, vector<16x4xf32>
    %66 = vector.shape_cast %65 : vector<16x4xf32> to vector<1x16x4xf32>
    %67 = vector.broadcast %66 : vector<1x16x4xf32> to vector<16x16x4xf32>
    %68 = arith.mulf %67, %16 : vector<16x16x4xf32>
    %cst_41 = arith.constant dense<0.000000e+00> : vector<16x4xf32>
    %69 = vector.multi_reduction <add>, %68, %cst_41 [1] : vector<16x16x4xf32> to vector<16x4xf32>
    %cst_42 = arith.constant dense<0xFF800000> : vector<4xf32>
    %70 = vector.multi_reduction <maximumf>, %69, %cst_42 [0] : vector<16x4xf32> to vector<4xf32>
    %71 = vector.shape_cast %70 : vector<4xf32> to vector<1x4xf32>
    %72 = vector.broadcast %71 : vector<1x4xf32> to vector<16x4xf32>
    %73 = arith.subf %69, %72 : vector<16x4xf32>
    %74 = math.exp %73 : vector<16x4xf32>
    %cst_43 = arith.constant dense<0.000000e+00> : vector<4xf32>
    %75 = vector.multi_reduction <add>, %74, %cst_43 [0] : vector<16x4xf32> to vector<4xf32>
    %76 = vector.shape_cast %75 : vector<4xf32> to vector<1x4xf32>
    %77 = vector.broadcast %76 : vector<1x4xf32> to vector<16x4xf32>
    %78 = arith.divf %74, %77 : vector<16x4xf32>
    %79 = vector.shape_cast %78 : vector<16x4xf32> to vector<16x1x4xf32>
    %80 = vector.broadcast %79 : vector<16x1x4xf32> to vector<16x16x4xf32>
    %81 = arith.mulf %80, %16 : vector<16x16x4xf32>
    %cst_44 = arith.constant dense<0.000000e+00> : vector<16x4xf32>
    %82 = vector.multi_reduction <add>, %81, %cst_44 [0] : vector<16x16x4xf32> to vector<16x4xf32>
    %c0_45 = arith.constant 0 : index
    %c32_46 = arith.constant 32 : index
    %c0_47 = arith.constant 0 : index
    %83 = vector.load %arg3[%c0_45, %c32_46, %c0_47] : memref<1x256x4xf32, #tpu.memory_space<vmem>>, vector<1x16x4xf32>
    %84 = vector.shape_cast %83 : vector<1x16x4xf32> to vector<16x4xf32>
    %85 = arith.addf %82, %84 : vector<16x4xf32>
    %c0_48 = arith.constant 0 : index
    %c32_49 = arith.constant 32 : index
    %c0_50 = arith.constant 0 : index
    %86 = vector.load %arg8[%c0_48, %c32_49, %c0_50] : memref<1x256x4xf32, #tpu.memory_space<vmem>>, vector<1x16x4xf32>
    %87 = vector.shape_cast %86 : vector<1x16x4xf32> to vector<16x4xf32>
    %88 = vector.shape_cast %85 : vector<16x4xf32> to vector<1x16x4xf32>
    tpu.vector_store %arg8[%c0_48, %c32_49, %c0_50], %88 {strides = array<i32>} : memref<1x256x4xf32, #tpu.memory_space<vmem>>, vector<1x16x4xf32>,
    %c48 = arith.constant 48 : index
    %c0_51 = arith.constant 0 : index
    %89 = vector.load %arg9[%c48, %c0_51] : memref<256x4xf32, #tpu.memory_space<vmem>>, vector<16x4xf32>
    %90 = vector.shape_cast %89 : vector<16x4xf32> to vector<1x16x4xf32>
    %91 = vector.broadcast %90 : vector<1x16x4xf32> to vector<16x16x4xf32>
    %92 = arith.mulf %91, %16 : vector<16x16x4xf32>
    %cst_52 = arith.constant dense<0.000000e+00> : vector<16x4xf32>
    %93 = vector.multi_reduction <add>, %92, %cst_52 [1] : vector<16x16x4xf32> to vector<16x4xf32>
    %cst_53 = arith.constant dense<0xFF800000> : vector<4xf32>
    %94 = vector.multi_reduction <maximumf>, %93, %cst_53 [0] : vector<16x4xf32> to vector<4xf32>
    %95 = vector.shape_cast %94 : vector<4xf32> to vector<1x4xf32>
    %96 = vector.broadcast %95 : vector<1x4xf32> to vector<16x4xf32>
    %97 = arith.subf %93, %96 : vector<16x4xf32>
    %98 = math.exp %97 : vector<16x4xf32>
    %cst_54 = arith.constant dense<0.000000e+00> : vector<4xf32>
    %99 = vector.multi_reduction <add>, %98, %cst_54 [0] : vector<16x4xf32> to vector<4xf32>
    %100 = vector.shape_cast %99 : vector<4xf32> to vector<1x4xf32>
    %101 = vector.broadcast %100 : vector<1x4xf32> to vector<16x4xf32>
    %102 = arith.divf %98, %101 : vector<16x4xf32>
    %103 = vector.shape_cast %102 : vector<16x4xf32> to vector<16x1x4xf32>
    %104 = vector.broadcast %103 : vector<16x1x4xf32> to vector<16x16x4xf32>
    %105 = arith.mulf %104, %16 : vector<16x16x4xf32>
    %cst_55 = arith.constant dense<0.000000e+00> : vector<16x4xf32>
    %106 = vector.multi_reduction <add>, %105, %cst_55 [0] : vector<16x16x4xf32> to vector<16x4xf32>
    %c0_56 = arith.constant 0 : index
    %c48_57 = arith.constant 48 : index
    %c0_58 = arith.constant 0 : index
    %107 = vector.load %arg3[%c0_56, %c48_57, %c0_58] : memref<1x256x4xf32, #tpu.memory_space<vmem>>, vector<1x16x4xf32>
    %108 = vector.shape_cast %107 : vector<1x16x4xf32> to vector<16x4xf32>
    %109 = arith.addf %106, %108 : vector<16x4xf32>
    %c0_59 = arith.constant 0 : index
    %c48_60 = arith.constant 48 : index
    %c0_61 = arith.constant 0 : index
    %110 = vector.load %arg8[%c0_59, %c48_60, %c0_61] : memref<1x256x4xf32, #tpu.memory_space<vmem>>, vector<1x16x4xf32>
    %111 = vector.shape_cast %110 : vector<1x16x4xf32> to vector<16x4xf32>
    %112 = vector.shape_cast %109 : vector<16x4xf32> to vector<1x16x4xf32>
    tpu.vector_store %arg8[%c0_59, %c48_60, %c0_61], %112 {strides = array<i32>} : memref<1x256x4xf32, #tpu.memory_space<vmem>>, vector<1x16x4xf32>,
    %c64 = arith.constant 64 : index
    %c0_62 = arith.constant 0 : index
    %113 = vector.load %arg9[%c64, %c0_62] : memref<256x4xf32, #tpu.memory_space<vmem>>, vector<16x4xf32>
    %114 = vector.shape_cast %113 : vector<16x4xf32> to vector<1x16x4xf32>
    %115 = vector.broadcast %114 : vector<1x16x4xf32> to vector<16x16x4xf32>
    %116 = arith.mulf %115, %16 : vector<16x16x4xf32>
    %cst_63 = arith.constant dense<0.000000e+00> : vector<16x4xf32>
    %117 = vector.multi_reduction <add>, %116, %cst_63 [1] : vector<16x16x4xf32> to vector<16x4xf32>
    %cst_64 = arith.constant dense<0xFF800000> : vector<4xf32>
    %118 = vector.multi_reduction <maximumf>, %117, %cst_64 [0] : vector<16x4xf32> to vector<4xf32>
    %119 = vector.shape_cast %118 : vector<4xf32> to vector<1x4xf32>
    %120 = vector.broadcast %119 : vector<1x4xf32> to vector<16x4xf32>
    %121 = arith.subf %117, %120 : vector<16x4xf32>
    %122 = math.exp %121 : vector<16x4xf32>
    %cst_65 = arith.constant dense<0.000000e+00> : vector<4xf32>
    %123 = vector.multi_reduction <add>, %122, %cst_65 [0] : vector<16x4xf32> to vector<4xf32>
    %124 = vector.shape_cast %123 : vector<4xf32> to vector<1x4xf32>
    %125 = vector.broadcast %124 : vector<1x4xf32> to vector<16x4xf32>
    %126 = arith.divf %122, %125 : vector<16x4xf32>
    %127 = vector.shape_cast %126 : vector<16x4xf32> to vector<16x1x4xf32>
    %128 = vector.broadcast %127 : vector<16x1x4xf32> to vector<16x16x4xf32>
    %129 = arith.mulf %128, %16 : vector<16x16x4xf32>
    %cst_66 = arith.constant dense<0.000000e+00> : vector<16x4xf32>
    %130 = vector.multi_reduction <add>, %129, %cst_66 [0] : vector<16x16x4xf32> to vector<16x4xf32>
    %c0_67 = arith.constant 0 : index
    %c64_68 = arith.constant 64 : index
    %c0_69 = arith.constant 0 : index
    %131 = vector.load %arg3[%c0_67, %c64_68, %c0_69] : memref<1x256x4xf32, #tpu.memory_space<vmem>>, vector<1x16x4xf32>
    %132 = vector.shape_cast %131 : vector<1x16x4xf32> to vector<16x4xf32>
    %133 = arith.addf %130, %132 : vector<16x4xf32>
    %c0_70 = arith.constant 0 : index
    %c64_71 = arith.constant 64 : index
    %c0_72 = arith.constant 0 : index
    %134 = vector.load %arg8[%c0_70, %c64_71, %c0_72] : memref<1x256x4xf32, #tpu.memory_space<vmem>>, vector<1x16x4xf32>
    %135 = vector.shape_cast %134 : vector<1x16x4xf32> to vector<16x4xf32>
    %136 = vector.shape_cast %133 : vector<16x4xf32> to vector<1x16x4xf32>
    tpu.vector_store %arg8[%c0_70, %c64_71, %c0_72], %136 {strides = array<i32>} : memref<1x256x4xf32, #tpu.memory_space<vmem>>, vector<1x16x4xf32>,
    %c80 = arith.constant 80 : index
    %c0_73 = arith.constant 0 : index
    %137 = vector.load %arg9[%c80, %c0_73] : memref<256x4xf32, #tpu.memory_space<vmem>>, vector<16x4xf32>
    %138 = vector.shape_cast %137 : vector<16x4xf32> to vector<1x16x4xf32>
    %139 = vector.broadcast %138 : vector<1x16x4xf32> to vector<16x16x4xf32>
    %140 = arith.mulf %139, %16 : vector<16x16x4xf32>
    %cst_74 = arith.constant dense<0.000000e+00> : vector<16x4xf32>
    %141 = vector.multi_reduction <add>, %140, %cst_74 [1] : vector<16x16x4xf32> to vector<16x4xf32>
    %cst_75 = arith.constant dense<0xFF800000> : vector<4xf32>
    %142 = vector.multi_reduction <maximumf>, %141, %cst_75 [0] : vector<16x4xf32> to vector<4xf32>
    %143 = vector.shape_cast %142 : vector<4xf32> to vector<1x4xf32>
    %144 = vector.broadcast %143 : vector<1x4xf32> to vector<16x4xf32>
    %145 = arith.subf %141, %144 : vector<16x4xf32>
    %146 = math.exp %145 : vector<16x4xf32>
    %cst_76 = arith.constant dense<0.000000e+00> : vector<4xf32>
    %147 = vector.multi_reduction <add>, %146, %cst_76 [0] : vector<16x4xf32> to vector<4xf32>
    %148 = vector.shape_cast %147 : vector<4xf32> to vector<1x4xf32>
    %149 = vector.broadcast %148 : vector<1x4xf32> to vector<16x4xf32>
    %150 = arith.divf %146, %149 : vector<16x4xf32>
    %151 = vector.shape_cast %150 : vector<16x4xf32> to vector<16x1x4xf32>
    %152 = vector.broadcast %151 : vector<16x1x4xf32> to vector<16x16x4xf32>
    %153 = arith.mulf %152, %16 : vector<16x16x4xf32>
    %cst_77 = arith.constant dense<0.000000e+00> : vector<16x4xf32>
    %154 = vector.multi_reduction <add>, %153, %cst_77 [0] : vector<16x16x4xf32> to vector<16x4xf32>
    %c0_78 = arith.constant 0 : index
    %c80_79 = arith.constant 80 : index
    %c0_80 = arith.constant 0 : index
    %155 = vector.load %arg3[%c0_78, %c80_79, %c0_80] : memref<1x256x4xf32, #tpu.memory_space<vmem>>, vector<1x16x4xf32>
    %156 = vector.shape_cast %155 : vector<1x16x4xf32> to vector<16x4xf32>
    %157 = arith.addf %154, %156 : vector<16x4xf32>
    %c0_81 = arith.constant 0 : index
    %c80_82 = arith.constant 80 : index
    %c0_83 = arith.constant 0 : index
    %158 = vector.load %arg8[%c0_81, %c80_82, %c0_83] : memref<1x256x4xf32, #tpu.memory_space<vmem>>, vector<1x16x4xf32>
    %159 = vector.shape_cast %158 : vector<1x16x4xf32> to vector<16x4xf32>
    %160 = vector.shape_cast %157 : vector<16x4xf32> to vector<1x16x4xf32>
    tpu.vector_store %arg8[%c0_81, %c80_82, %c0_83], %160 {strides = array<i32>} : memref<1x256x4xf32, #tpu.memory_space<vmem>>, vector<1x16x4xf32>,
    %c96 = arith.constant 96 : index
    %c0_84 = arith.constant 0 : index
    %161 = vector.load %arg9[%c96, %c0_84] : memref<256x4xf32, #tpu.memory_space<vmem>>, vector<16x4xf32>
    %162 = vector.shape_cast %161 : vector<16x4xf32> to vector<1x16x4xf32>
    %163 = vector.broadcast %162 : vector<1x16x4xf32> to vector<16x16x4xf32>
    %164 = arith.mulf %163, %16 : vector<16x16x4xf32>
    %cst_85 = arith.constant dense<0.000000e+00> : vector<16x4xf32>
    %165 = vector.multi_reduction <add>, %164, %cst_85 [1] : vector<16x16x4xf32> to vector<16x4xf32>
    %cst_86 = arith.constant dense<0xFF800000> : vector<4xf32>
    %166 = vector.multi_reduction <maximumf>, %165, %cst_86 [0] : vector<16x4xf32> to vector<4xf32>
    %167 = vector.shape_cast %166 : vector<4xf32> to vector<1x4xf32>
    %168 = vector.broadcast %167 : vector<1x4xf32> to vector<16x4xf32>
    %169 = arith.subf %165, %168 : vector<16x4xf32>
    %170 = math.exp %169 : vector<16x4xf32>
    %cst_87 = arith.constant dense<0.000000e+00> : vector<4xf32>
    %171 = vector.multi_reduction <add>, %170, %cst_87 [0] : vector<16x4xf32> to vector<4xf32>
    %172 = vector.shape_cast %171 : vector<4xf32> to vector<1x4xf32>
    %173 = vector.broadcast %172 : vector<1x4xf32> to vector<16x4xf32>
    %174 = arith.divf %170, %173 : vector<16x4xf32>
    %175 = vector.shape_cast %174 : vector<16x4xf32> to vector<16x1x4xf32>
    %176 = vector.broadcast %175 : vector<16x1x4xf32> to vector<16x16x4xf32>
    %177 = arith.mulf %176, %16 : vector<16x16x4xf32>
    %cst_88 = arith.constant dense<0.000000e+00> : vector<16x4xf32>
    %178 = vector.multi_reduction <add>, %177, %cst_88 [0] : vector<16x16x4xf32> to vector<16x4xf32>
    %c0_89 = arith.constant 0 : index
    %c96_90 = arith.constant 96 : index
    %c0_91 = arith.constant 0 : index
    %179 = vector.load %arg3[%c0_89, %c96_90, %c0_91] : memref<1x256x4xf32, #tpu.memory_space<vmem>>, vector<1x16x4xf32>
    %180 = vector.shape_cast %179 : vector<1x16x4xf32> to vector<16x4xf32>
    %181 = arith.addf %178, %180 : vector<16x4xf32>
    %c0_92 = arith.constant 0 : index
    %c96_93 = arith.constant 96 : index
    %c0_94 = arith.constant 0 : index
    %182 = vector.load %arg8[%c0_92, %c96_93, %c0_94] : memref<1x256x4xf32, #tpu.memory_space<vmem>>, vector<1x16x4xf32>
    %183 = vector.shape_cast %182 : vector<1x16x4xf32> to vector<16x4xf32>
    %184 = vector.shape_cast %181 : vector<16x4xf32> to vector<1x16x4xf32>
    tpu.vector_store %arg8[%c0_92, %c96_93, %c0_94], %184 {strides = array<i32>} : memref<1x256x4xf32, #tpu.memory_space<vmem>>, vector<1x16x4xf32>,
    %c112 = arith.constant 112 : index
    %c0_95 = arith.constant 0 : index
    %185 = vector.load %arg9[%c112, %c0_95] : memref<256x4xf32, #tpu.memory_space<vmem>>, vector<16x4xf32>
    %186 = vector.shape_cast %185 : vector<16x4xf32> to vector<1x16x4xf32>
    %187 = vector.broadcast %186 : vector<1x16x4xf32> to vector<16x16x4xf32>
    %188 = arith.mulf %187, %16 : vector<16x16x4xf32>
    %cst_96 = arith.constant dense<0.000000e+00> : vector<16x4xf32>
    %189 = vector.multi_reduction <add>, %188, %cst_96 [1] : vector<16x16x4xf32> to vector<16x4xf32>
    %cst_97 = arith.constant dense<0xFF800000> : vector<4xf32>
    %190 = vector.multi_reduction <maximumf>, %189, %cst_97 [0] : vector<16x4xf32> to vector<4xf32>
    %191 = vector.shape_cast %190 : vector<4xf32> to vector<1x4xf32>
    %192 = vector.broadcast %191 : vector<1x4xf32> to vector<16x4xf32>
    %193 = arith.subf %189, %192 : vector<16x4xf32>
    %194 = math.exp %193 : vector<16x4xf32>
    %cst_98 = arith.constant dense<0.000000e+00> : vector<4xf32>
    %195 = vector.multi_reduction <add>, %194, %cst_98 [0] : vector<16x4xf32> to vector<4xf32>
    %196 = vector.shape_cast %195 : vector<4xf32> to vector<1x4xf32>
    %197 = vector.broadcast %196 : vector<1x4xf32> to vector<16x4xf32>
    %198 = arith.divf %194, %197 : vector<16x4xf32>
    %199 = vector.shape_cast %198 : vector<16x4xf32> to vector<16x1x4xf32>
    %200 = vector.broadcast %199 : vector<16x1x4xf32> to vector<16x16x4xf32>
    %201 = arith.mulf %200, %16 : vector<16x16x4xf32>
    %cst_99 = arith.constant dense<0.000000e+00> : vector<16x4xf32>
    %202 = vector.multi_reduction <add>, %201, %cst_99 [0] : vector<16x16x4xf32> to vector<16x4xf32>
    %c0_100 = arith.constant 0 : index
    %c112_101 = arith.constant 112 : index
    %c0_102 = arith.constant 0 : index
    %203 = vector.load %arg3[%c0_100, %c112_101, %c0_102] : memref<1x256x4xf32, #tpu.memory_space<vmem>>, vector<1x16x4xf32>
    %204 = vector.shape_cast %203 : vector<1x16x4xf32> to vector<16x4xf32>
    %205 = arith.addf %202, %204 : vector<16x4xf32>
    %c0_103 = arith.constant 0 : index
    %c112_104 = arith.constant 112 : index
    %c0_105 = arith.constant 0 : index
    %206 = vector.load %arg8[%c0_103, %c112_104, %c0_105] : memref<1x256x4xf32, #tpu.memory_space<vmem>>, vector<1x16x4xf32>
    %207 = vector.shape_cast %206 : vector<1x16x4xf32> to vector<16x4xf32>
    %208 = vector.shape_cast %205 : vector<16x4xf32> to vector<1x16x4xf32>
    tpu.vector_store %arg8[%c0_103, %c112_104, %c0_105], %208 {strides = array<i32>} : memref<1x256x4xf32, #tpu.memory_space<vmem>>, vector<1x16x4xf32>,
    %c128 = arith.constant 128 : index
    %c0_106 = arith.constant 0 : index
    %209 = vector.load %arg9[%c128, %c0_106] : memref<256x4xf32, #tpu.memory_space<vmem>>, vector<16x4xf32>
    %210 = vector.shape_cast %209 : vector<16x4xf32> to vector<1x16x4xf32>
    %211 = vector.broadcast %210 : vector<1x16x4xf32> to vector<16x16x4xf32>
    %212 = arith.mulf %211, %16 : vector<16x16x4xf32>
    %cst_107 = arith.constant dense<0.000000e+00> : vector<16x4xf32>
    %213 = vector.multi_reduction <add>, %212, %cst_107 [1] : vector<16x16x4xf32> to vector<16x4xf32>
    %cst_108 = arith.constant dense<0xFF800000> : vector<4xf32>
    %214 = vector.multi_reduction <maximumf>, %213, %cst_108 [0] : vector<16x4xf32> to vector<4xf32>
    %215 = vector.shape_cast %214 : vector<4xf32> to vector<1x4xf32>
    %216 = vector.broadcast %215 : vector<1x4xf32> to vector<16x4xf32>
    %217 = arith.subf %213, %216 : vector<16x4xf32>
    %218 = math.exp %217 : vector<16x4xf32>
    %cst_109 = arith.constant dense<0.000000e+00> : vector<4xf32>
    %219 = vector.multi_reduction <add>, %218, %cst_109 [0] : vector<16x4xf32> to vector<4xf32>
    %220 = vector.shape_cast %219 : vector<4xf32> to vector<1x4xf32>
    %221 = vector.broadcast %220 : vector<1x4xf32> to vector<16x4xf32>
    %222 = arith.divf %218, %221 : vector<16x4xf32>
    %223 = vector.shape_cast %222 : vector<16x4xf32> to vector<16x1x4xf32>
    %224 = vector.broadcast %223 : vector<16x1x4xf32> to vector<16x16x4xf32>
    %225 = arith.mulf %224, %16 : vector<16x16x4xf32>
    %cst_110 = arith.constant dense<0.000000e+00> : vector<16x4xf32>
    %226 = vector.multi_reduction <add>, %225, %cst_110 [0] : vector<16x16x4xf32> to vector<16x4xf32>
    %c0_111 = arith.constant 0 : index
    %c128_112 = arith.constant 128 : index
    %c0_113 = arith.constant 0 : index
    %227 = vector.load %arg3[%c0_111, %c128_112, %c0_113] : memref<1x256x4xf32, #tpu.memory_space<vmem>>, vector<1x16x4xf32>
    %228 = vector.shape_cast %227 : vector<1x16x4xf32> to vector<16x4xf32>
    %229 = arith.addf %226, %228 : vector<16x4xf32>
    %c0_114 = arith.constant 0 : index
    %c128_115 = arith.constant 128 : index
    %c0_116 = arith.constant 0 : index
    %230 = vector.load %arg8[%c0_114, %c128_115, %c0_116] : memref<1x256x4xf32, #tpu.memory_space<vmem>>, vector<1x16x4xf32>
    %231 = vector.shape_cast %230 : vector<1x16x4xf32> to vector<16x4xf32>
    %232 = vector.shape_cast %229 : vector<16x4xf32> to vector<1x16x4xf32>
    tpu.vector_store %arg8[%c0_114, %c128_115, %c0_116], %232 {strides = array<i32>} : memref<1x256x4xf32, #tpu.memory_space<vmem>>, vector<1x16x4xf32>,
    %c144 = arith.constant 144 : index
    %c0_117 = arith.constant 0 : index
    %233 = vector.load %arg9[%c144, %c0_117] : memref<256x4xf32, #tpu.memory_space<vmem>>, vector<16x4xf32>
    %234 = vector.shape_cast %233 : vector<16x4xf32> to vector<1x16x4xf32>
    %235 = vector.broadcast %234 : vector<1x16x4xf32> to vector<16x16x4xf32>
    %236 = arith.mulf %235, %16 : vector<16x16x4xf32>
    %cst_118 = arith.constant dense<0.000000e+00> : vector<16x4xf32>
    %237 = vector.multi_reduction <add>, %236, %cst_118 [1] : vector<16x16x4xf32> to vector<16x4xf32>
    %cst_119 = arith.constant dense<0xFF800000> : vector<4xf32>
    %238 = vector.multi_reduction <maximumf>, %237, %cst_119 [0] : vector<16x4xf32> to vector<4xf32>
    %239 = vector.shape_cast %238 : vector<4xf32> to vector<1x4xf32>
    %240 = vector.broadcast %239 : vector<1x4xf32> to vector<16x4xf32>
    %241 = arith.subf %237, %240 : vector<16x4xf32>
    %242 = math.exp %241 : vector<16x4xf32>
    %cst_120 = arith.constant dense<0.000000e+00> : vector<4xf32>
    %243 = vector.multi_reduction <add>, %242, %cst_120 [0] : vector<16x4xf32> to vector<4xf32>
    %244 = vector.shape_cast %243 : vector<4xf32> to vector<1x4xf32>
    %245 = vector.broadcast %244 : vector<1x4xf32> to vector<16x4xf32>
    %246 = arith.divf %242, %245 : vector<16x4xf32>
    %247 = vector.shape_cast %246 : vector<16x4xf32> to vector<16x1x4xf32>
    %248 = vector.broadcast %247 : vector<16x1x4xf32> to vector<16x16x4xf32>
    %249 = arith.mulf %248, %16 : vector<16x16x4xf32>
    %cst_121 = arith.constant dense<0.000000e+00> : vector<16x4xf32>
    %250 = vector.multi_reduction <add>, %249, %cst_121 [0] : vector<16x16x4xf32> to vector<16x4xf32>
    %c0_122 = arith.constant 0 : index
    %c144_123 = arith.constant 144 : index
    %c0_124 = arith.constant 0 : index
    %251 = vector.load %arg3[%c0_122, %c144_123, %c0_124] : memref<1x256x4xf32, #tpu.memory_space<vmem>>, vector<1x16x4xf32>
    %252 = vector.shape_cast %251 : vector<1x16x4xf32> to vector<16x4xf32>
    %253 = arith.addf %250, %252 : vector<16x4xf32>
    %c0_125 = arith.constant 0 : index
    %c144_126 = arith.constant 144 : index
    %c0_127 = arith.constant 0 : index
    %254 = vector.load %arg8[%c0_125, %c144_126, %c0_127] : memref<1x256x4xf32, #tpu.memory_space<vmem>>, vector<1x16x4xf32>
    %255 = vector.shape_cast %254 : vector<1x16x4xf32> to vector<16x4xf32>
    %256 = vector.shape_cast %253 : vector<16x4xf32> to vector<1x16x4xf32>
    tpu.vector_store %arg8[%c0_125, %c144_126, %c0_127], %256 {strides = array<i32>} : memref<1x256x4xf32, #tpu.memory_space<vmem>>, vector<1x16x4xf32>,
    %c160 = arith.constant 160 : index
    %c0_128 = arith.constant 0 : index
    %257 = vector.load %arg9[%c160, %c0_128] : memref<256x4xf32, #tpu.memory_space<vmem>>, vector<16x4xf32>
    %258 = vector.shape_cast %257 : vector<16x4xf32> to vector<1x16x4xf32>
    %259 = vector.broadcast %258 : vector<1x16x4xf32> to vector<16x16x4xf32>
    %260 = arith.mulf %259, %16 : vector<16x16x4xf32>
    %cst_129 = arith.constant dense<0.000000e+00> : vector<16x4xf32>
    %261 = vector.multi_reduction <add>, %260, %cst_129 [1] : vector<16x16x4xf32> to vector<16x4xf32>
    %cst_130 = arith.constant dense<0xFF800000> : vector<4xf32>
    %262 = vector.multi_reduction <maximumf>, %261, %cst_130 [0] : vector<16x4xf32> to vector<4xf32>
    %263 = vector.shape_cast %262 : vector<4xf32> to vector<1x4xf32>
    %264 = vector.broadcast %263 : vector<1x4xf32> to vector<16x4xf32>
    %265 = arith.subf %261, %264 : vector<16x4xf32>
    %266 = math.exp %265 : vector<16x4xf32>
    %cst_131 = arith.constant dense<0.000000e+00> : vector<4xf32>
    %267 = vector.multi_reduction <add>, %266, %cst_131 [0] : vector<16x4xf32> to vector<4xf32>
    %268 = vector.shape_cast %267 : vector<4xf32> to vector<1x4xf32>
    %269 = vector.broadcast %268 : vector<1x4xf32> to vector<16x4xf32>
    %270 = arith.divf %266, %269 : vector<16x4xf32>
    %271 = vector.shape_cast %270 : vector<16x4xf32> to vector<16x1x4xf32>
    %272 = vector.broadcast %271 : vector<16x1x4xf32> to vector<16x16x4xf32>
    %273 = arith.mulf %272, %16 : vector<16x16x4xf32>
    %cst_132 = arith.constant dense<0.000000e+00> : vector<16x4xf32>
    %274 = vector.multi_reduction <add>, %273, %cst_132 [0] : vector<16x16x4xf32> to vector<16x4xf32>
    %c0_133 = arith.constant 0 : index
    %c160_134 = arith.constant 160 : index
    %c0_135 = arith.constant 0 : index
    %275 = vector.load %arg3[%c0_133, %c160_134, %c0_135] : memref<1x256x4xf32, #tpu.memory_space<vmem>>, vector<1x16x4xf32>
    %276 = vector.shape_cast %275 : vector<1x16x4xf32> to vector<16x4xf32>
    %277 = arith.addf %274, %276 : vector<16x4xf32>
    %c0_136 = arith.constant 0 : index
    %c160_137 = arith.constant 160 : index
    %c0_138 = arith.constant 0 : index
    %278 = vector.load %arg8[%c0_136, %c160_137, %c0_138] : memref<1x256x4xf32, #tpu.memory_space<vmem>>, vector<1x16x4xf32>
    %279 = vector.shape_cast %278 : vector<1x16x4xf32> to vector<16x4xf32>
    %280 = vector.shape_cast %277 : vector<16x4xf32> to vector<1x16x4xf32>
    tpu.vector_store %arg8[%c0_136, %c160_137, %c0_138], %280 {strides = array<i32>} : memref<1x256x4xf32, #tpu.memory_space<vmem>>, vector<1x16x4xf32>,
    %c176 = arith.constant 176 : index
    %c0_139 = arith.constant 0 : index
    %281 = vector.load %arg9[%c176, %c0_139] : memref<256x4xf32, #tpu.memory_space<vmem>>, vector<16x4xf32>
    %282 = vector.shape_cast %281 : vector<16x4xf32> to vector<1x16x4xf32>
    %283 = vector.broadcast %282 : vector<1x16x4xf32> to vector<16x16x4xf32>
    %284 = arith.mulf %283, %16 : vector<16x16x4xf32>
    %cst_140 = arith.constant dense<0.000000e+00> : vector<16x4xf32>
    %285 = vector.multi_reduction <add>, %284, %cst_140 [1] : vector<16x16x4xf32> to vector<16x4xf32>
    %cst_141 = arith.constant dense<0xFF800000> : vector<4xf32>
    %286 = vector.multi_reduction <maximumf>, %285, %cst_141 [0] : vector<16x4xf32> to vector<4xf32>
    %287 = vector.shape_cast %286 : vector<4xf32> to vector<1x4xf32>
    %288 = vector.broadcast %287 : vector<1x4xf32> to vector<16x4xf32>
    %289 = arith.subf %285, %288 : vector<16x4xf32>
    %290 = math.exp %289 : vector<16x4xf32>
    %cst_142 = arith.constant dense<0.000000e+00> : vector<4xf32>
    %291 = vector.multi_reduction <add>, %290, %cst_142 [0] : vector<16x4xf32> to vector<4xf32>
    %292 = vector.shape_cast %291 : vector<4xf32> to vector<1x4xf32>
    %293 = vector.broadcast %292 : vector<1x4xf32> to vector<16x4xf32>
    %294 = arith.divf %290, %293 : vector<16x4xf32>
    %295 = vector.shape_cast %294 : vector<16x4xf32> to vector<16x1x4xf32>
    %296 = vector.broadcast %295 : vector<16x1x4xf32> to vector<16x16x4xf32>
    %297 = arith.mulf %296, %16 : vector<16x16x4xf32>
    %cst_143 = arith.constant dense<0.000000e+00> : vector<16x4xf32>
    %298 = vector.multi_reduction <add>, %297, %cst_143 [0] : vector<16x16x4xf32> to vector<16x4xf32>
    %c0_144 = arith.constant 0 : index
    %c176_145 = arith.constant 176 : index
    %c0_146 = arith.constant 0 : index
    %299 = vector.load %arg3[%c0_144, %c176_145, %c0_146] : memref<1x256x4xf32, #tpu.memory_space<vmem>>, vector<1x16x4xf32>
    %300 = vector.shape_cast %299 : vector<1x16x4xf32> to vector<16x4xf32>
    %301 = arith.addf %298, %300 : vector<16x4xf32>
    %c0_147 = arith.constant 0 : index
    %c176_148 = arith.constant 176 : index
    %c0_149 = arith.constant 0 : index
    %302 = vector.load %arg8[%c0_147, %c176_148, %c0_149] : memref<1x256x4xf32, #tpu.memory_space<vmem>>, vector<1x16x4xf32>
    %303 = vector.shape_cast %302 : vector<1x16x4xf32> to vector<16x4xf32>
    %304 = vector.shape_cast %301 : vector<16x4xf32> to vector<1x16x4xf32>
    tpu.vector_store %arg8[%c0_147, %c176_148, %c0_149], %304 {strides = array<i32>} : memref<1x256x4xf32, #tpu.memory_space<vmem>>, vector<1x16x4xf32>,
    %c192 = arith.constant 192 : index
    %c0_150 = arith.constant 0 : index
    %305 = vector.load %arg9[%c192, %c0_150] : memref<256x4xf32, #tpu.memory_space<vmem>>, vector<16x4xf32>
    %306 = vector.shape_cast %305 : vector<16x4xf32> to vector<1x16x4xf32>
    %307 = vector.broadcast %306 : vector<1x16x4xf32> to vector<16x16x4xf32>
    %308 = arith.mulf %307, %16 : vector<16x16x4xf32>
    %cst_151 = arith.constant dense<0.000000e+00> : vector<16x4xf32>
    %309 = vector.multi_reduction <add>, %308, %cst_151 [1] : vector<16x16x4xf32> to vector<16x4xf32>
    %cst_152 = arith.constant dense<0xFF800000> : vector<4xf32>
    %310 = vector.multi_reduction <maximumf>, %309, %cst_152 [0] : vector<16x4xf32> to vector<4xf32>
    %311 = vector.shape_cast %310 : vector<4xf32> to vector<1x4xf32>
    %312 = vector.broadcast %311 : vector<1x4xf32> to vector<16x4xf32>
    %313 = arith.subf %309, %312 : vector<16x4xf32>
    %314 = math.exp %313 : vector<16x4xf32>
    %cst_153 = arith.constant dense<0.000000e+00> : vector<4xf32>
    %315 = vector.multi_reduction <add>, %314, %cst_153 [0] : vector<16x4xf32> to vector<4xf32>
    %316 = vector.shape_cast %315 : vector<4xf32> to vector<1x4xf32>
    %317 = vector.broadcast %316 : vector<1x4xf32> to vector<16x4xf32>
    %318 = arith.divf %314, %317 : vector<16x4xf32>
    %319 = vector.shape_cast %318 : vector<16x4xf32> to vector<16x1x4xf32>
    %320 = vector.broadcast %319 : vector<16x1x4xf32> to vector<16x16x4xf32>
    %321 = arith.mulf %320, %16 : vector<16x16x4xf32>
    %cst_154 = arith.constant dense<0.000000e+00> : vector<16x4xf32>
    %322 = vector.multi_reduction <add>, %321, %cst_154 [0] : vector<16x16x4xf32> to vector<16x4xf32>
    %c0_155 = arith.constant 0 : index
    %c192_156 = arith.constant 192 : index
    %c0_157 = arith.constant 0 : index
    %323 = vector.load %arg3[%c0_155, %c192_156, %c0_157] : memref<1x256x4xf32, #tpu.memory_space<vmem>>, vector<1x16x4xf32>
    %324 = vector.shape_cast %323 : vector<1x16x4xf32> to vector<16x4xf32>
    %325 = arith.addf %322, %324 : vector<16x4xf32>
    %c0_158 = arith.constant 0 : index
    %c192_159 = arith.constant 192 : index
    %c0_160 = arith.constant 0 : index
    %326 = vector.load %arg8[%c0_158, %c192_159, %c0_160] : memref<1x256x4xf32, #tpu.memory_space<vmem>>, vector<1x16x4xf32>
    %327 = vector.shape_cast %326 : vector<1x16x4xf32> to vector<16x4xf32>
    %328 = vector.shape_cast %325 : vector<16x4xf32> to vector<1x16x4xf32>
    tpu.vector_store %arg8[%c0_158, %c192_159, %c0_160], %328 {strides = array<i32>} : memref<1x256x4xf32, #tpu.memory_space<vmem>>, vector<1x16x4xf32>,
    %c208 = arith.constant 208 : index
    %c0_161 = arith.constant 0 : index
    %329 = vector.load %arg9[%c208, %c0_161] : memref<256x4xf32, #tpu.memory_space<vmem>>, vector<16x4xf32>
    %330 = vector.shape_cast %329 : vector<16x4xf32> to vector<1x16x4xf32>
    %331 = vector.broadcast %330 : vector<1x16x4xf32> to vector<16x16x4xf32>
    %332 = arith.mulf %331, %16 : vector<16x16x4xf32>
    %cst_162 = arith.constant dense<0.000000e+00> : vector<16x4xf32>
    %333 = vector.multi_reduction <add>, %332, %cst_162 [1] : vector<16x16x4xf32> to vector<16x4xf32>
    %cst_163 = arith.constant dense<0xFF800000> : vector<4xf32>
    %334 = vector.multi_reduction <maximumf>, %333, %cst_163 [0] : vector<16x4xf32> to vector<4xf32>
    %335 = vector.shape_cast %334 : vector<4xf32> to vector<1x4xf32>
    %336 = vector.broadcast %335 : vector<1x4xf32> to vector<16x4xf32>
    %337 = arith.subf %333, %336 : vector<16x4xf32>
    %338 = math.exp %337 : vector<16x4xf32>
    %cst_164 = arith.constant dense<0.000000e+00> : vector<4xf32>
    %339 = vector.multi_reduction <add>, %338, %cst_164 [0] : vector<16x4xf32> to vector<4xf32>
    %340 = vector.shape_cast %339 : vector<4xf32> to vector<1x4xf32>
    %341 = vector.broadcast %340 : vector<1x4xf32> to vector<16x4xf32>
    %342 = arith.divf %338, %341 : vector<16x4xf32>
    %343 = vector.shape_cast %342 : vector<16x4xf32> to vector<16x1x4xf32>
    %344 = vector.broadcast %343 : vector<16x1x4xf32> to vector<16x16x4xf32>
    %345 = arith.mulf %344, %16 : vector<16x16x4xf32>
    %cst_165 = arith.constant dense<0.000000e+00> : vector<16x4xf32>
    %346 = vector.multi_reduction <add>, %345, %cst_165 [0] : vector<16x16x4xf32> to vector<16x4xf32>
    %c0_166 = arith.constant 0 : index
    %c208_167 = arith.constant 208 : index
    %c0_168 = arith.constant 0 : index
    %347 = vector.load %arg3[%c0_166, %c208_167, %c0_168] : memref<1x256x4xf32, #tpu.memory_space<vmem>>, vector<1x16x4xf32>
    %348 = vector.shape_cast %347 : vector<1x16x4xf32> to vector<16x4xf32>
    %349 = arith.addf %346, %348 : vector<16x4xf32>
    %c0_169 = arith.constant 0 : index
    %c208_170 = arith.constant 208 : index
    %c0_171 = arith.constant 0 : index
    %350 = vector.load %arg8[%c0_169, %c208_170, %c0_171] : memref<1x256x4xf32, #tpu.memory_space<vmem>>, vector<1x16x4xf32>
    %351 = vector.shape_cast %350 : vector<1x16x4xf32> to vector<16x4xf32>
    %352 = vector.shape_cast %349 : vector<16x4xf32> to vector<1x16x4xf32>
    tpu.vector_store %arg8[%c0_169, %c208_170, %c0_171], %352 {strides = array<i32>} : memref<1x256x4xf32, #tpu.memory_space<vmem>>, vector<1x16x4xf32>,
    %c224 = arith.constant 224 : index
    %c0_172 = arith.constant 0 : index
    %353 = vector.load %arg9[%c224, %c0_172] : memref<256x4xf32, #tpu.memory_space<vmem>>, vector<16x4xf32>
    %354 = vector.shape_cast %353 : vector<16x4xf32> to vector<1x16x4xf32>
    %355 = vector.broadcast %354 : vector<1x16x4xf32> to vector<16x16x4xf32>
    %356 = arith.mulf %355, %16 : vector<16x16x4xf32>
    %cst_173 = arith.constant dense<0.000000e+00> : vector<16x4xf32>
    %357 = vector.multi_reduction <add>, %356, %cst_173 [1] : vector<16x16x4xf32> to vector<16x4xf32>
    %cst_174 = arith.constant dense<0xFF800000> : vector<4xf32>
    %358 = vector.multi_reduction <maximumf>, %357, %cst_174 [0] : vector<16x4xf32> to vector<4xf32>
    %359 = vector.shape_cast %358 : vector<4xf32> to vector<1x4xf32>
    %360 = vector.broadcast %359 : vector<1x4xf32> to vector<16x4xf32>
    %361 = arith.subf %357, %360 : vector<16x4xf32>
    %362 = math.exp %361 : vector<16x4xf32>
    %cst_175 = arith.constant dense<0.000000e+00> : vector<4xf32>
    %363 = vector.multi_reduction <add>, %362, %cst_175 [0] : vector<16x4xf32> to vector<4xf32>
    %364 = vector.shape_cast %363 : vector<4xf32> to vector<1x4xf32>
    %365 = vector.broadcast %364 : vector<1x4xf32> to vector<16x4xf32>
    %366 = arith.divf %362, %365 : vector<16x4xf32>
    %367 = vector.shape_cast %366 : vector<16x4xf32> to vector<16x1x4xf32>
    %368 = vector.broadcast %367 : vector<16x1x4xf32> to vector<16x16x4xf32>
    %369 = arith.mulf %368, %16 : vector<16x16x4xf32>
    %cst_176 = arith.constant dense<0.000000e+00> : vector<16x4xf32>
    %370 = vector.multi_reduction <add>, %369, %cst_176 [0] : vector<16x16x4xf32> to vector<16x4xf32>
    %c0_177 = arith.constant 0 : index
    %c224_178 = arith.constant 224 : index
    %c0_179 = arith.constant 0 : index
    %371 = vector.load %arg3[%c0_177, %c224_178, %c0_179] : memref<1x256x4xf32, #tpu.memory_space<vmem>>, vector<1x16x4xf32>
    %372 = vector.shape_cast %371 : vector<1x16x4xf32> to vector<16x4xf32>
    %373 = arith.addf %370, %372 : vector<16x4xf32>
    %c0_180 = arith.constant 0 : index
    %c224_181 = arith.constant 224 : index
    %c0_182 = arith.constant 0 : index
    %374 = vector.load %arg8[%c0_180, %c224_181, %c0_182] : memref<1x256x4xf32, #tpu.memory_space<vmem>>, vector<1x16x4xf32>
    %375 = vector.shape_cast %374 : vector<1x16x4xf32> to vector<16x4xf32>
    %376 = vector.shape_cast %373 : vector<16x4xf32> to vector<1x16x4xf32>
    tpu.vector_store %arg8[%c0_180, %c224_181, %c0_182], %376 {strides = array<i32>} : memref<1x256x4xf32, #tpu.memory_space<vmem>>, vector<1x16x4xf32>,
    %c240 = arith.constant 240 : index
    %c0_183 = arith.constant 0 : index
    %377 = vector.load %arg9[%c240, %c0_183] : memref<256x4xf32, #tpu.memory_space<vmem>>, vector<16x4xf32>
    %378 = vector.shape_cast %377 : vector<16x4xf32> to vector<1x16x4xf32>
    %379 = vector.broadcast %378 : vector<1x16x4xf32> to vector<16x16x4xf32>
    %380 = arith.mulf %379, %16 : vector<16x16x4xf32>
    %cst_184 = arith.constant dense<0.000000e+00> : vector<16x4xf32>
    %381 = vector.multi_reduction <add>, %380, %cst_184 [1] : vector<16x16x4xf32> to vector<16x4xf32>
    %cst_185 = arith.constant dense<0xFF800000> : vector<4xf32>
    %382 = vector.multi_reduction <maximumf>, %381, %cst_185 [0] : vector<16x4xf32> to vector<4xf32>
    %383 = vector.shape_cast %382 : vector<4xf32> to vector<1x4xf32>
    %384 = vector.broadcast %383 : vector<1x4xf32> to vector<16x4xf32>
    %385 = arith.subf %381, %384 : vector<16x4xf32>
    %386 = math.exp %385 : vector<16x4xf32>
    %cst_186 = arith.constant dense<0.000000e+00> : vector<4xf32>
    %387 = vector.multi_reduction <add>, %386, %cst_186 [0] : vector<16x4xf32> to vector<4xf32>
    %388 = vector.shape_cast %387 : vector<4xf32> to vector<1x4xf32>
    %389 = vector.broadcast %388 : vector<1x4xf32> to vector<16x4xf32>
    %390 = arith.divf %386, %389 : vector<16x4xf32>
    %391 = vector.shape_cast %390 : vector<16x4xf32> to vector<16x1x4xf32>
    %392 = vector.broadcast %391 : vector<16x1x4xf32> to vector<16x16x4xf32>
    %393 = arith.mulf %392, %16 : vector<16x16x4xf32>
    %cst_187 = arith.constant dense<0.000000e+00> : vector<16x4xf32>
    %394 = vector.multi_reduction <add>, %393, %cst_187 [0] : vector<16x16x4xf32> to vector<16x4xf32>
    %c0_188 = arith.constant 0 : index
    %c240_189 = arith.constant 240 : index
    %c0_190 = arith.constant 0 : index
    %395 = vector.load %arg3[%c0_188, %c240_189, %c0_190] : memref<1x256x4xf32, #tpu.memory_space<vmem>>, vector<1x16x4xf32>
    %396 = vector.shape_cast %395 : vector<1x16x4xf32> to vector<16x4xf32>
    %397 = arith.addf %394, %396 : vector<16x4xf32>
    %c0_191 = arith.constant 0 : index
    %c240_192 = arith.constant 240 : index
    %c0_193 = arith.constant 0 : index
    %398 = vector.load %arg8[%c0_191, %c240_192, %c0_193] : memref<1x256x4xf32, #tpu.memory_space<vmem>>, vector<1x16x4xf32>
    %399 = vector.shape_cast %398 : vector<1x16x4xf32> to vector<16x4xf32>
    %400 = vector.shape_cast %397 : vector<16x4xf32> to vector<1x16x4xf32>
    tpu.vector_store %arg8[%c0_191, %c240_192, %c0_193], %400 {strides = array<i32>} : memref<1x256x4xf32, #tpu.memory_space<vmem>>, vector<1x16x4xf32>,
    return
  }
  func.func @transform_0(%arg0: i32, %arg1: i32) -> (i32, i32, i32) {
    %c0_i32 = arith.constant 0 : i32
    %c0_i32_0 = arith.constant 0 : i32
    %c0_i32_1 = arith.constant 0 : i32
    return %arg1, %c0_i32, %c0_i32_0 : i32, i32, i32
  }
  func.func @transform_1(%arg0: i32, %arg1: i32) -> (i32, i32, i32) {
    %c0_i32 = arith.constant 0 : i32
    %c0_i32_0 = arith.constant 0 : i32
    return %arg1, %c0_i32, %arg0 : i32, i32, i32
  }
  func.func @transform_2(%arg0: i32, %arg1: i32) -> (i32, i32) {
    %c0_i32 = arith.constant 0 : i32
    %c0_i32_0 = arith.constant 0 : i32
    return %c0_i32, %arg0 : i32, i32
  }
  func.func @transform_3(%arg0: i32, %arg1: i32) -> (i32, i32) {
    %c0_i32 = arith.constant 0 : i32
    %c0_i32_0 = arith.constant 0 : i32
    return %c0_i32, %arg0 : i32, i32
  }
  func.func @transform_4(%arg0: i32, %arg1: i32) -> (i32, i32) {
    %c0_i32 = arith.constant 0 : i32
    %c0_i32_0 = arith.constant 0 : i32
    return %c0_i32, %arg0 : i32, i32
  }
  func.func @transform_5(%arg0: i32, %arg1: i32) -> (i32, i32) {
    %c0_i32 = arith.constant 0 : i32
    %c0_i32_0 = arith.constant 0 : i32
    return %c0_i32, %arg0 : i32, i32
  }
  func.func @transform_6(%arg0: i32, %arg1: i32) -> (i32, i32, i32) {
    %c0_i32 = arith.constant 0 : i32
    %c0_i32_0 = arith.constant 0 : i32
    return %arg1, %c0_i32, %arg0 : i32, i32, i32
  }
}

</mosaic_0001>

<llo_original>
// kernel: tpu_custom_call.1
$region0: #{tpu_custom_call.1}
  #allocation0 [shape = 'u32[]', space=smem, size = 0x4, offset = 0x4, fixed_abs, tag = 'smem constant byte address 0x4 - core index']
  #allocation1 [shape = 'u32[144,128]{1,0:T(1,128)}', space=vmem, size = 0x12000, scoped, tag = 'internal scratch']
  #allocation2 [shape = 'f32[256,4]{1,0:T(8,128)}', space=vmem, size = 0x20000, scoped, tag = 'scratch operand']
  #allocation3 [shape = 'f32[256,4]{1,0:T(8,128)}', space=vmem, size = 0x20000, scoped, tag = 'scratch operand']
  %s0 = inlined_call_operand.vmem [shape: f32[2,256,4], index: 0, kind: input, shape index: {}]
  %s1 = inlined_call_operand.vmem [shape: f32[2,256,4], index: 1, kind: input, shape index: {}]
  %s2 = inlined_call_operand.vmem [shape: bf16[4,4], index: 2, kind: input, shape index: {}]
  %s3 = inlined_call_operand.vmem [shape: bf16[4,4], index: 3, kind: input, shape index: {}]
  %s4 = inlined_call_operand.vmem [shape: f32[1,4], index: 4, kind: input, shape index: {}]
  %s5 = inlined_call_operand.vmem [shape: f32[1,4], index: 5, kind: input, shape index: {}]
  %s6 = inlined_call_operand.vmem [shape: f32[2,256,4], index: 6, kind: output, shape index: {}]
  %s7 = sld [smem:[#allocation0]]
  $region57: #{tpu_custom_call.1} parent=0
    _
  %s9 = ssub.s32 1, %s7
  %s10 = scalar_select 0, %s9, %s7
  loop: start=0, step=1, limit=4
  $region2: #{tpu_custom_call.1} parent=0 // loop_pre_header
    _
  $region3: #{tpu_custom_call.1} parent=0 // loop_header
    %s12 = sphi 0, %s16
    %p13 = scmp.ge.s32.totalorder %s12, 4
    %s19 = sphi 0, %s31
    %s20 = sphi 0, %s27
    %s21 = sphi 0, %s19
    %s22 = sphi 0, %s20
    %s23 = sphi 0, %s21
    %s24 = sphi 0, %s22
    %s34 = sphi 0, %s36
    %s37 = sphi 0, %s34
    %s38 = sphi 0, %s37
    %s54 = sphi 0, %s38
    %s62 = sphi 0, %s64
    %s65 = sphi 0, %s62
    %s66 = sphi 0, %s65
    %s82 = sphi 0, %s66
    %s88 = sphi 0, %s90
    %s91 = sphi 0, %s88
    %s92 = sphi 0, %s91
    %s108 = sphi 0, %s92
    %s114 = sphi 0, %s116
    %s117 = sphi 0, %s114
    %s118 = sphi 0, %s117
    %s134 = sphi 0, %s118
    %s140 = sphi 0, %s142
    %s143 = sphi 0, %s140
    %s144 = sphi 0, %s143
    %s160 = sphi 0, %s144
    %s166 = sphi 0, %s168
    %s169 = sphi 0, %s166
    %s170 = sphi 0, %s169
    %s186 = sphi 0, %s170
    %s194 = sphi 0, %s196
    %s197 = sphi 0, %s194
    %s198 = sphi 0, %s197
    %s214 = sphi 0, %s198
  $region4: #{tpu_custom_call.1} parent=0 // loop_header_branch
    %15 = sbr.rel (%p13) target = $region8
  $region5: #{tpu_custom_call.1} parent=0 // loop_body
    %s17 = ssub.s32 %s12, 1
    %s18 = ssub.s32 %s12, 2
    %s25 = sadd.s32 1, %s20
    %p26 = scmp.ge.s32.totalorder %s25, 2
    %s27 = scalar_select %p26, 0, %s25
    %s28 = sadd.s32 1, %s19
    %s29 = scalar_select %p26, %s28, %s19
    %p30 = scmp.ge.s32.totalorder %s29, 1
    %s31 = scalar_select %p30, 0, %s29
    %s32 = ssub.s32 %s20, %s27
    %p33 = scmp.eq.s32.totalorder %s32, 0
    %s35 = sadd.s32 %s34, 1
    %s36 = scalar_select %p33, %s34, %s35
    %p39 = pneg %p33
    %p40 = scmp.eq.s32.totalorder %s12, 1
    %p41 = por %p39, %p40
    %p42 = scmp.ne.s32.totalorder %s34, %s37
    %p43 = scmp.eq.s32.totalorder %s12, 0
    %p44 = por %p42, %p43
    %p45 = scmp.ne.s32.totalorder %s34, %s37
    %p46 = scmp.eq.s32.totalorder %s17, 1
    %p47 = por %p45, %p46
    %p48 = scmp.ne.s32.totalorder %s37, %s38
    %p49 = scmp.eq.s32.totalorder %s17, 0
    %p50 = por %p48, %p49
    %p51 = scmp.ne.s32.totalorder %s37, %s38
    %p52 = scmp.eq.s32.totalorder %s18, 1
    %p53 = por %p51, %p52
    %p55 = scmp.ne.s32.totalorder %s38, %s54
    %p56 = scmp.eq.s32.totalorder %s18, 0
    %p57 = por %p55, %p56
    %s58 = ssub.s32 %s20, %s27
    %s59 = ssub.s32 %s19, %s31
    %s60 = sor.u32 %s58, %s59
    %p61 = scmp.eq.s32.totalorder %s60, 0
    %s63 = sadd.s32 %s62, 1
    %s64 = scalar_select %p61, %s62, %s63
    %p67 = pneg %p61
    %p68 = scmp.eq.s32.totalorder %s12, 1
    %p69 = por %p67, %p68
    %p70 = scmp.ne.s32.totalorder %s62, %s65
    %p71 = scmp.eq.s32.totalorder %s12, 0
    %p72 = por %p70, %p71
    %p73 = scmp.ne.s32.totalorder %s62, %s65
    %p74 = scmp.eq.s32.totalorder %s17, 1
    %p75 = por %p73, %p74
    %p76 = scmp.ne.s32.totalorder %s65, %s66
    %p77 = scmp.eq.s32.totalorder %s17, 0
    %p78 = por %p76, %p77
    %p79 = scmp.ne.s32.totalorder %s65, %s66
    %p80 = scmp.eq.s32.totalorder %s18, 1
    %p81 = por %p79, %p80
    %p83 = scmp.ne.s32.totalorder %s66, %s82
    %p84 = scmp.eq.s32.totalorder %s18, 0
    %p85 = por %p83, %p84
    %s86 = ssub.s32 %s19, %s31
    %p87 = scmp.eq.s32.totalorder %s86, 0
    %s89 = sadd.s32 %s88, 1
    %s90 = scalar_select %p87, %s88, %s89
    %p93 = pneg %p87
    %p94 = scmp.eq.s32.totalorder %s12, 1
    %p95 = por %p93, %p94
    %p96 = scmp.ne.s32.totalorder %s88, %s91
    %p97 = scmp.eq.s32.totalorder %s12, 0
    %p98 = por %p96, %p97
    %p99 = scmp.ne.s32.totalorder %s88, %s91
    %p100 = scmp.eq.s32.totalorder %s17, 1
    %p101 = por %p99, %p100
    %p102 = scmp.ne.s32.totalorder %s91, %s92
    %p103 = scmp.eq.s32.totalorder %s17, 0
    %p104 = por %p102, %p103
    %p105 = scmp.ne.s32.totalorder %s91, %s92
    %p106 = scmp.eq.s32.totalorder %s18, 1
    %p107 = por %p105, %p106
    %p109 = scmp.ne.s32.totalorder %s92, %s108
    %p110 = scmp.eq.s32.totalorder %s18, 0
    %p111 = por %p109, %p110
    %s112 = ssub.s32 %s19, %s31
    %p113 = scmp.eq.s32.totalorder %s112, 0
    %s115 = sadd.s32 %s114, 1
    %s116 = scalar_select %p113, %s114, %s115
    %p119 = pneg %p113
    %p120 = scmp.eq.s32.totalorder %s12, 1
    %p121 = por %p119, %p120
    %p122 = scmp.ne.s32.totalorder %s114, %s117
    %p123 = scmp.eq.s32.totalorder %s12, 0
    %p124 = por %p122, %p123
    %p125 = scmp.ne.s32.totalorder %s114, %s117
    %p126 = scmp.eq.s32.totalorder %s17, 1
    %p127 = por %p125, %p126
    %p128 = scmp.ne.s32.totalorder %s117, %s118
    %p129 = scmp.eq.s32.totalorder %s17, 0
    %p130 = por %p128, %p129
    %p131 = scmp.ne.s32.totalorder %s117, %s118
    %p132 = scmp.eq.s32.totalorder %s18, 1
    %p133 = por %p131, %p132
    %p135 = scmp.ne.s32.totalorder %s118, %s134
    %p136 = scmp.eq.s32.totalorder %s18, 0
    %p137 = por %p135, %p136
    %s138 = ssub.s32 %s19, %s31
    %p139 = scmp.eq.s32.totalorder %s138, 0
    %s141 = sadd.s32 %s140, 1
    %s142 = scalar_select %p139, %s140, %s141
    %p145 = pneg %p139
    %p146 = scmp.eq.s32.totalorder %s12, 1
    %p147 = por %p145, %p146
    %p148 = scmp.ne.s32.totalorder %s140, %s143
    %p149 = scmp.eq.s32.totalorder %s12, 0
    %p150 = por %p148, %p149
    %p151 = scmp.ne.s32.totalorder %s140, %s143
    %p152 = scmp.eq.s32.totalorder %s17, 1
    %p153 = por %p151, %p152
    %p154 = scmp.ne.s32.totalorder %s143, %s144
    %p155 = scmp.eq.s32.totalorder %s17, 0
    %p156 = por %p154, %p155
    %p157 = scmp.ne.s32.totalorder %s143, %s144
    %p158 = scmp.eq.s32.totalorder %s18, 1
    %p159 = por %p157, %p158
    %p161 = scmp.ne.s32.totalorder %s144, %s160
    %p162 = scmp.eq.s32.totalorder %s18, 0
    %p163 = por %p161, %p162
    %s164 = ssub.s32 %s19, %s31
    %p165 = scmp.eq.s32.totalorder %s164, 0
    %s167 = sadd.s32 %s166, 1
    %s168 = scalar_select %p165, %s166, %s167
    %p171 = pneg %p165
    %p172 = scmp.eq.s32.totalorder %s12, 1
    %p173 = por %p171, %p172
    %p174 = scmp.ne.s32.totalorder %s166, %s169
    %p175 = scmp.eq.s32.totalorder %s12, 0
    %p176 = por %p174, %p175
    %p177 = scmp.ne.s32.totalorder %s166, %s169
    %p178 = scmp.eq.s32.totalorder %s17, 1
    %p179 = por %p177, %p178
    %p180 = scmp.ne.s32.totalorder %s169, %s170
    %p181 = scmp.eq.s32.totalorder %s17, 0
    %p182 = por %p180, %p181
    %p183 = scmp.ne.s32.totalorder %s169, %s170
    %p184 = scmp.eq.s32.totalorder %s18, 1
    %p185 = por %p183, %p184
    %p187 = scmp.ne.s32.totalorder %s170, %s186
    %p188 = scmp.eq.s32.totalorder %s18, 0
    %p189 = por %p187, %p188
    %s190 = ssub.s32 %s20, %s27
    %s191 = ssub.s32 %s19, %s31
    %s192 = sor.u32 %s190, %s191
    %p193 = scmp.eq.s32.totalorder %s192, 0
    %s195 = sadd.s32 %s194, 1
    %s196 = scalar_select %p193, %s194, %s195
    %p199 = pneg %p193
    %p200 = scmp.eq.s32.totalorder %s12, 1
    %p201 = por %p199, %p200
    %p202 = scmp.ne.s32.totalorder %s194, %s197
    %p203 = scmp.eq.s32.totalorder %s12, 0
    %p204 = por %p202, %p203
    %p205 = scmp.ne.s32.totalorder %s194, %s197
    %p206 = scmp.eq.s32.totalorder %s17, 1
    %p207 = por %p205, %p206
    %p208 = scmp.ne.s32.totalorder %s197, %s198
    %p209 = scmp.eq.s32.totalorder %s17, 0
    %p210 = por %p208, %p209
    %p211 = scmp.ne.s32.totalorder %s197, %s198
    %p212 = scmp.eq.s32.totalorder %s18, 1
    %p213 = por %p211, %p212
    %p215 = scmp.ne.s32.totalorder %s198, %s214
    %p216 = scmp.eq.s32.totalorder %s18, 0
    %p217 = por %p215, %p216
    %p218 = scmp.le.s32.totalorder 1, %s12
    %p219 = scmp.lt.s32.totalorder %s12, 3
    %p220 = pnand %p218, %p219
    %p221 = pneg %p220
    // Predicated region
    $region9: #{tpu_custom_call.1} parent=5 // pred_check
      _
    $region10: #{tpu_custom_call.1} parent=5 // pred_check_branch
      %223 = sbr.rel (%p220) target = $region12
    $region11: #{tpu_custom_call.1} parent=5 // pred_region
      %s224 = ssub.s32 %s12, 1
      // Predicated region
      $region13: #{tpu_custom_call.1} parent=11 // pred_check
        %p225 = pneg %p104
      $region14: #{tpu_custom_call.1} parent=11 // pred_check_branch
        %227 = sbr.rel (%p225) target = $region16
      $region15: #{tpu_custom_call.1} parent=11 // pred_region
        %p228 = scmp.lt.s32.totalorder %s21, 0
        %s229 = scalar_select %p228, %s21, 0
        %s230 = smul.addr %s229, 2
        %s231 = scalar_lea.vmem %s2, %s230
      $region16: #{tpu_custom_call.1} parent=11 // pred_fallthru
        _
      // Predicated region
      $region17: #{tpu_custom_call.1} parent=11 // pred_check
        %p232 = pneg %p130
      $region18: #{tpu_custom_call.1} parent=11 // pred_check_branch
        %234 = sbr.rel (%p232) target = $region20
      $region19: #{tpu_custom_call.1} parent=11 // pred_region
        %p235 = scmp.lt.s32.totalorder %s21, 0
        %s236 = scalar_select %p235, %s21, 0
        %s237 = smul.addr %s236, 2
        %s238 = scalar_lea.vmem %s3, %s237
      $region20: #{tpu_custom_call.1} parent=11 // pred_fallthru
        _
      // Predicated region
      $region21: #{tpu_custom_call.1} parent=11 // pred_check
        %p239 = pneg %p156
      $region22: #{tpu_custom_call.1} parent=11 // pred_check_branch
        %241 = sbr.rel (%p239) target = $region24
      $region23: #{tpu_custom_call.1} parent=11 // pred_region
        %p242 = scmp.lt.s32.totalorder %s21, 0
        %s243 = scalar_select %p242, %s21, 0
        %s244 = scalar_lea.vmem %s4, %s243
      $region24: #{tpu_custom_call.1} parent=11 // pred_fallthru
        _
      // Predicated region
      $region25: #{tpu_custom_call.1} parent=11 // pred_check
        %p245 = pneg %p182
      $region26: #{tpu_custom_call.1} parent=11 // pred_check_branch
        %247 = sbr.rel (%p245) target = $region28
      $region27: #{tpu_custom_call.1} parent=11 // pred_region
        %p248 = scmp.lt.s32.totalorder %s21, 0
        %s249 = scalar_select %p248, %s21, 0
        %s250 = scalar_lea.vmem %s5, %s249
      $region28: #{tpu_custom_call.1} parent=11 // pred_fallthru
        _
    $region12: #{tpu_custom_call.1} parent=5 // pred_fallthru
      _
    %p251 = scmp.lt.s32.totalorder %s12, 2
    // Predicated region
    $region29: #{tpu_custom_call.1} parent=5 // pred_check
      %p252 = pneg %p251
    $region30: #{tpu_custom_call.1} parent=5 // pred_check_branch
      %254 = sbr.rel (%p252) target = $region32
    $region31: #{tpu_custom_call.1} parent=5 // pred_region
      // Predicated region
      $region33: #{tpu_custom_call.1} parent=31 // pred_check
        %p255 = pneg %p44
      $region34: #{tpu_custom_call.1} parent=31 // pred_check_branch
        %257 = sbr.rel (%p255) target = $region36
      $region35: #{tpu_custom_call.1} parent=31 // pred_region
        %p258 = scmp.lt.s32.totalorder %s20, 1
        %s259 = scalar_select %p258, %s20, 1
        %s260 = smul.addr %s259, 32
        %s261 = smul.addr %s260, 8
        %s262 = scalar_lea.vmem %s0, %s261
      $region36: #{tpu_custom_call.1} parent=31 // pred_fallthru
        _
      // Predicated region
      $region37: #{tpu_custom_call.1} parent=31 // pred_check
        %p263 = pneg %p72
      $region38: #{tpu_custom_call.1} parent=31 // pred_check_branch
        %265 = sbr.rel (%p263) target = $region40
      $region39: #{tpu_custom_call.1} parent=31 // pred_region
        %p266 = scmp.lt.s32.totalorder %s20, 1
        %s267 = scalar_select %p266, %s20, 1
        %p268 = scmp.lt.s32.totalorder %s19, 0
        %s269 = scalar_select %p268, %s19, 0
        %s270 = smul.addr %s267, 32
        %s271 = sadd.s32 %s269, %s270
        %s272 = smul.addr %s271, 8
        %s273 = scalar_lea.vmem %s1, %s272
      $region40: #{tpu_custom_call.1} parent=31 // pred_fallthru
        _
    $region32: #{tpu_custom_call.1} parent=5 // pred_fallthru
      _
    %p274 = scmp.le.s32.totalorder 1, %s12
    %p275 = scmp.lt.s32.totalorder %s12, 3
    %p276 = pnand %p274, %p275
    %p277 = pneg %p276
    // Predicated region
    $region41: #{tpu_custom_call.1} parent=5 // pred_check
      _
    $region42: #{tpu_custom_call.1} parent=5 // pred_check_branch
      %279 = sbr.rel (%p276) target = $region44
    $region43: #{tpu_custom_call.1} parent=5 // pred_region
      %s280 = ssub.s32 %s12, 1
      %p281 = scmp.lt.s32.totalorder %s22, 1
      %s282 = scalar_select %p281, %s22, 1
      %s283 = smul.addr %s282, 32
      %s284 = smul.addr %s283, 8
      %s285 = scalar_lea.vmem %s0, %s284
      %p286 = pneg %p50
      %p287 = pneg %p47
      %p288 = scmp.lt.s32.totalorder %s22, 1
      %s289 = scalar_select %p288, %s22, 1
      %p290 = scmp.lt.s32.totalorder %s21, 0
      %s291 = scalar_select %p290, %s21, 0
      %s292 = smul.addr %s289, 32
      %s293 = sadd.s32 %s291, %s292
      %s294 = smul.addr %s293, 8
      %s295 = scalar_lea.vmem %s1, %s294
      %p296 = pneg %p78
      %p297 = pneg %p75
      %p298 = scmp.lt.s32.totalorder %s21, 0
      %s299 = scalar_select %p298, %s21, 0
      %s300 = smul.addr %s299, 2
      %s301 = scalar_lea.vmem %s2, %s300
      %p302 = pneg %p104
      %p303 = pneg %p101
      %p304 = scmp.lt.s32.totalorder %s21, 0
      %s305 = scalar_select %p304, %s21, 0
      %s306 = smul.addr %s305, 2
      %s307 = scalar_lea.vmem %s3, %s306
      %p308 = pneg %p130
      %p309 = pneg %p127
      %p310 = scmp.lt.s32.totalorder %s21, 0
      %s311 = scalar_select %p310, %s21, 0
      %s312 = scalar_lea.vmem %s4, %s311
      %p313 = pneg %p156
      %p314 = pneg %p153
      %p315 = scmp.lt.s32.totalorder %s21, 0
      %s316 = scalar_select %p315, %s21, 0
      %s317 = scalar_lea.vmem %s5, %s316
      %p318 = pneg %p182
      %p319 = pneg %p179
      %p320 = pneg %p210
      %p321 = pneg %p207
      %p322 = scmp.lt.s32.totalorder %s22, 1
      %s323 = scalar_select %p322, %s22, 1
      %p324 = scmp.lt.s32.totalorder %s21, 0
      %s325 = scalar_select %p324, %s21, 0
      %s326 = smul.addr %s323, 32
      %s327 = sadd.s32 %s325, %s326
      %s328 = smul.addr %s327, 8
      %s329 = scalar_lea.vmem %s6, %s328
      %p330 = scmp.lt.s32.totalorder %s22, 1
      %s331 = scalar_select %p330, %s22, 1
      %s332 = smul.addr %s331, 32
      %s333 = smul.addr %s332, 8
      %s334 = scalar_lea.vmem %s0, %s333
      %p335 = scmp.lt.s32.totalorder %s22, 1
      %s336 = scalar_select %p335, %s22, 1
      %p337 = scmp.lt.s32.totalorder %s21, 0
      %s338 = scalar_select %p337, %s21, 0
      %s339 = smul.addr %s336, 32
      %s340 = sadd.s32 %s338, %s339
      %s341 = smul.addr %s340, 8
      %s342 = scalar_lea.vmem %s1, %s341
      %p343 = scmp.lt.s32.totalorder %s21, 0
      %s344 = scalar_select %p343, %s21, 0
      %s345 = smul.addr %s344, 2
      %s346 = scalar_lea.vmem %s2, %s345
      %p347 = scmp.lt.s32.totalorder %s21, 0
      %s348 = scalar_select %p347, %s21, 0
      %s349 = smul.addr %s348, 2
      %s350 = scalar_lea.vmem %s3, %s349
      %p351 = scmp.lt.s32.totalorder %s21, 0
      %s352 = scalar_select %p351, %s21, 0
      %s353 = scalar_lea.vmem %s4, %s352
      %p354 = scmp.lt.s32.totalorder %s21, 0
      %s355 = scalar_select %p354, %s21, 0
      %s356 = scalar_lea.vmem %s5, %s355
      %p357 = scmp.lt.s32.totalorder %s22, 1
      %s358 = scalar_select %p357, %s22, 1
      %p359 = scmp.lt.s32.totalorder %s21, 0
      %s360 = scalar_select %p359, %s21, 0
      %s361 = smul.addr %s358, 32
      %s362 = sadd.s32 %s360, %s361
      %s363 = smul.addr %s362, 8
      %s364 = scalar_lea.vmem %s6, %s363
      %v366 = vld [vmem:[%s334] sm:$0xff]
      %v367 = vld [vmem:[%s334 + $0x8] sm:$0xff]
      %v368 = vld [vmem:[%s334 + $0x10] sm:$0xff]
      %v369 = vld [vmem:[%s334 + $0x18] sm:$0xff]
      %v370 = vld [vmem:[%s334 + $0x20] sm:$0xff]
      %v371 = vld [vmem:[%s334 + $0x28] sm:$0xff]
      %v372 = vld [vmem:[%s334 + $0x30] sm:$0xff]
      %v373 = vld [vmem:[%s334 + $0x38] sm:$0xff]
      %v374 = vld [vmem:[%s334 + $0x40] sm:$0xff]
      %v375 = vld [vmem:[%s334 + $0x48] sm:$0xff]
      %v376 = vld [vmem:[%s334 + $0x50] sm:$0xff]
      %v377 = vld [vmem:[%s334 + $0x58] sm:$0xff]
      %v378 = vld [vmem:[%s334 + $0x60] sm:$0xff]
      %v379 = vld [vmem:[%s334 + $0x68] sm:$0xff]
      %v380 = vld [vmem:[%s334 + $0x70] sm:$0xff]
      %v381 = vld [vmem:[%s334 + $0x78] sm:$0xff]
      %v382 = vld [vmem:[%s334 + $0x80] sm:$0xff]
      %v383 = vld [vmem:[%s334 + $0x88] sm:$0xff]
      %v384 = vld [vmem:[%s334 + $0x90] sm:$0xff]
      %v385 = vld [vmem:[%s334 + $0x98] sm:$0xff]
      %v386 = vld [vmem:[%s334 + $0xa0] sm:$0xff]
      %v387 = vld [vmem:[%s334 + $0xa8] sm:$0xff]
      %v388 = vld [vmem:[%s334 + $0xb0] sm:$0xff]
      %v389 = vld [vmem:[%s334 + $0xb8] sm:$0xff]
      %v390 = vld [vmem:[%s334 + $0xc0] sm:$0xff]
      %v391 = vld [vmem:[%s334 + $0xc8] sm:$0xff]
      %v392 = vld [vmem:[%s334 + $0xd0] sm:$0xff]
      %v393 = vld [vmem:[%s334 + $0xd8] sm:$0xff]
      %v394 = vld [vmem:[%s334 + $0xe0] sm:$0xff]
      %v395 = vld [vmem:[%s334 + $0xe8] sm:$0xff]
      %v396 = vld [vmem:[%s334 + $0xf0] sm:$0xff]
      %v397 = vld [vmem:[%s334 + $0xf8] sm:$0xff]
      %v398 = vpack.c.bf16 %v367, %v366
      %v399 = vpack.c.bf16 %v369, %v368
      %v400 = vpack.c.bf16 %v371, %v370
      %v401 = vpack.c.bf16 %v373, %v372
      %v402 = vpack.c.bf16 %v375, %v374
      %v403 = vpack.c.bf16 %v377, %v376
      %v404 = vpack.c.bf16 %v379, %v378
      %v405 = vpack.c.bf16 %v381, %v380
      %v406 = vpack.c.bf16 %v383, %v382
      %v407 = vpack.c.bf16 %v385, %v384
      %v408 = vpack.c.bf16 %v387, %v386
      %v409 = vpack.c.bf16 %v389, %v388
      %v410 = vpack.c.bf16 %v391, %v390
      %v411 = vpack.c.bf16 %v393, %v392
      %v412 = vpack.c.bf16 %v395, %v394
      %v413 = vpack.c.bf16 %v397, %v396
      %v414 = vld [vmem:[%s346] sm:$0x3]
      %v415 = vld [vmem:[%s353] sm:$0x1]
      %v417 = vlaneseq
      %v418 = vshrl.u32 %v417, 7
      %v419 = vsub.s32 0, %v418
      %v420 = vrot.slane %v415, %v419
      %vm422 = vcmask 31744
      %v424 = vsel %vm422, %v398, 0
      %v427 = vsel %vm422, %v399, 0
      %v430 = vsel %vm422, %v400, 0
      %v433 = vsel %vm422, %v401, 0
      %v436 = vsel %vm422, %v402, 0
      %v439 = vsel %vm422, %v403, 0
      %v442 = vsel %vm422, %v404, 0
      %v445 = vsel %vm422, %v405, 0
      %v448 = vsel %vm422, %v406, 0
      %v451 = vsel %vm422, %v407, 0
      %v454 = vsel %vm422, %v408, 0
      %v457 = vsel %vm422, %v409, 0
      %v460 = vsel %vm422, %v410, 0
      %v463 = vsel %vm422, %v411, 0
      %v466 = vsel %vm422, %v412, 0
      %v469 = vsel %vm422, %v413, 0
      %vm471 = vcmask 1041408
      %v473 = vsel %vm471, %v414, 0
      %475 = vmatprep.subr.bf16.mxu0 0
      %476 = vmatpush1.bf16.msra.mxu0 %v473
      %477 = vmatprep.subr.bf16.mxu0 0
      %478 = vmatpush1.bf16.msra.mxu0 0
      %479 = vmatprep.subr.bf16.mxu0 0
      %480 = vmatpush1.bf16.msra.mxu0 0
      %481 = vmatprep.subr.bf16.mxu0 0
      %482 = vmatpush1.bf16.msra.mxu0 0
      %483 = vmatprep.subr.bf16.mxu0 0
      %484 = vmatpush1.bf16.msra.mxu0 0
      %485 = vmatprep.subr.bf16.mxu0 0
      %486 = vmatpush1.bf16.msra.mxu0 0
      %487 = vmatprep.subr.bf16.mxu0 0
      %488 = vmatpush1.bf16.msra.mxu0 0
      %489 = vmatprep.subr.bf16.mxu0 0
      %490 = vmatpush1.bf16.msra.mxu0 0
      %491 = vmatprep.subr.bf16.mxu0 0
      %492 = vmatpush1.bf16.msra.mxu0 0
      %493 = vmatprep.subr.bf16.mxu0 0
      %494 = vmatpush1.bf16.msra.mxu0 0
      %495 = vmatprep.subr.bf16.mxu0 0
      %496 = vmatpush1.bf16.msra.mxu0 0
      %497 = vmatprep.subr.bf16.mxu0 0
      %498 = vmatpush1.bf16.msra.mxu0 0
      %499 = vmatprep.subr.bf16.mxu0 0
      %500 = vmatpush1.bf16.msra.mxu0 0
      %501 = vmatprep.subr.bf16.mxu0 0
      %502 = vmatpush1.bf16.msra.mxu0 0
      %503 = vmatprep.subr.bf16.mxu0 0
      %504 = vmatpush1.bf16.msra.mxu0 0
      %505 = vmatprep.subr.bf16.mxu0 0
      %506 = vmatpush1.bf16.msra.mxu0 0
      %507 = vmatprep.mubr.bf16.mxu0 0
      %508 = vmatmul.mubr.bf16.gmra.mrb[0].mxu0 %v424
      %v509 = vpop.f32.mrb[0].mxu0
      %v510 = vadd.f32 %v420, %v509
      %v511 = vpop.f32.mrb[0].mxu0
      %v512 = vpop.f32.mrb[0].mxu0
      %v513 = vadd.f32 %v420, %v512
      %v514 = vpop.f32.mrb[0].mxu0
      %515 = vmatprep.mubr.bf16.mxu0 0
      %516 = vmatmul.mubr.bf16.gmra.mrb[0].mxu0 %v427
      %v517 = vpop.f32.mrb[0].mxu0
      %v518 = vadd.f32 %v420, %v517
      %v519 = vpop.f32.mrb[0].mxu0
      %v520 = vpop.f32.mrb[0].mxu0
      %v521 = vadd.f32 %v420, %v520
      %v522 = vpop.f32.mrb[0].mxu0
      %523 = vmatprep.mubr.bf16.mxu0 0
      %524 = vmatmul.mubr.bf16.gmra.mrb[0].mxu0 %v430
      %v525 = vpop.f32.mrb[0].mxu0
      %v526 = vadd.f32 %v420, %v525
      %v527 = vpop.f32.mrb[0].mxu0
      %v528 = vpop.f32.mrb[0].mxu0
      %v529 = vadd.f32 %v420, %v528
      %v530 = vpop.f32.mrb[0].mxu0
      %531 = vmatprep.mubr.bf16.mxu0 0
      %532 = vmatmul.mubr.bf16.gmra.mrb[0].mxu0 %v433
      %v533 = vpop.f32.mrb[0].mxu0
      %v534 = vadd.f32 %v420, %v533
      %v535 = vpop.f32.mrb[0].mxu0
      %v536 = vpop.f32.mrb[0].mxu0
      %v537 = vadd.f32 %v420, %v536
      %v538 = vpop.f32.mrb[0].mxu0
      %539 = vmatprep.mubr.bf16.mxu0 0
      %540 = vmatmul.mubr.bf16.gmra.mrb[0].mxu0 %v436
      %v541 = vpop.f32.mrb[0].mxu0
      %v542 = vadd.f32 %v420, %v541
      %v543 = vpop.f32.mrb[0].mxu0
      %v544 = vpop.f32.mrb[0].mxu0
      %v545 = vadd.f32 %v420, %v544
      %v546 = vpop.f32.mrb[0].mxu0
      %547 = vmatprep.mubr.bf16.mxu0 0
      %548 = vmatmul.mubr.bf16.gmra.mrb[0].mxu0 %v439
      %v549 = vpop.f32.mrb[0].mxu0
      %v550 = vadd.f32 %v420, %v549
      %v551 = vpop.f32.mrb[0].mxu0
      %v552 = vpop.f32.mrb[0].mxu0
      %v553 = vadd.f32 %v420, %v552
      %v554 = vpop.f32.mrb[0].mxu0
      %555 = vmatprep.mubr.bf16.mxu0 0
      %556 = vmatmul.mubr.bf16.gmra.mrb[0].mxu0 %v442
      %v557 = vpop.f32.mrb[0].mxu0
      %v558 = vadd.f32 %v420, %v557
      %v559 = vpop.f32.mrb[0].mxu0
      %v560 = vpop.f32.mrb[0].mxu0
      %v561 = vadd.f32 %v420, %v560
      %v562 = vpop.f32.mrb[0].mxu0
      %563 = vmatprep.mubr.bf16.mxu0 0
      %564 = vmatmul.mubr.bf16.gmra.mrb[0].mxu0 %v445
      %v565 = vpop.f32.mrb[0].mxu0
      %v566 = vadd.f32 %v420, %v565
      %v567 = vpop.f32.mrb[0].mxu0
      %v568 = vpop.f32.mrb[0].mxu0
      %v569 = vadd.f32 %v420, %v568
      %v570 = vpop.f32.mrb[0].mxu0
      %571 = vmatprep.mubr.bf16.mxu0 0
      %572 = vmatmul.mubr.bf16.gmra.mrb[0].mxu0 %v448
      %v573 = vpop.f32.mrb[0].mxu0
      %v574 = vadd.f32 %v420, %v573
      %v575 = vpop.f32.mrb[0].mxu0
      %v576 = vpop.f32.mrb[0].mxu0
      %v577 = vadd.f32 %v420, %v576
      %v578 = vpop.f32.mrb[0].mxu0
      %579 = vmatprep.mubr.bf16.mxu0 0
      %580 = vmatmul.mubr.bf16.gmra.mrb[0].mxu0 %v451
      %v581 = vpop.f32.mrb[0].mxu0
      %v582 = vadd.f32 %v420, %v581
      %v583 = vpop.f32.mrb[0].mxu0
      %v584 = vpop.f32.mrb[0].mxu0
      %v585 = vadd.f32 %v420, %v584
      %v586 = vpop.f32.mrb[0].mxu0
      %587 = vmatprep.mubr.bf16.mxu0 0
      %588 = vmatmul.mubr.bf16.gmra.mrb[0].mxu0 %v454
      %v589 = vpop.f32.mrb[0].mxu0
      %v590 = vadd.f32 %v420, %v589
      %v591 = vpop.f32.mrb[0].mxu0
      %v592 = vpop.f32.mrb[0].mxu0
      %v593 = vadd.f32 %v420, %v592
      %v594 = vpop.f32.mrb[0].mxu0
      %595 = vmatprep.mubr.bf16.mxu0 0
      %596 = vmatmul.mubr.bf16.gmra.mrb[0].mxu0 %v457
      %v597 = vpop.f32.mrb[0].mxu0
      %v598 = vadd.f32 %v420, %v597
      %v599 = vpop.f32.mrb[0].mxu0
      %v600 = vpop.f32.mrb[0].mxu0
      %v601 = vadd.f32 %v420, %v600
      %v602 = vpop.f32.mrb[0].mxu0
      %603 = vmatprep.mubr.bf16.mxu0 0
      %604 = vmatmul.mubr.bf16.gmra.mrb[0].mxu0 %v460
      %v605 = vpop.f32.mrb[0].mxu0
      %v606 = vadd.f32 %v420, %v605
      %v607 = vpop.f32.mrb[0].mxu0
      %v608 = vpop.f32.mrb[0].mxu0
      %v609 = vadd.f32 %v420, %v608
      %v610 = vpop.f32.mrb[0].mxu0
      %611 = vmatprep.mubr.bf16.mxu0 0
      %612 = vmatmul.mubr.bf16.gmra.mrb[0].mxu0 %v463
      %v613 = vpop.f32.mrb[0].mxu0
      %v614 = vadd.f32 %v420, %v613
      %v615 = vpop.f32.mrb[0].mxu0
      %v616 = vpop.f32.mrb[0].mxu0
      %v617 = vadd.f32 %v420, %v616
      %v618 = vpop.f32.mrb[0].mxu0
      %619 = vmatprep.mubr.bf16.mxu0 0
      %620 = vmatmul.mubr.bf16.gmra.mrb[0].mxu0 %v466
      %v621 = vpop.f32.mrb[0].mxu0
      %v622 = vadd.f32 %v420, %v621
      %v623 = vpop.f32.mrb[0].mxu0
      %v624 = vpop.f32.mrb[0].mxu0
      %v625 = vadd.f32 %v420, %v624
      %v626 = vpop.f32.mrb[0].mxu0
      %627 = vmatprep.mubr.bf16.mxu0 0
      %628 = vmatmul.mubr.bf16.gmra.mrb[0].mxu0 %v469
      %v629 = vpop.f32.mrb[0].mxu0
      %v630 = vadd.f32 %v420, %v629
      %v631 = vpop.f32.mrb[0].mxu0
      %v632 = vpop.f32.mrb[0].mxu0
      %v633 = vadd.f32 %v420, %v632
      %v634 = vpop.f32.mrb[0].mxu0
      %635 = vdwg.mxu0
      %636 = vst.msk [vmem:[#allocation2] sm:$0xff] %vm422, %v510
      %637 = vst.msk [vmem:[#allocation2 + $0x8] sm:$0xff] %vm422, %v513
      %638 = vst.msk [vmem:[#allocation2 + $0x10] sm:$0xff] %vm422, %v518
      %639 = vst.msk [vmem:[#allocation2 + $0x18] sm:$0xff] %vm422, %v521
      %640 = vst.msk [vmem:[#allocation2 + $0x20] sm:$0xff] %vm422, %v526
      %641 = vst.msk [vmem:[#allocation2 + $0x28] sm:$0xff] %vm422, %v529
      %642 = vst.msk [vmem:[#allocation2 + $0x30] sm:$0xff] %vm422, %v534
      %643 = vst.msk [vmem:[#allocation2 + $0x38] sm:$0xff] %vm422, %v537
      %644 = vst.msk [vmem:[#allocation2 + $0x40] sm:$0xff] %vm422, %v542
      %645 = vst.msk [vmem:[#allocation2 + $0x48] sm:$0xff] %vm422, %v545
      %646 = vst.msk [vmem:[#allocation2 + $0x50] sm:$0xff] %vm422, %v550
      %647 = vst.msk [vmem:[#allocation2 + $0x58] sm:$0xff] %vm422, %v553
      %648 = vst.msk [vmem:[#allocation2 + $0x60] sm:$0xff] %vm422, %v558
      %649 = vst.msk [vmem:[#allocation2 + $0x68] sm:$0xff] %vm422, %v561
      %650 = vst.msk [vmem:[#allocation2 + $0x70] sm:$0xff] %vm422, %v566
      %651 = vst.msk [vmem:[#allocation2 + $0x78] sm:$0xff] %vm422, %v569
      %652 = vst.msk [vmem:[#allocation2 + $0x80] sm:$0xff] %vm422, %v574
      %653 = vst.msk [vmem:[#allocation2 + $0x88] sm:$0xff] %vm422, %v577
      %654 = vst.msk [vmem:[#allocation2 + $0x90] sm:$0xff] %vm422, %v582
      %655 = vst.msk [vmem:[#allocation2 + $0x98] sm:$0xff] %vm422, %v585
      %656 = vst.msk [vmem:[#allocation2 + $0xa0] sm:$0xff] %vm422, %v590
      %657 = vst.msk [vmem:[#allocation2 + $0xa8] sm:$0xff] %vm422, %v593
      %658 = vst.msk [vmem:[#allocation2 + $0xb0] sm:$0xff] %vm422, %v598
      %659 = vst.msk [vmem:[#allocation2 + $0xb8] sm:$0xff] %vm422, %v601
      %660 = vst.msk [vmem:[#allocation2 + $0xc0] sm:$0xff] %vm422, %v606
      %661 = vst.msk [vmem:[#allocation2 + $0xc8] sm:$0xff] %vm422, %v609
      %662 = vst.msk [vmem:[#allocation2 + $0xd0] sm:$0xff] %vm422, %v614
      %663 = vst.msk [vmem:[#allocation2 + $0xd8] sm:$0xff] %vm422, %v617
      %664 = vst.msk [vmem:[#allocation2 + $0xe0] sm:$0xff] %vm422, %v622
      %665 = vst.msk [vmem:[#allocation2 + $0xe8] sm:$0xff] %vm422, %v625
      %666 = vst.msk [vmem:[#allocation2 + $0xf0] sm:$0xff] %vm422, %v630
      %667 = vst.msk [vmem:[#allocation2 + $0xf8] sm:$0xff] %vm422, %v633
      %v668 = vld [vmem:[%s350] sm:$0x3]
      %v669 = vld [vmem:[%s356] sm:$0x1]
      %v671 = vlaneseq
      %v672 = vshrl.u32 %v671, 7
      %v673 = vsub.s32 0, %v672
      %v674 = vrot.slane %v669, %v673
      %v677 = vsel %vm471, %v668, 0
      %679 = vmatprep.subr.bf16.mxu0 0
      %680 = vmatpush1.bf16.msra.mxu0 %v677
      %681 = vmatprep.subr.bf16.mxu0 0
      %682 = vmatpush1.bf16.msra.mxu0 0
      %683 = vmatprep.subr.bf16.mxu0 0
      %684 = vmatpush1.bf16.msra.mxu0 0
      %685 = vmatprep.subr.bf16.mxu0 0
      %686 = vmatpush1.bf16.msra.mxu0 0
      %687 = vmatprep.subr.bf16.mxu0 0
      %688 = vmatpush1.bf16.msra.mxu0 0
      %689 = vmatprep.subr.bf16.mxu0 0
      %690 = vmatpush1.bf16.msra.mxu0 0
      %691 = vmatprep.subr.bf16.mxu0 0
      %692 = vmatpush1.bf16.msra.mxu0 0
      %693 = vmatprep.subr.bf16.mxu0 0
      %694 = vmatpush1.bf16.msra.mxu0 0
      %695 = vmatprep.subr.bf16.mxu0 0
      %696 = vmatpush1.bf16.msra.mxu0 0
      %697 = vmatprep.subr.bf16.mxu0 0
      %698 = vmatpush1.bf16.msra.mxu0 0
      %699 = vmatprep.subr.bf16.mxu0 0
      %700 = vmatpush1.bf16.msra.mxu0 0
      %701 = vmatprep.subr.bf16.mxu0 0
      %702 = vmatpush1.bf16.msra.mxu0 0
      %703 = vmatprep.subr.bf16.mxu0 0
      %704 = vmatpush1.bf16.msra.mxu0 0
      %705 = vmatprep.subr.bf16.mxu0 0
      %706 = vmatpush1.bf16.msra.mxu0 0
      %707 = vmatprep.subr.bf16.mxu0 0
      %708 = vmatpush1.bf16.msra.mxu0 0
      %709 = vmatprep.subr.bf16.mxu0 0
      %710 = vmatpush1.bf16.msra.mxu0 0
      %711 = vmatprep.mubr.bf16.mxu0 0
      %712 = vmatmul.mubr.bf16.gmra.mrb[0].mxu0 %v424
      %v713 = vpop.f32.mrb[0].mxu0
      %v714 = vadd.f32 %v674, %v713
      %v715 = vpop.f32.mrb[0].mxu0
      %v716 = vpop.f32.mrb[0].mxu0
      %v717 = vadd.f32 %v674, %v716
      %v718 = vpop.f32.mrb[0].mxu0
      %719 = vmatprep.mubr.bf16.mxu0 0
      %720 = vmatmul.mubr.bf16.gmra.mrb[0].mxu0 %v427
      %v721 = vpop.f32.mrb[0].mxu0
      %v722 = vadd.f32 %v674, %v721
      %v723 = vpop.f32.mrb[0].mxu0
      %v724 = vpop.f32.mrb[0].mxu0
      %v725 = vadd.f32 %v674, %v724
      %v726 = vpop.f32.mrb[0].mxu0
      %727 = vmatprep.mubr.bf16.mxu0 0
      %728 = vmatmul.mubr.bf16.gmra.mrb[0].mxu0 %v430
      %v729 = vpop.f32.mrb[0].mxu0
      %v730 = vadd.f32 %v674, %v729
      %v731 = vpop.f32.mrb[0].mxu0
      %v732 = vpop.f32.mrb[0].mxu0
      %v733 = vadd.f32 %v674, %v732
      %v734 = vpop.f32.mrb[0].mxu0
      %735 = vmatprep.mubr.bf16.mxu0 0
      %736 = vmatmul.mubr.bf16.gmra.mrb[0].mxu0 %v433
      %v737 = vpop.f32.mrb[0].mxu0
      %v738 = vadd.f32 %v674, %v737
      %v739 = vpop.f32.mrb[0].mxu0
      %v740 = vpop.f32.mrb[0].mxu0
      %v741 = vadd.f32 %v674, %v740
      %v742 = vpop.f32.mrb[0].mxu0
      %743 = vmatprep.mubr.bf16.mxu0 0
      %744 = vmatmul.mubr.bf16.gmra.mrb[0].mxu0 %v436
      %v745 = vpop.f32.mrb[0].mxu0
      %v746 = vadd.f32 %v674, %v745
      %v747 = vpop.f32.mrb[0].mxu0
      %v748 = vpop.f32.mrb[0].mxu0
      %v749 = vadd.f32 %v674, %v748
      %v750 = vpop.f32.mrb[0].mxu0
      %751 = vmatprep.mubr.bf16.mxu0 0
      %752 = vmatmul.mubr.bf16.gmra.mrb[0].mxu0 %v439
      %v753 = vpop.f32.mrb[0].mxu0
      %v754 = vadd.f32 %v674, %v753
      %v755 = vpop.f32.mrb[0].mxu0
      %v756 = vpop.f32.mrb[0].mxu0
      %v757 = vadd.f32 %v674, %v756
      %v758 = vpop.f32.mrb[0].mxu0
      %759 = vmatprep.mubr.bf16.mxu0 0
      %760 = vmatmul.mubr.bf16.gmra.mrb[0].mxu0 %v442
      %v761 = vpop.f32.mrb[0].mxu0
      %v762 = vadd.f32 %v674, %v761
      %v763 = vpop.f32.mrb[0].mxu0
      %v764 = vpop.f32.mrb[0].mxu0
      %v765 = vadd.f32 %v674, %v764
      %v766 = vpop.f32.mrb[0].mxu0
      %767 = vmatprep.mubr.bf16.mxu0 0
      %768 = vmatmul.mubr.bf16.gmra.mrb[0].mxu0 %v445
      %v769 = vpop.f32.mrb[0].mxu0
      %v770 = vadd.f32 %v674, %v769
      %v771 = vpop.f32.mrb[0].mxu0
      %v772 = vpop.f32.mrb[0].mxu0
      %v773 = vadd.f32 %v674, %v772
      %v774 = vpop.f32.mrb[0].mxu0
      %775 = vmatprep.mubr.bf16.mxu0 0
      %776 = vmatmul.mubr.bf16.gmra.mrb[0].mxu0 %v448
      %v777 = vpop.f32.mrb[0].mxu0
      %v778 = vadd.f32 %v674, %v777
      %v779 = vpop.f32.mrb[0].mxu0
      %v780 = vpop.f32.mrb[0].mxu0
      %v781 = vadd.f32 %v674, %v780
      %v782 = vpop.f32.mrb[0].mxu0
      %783 = vmatprep.mubr.bf16.mxu0 0
      %784 = vmatmul.mubr.bf16.gmra.mrb[0].mxu0 %v451
      %v785 = vpop.f32.mrb[0].mxu0
      %v786 = vadd.f32 %v674, %v785
      %v787 = vpop.f32.mrb[0].mxu0
      %v788 = vpop.f32.mrb[0].mxu0
      %v789 = vadd.f32 %v674, %v788
      %v790 = vpop.f32.mrb[0].mxu0
      %791 = vmatprep.mubr.bf16.mxu0 0
      %792 = vmatmul.mubr.bf16.gmra.mrb[0].mxu0 %v454
      %v793 = vpop.f32.mrb[0].mxu0
      %v794 = vadd.f32 %v674, %v793
      %v795 = vpop.f32.mrb[0].mxu0
      %v796 = vpop.f32.mrb[0].mxu0
      %v797 = vadd.f32 %v674, %v796
      %v798 = vpop.f32.mrb[0].mxu0
      %799 = vmatprep.mubr.bf16.mxu0 0
      %800 = vmatmul.mubr.bf16.gmra.mrb[0].mxu0 %v457
      %v801 = vpop.f32.mrb[0].mxu0
      %v802 = vadd.f32 %v674, %v801
      %v803 = vpop.f32.mrb[0].mxu0
      %v804 = vpop.f32.mrb[0].mxu0
      %v805 = vadd.f32 %v674, %v804
      %v806 = vpop.f32.mrb[0].mxu0
      %807 = vmatprep.mubr.bf16.mxu0 0
      %808 = vmatmul.mubr.bf16.gmra.mrb[0].mxu0 %v460
      %v809 = vpop.f32.mrb[0].mxu0
      %v810 = vadd.f32 %v674, %v809
      %v811 = vpop.f32.mrb[0].mxu0
      %v812 = vpop.f32.mrb[0].mxu0
      %v813 = vadd.f32 %v674, %v812
      %v814 = vpop.f32.mrb[0].mxu0
      %815 = vmatprep.mubr.bf16.mxu0 0
      %816 = vmatmul.mubr.bf16.gmra.mrb[0].mxu0 %v463
      %v817 = vpop.f32.mrb[0].mxu0
      %v818 = vadd.f32 %v674, %v817
      %v819 = vpop.f32.mrb[0].mxu0
      %v820 = vpop.f32.mrb[0].mxu0
      %v821 = vadd.f32 %v674, %v820
      %v822 = vpop.f32.mrb[0].mxu0
      %823 = vmatprep.mubr.bf16.mxu0 0
      %824 = vmatmul.mubr.bf16.gmra.mrb[0].mxu0 %v466
      %v825 = vpop.f32.mrb[0].mxu0
      %v826 = vadd.f32 %v674, %v825
      %v827 = vpop.f32.mrb[0].mxu0
      %v828 = vpop.f32.mrb[0].mxu0
      %v829 = vadd.f32 %v674, %v828
      %v830 = vpop.f32.mrb[0].mxu0
      %831 = vmatprep.mubr.bf16.mxu0 0
      %832 = vmatmul.mubr.bf16.gmra.mrb[0].mxu0 %v469
      %v833 = vpop.f32.mrb[0].mxu0
      %v834 = vadd.f32 %v674, %v833
      %v835 = vpop.f32.mrb[0].mxu0
      %v836 = vpop.f32.mrb[0].mxu0
      %v837 = vadd.f32 %v674, %v836
      %v838 = vpop.f32.mrb[0].mxu0
      %839 = vdwg.mxu0
      %840 = vst.msk [vmem:[#allocation3] sm:$0xff] %vm422, %v714
      %841 = vst.msk [vmem:[#allocation3 + $0x8] sm:$0xff] %vm422, %v717
      %842 = vst.msk [vmem:[#allocation3 + $0x10] sm:$0xff] %vm422, %v722
      %843 = vst.msk [vmem:[#allocation3 + $0x18] sm:$0xff] %vm422, %v725
      %844 = vst.msk [vmem:[#allocation3 + $0x20] sm:$0xff] %vm422, %v730
      %845 = vst.msk [vmem:[#allocation3 + $0x28] sm:$0xff] %vm422, %v733
      %846 = vst.msk [vmem:[#allocation3 + $0x30] sm:$0xff] %vm422, %v738
      %847 = vst.msk [vmem:[#allocation3 + $0x38] sm:$0xff] %vm422, %v741
      %848 = vst.msk [vmem:[#allocation3 + $0x40] sm:$0xff] %vm422, %v746
      %849 = vst.msk [vmem:[#allocation3 + $0x48] sm:$0xff] %vm422, %v749
      %850 = vst.msk [vmem:[#allocation3 + $0x50] sm:$0xff] %vm422, %v754
      %851 = vst.msk [vmem:[#allocation3 + $0x58] sm:$0xff] %vm422, %v757
      %852 = vst.msk [vmem:[#allocation3 + $0x60] sm:$0xff] %vm422, %v762
      %853 = vst.msk [vmem:[#allocation3 + $0x68] sm:$0xff] %vm422, %v765
      %854 = vst.msk [vmem:[#allocation3 + $0x70] sm:$0xff] %vm422, %v770
      %855 = vst.msk [vmem:[#allocation3 + $0x78] sm:$0xff] %vm422, %v773
      %856 = vst.msk [vmem:[#allocation3 + $0x80] sm:$0xff] %vm422, %v778
      %857 = vst.msk [vmem:[#allocation3 + $0x88] sm:$0xff] %vm422, %v781
      %858 = vst.msk [vmem:[#allocation3 + $0x90] sm:$0xff] %vm422, %v786
      %859 = vst.msk [vmem:[#allocation3 + $0x98] sm:$0xff] %vm422, %v789
      %860 = vst.msk [vmem:[#allocation3 + $0xa0] sm:$0xff] %vm422, %v794
      %861 = vst.msk [vmem:[#allocation3 + $0xa8] sm:$0xff] %vm422, %v797
      %862 = vst.msk [vmem:[#allocation3 + $0xb0] sm:$0xff] %vm422, %v802
      %863 = vst.msk [vmem:[#allocation3 + $0xb8] sm:$0xff] %vm422, %v805
      %864 = vst.msk [vmem:[#allocation3 + $0xc0] sm:$0xff] %vm422, %v810
      %865 = vst.msk [vmem:[#allocation3 + $0xc8] sm:$0xff] %vm422, %v813
      %866 = vst.msk [vmem:[#allocation3 + $0xd0] sm:$0xff] %vm422, %v818
      %867 = vst.msk [vmem:[#allocation3 + $0xd8] sm:$0xff] %vm422, %v821
      %868 = vst.msk [vmem:[#allocation3 + $0xe0] sm:$0xff] %vm422, %v826
      %869 = vst.msk [vmem:[#allocation3 + $0xe8] sm:$0xff] %vm422, %v829
      %870 = vst.msk [vmem:[#allocation3 + $0xf0] sm:$0xff] %vm422, %v834
      %871 = vst.msk [vmem:[#allocation3 + $0xf8] sm:$0xff] %vm422, %v837
      %v872 = vld [vmem:[#allocation3] sm:$0xff]
      %v873 = vld [vmem:[#allocation3 + $0x8] sm:$0xff]
      %v874 = vld [vmem:[#allocation3 + $0x10] sm:$0xff]
      %v875 = vld [vmem:[#allocation3 + $0x18] sm:$0xff]
      %v876 = vld [vmem:[#allocation3 + $0x20] sm:$0xff]
      %v877 = vld [vmem:[#allocation3 + $0x28] sm:$0xff]
      %v878 = vld [vmem:[#allocation3 + $0x30] sm:$0xff]
      %v879 = vld [vmem:[#allocation3 + $0x38] sm:$0xff]
      %v880 = vld [vmem:[#allocation3 + $0x40] sm:$0xff]
      %v881 = vld [vmem:[#allocation3 + $0x48] sm:$0xff]
      %v882 = vld [vmem:[#allocation3 + $0x50] sm:$0xff]
      %v883 = vld [vmem:[#allocation3 + $0x58] sm:$0xff]
      %v884 = vld [vmem:[#allocation3 + $0x60] sm:$0xff]
      %v885 = vld [vmem:[#allocation3 + $0x68] sm:$0xff]
      %v886 = vld [vmem:[#allocation3 + $0x70] sm:$0xff]
      %v887 = vld [vmem:[#allocation3 + $0x78] sm:$0xff]
      %v888 = vld [vmem:[#allocation3 + $0x80] sm:$0xff]
      %v889 = vld [vmem:[#allocation3 + $0x88] sm:$0xff]
      %v890 = vld [vmem:[#allocation3 + $0x90] sm:$0xff]
      %v891 = vld [vmem:[#allocation3 + $0x98] sm:$0xff]
      %v892 = vld [vmem:[#allocation3 + $0xa0] sm:$0xff]
      %v893 = vld [vmem:[#allocation3 + $0xa8] sm:$0xff]
      %v894 = vld [vmem:[#allocation3 + $0xb0] sm:$0xff]
      %v895 = vld [vmem:[#allocation3 + $0xb8] sm:$0xff]
      %v896 = vld [vmem:[#allocation3 + $0xc0] sm:$0xff]
      %v897 = vld [vmem:[#allocation3 + $0xc8] sm:$0xff]
      %v898 = vld [vmem:[#allocation3 + $0xd0] sm:$0xff]
      %v899 = vld [vmem:[#allocation3 + $0xd8] sm:$0xff]
      %v900 = vld [vmem:[#allocation3 + $0xe0] sm:$0xff]
      %v901 = vld [vmem:[#allocation3 + $0xe8] sm:$0xff]
      %v902 = vld [vmem:[#allocation3 + $0xf0] sm:$0xff]
      %v903 = vld [vmem:[#allocation3 + $0xf8] sm:$0xff]
      %v904 = vld [vmem:[#allocation2] sm:$0xff]
      %v905 = vld [vmem:[#allocation2 + $0x8] sm:$0xff]
      %v906 = vmul.f32 %v904, %v872
      %v907 = vmul.f32 %v905, %v873
      %v908 = vmul.f32 %v904, %v874
      %v909 = vmul.f32 %v905, %v875
      %v910 = vmul.f32 %v904, %v876
      %v911 = vmul.f32 %v905, %v877
      %v912 = vmul.f32 %v904, %v878
      %v913 = vmul.f32 %v905, %v879
      %v914 = vmul.f32 %v904, %v880
      %v915 = vmul.f32 %v905, %v881
      %v916 = vmul.f32 %v904, %v882
      %v917 = vmul.f32 %v905, %v883
      %v918 = vmul.f32 %v904, %v884
      %v919 = vmul.f32 %v905, %v885
      %v920 = vmul.f32 %v904, %v886
      %v921 = vmul.f32 %v905, %v887
      %v922 = vmul.f32 %v904, %v888
      %v923 = vmul.f32 %v905, %v889
      %v924 = vmul.f32 %v904, %v890
      %v925 = vmul.f32 %v905, %v891
      %v926 = vmul.f32 %v904, %v892
      %v927 = vmul.f32 %v905, %v893
      %v928 = vmul.f32 %v904, %v894
      %v929 = vmul.f32 %v905, %v895
      %v930 = vmul.f32 %v904, %v896
      %v931 = vmul.f32 %v905, %v897
      %v932 = vmul.f32 %v904, %v898
      %v933 = vmul.f32 %v905, %v899
      %v934 = vmul.f32 %v904, %v900
      %v935 = vmul.f32 %v905, %v901
      %v936 = vmul.f32 %v904, %v902
      %v937 = vmul.f32 %v905, %v903
      %v938 = vsel %vm422, %v906, 0.0
      %v939 = vsel %vm422, %v907, 0.0
      %v940 = vadd.f32 %v938, %v939
      %v941 = vrot.slane %v940, 4
      %v942 = vadd.f32 %v940, %v941
      %v943 = vrot.slane %v942, 2
      %v944 = vadd.f32 %v942, %v943
      %v945 = vrot.slane %v944, 1
      %v946 = vadd.f32 %v944, %v945
      %v947 = vsel %vm422, %v908, 0.0
      %v948 = vsel %vm422, %v909, 0.0
      %v949 = vadd.f32 %v947, %v948
      %v950 = vrot.slane %v949, 4
      %v951 = vadd.f32 %v949, %v950
      %v952 = vrot.slane %v951, 2
      %v953 = vadd.f32 %v951, %v952
      %v954 = vrot.slane %v953, 1
      %v955 = vadd.f32 %v953, %v954
      %v956 = vsel %vm422, %v910, 0.0
      %v957 = vsel %vm422, %v911, 0.0
      %v958 = vadd.f32 %v956, %v957
      %v959 = vrot.slane %v958, 4
      %v960 = vadd.f32 %v958, %v959
      %v961 = vrot.slane %v960, 2
      %v962 = vadd.f32 %v960, %v961
      %v963 = vrot.slane %v962, 1
      %v964 = vadd.f32 %v962, %v963
      %v965 = vsel %vm422, %v912, 0.0
      %v966 = vsel %vm422, %v913, 0.0
      %v967 = vadd.f32 %v965, %v966
      %v968 = vrot.slane %v967, 4
      %v969 = vadd.f32 %v967, %v968
      %v970 = vrot.slane %v969, 2
      %v971 = vadd.f32 %v969, %v970
      %v972 = vrot.slane %v971, 1
      %v973 = vadd.f32 %v971, %v972
      %v974 = vsel %vm422, %v914, 0.0
      %v975 = vsel %vm422, %v915, 0.0
      %v976 = vadd.f32 %v974, %v975
      %v977 = vrot.slane %v976, 4
      %v978 = vadd.f32 %v976, %v977
      %v979 = vrot.slane %v978, 2
      %v980 = vadd.f32 %v978, %v979
      %v981 = vrot.slane %v980, 1
      %v982 = vadd.f32 %v980, %v981
      %v983 = vsel %vm422, %v916, 0.0
      %v984 = vsel %vm422, %v917, 0.0
      %v985 = vadd.f32 %v983, %v984
      %v986 = vrot.slane %v985, 4
      %v987 = vadd.f32 %v985, %v986
      %v988 = vrot.slane %v987, 2
      %v989 = vadd.f32 %v987, %v988
      %v990 = vrot.slane %v989, 1
      %v991 = vadd.f32 %v989, %v990
      %v992 = vsel %vm422, %v918, 0.0
      %v993 = vsel %vm422, %v919, 0.0
      %v994 = vadd.f32 %v992, %v993
      %v995 = vrot.slane %v994, 4
      %v996 = vadd.f32 %v994, %v995
      %v997 = vrot.slane %v996, 2
      %v998 = vadd.f32 %v996, %v997
      %v999 = vrot.slane %v998, 1
      %v1000 = vadd.f32 %v998, %v999
      %v1001 = vsel %vm422, %v920, 0.0
      %v1002 = vsel %vm422, %v921, 0.0
      %v1003 = vadd.f32 %v1001, %v1002
      %v1004 = vrot.slane %v1003, 4
      %v1005 = vadd.f32 %v1003, %v1004
      %v1006 = vrot.slane %v1005, 2
      %v1007 = vadd.f32 %v1005, %v1006
      %v1008 = vrot.slane %v1007, 1
      %v1009 = vadd.f32 %v1007, %v1008
      %v1010 = vsel %vm422, %v922, 0.0
      %v1011 = vsel %vm422, %v923, 0.0
      %v1012 = vadd.f32 %v1010, %v1011
      %v1013 = vrot.slane %v1012, 4
      %v1014 = vadd.f32 %v1012, %v1013
      %v1015 = vrot.slane %v1014, 2
      %v1016 = vadd.f32 %v1014, %v1015
      %v1017 = vrot.slane %v1016, 1
      %v1018 = vadd.f32 %v1016, %v1017
      %v1019 = vsel %vm422, %v924, 0.0
      %v1020 = vsel %vm422, %v925, 0.0
      %v1021 = vadd.f32 %v1019, %v1020
      %v1022 = vrot.slane %v1021, 4
      %v1023 = vadd.f32 %v1021, %v1022
      %v1024 = vrot.slane %v1023, 2
      %v1025 = vadd.f32 %v1023, %v1024
      %v1026 = vrot.slane %v1025, 1
      %v1027 = vadd.f32 %v1025, %v1026
      %v1028 = vsel %vm422, %v926, 0.0
      %v1029 = vsel %vm422, %v927, 0.0
      %v1030 = vadd.f32 %v1028, %v1029
      %v1031 = vrot.slane %v1030, 4
      %v1032 = vadd.f32 %v1030, %v1031
      %v1033 = vrot.slane %v1032, 2
      %v1034 = vadd.f32 %v1032, %v1033
      %v1035 = vrot.slane %v1034, 1
      %v1036 = vadd.f32 %v1034, %v1035
      %v1037 = vsel %vm422, %v928, 0.0
      %v1038 = vsel %vm422, %v929, 0.0
      %v1039 = vadd.f32 %v1037, %v1038
      %v1040 = vrot.slane %v1039, 4
      %v1041 = vadd.f32 %v1039, %v1040
      %v1042 = vrot.slane %v1041, 2
      %v1043 = vadd.f32 %v1041, %v1042
      %v1044 = vrot.slane %v1043, 1
      %v1045 = vadd.f32 %v1043, %v1044
      %v1046 = vsel %vm422, %v930, 0.0
      %v1047 = vsel %vm422, %v931, 0.0
      %v1048 = vadd.f32 %v1046, %v1047
      %v1049 = vrot.slane %v1048, 4
      %v1050 = vadd.f32 %v1048, %v1049
      %v1051 = vrot.slane %v1050, 2
      %v1052 = vadd.f32 %v1050, %v1051
      %v1053 = vrot.slane %v1052, 1
      %v1054 = vadd.f32 %v1052, %v1053
      %v1055 = vsel %vm422, %v932, 0.0
      %v1056 = vsel %vm422, %v933, 0.0
      %v1057 = vadd.f32 %v1055, %v1056
      %v1058 = vrot.slane %v1057, 4
      %v1059 = vadd.f32 %v1057, %v1058
      %v1060 = vrot.slane %v1059, 2
      %v1061 = vadd.f32 %v1059, %v1060
      %v1062 = vrot.slane %v1061, 1
      %v1063 = vadd.f32 %v1061, %v1062
      %v1064 = vsel %vm422, %v934, 0.0
      %v1065 = vsel %vm422, %v935, 0.0
      %v1066 = vadd.f32 %v1064, %v1065
      %v1067 = vrot.slane %v1066, 4
      %v1068 = vadd.f32 %v1066, %v1067
      %v1069 = vrot.slane %v1068, 2
      %v1070 = vadd.f32 %v1068, %v1069
      %v1071 = vrot.slane %v1070, 1
      %v1072 = vadd.f32 %v1070, %v1071
      %v1073 = vsel %vm422, %v936, 0.0
      %v1074 = vsel %vm422, %v937, 0.0
      %v1075 = vadd.f32 %v1073, %v1074
      %v1076 = vrot.slane %v1075, 4
      %v1077 = vadd.f32 %v1075, %v1076
      %v1078 = vrot.slane %v1077, 2
      %v1079 = vadd.f32 %v1077, %v1078
      %v1080 = vrot.slane %v1079, 1
      %v1081 = vadd.f32 %v1079, %v1080
      %v1082 = vsel %vm422, %v946, -inf
      %v1083 = vsel %vm422, %v955, -inf
      %v1084 = vsel %vm422, %v964, -inf
      %v1085 = vsel %vm422, %v973, -inf
      %v1086 = vsel %vm422, %v982, -inf
      %v1087 = vmax.f32 %v1082, %v1086
      %v1088 = vsel %vm422, %v991, -inf
      %v1089 = vmax.f32 %v1083, %v1088
      %v1090 = vsel %vm422, %v1000, -inf
      %v1091 = vmax.f32 %v1084, %v1090
      %v1092 = vsel %vm422, %v1009, -inf
      %v1093 = vmax.f32 %v1085, %v1092
      %v1094 = vsel %vm422, %v1018, -inf
      %v1095 = vmax.f32 %v1087, %v1094
      %v1096 = vsel %vm422, %v1027, -inf
      %v1097 = vmax.f32 %v1089, %v1096
      %v1098 = vsel %vm422, %v1036, -inf
      %v1099 = vmax.f32 %v1091, %v1098
      %v1100 = vsel %vm422, %v1045, -inf
      %v1101 = vmax.f32 %v1093, %v1100
      %v1102 = vsel %vm422, %v1054, -inf
      %v1103 = vmax.f32 %v1095, %v1102
      %v1104 = vsel %vm422, %v1063, -inf
      %v1105 = vmax.f32 %v1097, %v1104
      %v1106 = vsel %vm422, %v1072, -inf
      %v1107 = vmax.f32 %v1099, %v1106
      %v1108 = vsel %vm422, %v1081, -inf
      %v1109 = vmax.f32 %v1101, %v1108
      %v1110 = vmax.f32 %v1103, %v1105
      %v1111 = vmax.f32 %v1107, %v1109
      %v1112 = vmax.f32 %v1110, %v1111
      %v1113 = vsub.f32 %v946, %v1112
      %v1114 = vsub.f32 %v955, %v1112
      %v1115 = vsub.f32 %v964, %v1112
      %v1116 = vsub.f32 %v973, %v1112
      %v1117 = vsub.f32 %v982, %v1112
      %v1118 = vsub.f32 %v991, %v1112
      %v1119 = vsub.f32 %v1000, %v1112
      %v1120 = vsub.f32 %v1009, %v1112
      %v1121 = vsub.f32 %v1018, %v1112
      %v1122 = vsub.f32 %v1027, %v1112
      %v1123 = vsub.f32 %v1036, %v1112
      %v1124 = vsub.f32 %v1045, %v1112
      %v1125 = vsub.f32 %v1054, %v1112
      %v1126 = vsub.f32 %v1063, %v1112
      %v1127 = vsub.f32 %v1072, %v1112
      %v1128 = vsub.f32 %v1081, %v1112
      %v1129 = vmul.f32 %v1113, 1.442695
      %v1130 = vpow.pop %v1129
      %v1131 = vmul.f32 %v1114, 1.442695
      %v1132 = vpow.pop %v1131
      %v1133 = vmul.f32 %v1115, 1.442695
      %v1134 = vpow.pop %v1133
      %v1135 = vmul.f32 %v1116, 1.442695
      %v1136 = vpow.pop %v1135
      %v1137 = vmul.f32 %v1117, 1.442695
      %v1138 = vpow.pop %v1137
      %v1139 = vmul.f32 %v1118, 1.442695
      %v1140 = vpow.pop %v1139
      %v1141 = vmul.f32 %v1119, 1.442695
      %v1142 = vpow.pop %v1141
      %v1143 = vmul.f32 %v1120, 1.442695
      %v1144 = vpow.pop %v1143
      %v1145 = vmul.f32 %v1121, 1.442695
      %v1146 = vpow.pop %v1145
      %v1147 = vmul.f32 %v1122, 1.442695
      %v1148 = vpow.pop %v1147
      %v1149 = vmul.f32 %v1123, 1.442695
      %v1150 = vpow.pop %v1149
      %v1151 = vmul.f32 %v1124, 1.442695
      %v1152 = vpow.pop %v1151
      %v1153 = vmul.f32 %v1125, 1.442695
      %v1154 = vpow.pop %v1153
      %v1155 = vmul.f32 %v1126, 1.442695
      %v1156 = vpow.pop %v1155
      %v1157 = vmul.f32 %v1127, 1.442695
      %v1158 = vpow.pop %v1157
      %v1159 = vmul.f32 %v1128, 1.442695
      %v1160 = vpow.pop %v1159
      %v1177 = vrot.slane %v1132, 7
      %vm1178 = vcmask 1041409
      %v1179 = vsel %vm1178, %v1177, %v1130
      %v1180 = vrot.slane %v1134, 6
      %vm1181 = vcmask 1042434
      %v1182 = vsel %vm1181, %v1180, %v1179
      %v1183 = vrot.slane %v1136, 5
      %vm1184 = vcmask 1043459
      %v1185 = vsel %vm1184, %v1183, %v1182
      %v1186 = vrot.slane %v1138, 4
      %vm1187 = vcmask 1044484
      %v1188 = vsel %vm1187, %v1186, %v1185
      %v1189 = vrot.slane %v1140, 3
      %vm1190 = vcmask 1045509
      %v1191 = vsel %vm1190, %v1189, %v1188
      %v1192 = vrot.slane %v1142, 2
      %vm1193 = vcmask 1046534
      %v1194 = vsel %vm1193, %v1192, %v1191
      %v1195 = vrot.slane %v1144, 1
      %vm1196 = vcmask 1047559
      %v1197 = vsel %vm1196, %v1195, %v1194
      %v1198 = vrot.slane %v1148, 7
      %v1199 = vsel %vm1178, %v1198, %v1146
      %v1200 = vrot.slane %v1150, 6
      %v1201 = vsel %vm1181, %v1200, %v1199
      %v1202 = vrot.slane %v1152, 5
      %v1203 = vsel %vm1184, %v1202, %v1201
      %v1204 = vrot.slane %v1154, 4
      %v1205 = vsel %vm1187, %v1204, %v1203
      %v1206 = vrot.slane %v1156, 3
      %v1207 = vsel %vm1190, %v1206, %v1205
      %v1208 = vrot.slane %v1158, 2
      %v1209 = vsel %vm1193, %v1208, %v1207
      %v1210 = vrot.slane %v1160, 1
      %v1211 = vsel %vm1196, %v1210, %v1209
      %v1214 = vsel %vm422, %v1197, 0.0
      %v1215 = vsel %vm422, %v1211, 0.0
      %v1216 = vadd.f32 %v1214, %v1215
      %v1217 = vrot.slane %v1216, 4
      %v1218 = vadd.f32 %v1216, %v1217
      %v1219 = vrot.slane %v1218, 2
      %v1220 = vadd.f32 %v1218, %v1219
      %v1221 = vrot.slane %v1220, 1
      %v1222 = vadd.f32 %v1220, %v1221
      %v1223 = vlaneseq
      %v1224 = vshrl.u32 %v1223, 7
      %v1225 = vsub.s32 0, %v1224
      %v1226 = vrot.slane %v1222, %v1225
      %v1227 = vrcp.pop %v1226
      %v1228 = vmul.f32 %v1130, %v1227
      %v1229 = vmul.f32 %v1132, %v1227
      %v1230 = vmul.f32 %v1134, %v1227
      %v1231 = vmul.f32 %v1136, %v1227
      %v1232 = vmul.f32 %v1138, %v1227
      %v1233 = vmul.f32 %v1140, %v1227
      %v1234 = vmul.f32 %v1142, %v1227
      %v1235 = vmul.f32 %v1144, %v1227
      %v1236 = vmul.f32 %v1146, %v1227
      %v1237 = vmul.f32 %v1148, %v1227
      %v1238 = vmul.f32 %v1150, %v1227
      %v1239 = vmul.f32 %v1152, %v1227
      %v1240 = vmul.f32 %v1154, %v1227
      %v1241 = vmul.f32 %v1156, %v1227
      %v1242 = vmul.f32 %v1158, %v1227
      %v1243 = vmul.f32 %v1160, %v1227
      %v1244 = vlaneseq
      %v1245 = vshrl.u32 %v1244, 7
      %v1246 = vsub.s32 0, %v1245
      %v1247 = vrot.slane %v1228, %v1246
      %v1248 = vlaneseq
      %v1249 = vshrl.u32 %v1248, 7
      %v1250 = vsub.s32 0, %v1249
      %v1251 = vrot.slane %v1229, %v1250
      %v1252 = vlaneseq
      %v1253 = vshrl.u32 %v1252, 7
      %v1254 = vsub.s32 0, %v1253
      %v1255 = vrot.slane %v1230, %v1254
      %v1256 = vlaneseq
      %v1257 = vshrl.u32 %v1256, 7
      %v1258 = vsub.s32 0, %v1257
      %v1259 = vrot.slane %v1231, %v1258
      %v1260 = vlaneseq
      %v1261 = vshrl.u32 %v1260, 7
      %v1262 = vsub.s32 0, %v1261
      %v1263 = vrot.slane %v1232, %v1262
      %v1264 = vlaneseq
      %v1265 = vshrl.u32 %v1264, 7
      %v1266 = vsub.s32 0, %v1265
      %v1267 = vrot.slane %v1233, %v1266
      %v1268 = vlaneseq
      %v1269 = vshrl.u32 %v1268, 7
      %v1270 = vsub.s32 0, %v1269
      %v1271 = vrot.slane %v1234, %v1270
      %v1272 = vlaneseq
      %v1273 = vshrl.u32 %v1272, 7
      %v1274 = vsub.s32 0, %v1273
      %v1275 = vrot.slane %v1235, %v1274
      %v1276 = vlaneseq
      %v1277 = vshrl.u32 %v1276, 7
      %v1278 = vsub.s32 0, %v1277
      %v1279 = vrot.slane %v1236, %v1278
      %v1280 = vlaneseq
      %v1281 = vshrl.u32 %v1280, 7
      %v1282 = vsub.s32 0, %v1281
      %v1283 = vrot.slane %v1237, %v1282
      %v1284 = vlaneseq
      %v1285 = vshrl.u32 %v1284, 7
      %v1286 = vsub.s32 0, %v1285
      %v1287 = vrot.slane %v1238, %v1286
      %v1288 = vlaneseq
      %v1289 = vshrl.u32 %v1288, 7
      %v1290 = vsub.s32 0, %v1289
      %v1291 = vrot.slane %v1239, %v1290
      %v1292 = vlaneseq
      %v1293 = vshrl.u32 %v1292, 7
      %v1294 = vsub.s32 0, %v1293
      %v1295 = vrot.slane %v1240, %v1294
      %v1296 = vlaneseq
      %v1297 = vshrl.u32 %v1296, 7
      %v1298 = vsub.s32 0, %v1297
      %v1299 = vrot.slane %v1241, %v1298
      %v1300 = vlaneseq
      %v1301 = vshrl.u32 %v1300, 7
      %v1302 = vsub.s32 0, %v1301
      %v1303 = vrot.slane %v1242, %v1302
      %v1304 = vlaneseq
      %v1305 = vshrl.u32 %v1304, 7
      %v1306 = vsub.s32 0, %v1305
      %v1307 = vrot.slane %v1243, %v1306
      %v1308 = vmul.f32 %v1247, %v872
      %v1309 = vmul.f32 %v1247, %v873
      %v1310 = vmul.f32 %v1251, %v874
      %v1311 = vmul.f32 %v1251, %v875
      %v1312 = vmul.f32 %v1255, %v876
      %v1313 = vmul.f32 %v1255, %v877
      %v1314 = vmul.f32 %v1259, %v878
      %v1315 = vmul.f32 %v1259, %v879
      %v1316 = vmul.f32 %v1263, %v880
      %v1317 = vmul.f32 %v1263, %v881
      %v1318 = vmul.f32 %v1267, %v882
      %v1319 = vmul.f32 %v1267, %v883
      %v1320 = vmul.f32 %v1271, %v884
      %v1321 = vmul.f32 %v1271, %v885
      %v1322 = vmul.f32 %v1275, %v886
      %v1323 = vmul.f32 %v1275, %v887
      %v1324 = vmul.f32 %v1279, %v888
      %v1325 = vmul.f32 %v1279, %v889
      %v1326 = vmul.f32 %v1283, %v890
      %v1327 = vmul.f32 %v1283, %v891
      %v1328 = vmul.f32 %v1287, %v892
      %v1329 = vmul.f32 %v1287, %v893
      %v1330 = vmul.f32 %v1291, %v894
      %v1331 = vmul.f32 %v1291, %v895
      %v1332 = vmul.f32 %v1295, %v896
      %v1333 = vmul.f32 %v1295, %v897
      %v1334 = vmul.f32 %v1299, %v898
      %v1335 = vmul.f32 %v1299, %v899
      %v1336 = vmul.f32 %v1303, %v900
      %v1337 = vmul.f32 %v1303, %v901
      %v1338 = vmul.f32 %v1307, %v902
      %v1339 = vmul.f32 %v1307, %v903
      %v1340 = vsel %vm422, %v1308, 0.0
      %v1341 = vsel %vm422, %v1310, 0.0
      %v1342 = vadd.f32 %v1340, %v1341
      %v1343 = vsel %vm422, %v1312, 0.0
      %v1344 = vadd.f32 %v1342, %v1343
      %v1345 = vsel %vm422, %v1314, 0.0
      %v1346 = vadd.f32 %v1344, %v1345
      %v1347 = vsel %vm422, %v1316, 0.0
      %v1348 = vadd.f32 %v1346, %v1347
      %v1349 = vsel %vm422, %v1318, 0.0
      %v1350 = vadd.f32 %v1348, %v1349
      %v1351 = vsel %vm422, %v1320, 0.0
      %v1352 = vadd.f32 %v1350, %v1351
      %v1353 = vsel %vm422, %v1322, 0.0
      %v1354 = vadd.f32 %v1352, %v1353
      %v1355 = vsel %vm422, %v1324, 0.0
      %v1356 = vadd.f32 %v1354, %v1355
      %v1357 = vsel %vm422, %v1326, 0.0
      %v1358 = vadd.f32 %v1356, %v1357
      %v1359 = vsel %vm422, %v1328, 0.0
      %v1360 = vadd.f32 %v1358, %v1359
      %v1361 = vsel %vm422, %v1330, 0.0
      %v1362 = vadd.f32 %v1360, %v1361
      %v1363 = vsel %vm422, %v1332, 0.0
      %v1364 = vadd.f32 %v1362, %v1363
      %v1365 = vsel %vm422, %v1334, 0.0
      %v1366 = vadd.f32 %v1364, %v1365
      %v1367 = vsel %vm422, %v1336, 0.0
      %v1368 = vadd.f32 %v1366, %v1367
      %v1369 = vsel %vm422, %v1338, 0.0
      %v1370 = vadd.f32 %v1368, %v1369
      %v1371 = vsel %vm422, %v1309, 0.0
      %v1372 = vsel %vm422, %v1311, 0.0
      %v1373 = vadd.f32 %v1371, %v1372
      %v1374 = vsel %vm422, %v1313, 0.0
      %v1375 = vadd.f32 %v1373, %v1374
      %v1376 = vsel %vm422, %v1315, 0.0
      %v1377 = vadd.f32 %v1375, %v1376
      %v1378 = vsel %vm422, %v1317, 0.0
      %v1379 = vadd.f32 %v1377, %v1378
      %v1380 = vsel %vm422, %v1319, 0.0
      %v1381 = vadd.f32 %v1379, %v1380
      %v1382 = vsel %vm422, %v1321, 0.0
      %v1383 = vadd.f32 %v1381, %v1382
      %v1384 = vsel %vm422, %v1323, 0.0
      %v1385 = vadd.f32 %v1383, %v1384
      %v1386 = vsel %vm422, %v1325, 0.0
      %v1387 = vadd.f32 %v1385, %v1386
      %v1388 = vsel %vm422, %v1327, 0.0
      %v1389 = vadd.f32 %v1387, %v1388
      %v1390 = vsel %vm422, %v1329, 0.0
      %v1391 = vadd.f32 %v1389, %v1390
      %v1392 = vsel %vm422, %v1331, 0.0
      %v1393 = vadd.f32 %v1391, %v1392
      %v1394 = vsel %vm422, %v1333, 0.0
      %v1395 = vadd.f32 %v1393, %v1394
      %v1396 = vsel %vm422, %v1335, 0.0
      %v1397 = vadd.f32 %v1395, %v1396
      %v1398 = vsel %vm422, %v1337, 0.0
      %v1399 = vadd.f32 %v1397, %v1398
      %v1400 = vsel %vm422, %v1339, 0.0
      %v1401 = vadd.f32 %v1399, %v1400
      %v1402 = vld [vmem:[%s342] sm:$0xff]
      %v1403 = vld [vmem:[%s342 + $0x8] sm:$0xff]
      %v1404 = vadd.f32 %v1370, %v1402
      %v1405 = vadd.f32 %v1401, %v1403
      %1406 = vst.msk [vmem:[%s364] sm:$0xff] %vm422, %v1404
      %1407 = vst.msk [vmem:[%s364 + $0x8] sm:$0xff] %vm422, %v1405
      %v1408 = vld [vmem:[#allocation2 + $0x10] sm:$0xff]
      %v1409 = vld [vmem:[#allocation2 + $0x18] sm:$0xff]
      %v1410 = vmul.f32 %v1408, %v872
      %v1411 = vmul.f32 %v1409, %v873
      %v1412 = vmul.f32 %v1408, %v874
      %v1413 = vmul.f32 %v1409, %v875
      %v1414 = vmul.f32 %v1408, %v876
      %v1415 = vmul.f32 %v1409, %v877
      %v1416 = vmul.f32 %v1408, %v878
      %v1417 = vmul.f32 %v1409, %v879
      %v1418 = vmul.f32 %v1408, %v880
      %v1419 = vmul.f32 %v1409, %v881
      %v1420 = vmul.f32 %v1408, %v882
      %v1421 = vmul.f32 %v1409, %v883
      %v1422 = vmul.f32 %v1408, %v884
      %v1423 = vmul.f32 %v1409, %v885
      %v1424 = vmul.f32 %v1408, %v886
      %v1425 = vmul.f32 %v1409, %v887
      %v1426 = vmul.f32 %v1408, %v888
      %v1427 = vmul.f32 %v1409, %v889
      %v1428 = vmul.f32 %v1408, %v890
      %v1429 = vmul.f32 %v1409, %v891
      %v1430 = vmul.f32 %v1408, %v892
      %v1431 = vmul.f32 %v1409, %v893
      %v1432 = vmul.f32 %v1408, %v894
      %v1433 = vmul.f32 %v1409, %v895
      %v1434 = vmul.f32 %v1408, %v896
      %v1435 = vmul.f32 %v1409, %v897
      %v1436 = vmul.f32 %v1408, %v898
      %v1437 = vmul.f32 %v1409, %v899
      %v1438 = vmul.f32 %v1408, %v900
      %v1439 = vmul.f32 %v1409, %v901
      %v1440 = vmul.f32 %v1408, %v902
      %v1441 = vmul.f32 %v1409, %v903
      %v1442 = vsel %vm422, %v1410, 0.0
      %v1443 = vsel %vm422, %v1411, 0.0
      %v1444 = vadd.f32 %v1442, %v1443
      %v1445 = vrot.slane %v1444, 4
      %v1446 = vadd.f32 %v1444, %v1445
      %v1447 = vrot.slane %v1446, 2
      %v1448 = vadd.f32 %v1446, %v1447
      %v1449 = vrot.slane %v1448, 1
      %v1450 = vadd.f32 %v1448, %v1449
      %v1451 = vsel %vm422, %v1412, 0.0
      %v1452 = vsel %vm422, %v1413, 0.0
      %v1453 = vadd.f32 %v1451, %v1452
      %v1454 = vrot.slane %v1453, 4
      %v1455 = vadd.f32 %v1453, %v1454
      %v1456 = vrot.slane %v1455, 2
      %v1457 = vadd.f32 %v1455, %v1456
      %v1458 = vrot.slane %v1457, 1
      %v1459 = vadd.f32 %v1457, %v1458
      %v1460 = vsel %vm422, %v1414, 0.0
      %v1461 = vsel %vm422, %v1415, 0.0
      %v1462 = vadd.f32 %v1460, %v1461
      %v1463 = vrot.slane %v1462, 4
      %v1464 = vadd.f32 %v1462, %v1463
      %v1465 = vrot.slane %v1464, 2
      %v1466 = vadd.f32 %v1464, %v1465
      %v1467 = vrot.slane %v1466, 1
      %v1468 = vadd.f32 %v1466, %v1467
      %v1469 = vsel %vm422, %v1416, 0.0
      %v1470 = vsel %vm422, %v1417, 0.0
      %v1471 = vadd.f32 %v1469, %v1470
      %v1472 = vrot.slane %v1471, 4
      %v1473 = vadd.f32 %v1471, %v1472
      %v1474 = vrot.slane %v1473, 2
      %v1475 = vadd.f32 %v1473, %v1474
      %v1476 = vrot.slane %v1475, 1
      %v1477 = vadd.f32 %v1475, %v1476
      %v1478 = vsel %vm422, %v1418, 0.0
      %v1479 = vsel %vm422, %v1419, 0.0
      %v1480 = vadd.f32 %v1478, %v1479
      %v1481 = vrot.slane %v1480, 4
      %v1482 = vadd.f32 %v1480, %v1481
      %v1483 = vrot.slane %v1482, 2
      %v1484 = vadd.f32 %v1482, %v1483
      %v1485 = vrot.slane %v1484, 1
      %v1486 = vadd.f32 %v1484, %v1485
      %v1487 = vsel %vm422, %v1420, 0.0
      %v1488 = vsel %vm422, %v1421, 0.0
      %v1489 = vadd.f32 %v1487, %v1488
      %v1490 = vrot.slane %v1489, 4
      %v1491 = vadd.f32 %v1489, %v1490
      %v1492 = vrot.slane %v1491, 2
      %v1493 = vadd.f32 %v1491, %v1492
      %v1494 = vrot.slane %v1493, 1
      %v1495 = vadd.f32 %v1493, %v1494
      %v1496 = vsel %vm422, %v1422, 0.0
      %v1497 = vsel %vm422, %v1423, 0.0
      %v1498 = vadd.f32 %v1496, %v1497
      %v1499 = vrot.slane %v1498, 4
      %v1500 = vadd.f32 %v1498, %v1499
      %v1501 = vrot.slane %v1500, 2
      %v1502 = vadd.f32 %v1500, %v1501
      %v1503 = vrot.slane %v1502, 1
      %v1504 = vadd.f32 %v1502, %v1503
      %v1505 = vsel %vm422, %v1424, 0.0
      %v1506 = vsel %vm422, %v1425, 0.0
      %v1507 = vadd.f32 %v1505, %v1506
      %v1508 = vrot.slane %v1507, 4
      %v1509 = vadd.f32 %v1507, %v1508
      %v1510 = vrot.slane %v1509, 2
      %v1511 = vadd.f32 %v1509, %v1510
      %v1512 = vrot.slane %v1511, 1
      %v1513 = vadd.f32 %v1511, %v1512
      %v1514 = vsel %vm422, %v1426, 0.0
      %v1515 = vsel %vm422, %v1427, 0.0
      %v1516 = vadd.f32 %v1514, %v1515
      %v1517 = vrot.slane %v1516, 4
      %v1518 = vadd.f32 %v1516, %v1517
      %v1519 = vrot.slane %v1518, 2
      %v1520 = vadd.f32 %v1518, %v1519
      %v1521 = vrot.slane %v1520, 1
      %v1522 = vadd.f32 %v1520, %v1521
      %v1523 = vsel %vm422, %v1428, 0.0
      %v1524 = vsel %vm422, %v1429, 0.0
      %v1525 = vadd.f32 %v1523, %v1524
      %v1526 = vrot.slane %v1525, 4
      %v1527 = vadd.f32 %v1525, %v1526
      %v1528 = vrot.slane %v1527, 2
      %v1529 = vadd.f32 %v1527, %v1528
      %v1530 = vrot.slane %v1529, 1
      %v1531 = vadd.f32 %v1529, %v1530
      %v1532 = vsel %vm422, %v1430, 0.0
      %v1533 = vsel %vm422, %v1431, 0.0
      %v1534 = vadd.f32 %v1532, %v1533
      %v1535 = vrot.slane %v1534, 4
      %v1536 = vadd.f32 %v1534, %v1535
      %v1537 = vrot.slane %v1536, 2
      %v1538 = vadd.f32 %v1536, %v1537
      %v1539 = vrot.slane %v1538, 1
      %v1540 = vadd.f32 %v1538, %v1539
      %v1541 = vsel %vm422, %v1432, 0.0
      %v1542 = vsel %vm422, %v1433, 0.0
      %v1543 = vadd.f32 %v1541, %v1542
      %v1544 = vrot.slane %v1543, 4
      %v1545 = vadd.f32 %v1543, %v1544
      %v1546 = vrot.slane %v1545, 2
      %v1547 = vadd.f32 %v1545, %v1546
      %v1548 = vrot.slane %v1547, 1
      %v1549 = vadd.f32 %v1547, %v1548
      %v1550 = vsel %vm422, %v1434, 0.0
      %v1551 = vsel %vm422, %v1435, 0.0
      %v1552 = vadd.f32 %v1550, %v1551
      %v1553 = vrot.slane %v1552, 4
      %v1554 = vadd.f32 %v1552, %v1553
      %v1555 = vrot.slane %v1554, 2
      %v1556 = vadd.f32 %v1554, %v1555
      %v1557 = vrot.slane %v1556, 1
      %v1558 = vadd.f32 %v1556, %v1557
      %v1559 = vsel %vm422, %v1436, 0.0
      %v1560 = vsel %vm422, %v1437, 0.0
      %v1561 = vadd.f32 %v1559, %v1560
      %v1562 = vrot.slane %v1561, 4
      %v1563 = vadd.f32 %v1561, %v1562
      %v1564 = vrot.slane %v1563, 2
      %v1565 = vadd.f32 %v1563, %v1564
      %v1566 = vrot.slane %v1565, 1
      %v1567 = vadd.f32 %v1565, %v1566
      %v1568 = vsel %vm422, %v1438, 0.0
      %v1569 = vsel %vm422, %v1439, 0.0
      %v1570 = vadd.f32 %v1568, %v1569
      %v1571 = vrot.slane %v1570, 4
      %v1572 = vadd.f32 %v1570, %v1571
      %v1573 = vrot.slane %v1572, 2
      %v1574 = vadd.f32 %v1572, %v1573
      %v1575 = vrot.slane %v1574, 1
      %v1576 = vadd.f32 %v1574, %v1575
      %v1577 = vsel %vm422, %v1440, 0.0
      %v1578 = vsel %vm422, %v1441, 0.0
      %v1579 = vadd.f32 %v1577, %v1578
      %v1580 = vrot.slane %v1579, 4
      %v1581 = vadd.f32 %v1579, %v1580
      %v1582 = vrot.slane %v1581, 2
      %v1583 = vadd.f32 %v1581, %v1582
      %v1584 = vrot.slane %v1583, 1
      %v1585 = vadd.f32 %v1583, %v1584
      %v1586 = vsel %vm422, %v1450, -inf
      %v1587 = vsel %vm422, %v1459, -inf
      %v1588 = vsel %vm422, %v1468, -inf
      %v1589 = vsel %vm422, %v1477, -inf
      %v1590 = vsel %vm422, %v1486, -inf
      %v1591 = vmax.f32 %v1586, %v1590
      %v1592 = vsel %vm422, %v1495, -inf
      %v1593 = vmax.f32 %v1587, %v1592
      %v1594 = vsel %vm422, %v1504, -inf
      %v1595 = vmax.f32 %v1588, %v1594
      %v1596 = vsel %vm422, %v1513, -inf
      %v1597 = vmax.f32 %v1589, %v1596
      %v1598 = vsel %vm422, %v1522, -inf
      %v1599 = vmax.f32 %v1591, %v1598
      %v1600 = vsel %vm422, %v1531, -inf
      %v1601 = vmax.f32 %v1593, %v1600
      %v1602 = vsel %vm422, %v1540, -inf
      %v1603 = vmax.f32 %v1595, %v1602
      %v1604 = vsel %vm422, %v1549, -inf
      %v1605 = vmax.f32 %v1597, %v1604
      %v1606 = vsel %vm422, %v1558, -inf
      %v1607 = vmax.f32 %v1599, %v1606
      %v1608 = vsel %vm422, %v1567, -inf
      %v1609 = vmax.f32 %v1601, %v1608
      %v1610 = vsel %vm422, %v1576, -inf
      %v1611 = vmax.f32 %v1603, %v1610
      %v1612 = vsel %vm422, %v1585, -inf
      %v1613 = vmax.f32 %v1605, %v1612
      %v1614 = vmax.f32 %v1607, %v1609
      %v1615 = vmax.f32 %v1611, %v1613
      %v1616 = vmax.f32 %v1614, %v1615
      %v1617 = vsub.f32 %v1450, %v1616
      %v1618 = vsub.f32 %v1459, %v1616
      %v1619 = vsub.f32 %v1468, %v1616
      %v1620 = vsub.f32 %v1477, %v1616
      %v1621 = vsub.f32 %v1486, %v1616
      %v1622 = vsub.f32 %v1495, %v1616
      %v1623 = vsub.f32 %v1504, %v1616
      %v1624 = vsub.f32 %v1513, %v1616
      %v1625 = vsub.f32 %v1522, %v1616
      %v1626 = vsub.f32 %v1531, %v1616
      %v1627 = vsub.f32 %v1540, %v1616
      %v1628 = vsub.f32 %v1549, %v1616
      %v1629 = vsub.f32 %v1558, %v1616
      %v1630 = vsub.f32 %v1567, %v1616
      %v1631 = vsub.f32 %v1576, %v1616
      %v1632 = vsub.f32 %v1585, %v1616
      %v1633 = vmul.f32 %v1617, 1.442695
      %v1634 = vpow.pop %v1633
      %v1635 = vmul.f32 %v1618, 1.442695
      %v1636 = vpow.pop %v1635
      %v1637 = vmul.f32 %v1619, 1.442695
      %v1638 = vpow.pop %v1637
      %v1639 = vmul.f32 %v1620, 1.442695
      %v1640 = vpow.pop %v1639
      %v1641 = vmul.f32 %v1621, 1.442695
      %v1642 = vpow.pop %v1641
      %v1643 = vmul.f32 %v1622, 1.442695
      %v1644 = vpow.pop %v1643
      %v1645 = vmul.f32 %v1623, 1.442695
      %v1646 = vpow.pop %v1645
      %v1647 = vmul.f32 %v1624, 1.442695
      %v1648 = vpow.pop %v1647
      %v1649 = vmul.f32 %v1625, 1.442695
      %v1650 = vpow.pop %v1649
      %v1651 = vmul.f32 %v1626, 1.442695
      %v1652 = vpow.pop %v1651
      %v1653 = vmul.f32 %v1627, 1.442695
      %v1654 = vpow.pop %v1653
      %v1655 = vmul.f32 %v1628, 1.442695
      %v1656 = vpow.pop %v1655
      %v1657 = vmul.f32 %v1629, 1.442695
      %v1658 = vpow.pop %v1657
      %v1659 = vmul.f32 %v1630, 1.442695
      %v1660 = vpow.pop %v1659
      %v1661 = vmul.f32 %v1631, 1.442695
      %v1662 = vpow.pop %v1661
      %v1663 = vmul.f32 %v1632, 1.442695
      %v1664 = vpow.pop %v1663
      %v1681 = vrot.slane %v1636, 7
      %v1682 = vsel %vm1178, %v1681, %v1634
      %v1683 = vrot.slane %v1638, 6
      %v1684 = vsel %vm1181, %v1683, %v1682
      %v1685 = vrot.slane %v1640, 5
      %v1686 = vsel %vm1184, %v1685, %v1684
      %v1687 = vrot.slane %v1642, 4
      %v1688 = vsel %vm1187, %v1687, %v1686
      %v1689 = vrot.slane %v1644, 3
      %v1690 = vsel %vm1190, %v1689, %v1688
      %v1691 = vrot.slane %v1646, 2
      %v1692 = vsel %vm1193, %v1691, %v1690
      %v1693 = vrot.slane %v1648, 1
      %v1694 = vsel %vm1196, %v1693, %v1692
      %v1695 = vrot.slane %v1652, 7
      %v1696 = vsel %vm1178, %v1695, %v1650
      %v1697 = vrot.slane %v1654, 6
      %v1698 = vsel %vm1181, %v1697, %v1696
      %v1699 = vrot.slane %v1656, 5
      %v1700 = vsel %vm1184, %v1699, %v1698
      %v1701 = vrot.slane %v1658, 4
      %v1702 = vsel %vm1187, %v1701, %v1700
      %v1703 = vrot.slane %v1660, 3
      %v1704 = vsel %vm1190, %v1703, %v1702
      %v1705 = vrot.slane %v1662, 2
      %v1706 = vsel %vm1193, %v1705, %v1704
      %v1707 = vrot.slane %v1664, 1
      %v1708 = vsel %vm1196, %v1707, %v1706
      %v1711 = vsel %vm422, %v1694, 0.0
      %v1712 = vsel %vm422, %v1708, 0.0
      %v1713 = vadd.f32 %v1711, %v1712
      %v1714 = vrot.slane %v1713, 4
      %v1715 = vadd.f32 %v1713, %v1714
      %v1716 = vrot.slane %v1715, 2
      %v1717 = vadd.f32 %v1715, %v1716
      %v1718 = vrot.slane %v1717, 1
      %v1719 = vadd.f32 %v1717, %v1718
      %v1720 = vlaneseq
      %v1721 = vshrl.u32 %v1720, 7
      %v1722 = vsub.s32 0, %v1721
      %v1723 = vrot.slane %v1719, %v1722
      %v1724 = vrcp.pop %v1723
      %v1725 = vmul.f32 %v1634, %v1724
      %v1726 = vmul.f32 %v1636, %v1724
      %v1727 = vmul.f32 %v1638, %v1724
      %v1728 = vmul.f32 %v1640, %v1724
      %v1729 = vmul.f32 %v1642, %v1724
      %v1730 = vmul.f32 %v1644, %v1724
      %v1731 = vmul.f32 %v1646, %v1724
      %v1732 = vmul.f32 %v1648, %v1724
      %v1733 = vmul.f32 %v1650, %v1724
      %v1734 = vmul.f32 %v1652, %v1724
      %v1735 = vmul.f32 %v1654, %v1724
      %v1736 = vmul.f32 %v1656, %v1724
      %v1737 = vmul.f32 %v1658, %v1724
      %v1738 = vmul.f32 %v1660, %v1724
      %v1739 = vmul.f32 %v1662, %v1724
      %v1740 = vmul.f32 %v1664, %v1724
      %v1741 = vlaneseq
      %v1742 = vshrl.u32 %v1741, 7
      %v1743 = vsub.s32 0, %v1742
      %v1744 = vrot.slane %v1725, %v1743
      %v1745 = vlaneseq
      %v1746 = vshrl.u32 %v1745, 7
      %v1747 = vsub.s32 0, %v1746
      %v1748 = vrot.slane %v1726, %v1747
      %v1749 = vlaneseq
      %v1750 = vshrl.u32 %v1749, 7
      %v1751 = vsub.s32 0, %v1750
      %v1752 = vrot.slane %v1727, %v1751
      %v1753 = vlaneseq
      %v1754 = vshrl.u32 %v1753, 7
      %v1755 = vsub.s32 0, %v1754
      %v1756 = vrot.slane %v1728, %v1755
      %v1757 = vlaneseq
      %v1758 = vshrl.u32 %v1757, 7
      %v1759 = vsub.s32 0, %v1758
      %v1760 = vrot.slane %v1729, %v1759
      %v1761 = vlaneseq
      %v1762 = vshrl.u32 %v1761, 7
      %v1763 = vsub.s32 0, %v1762
      %v1764 = vrot.slane %v1730, %v1763
      %v1765 = vlaneseq
      %v1766 = vshrl.u32 %v1765, 7
      %v1767 = vsub.s32 0, %v1766
      %v1768 = vrot.slane %v1731, %v1767
      %v1769 = vlaneseq
      %v1770 = vshrl.u32 %v1769, 7
      %v1771 = vsub.s32 0, %v1770
      %v1772 = vrot.slane %v1732, %v1771
      %v1773 = vlaneseq
      %v1774 = vshrl.u32 %v1773, 7
      %v1775 = vsub.s32 0, %v1774
      %v1776 = vrot.slane %v1733, %v1775
      %v1777 = vlaneseq
      %v1778 = vshrl.u32 %v1777, 7
      %v1779 = vsub.s32 0, %v1778
      %v1780 = vrot.slane %v1734, %v1779
      %v1781 = vlaneseq
      %v1782 = vshrl.u32 %v1781, 7
      %v1783 = vsub.s32 0, %v1782
      %v1784 = vrot.slane %v1735, %v1783
      %v1785 = vlaneseq
      %v1786 = vshrl.u32 %v1785, 7
      %v1787 = vsub.s32 0, %v1786
      %v1788 = vrot.slane %v1736, %v1787
      %v1789 = vlaneseq
      %v1790 = vshrl.u32 %v1789, 7
      %v1791 = vsub.s32 0, %v1790
      %v1792 = vrot.slane %v1737, %v1791
      %v1793 = vlaneseq
      %v1794 = vshrl.u32 %v1793, 7
      %v1795 = vsub.s32 0, %v1794
      %v1796 = vrot.slane %v1738, %v1795
      %v1797 = vlaneseq
      %v1798 = vshrl.u32 %v1797, 7
      %v1799 = vsub.s32 0, %v1798
      %v1800 = vrot.slane %v1739, %v1799
      %v1801 = vlaneseq
      %v1802 = vshrl.u32 %v1801, 7
      %v1803 = vsub.s32 0, %v1802
      %v1804 = vrot.slane %v1740, %v1803
      %v1805 = vmul.f32 %v1744, %v872
      %v1806 = vmul.f32 %v1744, %v873
      %v1807 = vmul.f32 %v1748, %v874
      %v1808 = vmul.f32 %v1748, %v875
      %v1809 = vmul.f32 %v1752, %v876
      %v1810 = vmul.f32 %v1752, %v877
      %v1811 = vmul.f32 %v1756, %v878
      %v1812 = vmul.f32 %v1756, %v879
      %v1813 = vmul.f32 %v1760, %v880
      %v1814 = vmul.f32 %v1760, %v881
      %v1815 = vmul.f32 %v1764, %v882
      %v1816 = vmul.f32 %v1764, %v883
      %v1817 = vmul.f32 %v1768, %v884
      %v1818 = vmul.f32 %v1768, %v885
      %v1819 = vmul.f32 %v1772, %v886
      %v1820 = vmul.f32 %v1772, %v887
      %v1821 = vmul.f32 %v1776, %v888
      %v1822 = vmul.f32 %v1776, %v889
      %v1823 = vmul.f32 %v1780, %v890
      %v1824 = vmul.f32 %v1780, %v891
      %v1825 = vmul.f32 %v1784, %v892
      %v1826 = vmul.f32 %v1784, %v893
      %v1827 = vmul.f32 %v1788, %v894
      %v1828 = vmul.f32 %v1788, %v895
      %v1829 = vmul.f32 %v1792, %v896
      %v1830 = vmul.f32 %v1792, %v897
      %v1831 = vmul.f32 %v1796, %v898
      %v1832 = vmul.f32 %v1796, %v899
      %v1833 = vmul.f32 %v1800, %v900
      %v1834 = vmul.f32 %v1800, %v901
      %v1835 = vmul.f32 %v1804, %v902
      %v1836 = vmul.f32 %v1804, %v903
      %v1837 = vsel %vm422, %v1805, 0.0
      %v1838 = vsel %vm422, %v1807, 0.0
      %v1839 = vadd.f32 %v1837, %v1838
      %v1840 = vsel %vm422, %v1809, 0.0
      %v1841 = vadd.f32 %v1839, %v1840
      %v1842 = vsel %vm422, %v1811, 0.0
      %v1843 = vadd.f32 %v1841, %v1842
      %v1844 = vsel %vm422, %v1813, 0.0
      %v1845 = vadd.f32 %v1843, %v1844
      %v1846 = vsel %vm422, %v1815, 0.0
      %v1847 = vadd.f32 %v1845, %v1846
      %v1848 = vsel %vm422, %v1817, 0.0
      %v1849 = vadd.f32 %v1847, %v1848
      %v1850 = vsel %vm422, %v1819, 0.0
      %v1851 = vadd.f32 %v1849, %v1850
      %v1852 = vsel %vm422, %v1821, 0.0
      %v1853 = vadd.f32 %v1851, %v1852
      %v1854 = vsel %vm422, %v1823, 0.0
      %v1855 = vadd.f32 %v1853, %v1854
      %v1856 = vsel %vm422, %v1825, 0.0
      %v1857 = vadd.f32 %v1855, %v1856
      %v1858 = vsel %vm422, %v1827, 0.0
      %v1859 = vadd.f32 %v1857, %v1858
      %v1860 = vsel %vm422, %v1829, 0.0
      %v1861 = vadd.f32 %v1859, %v1860
      %v1862 = vsel %vm422, %v1831, 0.0
      %v1863 = vadd.f32 %v1861, %v1862
      %v1864 = vsel %vm422, %v1833, 0.0
      %v1865 = vadd.f32 %v1863, %v1864
      %v1866 = vsel %vm422, %v1835, 0.0
      %v1867 = vadd.f32 %v1865, %v1866
      %v1868 = vsel %vm422, %v1806, 0.0
      %v1869 = vsel %vm422, %v1808, 0.0
      %v1870 = vadd.f32 %v1868, %v1869
      %v1871 = vsel %vm422, %v1810, 0.0
      %v1872 = vadd.f32 %v1870, %v1871
      %v1873 = vsel %vm422, %v1812, 0.0
      %v1874 = vadd.f32 %v1872, %v1873
      %v1875 = vsel %vm422, %v1814, 0.0
      %v1876 = vadd.f32 %v1874, %v1875
      %v1877 = vsel %vm422, %v1816, 0.0
      %v1878 = vadd.f32 %v1876, %v1877
      %v1879 = vsel %vm422, %v1818, 0.0
      %v1880 = vadd.f32 %v1878, %v1879
      %v1881 = vsel %vm422, %v1820, 0.0
      %v1882 = vadd.f32 %v1880, %v1881
      %v1883 = vsel %vm422, %v1822, 0.0
      %v1884 = vadd.f32 %v1882, %v1883
      %v1885 = vsel %vm422, %v1824, 0.0
      %v1886 = vadd.f32 %v1884, %v1885
      %v1887 = vsel %vm422, %v1826, 0.0
      %v1888 = vadd.f32 %v1886, %v1887
      %v1889 = vsel %vm422, %v1828, 0.0
      %v1890 = vadd.f32 %v1888, %v1889
      %v1891 = vsel %vm422, %v1830, 0.0
      %v1892 = vadd.f32 %v1890, %v1891
      %v1893 = vsel %vm422, %v1832, 0.0
      %v1894 = vadd.f32 %v1892, %v1893
      %v1895 = vsel %vm422, %v1834, 0.0
      %v1896 = vadd.f32 %v1894, %v1895
      %v1897 = vsel %vm422, %v1836, 0.0
      %v1898 = vadd.f32 %v1896, %v1897
      %v1899 = vld [vmem:[%s342 + $0x10] sm:$0xff]
      %v1900 = vld [vmem:[%s342 + $0x18] sm:$0xff]
      %v1901 = vadd.f32 %v1867, %v1899
      %v1902 = vadd.f32 %v1898, %v1900
      %1903 = vst.msk [vmem:[%s364 + $0x10] sm:$0xff] %vm422, %v1901
      %1904 = vst.msk [vmem:[%s364 + $0x18] sm:$0xff] %vm422, %v1902
      %v1905 = vld [vmem:[#allocation2 + $0x20] sm:$0xff]
      %v1906 = vld [vmem:[#allocation2 + $0x28] sm:$0xff]
      %v1907 = vmul.f32 %v1905, %v872
      %v1908 = vmul.f32 %v1906, %v873
      %v1909 = vmul.f32 %v1905, %v874
      %v1910 = vmul.f32 %v1906, %v875
      %v1911 = vmul.f32 %v1905, %v876
      %v1912 = vmul.f32 %v1906, %v877
      %v1913 = vmul.f32 %v1905, %v878
      %v1914 = vmul.f32 %v1906, %v879
      %v1915 = vmul.f32 %v1905, %v880
      %v1916 = vmul.f32 %v1906, %v881
      %v1917 = vmul.f32 %v1905, %v882
      %v1918 = vmul.f32 %v1906, %v883
      %v1919 = vmul.f32 %v1905, %v884
      %v1920 = vmul.f32 %v1906, %v885
      %v1921 = vmul.f32 %v1905, %v886
      %v1922 = vmul.f32 %v1906, %v887
      %v1923 = vmul.f32 %v1905, %v888
      %v1924 = vmul.f32 %v1906, %v889
      %v1925 = vmul.f32 %v1905, %v890
      %v1926 = vmul.f32 %v1906, %v891
      %v1927 = vmul.f32 %v1905, %v892
      %v1928 = vmul.f32 %v1906, %v893
      %v1929 = vmul.f32 %v1905, %v894
      %v1930 = vmul.f32 %v1906, %v895
      %v1931 = vmul.f32 %v1905, %v896
      %v1932 = vmul.f32 %v1906, %v897
      %v1933 = vmul.f32 %v1905, %v898
      %v1934 = vmul.f32 %v1906, %v899
      %v1935 = vmul.f32 %v1905, %v900
      %v1936 = vmul.f32 %v1906, %v901
      %v1937 = vmul.f32 %v1905, %v902
      %v1938 = vmul.f32 %v1906, %v903
      %v1939 = vsel %vm422, %v1907, 0.0
      %v1940 = vsel %vm422, %v1908, 0.0
      %v1941 = vadd.f32 %v1939, %v1940
      %v1942 = vrot.slane %v1941, 4
      %v1943 = vadd.f32 %v1941, %v1942
      %v1944 = vrot.slane %v1943, 2
      %v1945 = vadd.f32 %v1943, %v1944
      %v1946 = vrot.slane %v1945, 1
      %v1947 = vadd.f32 %v1945, %v1946
      %v1948 = vsel %vm422, %v1909, 0.0
      %v1949 = vsel %vm422, %v1910, 0.0
      %v1950 = vadd.f32 %v1948, %v1949
      %v1951 = vrot.slane %v1950, 4
      %v1952 = vadd.f32 %v1950, %v1951
      %v1953 = vrot.slane %v1952, 2
      %v1954 = vadd.f32 %v1952, %v1953
      %v1955 = vrot.slane %v1954, 1
      %v1956 = vadd.f32 %v1954, %v1955
      %v1957 = vsel %vm422, %v1911, 0.0
      %v1958 = vsel %vm422, %v1912, 0.0
      %v1959 = vadd.f32 %v1957, %v1958
      %v1960 = vrot.slane %v1959, 4
      %v1961 = vadd.f32 %v1959, %v1960
      %v1962 = vrot.slane %v1961, 2
      %v1963 = vadd.f32 %v1961, %v1962
      %v1964 = vrot.slane %v1963, 1
      %v1965 = vadd.f32 %v1963, %v1964
      %v1966 = vsel %vm422, %v1913, 0.0
      %v1967 = vsel %vm422, %v1914, 0.0
      %v1968 = vadd.f32 %v1966, %v1967
      %v1969 = vrot.slane %v1968, 4
      %v1970 = vadd.f32 %v1968, %v1969
      %v1971 = vrot.slane %v1970, 2
      %v1972 = vadd.f32 %v1970, %v1971
      %v1973 = vrot.slane %v1972, 1
      %v1974 = vadd.f32 %v1972, %v1973
      %v1975 = vsel %vm422, %v1915, 0.0
      %v1976 = vsel %vm422, %v1916, 0.0
      %v1977 = vadd.f32 %v1975, %v1976
      %v1978 = vrot.slane %v1977, 4
      %v1979 = vadd.f32 %v1977, %v1978
      %v1980 = vrot.slane %v1979, 2
      %v1981 = vadd.f32 %v1979, %v1980
      %v1982 = vrot.slane %v1981, 1
      %v1983 = vadd.f32 %v1981, %v1982
      %v1984 = vsel %vm422, %v1917, 0.0
      %v1985 = vsel %vm422, %v1918, 0.0
      %v1986 = vadd.f32 %v1984, %v1985
      %v1987 = vrot.slane %v1986, 4
      %v1988 = vadd.f32 %v1986, %v1987
      %v1989 = vrot.slane %v1988, 2
      %v1990 = vadd.f32 %v1988, %v1989
      %v1991 = vrot.slane %v1990, 1
      %v1992 = vadd.f32 %v1990, %v1991
      %v1993 = vsel %vm422, %v1919, 0.0
      %v1994 = vsel %vm422, %v1920, 0.0
      %v1995 = vadd.f32 %v1993, %v1994
      %v1996 = vrot.slane %v1995, 4
      %v1997 = vadd.f32 %v1995, %v1996
      %v1998 = vrot.slane %v1997, 2
      %v1999 = vadd.f32 %v1997, %v1998
      %v2000 = vrot.slane %v1999, 1
      %v2001 = vadd.f32 %v1999, %v2000
      %v2002 = vsel %vm422, %v1921, 0.0
      %v2003 = vsel %vm422, %v1922, 0.0
      %v2004 = vadd.f32 %v2002, %v2003
      %v2005 = vrot.slane %v2004, 4
      %v2006 = vadd.f32 %v2004, %v2005
      %v2007 = vrot.slane %v2006, 2
      %v2008 = vadd.f32 %v2006, %v2007
      %v2009 = vrot.slane %v2008, 1
      %v2010 = vadd.f32 %v2008, %v2009
      %v2011 = vsel %vm422, %v1923, 0.0
      %v2012 = vsel %vm422, %v1924, 0.0
      %v2013 = vadd.f32 %v2011, %v2012
      %v2014 = vrot.slane %v2013, 4
      %v2015 = vadd.f32 %v2013, %v2014
      %v2016 = vrot.slane %v2015, 2
      %v2017 = vadd.f32 %v2015, %v2016
      %v2018 = vrot.slane %v2017, 1
      %v2019 = vadd.f32 %v2017, %v2018
      %v2020 = vsel %vm422, %v1925, 0.0
      %v2021 = vsel %vm422, %v1926, 0.0
      %v2022 = vadd.f32 %v2020, %v2021
      %v2023 = vrot.slane %v2022, 4
      %v2024 = vadd.f32 %v2022, %v2023
      %v2025 = vrot.slane %v2024, 2
      %v2026 = vadd.f32 %v2024, %v2025
      %v2027 = vrot.slane %v2026, 1
      %v2028 = vadd.f32 %v2026, %v2027
      %v2029 = vsel %vm422, %v1927, 0.0
      %v2030 = vsel %vm422, %v1928, 0.0
      %v2031 = vadd.f32 %v2029, %v2030
      %v2032 = vrot.slane %v2031, 4
      %v2033 = vadd.f32 %v2031, %v2032
      %v2034 = vrot.slane %v2033, 2
      %v2035 = vadd.f32 %v2033, %v2034
      %v2036 = vrot.slane %v2035, 1
      %v2037 = vadd.f32 %v2035, %v2036
      %v2038 = vsel %vm422, %v1929, 0.0
      %v2039 = vsel %vm422, %v1930, 0.0
      %v2040 = vadd.f32 %v2038, %v2039
      %v2041 = vrot.slane %v2040, 4
      %v2042 = vadd.f32 %v2040, %v2041
      %v2043 = vrot.slane %v2042, 2
      %v2044 = vadd.f32 %v2042, %v2043
      %v2045 = vrot.slane %v2044, 1
      %v2046 = vadd.f32 %v2044, %v2045
      %v2047 = vsel %vm422, %v1931, 0.0
      %v2048 = vsel %vm422, %v1932, 0.0
      %v2049 = vadd.f32 %v2047, %v2048
      %v2050 = vrot.slane %v2049, 4
      %v2051 = vadd.f32 %v2049, %v2050
      %v2052 = vrot.slane %v2051, 2
      %v2053 = vadd.f32 %v2051, %v2052
      %v2054 = vrot.slane %v2053, 1
      %v2055 = vadd.f32 %v2053, %v2054
      %v2056 = vsel %vm422, %v1933, 0.0
      %v2057 = vsel %vm422, %v1934, 0.0
      %v2058 = vadd.f32 %v2056, %v2057
      %v2059 = vrot.slane %v2058, 4
      %v2060 = vadd.f32 %v2058, %v2059
      %v2061 = vrot.slane %v2060, 2
      %v2062 = vadd.f32 %v2060, %v2061
      %v2063 = vrot.slane %v2062, 1
      %v2064 = vadd.f32 %v2062, %v2063
      %v2065 = vsel %vm422, %v1935, 0.0
      %v2066 = vsel %vm422, %v1936, 0.0
      %v2067 = vadd.f32 %v2065, %v2066
      %v2068 = vrot.slane %v2067, 4
      %v2069 = vadd.f32 %v2067, %v2068
      %v2070 = vrot.slane %v2069, 2
      %v2071 = vadd.f32 %v2069, %v2070
      %v2072 = vrot.slane %v2071, 1
      %v2073 = vadd.f32 %v2071, %v2072
      %v2074 = vsel %vm422, %v1937, 0.0
      %v2075 = vsel %vm422, %v1938, 0.0
      %v2076 = vadd.f32 %v2074, %v2075
      %v2077 = vrot.slane %v2076, 4
      %v2078 = vadd.f32 %v2076, %v2077
      %v2079 = vrot.slane %v2078, 2
      %v2080 = vadd.f32 %v2078, %v2079
      %v2081 = vrot.slane %v2080, 1
      %v2082 = vadd.f32 %v2080, %v2081
      %v2083 = vsel %vm422, %v1947, -inf
      %v2084 = vsel %vm422, %v1956, -inf
      %v2085 = vsel %vm422, %v1965, -inf
      %v2086 = vsel %vm422, %v1974, -inf
      %v2087 = vsel %vm422, %v1983, -inf
      %v2088 = vmax.f32 %v2083, %v2087
      %v2089 = vsel %vm422, %v1992, -inf
      %v2090 = vmax.f32 %v2084, %v2089
      %v2091 = vsel %vm422, %v2001, -inf
      %v2092 = vmax.f32 %v2085, %v2091
      %v2093 = vsel %vm422, %v2010, -inf
      %v2094 = vmax.f32 %v2086, %v2093
      %v2095 = vsel %vm422, %v2019, -inf
      %v2096 = vmax.f32 %v2088, %v2095
      %v2097 = vsel %vm422, %v2028, -inf
      %v2098 = vmax.f32 %v2090, %v2097
      %v2099 = vsel %vm422, %v2037, -inf
      %v2100 = vmax.f32 %v2092, %v2099
      %v2101 = vsel %vm422, %v2046, -inf
      %v2102 = vmax.f32 %v2094, %v2101
      %v2103 = vsel %vm422, %v2055, -inf
      %v2104 = vmax.f32 %v2096, %v2103
      %v2105 = vsel %vm422, %v2064, -inf
      %v2106 = vmax.f32 %v2098, %v2105
      %v2107 = vsel %vm422, %v2073, -inf
      %v2108 = vmax.f32 %v2100, %v2107
      %v2109 = vsel %vm422, %v2082, -inf
      %v2110 = vmax.f32 %v2102, %v2109
      %v2111 = vmax.f32 %v2104, %v2106
      %v2112 = vmax.f32 %v2108, %v2110
      %v2113 = vmax.f32 %v2111, %v2112
      %v2114 = vsub.f32 %v1947, %v2113
      %v2115 = vsub.f32 %v1956, %v2113
      %v2116 = vsub.f32 %v1965, %v2113
      %v2117 = vsub.f32 %v1974, %v2113
      %v2118 = vsub.f32 %v1983, %v2113
      %v2119 = vsub.f32 %v1992, %v2113
      %v2120 = vsub.f32 %v2001, %v2113
      %v2121 = vsub.f32 %v2010, %v2113
      %v2122 = vsub.f32 %v2019, %v2113
      %v2123 = vsub.f32 %v2028, %v2113
      %v2124 = vsub.f32 %v2037, %v2113
      %v2125 = vsub.f32 %v2046, %v2113
      %v2126 = vsub.f32 %v2055, %v2113
      %v2127 = vsub.f32 %v2064, %v2113
      %v2128 = vsub.f32 %v2073, %v2113
      %v2129 = vsub.f32 %v2082, %v2113
      %v2130 = vmul.f32 %v2114, 1.442695
      %v2131 = vpow.pop %v2130
      %v2132 = vmul.f32 %v2115, 1.442695
      %v2133 = vpow.pop %v2132
      %v2134 = vmul.f32 %v2116, 1.442695
      %v2135 = vpow.pop %v2134
      %v2136 = vmul.f32 %v2117, 1.442695
      %v2137 = vpow.pop %v2136
      %v2138 = vmul.f32 %v2118, 1.442695
      %v2139 = vpow.pop %v2138
      %v2140 = vmul.f32 %v2119, 1.442695
      %v2141 = vpow.pop %v2140
      %v2142 = vmul.f32 %v2120, 1.442695
      %v2143 = vpow.pop %v2142
      %v2144 = vmul.f32 %v2121, 1.442695
      %v2145 = vpow.pop %v2144
      %v2146 = vmul.f32 %v2122, 1.442695
      %v2147 = vpow.pop %v2146
      %v2148 = vmul.f32 %v2123, 1.442695
      %v2149 = vpow.pop %v2148
      %v2150 = vmul.f32 %v2124, 1.442695
      %v2151 = vpow.pop %v2150
      %v2152 = vmul.f32 %v2125, 1.442695
      %v2153 = vpow.pop %v2152
      %v2154 = vmul.f32 %v2126, 1.442695
      %v2155 = vpow.pop %v2154
      %v2156 = vmul.f32 %v2127, 1.442695
      %v2157 = vpow.pop %v2156
      %v2158 = vmul.f32 %v2128, 1.442695
      %v2159 = vpow.pop %v2158
      %v2160 = vmul.f32 %v2129, 1.442695
      %v2161 = vpow.pop %v2160
      %v2178 = vrot.slane %v2133, 7
      %v2179 = vsel %vm1178, %v2178, %v2131
      %v2180 = vrot.slane %v2135, 6
      %v2181 = vsel %vm1181, %v2180, %v2179
      %v2182 = vrot.slane %v2137, 5
      %v2183 = vsel %vm1184, %v2182, %v2181
      %v2184 = vrot.slane %v2139, 4
      %v2185 = vsel %vm1187, %v2184, %v2183
      %v2186 = vrot.slane %v2141, 3
      %v2187 = vsel %vm1190, %v2186, %v2185
      %v2188 = vrot.slane %v2143, 2
      %v2189 = vsel %vm1193, %v2188, %v2187
      %v2190 = vrot.slane %v2145, 1
      %v2191 = vsel %vm1196, %v2190, %v2189
      %v2192 = vrot.slane %v2149, 7
      %v2193 = vsel %vm1178, %v2192, %v2147
      %v2194 = vrot.slane %v2151, 6
      %v2195 = vsel %vm1181, %v2194, %v2193
      %v2196 = vrot.slane %v2153, 5
      %v2197 = vsel %vm1184, %v2196, %v2195
      %v2198 = vrot.slane %v2155, 4
      %v2199 = vsel %vm1187, %v2198, %v2197
      %v2200 = vrot.slane %v2157, 3
      %v2201 = vsel %vm1190, %v2200, %v2199
      %v2202 = vrot.slane %v2159, 2
      %v2203 = vsel %vm1193, %v2202, %v2201
      %v2204 = vrot.slane %v2161, 1
      %v2205 = vsel %vm1196, %v2204, %v2203
      %v2208 = vsel %vm422, %v2191, 0.0
      %v2209 = vsel %vm422, %v2205, 0.0
      %v2210 = vadd.f32 %v2208, %v2209
      %v2211 = vrot.slane %v2210, 4
      %v2212 = vadd.f32 %v2210, %v2211
      %v2213 = vrot.slane %v2212, 2
      %v2214 = vadd.f32 %v2212, %v2213
      %v2215 = vrot.slane %v2214, 1
      %v2216 = vadd.f32 %v2214, %v2215
      %v2217 = vlaneseq
      %v2218 = vshrl.u32 %v2217, 7
      %v2219 = vsub.s32 0, %v2218
      %v2220 = vrot.slane %v2216, %v2219
      %v2221 = vrcp.pop %v2220
      %v2222 = vmul.f32 %v2131, %v2221
      %v2223 = vmul.f32 %v2133, %v2221
      %v2224 = vmul.f32 %v2135, %v2221
      %v2225 = vmul.f32 %v2137, %v2221
      %v2226 = vmul.f32 %v2139, %v2221
      %v2227 = vmul.f32 %v2141, %v2221
      %v2228 = vmul.f32 %v2143, %v2221
      %v2229 = vmul.f32 %v2145, %v2221
      %v2230 = vmul.f32 %v2147, %v2221
      %v2231 = vmul.f32 %v2149, %v2221
      %v2232 = vmul.f32 %v2151, %v2221
      %v2233 = vmul.f32 %v2153, %v2221
      %v2234 = vmul.f32 %v2155, %v2221
      %v2235 = vmul.f32 %v2157, %v2221
      %v2236 = vmul.f32 %v2159, %v2221
      %v2237 = vmul.f32 %v2161, %v2221
      %v2238 = vlaneseq
      %v2239 = vshrl.u32 %v2238, 7
      %v2240 = vsub.s32 0, %v2239
      %v2241 = vrot.slane %v2222, %v2240
      %v2242 = vlaneseq
      %v2243 = vshrl.u32 %v2242, 7
      %v2244 = vsub.s32 0, %v2243
      %v2245 = vrot.slane %v2223, %v2244
      %v2246 = vlaneseq
      %v2247 = vshrl.u32 %v2246, 7
      %v2248 = vsub.s32 0, %v2247
      %v2249 = vrot.slane %v2224, %v2248
      %v2250 = vlaneseq
      %v2251 = vshrl.u32 %v2250, 7
      %v2252 = vsub.s32 0, %v2251
      %v2253 = vrot.slane %v2225, %v2252
      %v2254 = vlaneseq
      %v2255 = vshrl.u32 %v2254, 7
      %v2256 = vsub.s32 0, %v2255
      %v2257 = vrot.slane %v2226, %v2256
      %v2258 = vlaneseq
      %v2259 = vshrl.u32 %v2258, 7
      %v2260 = vsub.s32 0, %v2259
      %v2261 = vrot.slane %v2227, %v2260
      %v2262 = vlaneseq
      %v2263 = vshrl.u32 %v2262, 7
      %v2264 = vsub.s32 0, %v2263
      %v2265 = vrot.slane %v2228, %v2264
      %v2266 = vlaneseq
      %v2267 = vshrl.u32 %v2266, 7
      %v2268 = vsub.s32 0, %v2267
      %v2269 = vrot.slane %v2229, %v2268
      %v2270 = vlaneseq
      %v2271 = vshrl.u32 %v2270, 7
      %v2272 = vsub.s32 0, %v2271
      %v2273 = vrot.slane %v2230, %v2272
      %v2274 = vlaneseq
      %v2275 = vshrl.u32 %v2274, 7
      %v2276 = vsub.s32 0, %v2275
      %v2277 = vrot.slane %v2231, %v2276
      %v2278 = vlaneseq
      %v2279 = vshrl.u32 %v2278, 7
      %v2280 = vsub.s32 0, %v2279
      %v2281 = vrot.slane %v2232, %v2280
      %v2282 = vlaneseq
      %v2283 = vshrl.u32 %v2282, 7
      %v2284 = vsub.s32 0, %v2283
      %v2285 = vrot.slane %v2233, %v2284
      %v2286 = vlaneseq
      %v2287 = vshrl.u32 %v2286, 7
      %v2288 = vsub.s32 0, %v2287
      %v2289 = vrot.slane %v2234, %v2288
      %v2290 = vlaneseq
      %v2291 = vshrl.u32 %v2290, 7
      %v2292 = vsub.s32 0, %v2291
      %v2293 = vrot.slane %v2235, %v2292
      %v2294 = vlaneseq
      %v2295 = vshrl.u32 %v2294, 7
      %v2296 = vsub.s32 0, %v2295
      %v2297 = vrot.slane %v2236, %v2296
      %v2298 = vlaneseq
      %v2299 = vshrl.u32 %v2298, 7
      %v2300 = vsub.s32 0, %v2299
      %v2301 = vrot.slane %v2237, %v2300
      %v2302 = vmul.f32 %v2241, %v872
      %v2303 = vmul.f32 %v2241, %v873
      %v2304 = vmul.f32 %v2245, %v874
      %v2305 = vmul.f32 %v2245, %v875
      %v2306 = vmul.f32 %v2249, %v876
      %v2307 = vmul.f32 %v2249, %v877
      %v2308 = vmul.f32 %v2253, %v878
      %v2309 = vmul.f32 %v2253, %v879
      %v2310 = vmul.f32 %v2257, %v880
      %v2311 = vmul.f32 %v2257, %v881
      %v2312 = vmul.f32 %v2261, %v882
      %v2313 = vmul.f32 %v2261, %v883
      %v2314 = vmul.f32 %v2265, %v884
      %v2315 = vmul.f32 %v2265, %v885
      %v2316 = vmul.f32 %v2269, %v886
      %v2317 = vmul.f32 %v2269, %v887
      %v2318 = vmul.f32 %v2273, %v888
      %v2319 = vmul.f32 %v2273, %v889
      %v2320 = vmul.f32 %v2277, %v890
      %v2321 = vmul.f32 %v2277, %v891
      %v2322 = vmul.f32 %v2281, %v892
      %v2323 = vmul.f32 %v2281, %v893
      %v2324 = vmul.f32 %v2285, %v894
      %v2325 = vmul.f32 %v2285, %v895
      %v2326 = vmul.f32 %v2289, %v896
      %v2327 = vmul.f32 %v2289, %v897
      %v2328 = vmul.f32 %v2293, %v898
      %v2329 = vmul.f32 %v2293, %v899
      %v2330 = vmul.f32 %v2297, %v900
      %v2331 = vmul.f32 %v2297, %v901
      %v2332 = vmul.f32 %v2301, %v902
      %v2333 = vmul.f32 %v2301, %v903
      %v2334 = vsel %vm422, %v2302, 0.0
      %v2335 = vsel %vm422, %v2304, 0.0
      %v2336 = vadd.f32 %v2334, %v2335
      %v2337 = vsel %vm422, %v2306, 0.0
      %v2338 = vadd.f32 %v2336, %v2337
      %v2339 = vsel %vm422, %v2308, 0.0
      %v2340 = vadd.f32 %v2338, %v2339
      %v2341 = vsel %vm422, %v2310, 0.0
      %v2342 = vadd.f32 %v2340, %v2341
      %v2343 = vsel %vm422, %v2312, 0.0
      %v2344 = vadd.f32 %v2342, %v2343
      %v2345 = vsel %vm422, %v2314, 0.0
      %v2346 = vadd.f32 %v2344, %v2345
      %v2347 = vsel %vm422, %v2316, 0.0
      %v2348 = vadd.f32 %v2346, %v2347
      %v2349 = vsel %vm422, %v2318, 0.0
      %v2350 = vadd.f32 %v2348, %v2349
      %v2351 = vsel %vm422, %v2320, 0.0
      %v2352 = vadd.f32 %v2350, %v2351
      %v2353 = vsel %vm422, %v2322, 0.0
      %v2354 = vadd.f32 %v2352, %v2353
      %v2355 = vsel %vm422, %v2324, 0.0
      %v2356 = vadd.f32 %v2354, %v2355
      %v2357 = vsel %vm422, %v2326, 0.0
      %v2358 = vadd.f32 %v2356, %v2357
      %v2359 = vsel %vm422, %v2328, 0.0
      %v2360 = vadd.f32 %v2358, %v2359
      %v2361 = vsel %vm422, %v2330, 0.0
      %v2362 = vadd.f32 %v2360, %v2361
      %v2363 = vsel %vm422, %v2332, 0.0
      %v2364 = vadd.f32 %v2362, %v2363
      %v2365 = vsel %vm422, %v2303, 0.0
      %v2366 = vsel %vm422, %v2305, 0.0
      %v2367 = vadd.f32 %v2365, %v2366
      %v2368 = vsel %vm422, %v2307, 0.0
      %v2369 = vadd.f32 %v2367, %v2368
      %v2370 = vsel %vm422, %v2309, 0.0
      %v2371 = vadd.f32 %v2369, %v2370
      %v2372 = vsel %vm422, %v2311, 0.0
      %v2373 = vadd.f32 %v2371, %v2372
      %v2374 = vsel %vm422, %v2313, 0.0
      %v2375 = vadd.f32 %v2373, %v2374
      %v2376 = vsel %vm422, %v2315, 0.0
      %v2377 = vadd.f32 %v2375, %v2376
      %v2378 = vsel %vm422, %v2317, 0.0
      %v2379 = vadd.f32 %v2377, %v2378
      %v2380 = vsel %vm422, %v2319, 0.0
      %v2381 = vadd.f32 %v2379, %v2380
      %v2382 = vsel %vm422, %v2321, 0.0
      %v2383 = vadd.f32 %v2381, %v2382
      %v2384 = vsel %vm422, %v2323, 0.0
      %v2385 = vadd.f32 %v2383, %v2384
      %v2386 = vsel %vm422, %v2325, 0.0
      %v2387 = vadd.f32 %v2385, %v2386
      %v2388 = vsel %vm422, %v2327, 0.0
      %v2389 = vadd.f32 %v2387, %v2388
      %v2390 = vsel %vm422, %v2329, 0.0
      %v2391 = vadd.f32 %v2389, %v2390
      %v2392 = vsel %vm422, %v2331, 0.0
      %v2393 = vadd.f32 %v2391, %v2392
      %v2394 = vsel %vm422, %v2333, 0.0
      %v2395 = vadd.f32 %v2393, %v2394
      %v2396 = vld [vmem:[%s342 + $0x20] sm:$0xff]
      %v2397 = vld [vmem:[%s342 + $0x28] sm:$0xff]
      %v2398 = vadd.f32 %v2364, %v2396
      %v2399 = vadd.f32 %v2395, %v2397
      %2400 = vst.msk [vmem:[%s364 + $0x20] sm:$0xff] %vm422, %v2398
      %2401 = vst.msk [vmem:[%s364 + $0x28] sm:$0xff] %vm422, %v2399
      %v2402 = vld [vmem:[#allocation2 + $0x30] sm:$0xff]
      %v2403 = vld [vmem:[#allocation2 + $0x38] sm:$0xff]
      %v2404 = vmul.f32 %v2402, %v872
      %v2405 = vmul.f32 %v2403, %v873
      %v2406 = vmul.f32 %v2402, %v874
      %v2407 = vmul.f32 %v2403, %v875
      %v2408 = vmul.f32 %v2402, %v876
      %v2409 = vmul.f32 %v2403, %v877
      %v2410 = vmul.f32 %v2402, %v878
      %v2411 = vmul.f32 %v2403, %v879
      %v2412 = vmul.f32 %v2402, %v880
      %v2413 = vmul.f32 %v2403, %v881
      %v2414 = vmul.f32 %v2402, %v882
      %v2415 = vmul.f32 %v2403, %v883
      %v2416 = vmul.f32 %v2402, %v884
      %v2417 = vmul.f32 %v2403, %v885
      %v2418 = vmul.f32 %v2402, %v886
      %v2419 = vmul.f32 %v2403, %v887
      %v2420 = vmul.f32 %v2402, %v888
      %v2421 = vmul.f32 %v2403, %v889
      %v2422 = vmul.f32 %v2402, %v890
      %v2423 = vmul.f32 %v2403, %v891
      %v2424 = vmul.f32 %v2402, %v892
      %v2425 = vmul.f32 %v2403, %v893
      %v2426 = vmul.f32 %v2402, %v894
      %v2427 = vmul.f32 %v2403, %v895
      %v2428 = vmul.f32 %v2402, %v896
      %v2429 = vmul.f32 %v2403, %v897
      %v2430 = vmul.f32 %v2402, %v898
      %v2431 = vmul.f32 %v2403, %v899
      %v2432 = vmul.f32 %v2402, %v900
      %v2433 = vmul.f32 %v2403, %v901
      %v2434 = vmul.f32 %v2402, %v902
      %v2435 = vmul.f32 %v2403, %v903
      %v2436 = vsel %vm422, %v2404, 0.0
      %v2437 = vsel %vm422, %v2405, 0.0
      %v2438 = vadd.f32 %v2436, %v2437
      %v2439 = vrot.slane %v2438, 4
      %v2440 = vadd.f32 %v2438, %v2439
      %v2441 = vrot.slane %v2440, 2
      %v2442 = vadd.f32 %v2440, %v2441
      %v2443 = vrot.slane %v2442, 1
      %v2444 = vadd.f32 %v2442, %v2443
      %v2445 = vsel %vm422, %v2406, 0.0
      %v2446 = vsel %vm422, %v2407, 0.0
      %v2447 = vadd.f32 %v2445, %v2446
      %v2448 = vrot.slane %v2447, 4
      %v2449 = vadd.f32 %v2447, %v2448
      %v2450 = vrot.slane %v2449, 2
      %v2451 = vadd.f32 %v2449, %v2450
      %v2452 = vrot.slane %v2451, 1
      %v2453 = vadd.f32 %v2451, %v2452
      %v2454 = vsel %vm422, %v2408, 0.0
      %v2455 = vsel %vm422, %v2409, 0.0
      %v2456 = vadd.f32 %v2454, %v2455
      %v2457 = vrot.slane %v2456, 4
      %v2458 = vadd.f32 %v2456, %v2457
      %v2459 = vrot.slane %v2458, 2
      %v2460 = vadd.f32 %v2458, %v2459
      %v2461 = vrot.slane %v2460, 1
      %v2462 = vadd.f32 %v2460, %v2461
      %v2463 = vsel %vm422, %v2410, 0.0
      %v2464 = vsel %vm422, %v2411, 0.0
      %v2465 = vadd.f32 %v2463, %v2464
      %v2466 = vrot.slane %v2465, 4
      %v2467 = vadd.f32 %v2465, %v2466
      %v2468 = vrot.slane %v2467, 2
      %v2469 = vadd.f32 %v2467, %v2468
      %v2470 = vrot.slane %v2469, 1
      %v2471 = vadd.f32 %v2469, %v2470
      %v2472 = vsel %vm422, %v2412, 0.0
      %v2473 = vsel %vm422, %v2413, 0.0
      %v2474 = vadd.f32 %v2472, %v2473
      %v2475 = vrot.slane %v2474, 4
      %v2476 = vadd.f32 %v2474, %v2475
      %v2477 = vrot.slane %v2476, 2
      %v2478 = vadd.f32 %v2476, %v2477
      %v2479 = vrot.slane %v2478, 1
      %v2480 = vadd.f32 %v2478, %v2479
      %v2481 = vsel %vm422, %v2414, 0.0
      %v2482 = vsel %vm422, %v2415, 0.0
      %v2483 = vadd.f32 %v2481, %v2482
      %v2484 = vrot.slane %v2483, 4
      %v2485 = vadd.f32 %v2483, %v2484
      %v2486 = vrot.slane %v2485, 2
      %v2487 = vadd.f32 %v2485, %v2486
      %v2488 = vrot.slane %v2487, 1
      %v2489 = vadd.f32 %v2487, %v2488
      %v2490 = vsel %vm422, %v2416, 0.0
      %v2491 = vsel %vm422, %v2417, 0.0
      %v2492 = vadd.f32 %v2490, %v2491
      %v2493 = vrot.slane %v2492, 4
      %v2494 = vadd.f32 %v2492, %v2493
      %v2495 = vrot.slane %v2494, 2
      %v2496 = vadd.f32 %v2494, %v2495
      %v2497 = vrot.slane %v2496, 1
      %v2498 = vadd.f32 %v2496, %v2497
      %v2499 = vsel %vm422, %v2418, 0.0
      %v2500 = vsel %vm422, %v2419, 0.0
      %v2501 = vadd.f32 %v2499, %v2500
      %v2502 = vrot.slane %v2501, 4
      %v2503 = vadd.f32 %v2501, %v2502
      %v2504 = vrot.slane %v2503, 2
      %v2505 = vadd.f32 %v2503, %v2504
      %v2506 = vrot.slane %v2505, 1
      %v2507 = vadd.f32 %v2505, %v2506
      %v2508 = vsel %vm422, %v2420, 0.0
      %v2509 = vsel %vm422, %v2421, 0.0
      %v2510 = vadd.f32 %v2508, %v2509
      %v2511 = vrot.slane %v2510, 4
      %v2512 = vadd.f32 %v2510, %v2511
      %v2513 = vrot.slane %v2512, 2
      %v2514 = vadd.f32 %v2512, %v2513
      %v2515 = vrot.slane %v2514, 1
      %v2516 = vadd.f32 %v2514, %v2515
      %v2517 = vsel %vm422, %v2422, 0.0
      %v2518 = vsel %vm422, %v2423, 0.0
      %v2519 = vadd.f32 %v2517, %v2518
      %v2520 = vrot.slane %v2519, 4
      %v2521 = vadd.f32 %v2519, %v2520
      %v2522 = vrot.slane %v2521, 2
      %v2523 = vadd.f32 %v2521, %v2522
      %v2524 = vrot.slane %v2523, 1
      %v2525 = vadd.f32 %v2523, %v2524
      %v2526 = vsel %vm422, %v2424, 0.0
      %v2527 = vsel %vm422, %v2425, 0.0
      %v2528 = vadd.f32 %v2526, %v2527
      %v2529 = vrot.slane %v2528, 4
      %v2530 = vadd.f32 %v2528, %v2529
      %v2531 = vrot.slane %v2530, 2
      %v2532 = vadd.f32 %v2530, %v2531
      %v2533 = vrot.slane %v2532, 1
      %v2534 = vadd.f32 %v2532, %v2533
      %v2535 = vsel %vm422, %v2426, 0.0
      %v2536 = vsel %vm422, %v2427, 0.0
      %v2537 = vadd.f32 %v2535, %v2536
      %v2538 = vrot.slane %v2537, 4
      %v2539 = vadd.f32 %v2537, %v2538
      %v2540 = vrot.slane %v2539, 2
      %v2541 = vadd.f32 %v2539, %v2540
      %v2542 = vrot.slane %v2541, 1
      %v2543 = vadd.f32 %v2541, %v2542
      %v2544 = vsel %vm422, %v2428, 0.0
      %v2545 = vsel %vm422, %v2429, 0.0
      %v2546 = vadd.f32 %v2544, %v2545
      %v2547 = vrot.slane %v2546, 4
      %v2548 = vadd.f32 %v2546, %v2547
      %v2549 = vrot.slane %v2548, 2
      %v2550 = vadd.f32 %v2548, %v2549
      %v2551 = vrot.slane %v2550, 1
      %v2552 = vadd.f32 %v2550, %v2551
      %v2553 = vsel %vm422, %v2430, 0.0
      %v2554 = vsel %vm422, %v2431, 0.0
      %v2555 = vadd.f32 %v2553, %v2554
      %v2556 = vrot.slane %v2555, 4
      %v2557 = vadd.f32 %v2555, %v2556
      %v2558 = vrot.slane %v2557, 2
      %v2559 = vadd.f32 %v2557, %v2558
      %v2560 = vrot.slane %v2559, 1
      %v2561 = vadd.f32 %v2559, %v2560
      %v2562 = vsel %vm422, %v2432, 0.0
      %v2563 = vsel %vm422, %v2433, 0.0
      %v2564 = vadd.f32 %v2562, %v2563
      %v2565 = vrot.slane %v2564, 4
      %v2566 = vadd.f32 %v2564, %v2565
      %v2567 = vrot.slane %v2566, 2
      %v2568 = vadd.f32 %v2566, %v2567
      %v2569 = vrot.slane %v2568, 1
      %v2570 = vadd.f32 %v2568, %v2569
      %v2571 = vsel %vm422, %v2434, 0.0
      %v2572 = vsel %vm422, %v2435, 0.0
      %v2573 = vadd.f32 %v2571, %v2572
      %v2574 = vrot.slane %v2573, 4
      %v2575 = vadd.f32 %v2573, %v2574
      %v2576 = vrot.slane %v2575, 2
      %v2577 = vadd.f32 %v2575, %v2576
      %v2578 = vrot.slane %v2577, 1
      %v2579 = vadd.f32 %v2577, %v2578
      %v2580 = vsel %vm422, %v2444, -inf
      %v2581 = vsel %vm422, %v2453, -inf
      %v2582 = vsel %vm422, %v2462, -inf
      %v2583 = vsel %vm422, %v2471, -inf
      %v2584 = vsel %vm422, %v2480, -inf
      %v2585 = vmax.f32 %v2580, %v2584
      %v2586 = vsel %vm422, %v2489, -inf
      %v2587 = vmax.f32 %v2581, %v2586
      %v2588 = vsel %vm422, %v2498, -inf
      %v2589 = vmax.f32 %v2582, %v2588
      %v2590 = vsel %vm422, %v2507, -inf
      %v2591 = vmax.f32 %v2583, %v2590
      %v2592 = vsel %vm422, %v2516, -inf
      %v2593 = vmax.f32 %v2585, %v2592
      %v2594 = vsel %vm422, %v2525, -inf
      %v2595 = vmax.f32 %v2587, %v2594
      %v2596 = vsel %vm422, %v2534, -inf
      %v2597 = vmax.f32 %v2589, %v2596
      %v2598 = vsel %vm422, %v2543, -inf
      %v2599 = vmax.f32 %v2591, %v2598
      %v2600 = vsel %vm422, %v2552, -inf
      %v2601 = vmax.f32 %v2593, %v2600
      %v2602 = vsel %vm422, %v2561, -inf
      %v2603 = vmax.f32 %v2595, %v2602
      %v2604 = vsel %vm422, %v2570, -inf
      %v2605 = vmax.f32 %v2597, %v2604
      %v2606 = vsel %vm422, %v2579, -inf
      %v2607 = vmax.f32 %v2599, %v2606
      %v2608 = vmax.f32 %v2601, %v2603
      %v2609 = vmax.f32 %v2605, %v2607
      %v2610 = vmax.f32 %v2608, %v2609
      %v2611 = vsub.f32 %v2444, %v2610
      %v2612 = vsub.f32 %v2453, %v2610
      %v2613 = vsub.f32 %v2462, %v2610
      %v2614 = vsub.f32 %v2471, %v2610
      %v2615 = vsub.f32 %v2480, %v2610
      %v2616 = vsub.f32 %v2489, %v2610
      %v2617 = vsub.f32 %v2498, %v2610
      %v2618 = vsub.f32 %v2507, %v2610
      %v2619 = vsub.f32 %v2516, %v2610
      %v2620 = vsub.f32 %v2525, %v2610
      %v2621 = vsub.f32 %v2534, %v2610
      %v2622 = vsub.f32 %v2543, %v2610
      %v2623 = vsub.f32 %v2552, %v2610
      %v2624 = vsub.f32 %v2561, %v2610
      %v2625 = vsub.f32 %v2570, %v2610
      %v2626 = vsub.f32 %v2579, %v2610
      %v2627 = vmul.f32 %v2611, 1.442695
      %v2628 = vpow.pop %v2627
      %v2629 = vmul.f32 %v2612, 1.442695
      %v2630 = vpow.pop %v2629
      %v2631 = vmul.f32 %v2613, 1.442695
      %v2632 = vpow.pop %v2631
      %v2633 = vmul.f32 %v2614, 1.442695
      %v2634 = vpow.pop %v2633
      %v2635 = vmul.f32 %v2615, 1.442695
      %v2636 = vpow.pop %v2635
      %v2637 = vmul.f32 %v2616, 1.442695
      %v2638 = vpow.pop %v2637
      %v2639 = vmul.f32 %v2617, 1.442695
      %v2640 = vpow.pop %v2639
      %v2641 = vmul.f32 %v2618, 1.442695
      %v2642 = vpow.pop %v2641
      %v2643 = vmul.f32 %v2619, 1.442695
      %v2644 = vpow.pop %v2643
      %v2645 = vmul.f32 %v2620, 1.442695
      %v2646 = vpow.pop %v2645
      %v2647 = vmul.f32 %v2621, 1.442695
      %v2648 = vpow.pop %v2647
      %v2649 = vmul.f32 %v2622, 1.442695
      %v2650 = vpow.pop %v2649
      %v2651 = vmul.f32 %v2623, 1.442695
      %v2652 = vpow.pop %v2651
      %v2653 = vmul.f32 %v2624, 1.442695
      %v2654 = vpow.pop %v2653
      %v2655 = vmul.f32 %v2625, 1.442695
      %v2656 = vpow.pop %v2655
      %v2657 = vmul.f32 %v2626, 1.442695
      %v2658 = vpow.pop %v2657
      %v2675 = vrot.slane %v2630, 7
      %v2676 = vsel %vm1178, %v2675, %v2628
      %v2677 = vrot.slane %v2632, 6
      %v2678 = vsel %vm1181, %v2677, %v2676
      %v2679 = vrot.slane %v2634, 5
      %v2680 = vsel %vm1184, %v2679, %v2678
      %v2681 = vrot.slane %v2636, 4
      %v2682 = vsel %vm1187, %v2681, %v2680
      %v2683 = vrot.slane %v2638, 3
      %v2684 = vsel %vm1190, %v2683, %v2682
      %v2685 = vrot.slane %v2640, 2
      %v2686 = vsel %vm1193, %v2685, %v2684
      %v2687 = vrot.slane %v2642, 1
      %v2688 = vsel %vm1196, %v2687, %v2686
      %v2689 = vrot.slane %v2646, 7
      %v2690 = vsel %vm1178, %v2689, %v2644
      %v2691 = vrot.slane %v2648, 6
      %v2692 = vsel %vm1181, %v2691, %v2690
      %v2693 = vrot.slane %v2650, 5
      %v2694 = vsel %vm1184, %v2693, %v2692
      %v2695 = vrot.slane %v2652, 4
      %v2696 = vsel %vm1187, %v2695, %v2694
      %v2697 = vrot.slane %v2654, 3
      %v2698 = vsel %vm1190, %v2697, %v2696
      %v2699 = vrot.slane %v2656, 2
      %v2700 = vsel %vm1193, %v2699, %v2698
      %v2701 = vrot.slane %v2658, 1
      %v2702 = vsel %vm1196, %v2701, %v2700
      %v2705 = vsel %vm422, %v2688, 0.0
      %v2706 = vsel %vm422, %v2702, 0.0
      %v2707 = vadd.f32 %v2705, %v2706
      %v2708 = vrot.slane %v2707, 4
      %v2709 = vadd.f32 %v2707, %v2708
      %v2710 = vrot.slane %v2709, 2
      %v2711 = vadd.f32 %v2709, %v2710
      %v2712 = vrot.slane %v2711, 1
      %v2713 = vadd.f32 %v2711, %v2712
      %v2714 = vlaneseq
      %v2715 = vshrl.u32 %v2714, 7
      %v2716 = vsub.s32 0, %v2715
      %v2717 = vrot.slane %v2713, %v2716
      %v2718 = vrcp.pop %v2717
      %v2719 = vmul.f32 %v2628, %v2718
      %v2720 = vmul.f32 %v2630, %v2718
      %v2721 = vmul.f32 %v2632, %v2718
      %v2722 = vmul.f32 %v2634, %v2718
      %v2723 = vmul.f32 %v2636, %v2718
      %v2724 = vmul.f32 %v2638, %v2718
      %v2725 = vmul.f32 %v2640, %v2718
      %v2726 = vmul.f32 %v2642, %v2718
      %v2727 = vmul.f32 %v2644, %v2718
      %v2728 = vmul.f32 %v2646, %v2718
      %v2729 = vmul.f32 %v2648, %v2718
      %v2730 = vmul.f32 %v2650, %v2718
      %v2731 = vmul.f32 %v2652, %v2718
      %v2732 = vmul.f32 %v2654, %v2718
      %v2733 = vmul.f32 %v2656, %v2718
      %v2734 = vmul.f32 %v2658, %v2718
      %v2735 = vlaneseq
      %v2736 = vshrl.u32 %v2735, 7
      %v2737 = vsub.s32 0, %v2736
      %v2738 = vrot.slane %v2719, %v2737
      %v2739 = vlaneseq
      %v2740 = vshrl.u32 %v2739, 7
      %v2741 = vsub.s32 0, %v2740
      %v2742 = vrot.slane %v2720, %v2741
      %v2743 = vlaneseq
      %v2744 = vshrl.u32 %v2743, 7
      %v2745 = vsub.s32 0, %v2744
      %v2746 = vrot.slane %v2721, %v2745
      %v2747 = vlaneseq
      %v2748 = vshrl.u32 %v2747, 7
      %v2749 = vsub.s32 0, %v2748
      %v2750 = vrot.slane %v2722, %v2749
      %v2751 = vlaneseq
      %v2752 = vshrl.u32 %v2751, 7
      %v2753 = vsub.s32 0, %v2752
      %v2754 = vrot.slane %v2723, %v2753
      %v2755 = vlaneseq
      %v2756 = vshrl.u32 %v2755, 7
      %v2757 = vsub.s32 0, %v2756
      %v2758 = vrot.slane %v2724, %v2757
      %v2759 = vlaneseq
      %v2760 = vshrl.u32 %v2759, 7
      %v2761 = vsub.s32 0, %v2760
      %v2762 = vrot.slane %v2725, %v2761
      %v2763 = vlaneseq
      %v2764 = vshrl.u32 %v2763, 7
      %v2765 = vsub.s32 0, %v2764
      %v2766 = vrot.slane %v2726, %v2765
      %v2767 = vlaneseq
      %v2768 = vshrl.u32 %v2767, 7
      %v2769 = vsub.s32 0, %v2768
      %v2770 = vrot.slane %v2727, %v2769
      %v2771 = vlaneseq
      %v2772 = vshrl.u32 %v2771, 7
      %v2773 = vsub.s32 0, %v2772
      %v2774 = vrot.slane %v2728, %v2773
      %v2775 = vlaneseq
      %v2776 = vshrl.u32 %v2775, 7
      %v2777 = vsub.s32 0, %v2776
      %v2778 = vrot.slane %v2729, %v2777
      %v2779 = vlaneseq
      %v2780 = vshrl.u32 %v2779, 7
      %v2781 = vsub.s32 0, %v2780
      %v2782 = vrot.slane %v2730, %v2781
      %v2783 = vlaneseq
      %v2784 = vshrl.u32 %v2783, 7
      %v2785 = vsub.s32 0, %v2784
      %v2786 = vrot.slane %v2731, %v2785
      %v2787 = vlaneseq
      %v2788 = vshrl.u32 %v2787, 7
      %v2789 = vsub.s32 0, %v2788
      %v2790 = vrot.slane %v2732, %v2789
      %v2791 = vlaneseq
      %v2792 = vshrl.u32 %v2791, 7
      %v2793 = vsub.s32 0, %v2792
      %v2794 = vrot.slane %v2733, %v2793
      %v2795 = vlaneseq
      %v2796 = vshrl.u32 %v2795, 7
      %v2797 = vsub.s32 0, %v2796
      %v2798 = vrot.slane %v2734, %v2797
      %v2799 = vmul.f32 %v2738, %v872
      %v2800 = vmul.f32 %v2738, %v873
      %v2801 = vmul.f32 %v2742, %v874
      %v2802 = vmul.f32 %v2742, %v875
      %v2803 = vmul.f32 %v2746, %v876
      %v2804 = vmul.f32 %v2746, %v877
      %v2805 = vmul.f32 %v2750, %v878
      %v2806 = vmul.f32 %v2750, %v879
      %v2807 = vmul.f32 %v2754, %v880
      %v2808 = vmul.f32 %v2754, %v881
      %v2809 = vmul.f32 %v2758, %v882
      %v2810 = vmul.f32 %v2758, %v883
      %v2811 = vmul.f32 %v2762, %v884
      %v2812 = vmul.f32 %v2762, %v885
      %v2813 = vmul.f32 %v2766, %v886
      %v2814 = vmul.f32 %v2766, %v887
      %v2815 = vmul.f32 %v2770, %v888
      %v2816 = vmul.f32 %v2770, %v889
      %v2817 = vmul.f32 %v2774, %v890
      %v2818 = vmul.f32 %v2774, %v891
      %v2819 = vmul.f32 %v2778, %v892
      %v2820 = vmul.f32 %v2778, %v893
      %v2821 = vmul.f32 %v2782, %v894
      %v2822 = vmul.f32 %v2782, %v895
      %v2823 = vmul.f32 %v2786, %v896
      %v2824 = vmul.f32 %v2786, %v897
      %v2825 = vmul.f32 %v2790, %v898
      %v2826 = vmul.f32 %v2790, %v899
      %v2827 = vmul.f32 %v2794, %v900
      %v2828 = vmul.f32 %v2794, %v901
      %v2829 = vmul.f32 %v2798, %v902
      %v2830 = vmul.f32 %v2798, %v903
      %v2831 = vsel %vm422, %v2799, 0.0
      %v2832 = vsel %vm422, %v2801, 0.0
      %v2833 = vadd.f32 %v2831, %v2832
      %v2834 = vsel %vm422, %v2803, 0.0
      %v2835 = vadd.f32 %v2833, %v2834
      %v2836 = vsel %vm422, %v2805, 0.0
      %v2837 = vadd.f32 %v2835, %v2836
      %v2838 = vsel %vm422, %v2807, 0.0
      %v2839 = vadd.f32 %v2837, %v2838
      %v2840 = vsel %vm422, %v2809, 0.0
      %v2841 = vadd.f32 %v2839, %v2840
      %v2842 = vsel %vm422, %v2811, 0.0
      %v2843 = vadd.f32 %v2841, %v2842
      %v2844 = vsel %vm422, %v2813, 0.0
      %v2845 = vadd.f32 %v2843, %v2844
      %v2846 = vsel %vm422, %v2815, 0.0
      %v2847 = vadd.f32 %v2845, %v2846
      %v2848 = vsel %vm422, %v2817, 0.0
      %v2849 = vadd.f32 %v2847, %v2848
      %v2850 = vsel %vm422, %v2819, 0.0
      %v2851 = vadd.f32 %v2849, %v2850
      %v2852 = vsel %vm422, %v2821, 0.0
      %v2853 = vadd.f32 %v2851, %v2852
      %v2854 = vsel %vm422, %v2823, 0.0
      %v2855 = vadd.f32 %v2853, %v2854
      %v2856 = vsel %vm422, %v2825, 0.0
      %v2857 = vadd.f32 %v2855, %v2856
      %v2858 = vsel %vm422, %v2827, 0.0
      %v2859 = vadd.f32 %v2857, %v2858
      %v2860 = vsel %vm422, %v2829, 0.0
      %v2861 = vadd.f32 %v2859, %v2860
      %v2862 = vsel %vm422, %v2800, 0.0
      %v2863 = vsel %vm422, %v2802, 0.0
      %v2864 = vadd.f32 %v2862, %v2863
      %v2865 = vsel %vm422, %v2804, 0.0
      %v2866 = vadd.f32 %v2864, %v2865
      %v2867 = vsel %vm422, %v2806, 0.0
      %v2868 = vadd.f32 %v2866, %v2867
      %v2869 = vsel %vm422, %v2808, 0.0
      %v2870 = vadd.f32 %v2868, %v2869
      %v2871 = vsel %vm422, %v2810, 0.0
      %v2872 = vadd.f32 %v2870, %v2871
      %v2873 = vsel %vm422, %v2812, 0.0
      %v2874 = vadd.f32 %v2872, %v2873
      %v2875 = vsel %vm422, %v2814, 0.0
      %v2876 = vadd.f32 %v2874, %v2875
      %v2877 = vsel %vm422, %v2816, 0.0
      %v2878 = vadd.f32 %v2876, %v2877
      %v2879 = vsel %vm422, %v2818, 0.0
      %v2880 = vadd.f32 %v2878, %v2879
      %v2881 = vsel %vm422, %v2820, 0.0
      %v2882 = vadd.f32 %v2880, %v2881
      %v2883 = vsel %vm422, %v2822, 0.0
      %v2884 = vadd.f32 %v2882, %v2883
      %v2885 = vsel %vm422, %v2824, 0.0
      %v2886 = vadd.f32 %v2884, %v2885
      %v2887 = vsel %vm422, %v2826, 0.0
      %v2888 = vadd.f32 %v2886, %v2887
      %v2889 = vsel %vm422, %v2828, 0.0
      %v2890 = vadd.f32 %v2888, %v2889
      %v2891 = vsel %vm422, %v2830, 0.0
      %v2892 = vadd.f32 %v2890, %v2891
      %v2893 = vld [vmem:[%s342 + $0x30] sm:$0xff]
      %v2894 = vld [vmem:[%s342 + $0x38] sm:$0xff]
      %v2895 = vadd.f32 %v2861, %v2893
      %v2896 = vadd.f32 %v2892, %v2894
      %2897 = vst.msk [vmem:[%s364 + $0x30] sm:$0xff] %vm422, %v2895
      %2898 = vst.msk [vmem:[%s364 + $0x38] sm:$0xff] %vm422, %v2896
      %v2899 = vld [vmem:[#allocation2 + $0x40] sm:$0xff]
      %v2900 = vld [vmem:[#allocation2 + $0x48] sm:$0xff]
      %v2901 = vmul.f32 %v2899, %v872
      %v2902 = vmul.f32 %v2900, %v873
      %v2903 = vmul.f32 %v2899, %v874
      %v2904 = vmul.f32 %v2900, %v875
      %v2905 = vmul.f32 %v2899, %v876
      %v2906 = vmul.f32 %v2900, %v877
      %v2907 = vmul.f32 %v2899, %v878
      %v2908 = vmul.f32 %v2900, %v879
      %v2909 = vmul.f32 %v2899, %v880
      %v2910 = vmul.f32 %v2900, %v881
      %v2911 = vmul.f32 %v2899, %v882
      %v2912 = vmul.f32 %v2900, %v883
      %v2913 = vmul.f32 %v2899, %v884
      %v2914 = vmul.f32 %v2900, %v885
      %v2915 = vmul.f32 %v2899, %v886
      %v2916 = vmul.f32 %v2900, %v887
      %v2917 = vmul.f32 %v2899, %v888
      %v2918 = vmul.f32 %v2900, %v889
      %v2919 = vmul.f32 %v2899, %v890
      %v2920 = vmul.f32 %v2900, %v891
      %v2921 = vmul.f32 %v2899, %v892
      %v2922 = vmul.f32 %v2900, %v893
      %v2923 = vmul.f32 %v2899, %v894
      %v2924 = vmul.f32 %v2900, %v895
      %v2925 = vmul.f32 %v2899, %v896
      %v2926 = vmul.f32 %v2900, %v897
      %v2927 = vmul.f32 %v2899, %v898
      %v2928 = vmul.f32 %v2900, %v899
      %v2929 = vmul.f32 %v2899, %v900
      %v2930 = vmul.f32 %v2900, %v901
      %v2931 = vmul.f32 %v2899, %v902
      %v2932 = vmul.f32 %v2900, %v903
      %v2933 = vsel %vm422, %v2901, 0.0
      %v2934 = vsel %vm422, %v2902, 0.0
      %v2935 = vadd.f32 %v2933, %v2934
      %v2936 = vrot.slane %v2935, 4
      %v2937 = vadd.f32 %v2935, %v2936
      %v2938 = vrot.slane %v2937, 2
      %v2939 = vadd.f32 %v2937, %v2938
      %v2940 = vrot.slane %v2939, 1
      %v2941 = vadd.f32 %v2939, %v2940
      %v2942 = vsel %vm422, %v2903, 0.0
      %v2943 = vsel %vm422, %v2904, 0.0
      %v2944 = vadd.f32 %v2942, %v2943
      %v2945 = vrot.slane %v2944, 4
      %v2946 = vadd.f32 %v2944, %v2945
      %v2947 = vrot.slane %v2946, 2
      %v2948 = vadd.f32 %v2946, %v2947
      %v2949 = vrot.slane %v2948, 1
      %v2950 = vadd.f32 %v2948, %v2949
      %v2951 = vsel %vm422, %v2905, 0.0
      %v2952 = vsel %vm422, %v2906, 0.0
      %v2953 = vadd.f32 %v2951, %v2952
      %v2954 = vrot.slane %v2953, 4
      %v2955 = vadd.f32 %v2953, %v2954
      %v2956 = vrot.slane %v2955, 2
      %v2957 = vadd.f32 %v2955, %v2956
      %v2958 = vrot.slane %v2957, 1
      %v2959 = vadd.f32 %v2957, %v2958
      %v2960 = vsel %vm422, %v2907, 0.0
      %v2961 = vsel %vm422, %v2908, 0.0
      %v2962 = vadd.f32 %v2960, %v2961
      %v2963 = vrot.slane %v2962, 4
      %v2964 = vadd.f32 %v2962, %v2963
      %v2965 = vrot.slane %v2964, 2
      %v2966 = vadd.f32 %v2964, %v2965
      %v2967 = vrot.slane %v2966, 1
      %v2968 = vadd.f32 %v2966, %v2967
      %v2969 = vsel %vm422, %v2909, 0.0
      %v2970 = vsel %vm422, %v2910, 0.0
      %v2971 = vadd.f32 %v2969, %v2970
      %v2972 = vrot.slane %v2971, 4
      %v2973 = vadd.f32 %v2971, %v2972
      %v2974 = vrot.slane %v2973, 2
      %v2975 = vadd.f32 %v2973, %v2974
      %v2976 = vrot.slane %v2975, 1
      %v2977 = vadd.f32 %v2975, %v2976
      %v2978 = vsel %vm422, %v2911, 0.0
      %v2979 = vsel %vm422, %v2912, 0.0
      %v2980 = vadd.f32 %v2978, %v2979
      %v2981 = vrot.slane %v2980, 4
      %v2982 = vadd.f32 %v2980, %v2981
      %v2983 = vrot.slane %v2982, 2
      %v2984 = vadd.f32 %v2982, %v2983
      %v2985 = vrot.slane %v2984, 1
      %v2986 = vadd.f32 %v2984, %v2985
      %v2987 = vsel %vm422, %v2913, 0.0
      %v2988 = vsel %vm422, %v2914, 0.0
      %v2989 = vadd.f32 %v2987, %v2988
      %v2990 = vrot.slane %v2989, 4
      %v2991 = vadd.f32 %v2989, %v2990
      %v2992 = vrot.slane %v2991, 2
      %v2993 = vadd.f32 %v2991, %v2992
      %v2994 = vrot.slane %v2993, 1
      %v2995 = vadd.f32 %v2993, %v2994
      %v2996 = vsel %vm422, %v2915, 0.0
      %v2997 = vsel %vm422, %v2916, 0.0
      %v2998 = vadd.f32 %v2996, %v2997
      %v2999 = vrot.slane %v2998, 4
      %v3000 = vadd.f32 %v2998, %v2999
      %v3001 = vrot.slane %v3000, 2
      %v3002 = vadd.f32 %v3000, %v3001
      %v3003 = vrot.slane %v3002, 1
      %v3004 = vadd.f32 %v3002, %v3003
      %v3005 = vsel %vm422, %v2917, 0.0
      %v3006 = vsel %vm422, %v2918, 0.0
      %v3007 = vadd.f32 %v3005, %v3006
      %v3008 = vrot.slane %v3007, 4
      %v3009 = vadd.f32 %v3007, %v3008
      %v3010 = vrot.slane %v3009, 2
      %v3011 = vadd.f32 %v3009, %v3010
      %v3012 = vrot.slane %v3011, 1
      %v3013 = vadd.f32 %v3011, %v3012
      %v3014 = vsel %vm422, %v2919, 0.0
      %v3015 = vsel %vm422, %v2920, 0.0
      %v3016 = vadd.f32 %v3014, %v3015
      %v3017 = vrot.slane %v3016, 4
      %v3018 = vadd.f32 %v3016, %v3017
      %v3019 = vrot.slane %v3018, 2
      %v3020 = vadd.f32 %v3018, %v3019
      %v3021 = vrot.slane %v3020, 1
      %v3022 = vadd.f32 %v3020, %v3021
      %v3023 = vsel %vm422, %v2921, 0.0
      %v3024 = vsel %vm422, %v2922, 0.0
      %v3025 = vadd.f32 %v3023, %v3024
      %v3026 = vrot.slane %v3025, 4
      %v3027 = vadd.f32 %v3025, %v3026
      %v3028 = vrot.slane %v3027, 2
      %v3029 = vadd.f32 %v3027, %v3028
      %v3030 = vrot.slane %v3029, 1
      %v3031 = vadd.f32 %v3029, %v3030
      %v3032 = vsel %vm422, %v2923, 0.0
      %v3033 = vsel %vm422, %v2924, 0.0
      %v3034 = vadd.f32 %v3032, %v3033
      %v3035 = vrot.slane %v3034, 4
      %v3036 = vadd.f32 %v3034, %v3035
      %v3037 = vrot.slane %v3036, 2
      %v3038 = vadd.f32 %v3036, %v3037
      %v3039 = vrot.slane %v3038, 1
      %v3040 = vadd.f32 %v3038, %v3039
      %v3041 = vsel %vm422, %v2925, 0.0
      %v3042 = vsel %vm422, %v2926, 0.0
      %v3043 = vadd.f32 %v3041, %v3042
      %v3044 = vrot.slane %v3043, 4
      %v3045 = vadd.f32 %v3043, %v3044
      %v3046 = vrot.slane %v3045, 2
      %v3047 = vadd.f32 %v3045, %v3046
      %v3048 = vrot.slane %v3047, 1
      %v3049 = vadd.f32 %v3047, %v3048
      %v3050 = vsel %vm422, %v2927, 0.0
      %v3051 = vsel %vm422, %v2928, 0.0
      %v3052 = vadd.f32 %v3050, %v3051
      %v3053 = vrot.slane %v3052, 4
      %v3054 = vadd.f32 %v3052, %v3053
      %v3055 = vrot.slane %v3054, 2
      %v3056 = vadd.f32 %v3054, %v3055
      %v3057 = vrot.slane %v3056, 1
      %v3058 = vadd.f32 %v3056, %v3057
      %v3059 = vsel %vm422, %v2929, 0.0
      %v3060 = vsel %vm422, %v2930, 0.0
      %v3061 = vadd.f32 %v3059, %v3060
      %v3062 = vrot.slane %v3061, 4
      %v3063 = vadd.f32 %v3061, %v3062
      %v3064 = vrot.slane %v3063, 2
      %v3065 = vadd.f32 %v3063, %v3064
      %v3066 = vrot.slane %v3065, 1
      %v3067 = vadd.f32 %v3065, %v3066
      %v3068 = vsel %vm422, %v2931, 0.0
      %v3069 = vsel %vm422, %v2932, 0.0
      %v3070 = vadd.f32 %v3068, %v3069
      %v3071 = vrot.slane %v3070, 4
      %v3072 = vadd.f32 %v3070, %v3071
      %v3073 = vrot.slane %v3072, 2
      %v3074 = vadd.f32 %v3072, %v3073
      %v3075 = vrot.slane %v3074, 1
      %v3076 = vadd.f32 %v3074, %v3075
      %v3077 = vsel %vm422, %v2941, -inf
      %v3078 = vsel %vm422, %v2950, -inf
      %v3079 = vsel %vm422, %v2959, -inf
      %v3080 = vsel %vm422, %v2968, -inf
      %v3081 = vsel %vm422, %v2977, -inf
      %v3082 = vmax.f32 %v3077, %v3081
      %v3083 = vsel %vm422, %v2986, -inf
      %v3084 = vmax.f32 %v3078, %v3083
      %v3085 = vsel %vm422, %v2995, -inf
      %v3086 = vmax.f32 %v3079, %v3085
      %v3087 = vsel %vm422, %v3004, -inf
      %v3088 = vmax.f32 %v3080, %v3087
      %v3089 = vsel %vm422, %v3013, -inf
      %v3090 = vmax.f32 %v3082, %v3089
      %v3091 = vsel %vm422, %v3022, -inf
      %v3092 = vmax.f32 %v3084, %v3091
      %v3093 = vsel %vm422, %v3031, -inf
      %v3094 = vmax.f32 %v3086, %v3093
      %v3095 = vsel %vm422, %v3040, -inf
      %v3096 = vmax.f32 %v3088, %v3095
      %v3097 = vsel %vm422, %v3049, -inf
      %v3098 = vmax.f32 %v3090, %v3097
      %v3099 = vsel %vm422, %v3058, -inf
      %v3100 = vmax.f32 %v3092, %v3099
      %v3101 = vsel %vm422, %v3067, -inf
      %v3102 = vmax.f32 %v3094, %v3101
      %v3103 = vsel %vm422, %v3076, -inf
      %v3104 = vmax.f32 %v3096, %v3103
      %v3105 = vmax.f32 %v3098, %v3100
      %v3106 = vmax.f32 %v3102, %v3104
      %v3107 = vmax.f32 %v3105, %v3106
      %v3108 = vsub.f32 %v2941, %v3107
      %v3109 = vsub.f32 %v2950, %v3107
      %v3110 = vsub.f32 %v2959, %v3107
      %v3111 = vsub.f32 %v2968, %v3107
      %v3112 = vsub.f32 %v2977, %v3107
      %v3113 = vsub.f32 %v2986, %v3107
      %v3114 = vsub.f32 %v2995, %v3107
      %v3115 = vsub.f32 %v3004, %v3107
      %v3116 = vsub.f32 %v3013, %v3107
      %v3117 = vsub.f32 %v3022, %v3107
      %v3118 = vsub.f32 %v3031, %v3107
      %v3119 = vsub.f32 %v3040, %v3107
      %v3120 = vsub.f32 %v3049, %v3107
      %v3121 = vsub.f32 %v3058, %v3107
      %v3122 = vsub.f32 %v3067, %v3107
      %v3123 = vsub.f32 %v3076, %v3107
      %v3124 = vmul.f32 %v3108, 1.442695
      %v3125 = vpow.pop %v3124
      %v3126 = vmul.f32 %v3109, 1.442695
      %v3127 = vpow.pop %v3126
      %v3128 = vmul.f32 %v3110, 1.442695
      %v3129 = vpow.pop %v3128
      %v3130 = vmul.f32 %v3111, 1.442695
      %v3131 = vpow.pop %v3130
      %v3132 = vmul.f32 %v3112, 1.442695
      %v3133 = vpow.pop %v3132
      %v3134 = vmul.f32 %v3113, 1.442695
      %v3135 = vpow.pop %v3134
      %v3136 = vmul.f32 %v3114, 1.442695
      %v3137 = vpow.pop %v3136
      %v3138 = vmul.f32 %v3115, 1.442695
      %v3139 = vpow.pop %v3138
      %v3140 = vmul.f32 %v3116, 1.442695
      %v3141 = vpow.pop %v3140
      %v3142 = vmul.f32 %v3117, 1.442695
      %v3143 = vpow.pop %v3142
      %v3144 = vmul.f32 %v3118, 1.442695
      %v3145 = vpow.pop %v3144
      %v3146 = vmul.f32 %v3119, 1.442695
      %v3147 = vpow.pop %v3146
      %v3148 = vmul.f32 %v3120, 1.442695
      %v3149 = vpow.pop %v3148
      %v3150 = vmul.f32 %v3121, 1.442695
      %v3151 = vpow.pop %v3150
      %v3152 = vmul.f32 %v3122, 1.442695
      %v3153 = vpow.pop %v3152
      %v3154 = vmul.f32 %v3123, 1.442695
      %v3155 = vpow.pop %v3154
      %v3172 = vrot.slane %v3127, 7
      %v3173 = vsel %vm1178, %v3172, %v3125
      %v3174 = vrot.slane %v3129, 6
      %v3175 = vsel %vm1181, %v3174, %v3173
      %v3176 = vrot.slane %v3131, 5
      %v3177 = vsel %vm1184, %v3176, %v3175
      %v3178 = vrot.slane %v3133, 4
      %v3179 = vsel %vm1187, %v3178, %v3177
      %v3180 = vrot.slane %v3135, 3
      %v3181 = vsel %vm1190, %v3180, %v3179
      %v3182 = vrot.slane %v3137, 2
      %v3183 = vsel %vm1193, %v3182, %v3181
      %v3184 = vrot.slane %v3139, 1
      %v3185 = vsel %vm1196, %v3184, %v3183
      %v3186 = vrot.slane %v3143, 7
      %v3187 = vsel %vm1178, %v3186, %v3141
      %v3188 = vrot.slane %v3145, 6
      %v3189 = vsel %vm1181, %v3188, %v3187
      %v3190 = vrot.slane %v3147, 5
      %v3191 = vsel %vm1184, %v3190, %v3189
      %v3192 = vrot.slane %v3149, 4
      %v3193 = vsel %vm1187, %v3192, %v3191
      %v3194 = vrot.slane %v3151, 3
      %v3195 = vsel %vm1190, %v3194, %v3193
      %v3196 = vrot.slane %v3153, 2
      %v3197 = vsel %vm1193, %v3196, %v3195
      %v3198 = vrot.slane %v3155, 1
      %v3199 = vsel %vm1196, %v3198, %v3197
      %v3202 = vsel %vm422, %v3185, 0.0
      %v3203 = vsel %vm422, %v3199, 0.0
      %v3204 = vadd.f32 %v3202, %v3203
      %v3205 = vrot.slane %v3204, 4
      %v3206 = vadd.f32 %v3204, %v3205
      %v3207 = vrot.slane %v3206, 2
      %v3208 = vadd.f32 %v3206, %v3207
      %v3209 = vrot.slane %v3208, 1
      %v3210 = vadd.f32 %v3208, %v3209
      %v3211 = vlaneseq
      %v3212 = vshrl.u32 %v3211, 7
      %v3213 = vsub.s32 0, %v3212
      %v3214 = vrot.slane %v3210, %v3213
      %v3215 = vrcp.pop %v3214
      %v3216 = vmul.f32 %v3125, %v3215
      %v3217 = vmul.f32 %v3127, %v3215
      %v3218 = vmul.f32 %v3129, %v3215
      %v3219 = vmul.f32 %v3131, %v3215
      %v3220 = vmul.f32 %v3133, %v3215
      %v3221 = vmul.f32 %v3135, %v3215
      %v3222 = vmul.f32 %v3137, %v3215
      %v3223 = vmul.f32 %v3139, %v3215
      %v3224 = vmul.f32 %v3141, %v3215
      %v3225 = vmul.f32 %v3143, %v3215
      %v3226 = vmul.f32 %v3145, %v3215
      %v3227 = vmul.f32 %v3147, %v3215
      %v3228 = vmul.f32 %v3149, %v3215
      %v3229 = vmul.f32 %v3151, %v3215
      %v3230 = vmul.f32 %v3153, %v3215
      %v3231 = vmul.f32 %v3155, %v3215
      %v3232 = vlaneseq
      %v3233 = vshrl.u32 %v3232, 7
      %v3234 = vsub.s32 0, %v3233
      %v3235 = vrot.slane %v3216, %v3234
      %v3236 = vlaneseq
      %v3237 = vshrl.u32 %v3236, 7
      %v3238 = vsub.s32 0, %v3237
      %v3239 = vrot.slane %v3217, %v3238
      %v3240 = vlaneseq
      %v3241 = vshrl.u32 %v3240, 7
      %v3242 = vsub.s32 0, %v3241
      %v3243 = vrot.slane %v3218, %v3242
      %v3244 = vlaneseq
      %v3245 = vshrl.u32 %v3244, 7
      %v3246 = vsub.s32 0, %v3245
      %v3247 = vrot.slane %v3219, %v3246
      %v3248 = vlaneseq
      %v3249 = vshrl.u32 %v3248, 7
      %v3250 = vsub.s32 0, %v3249
      %v3251 = vrot.slane %v3220, %v3250
      %v3252 = vlaneseq
      %v3253 = vshrl.u32 %v3252, 7
      %v3254 = vsub.s32 0, %v3253
      %v3255 = vrot.slane %v3221, %v3254
      %v3256 = vlaneseq
      %v3257 = vshrl.u32 %v3256, 7
      %v3258 = vsub.s32 0, %v3257
      %v3259 = vrot.slane %v3222, %v3258
      %v3260 = vlaneseq
      %v3261 = vshrl.u32 %v3260, 7
      %v3262 = vsub.s32 0, %v3261
      %v3263 = vrot.slane %v3223, %v3262
      %v3264 = vlaneseq
      %v3265 = vshrl.u32 %v3264, 7
      %v3266 = vsub.s32 0, %v3265
      %v3267 = vrot.slane %v3224, %v3266
      %v3268 = vlaneseq
      %v3269 = vshrl.u32 %v3268, 7
      %v3270 = vsub.s32 0, %v3269
      %v3271 = vrot.slane %v3225, %v3270
      %v3272 = vlaneseq
      %v3273 = vshrl.u32 %v3272, 7
      %v3274 = vsub.s32 0, %v3273
      %v3275 = vrot.slane %v3226, %v3274
      %v3276 = vlaneseq
      %v3277 = vshrl.u32 %v3276, 7
      %v3278 = vsub.s32 0, %v3277
      %v3279 = vrot.slane %v3227, %v3278
      %v3280 = vlaneseq
      %v3281 = vshrl.u32 %v3280, 7
      %v3282 = vsub.s32 0, %v3281
      %v3283 = vrot.slane %v3228, %v3282
      %v3284 = vlaneseq
      %v3285 = vshrl.u32 %v3284, 7
      %v3286 = vsub.s32 0, %v3285
      %v3287 = vrot.slane %v3229, %v3286
      %v3288 = vlaneseq
      %v3289 = vshrl.u32 %v3288, 7
      %v3290 = vsub.s32 0, %v3289
      %v3291 = vrot.slane %v3230, %v3290
      %v3292 = vlaneseq
      %v3293 = vshrl.u32 %v3292, 7
      %v3294 = vsub.s32 0, %v3293
      %v3295 = vrot.slane %v3231, %v3294
      %v3296 = vmul.f32 %v3235, %v872
      %v3297 = vmul.f32 %v3235, %v873
      %v3298 = vmul.f32 %v3239, %v874
      %v3299 = vmul.f32 %v3239, %v875
      %v3300 = vmul.f32 %v3243, %v876
      %v3301 = vmul.f32 %v3243, %v877
      %v3302 = vmul.f32 %v3247, %v878
      %v3303 = vmul.f32 %v3247, %v879
      %v3304 = vmul.f32 %v3251, %v880
      %v3305 = vmul.f32 %v3251, %v881
      %v3306 = vmul.f32 %v3255, %v882
      %v3307 = vmul.f32 %v3255, %v883
      %v3308 = vmul.f32 %v3259, %v884
      %v3309 = vmul.f32 %v3259, %v885
      %v3310 = vmul.f32 %v3263, %v886
      %v3311 = vmul.f32 %v3263, %v887
      %v3312 = vmul.f32 %v3267, %v888
      %v3313 = vmul.f32 %v3267, %v889
      %v3314 = vmul.f32 %v3271, %v890
      %v3315 = vmul.f32 %v3271, %v891
      %v3316 = vmul.f32 %v3275, %v892
      %v3317 = vmul.f32 %v3275, %v893
      %v3318 = vmul.f32 %v3279, %v894
      %v3319 = vmul.f32 %v3279, %v895
      %v3320 = vmul.f32 %v3283, %v896
      %v3321 = vmul.f32 %v3283, %v897
      %v3322 = vmul.f32 %v3287, %v898
      %v3323 = vmul.f32 %v3287, %v899
      %v3324 = vmul.f32 %v3291, %v900
      %v3325 = vmul.f32 %v3291, %v901
      %v3326 = vmul.f32 %v3295, %v902
      %v3327 = vmul.f32 %v3295, %v903
      %v3328 = vsel %vm422, %v3296, 0.0
      %v3329 = vsel %vm422, %v3298, 0.0
      %v3330 = vadd.f32 %v3328, %v3329
      %v3331 = vsel %vm422, %v3300, 0.0
      %v3332 = vadd.f32 %v3330, %v3331
      %v3333 = vsel %vm422, %v3302, 0.0
      %v3334 = vadd.f32 %v3332, %v3333
      %v3335 = vsel %vm422, %v3304, 0.0
      %v3336 = vadd.f32 %v3334, %v3335
      %v3337 = vsel %vm422, %v3306, 0.0
      %v3338 = vadd.f32 %v3336, %v3337
      %v3339 = vsel %vm422, %v3308, 0.0
      %v3340 = vadd.f32 %v3338, %v3339
      %v3341 = vsel %vm422, %v3310, 0.0
      %v3342 = vadd.f32 %v3340, %v3341
      %v3343 = vsel %vm422, %v3312, 0.0
      %v3344 = vadd.f32 %v3342, %v3343
      %v3345 = vsel %vm422, %v3314, 0.0
      %v3346 = vadd.f32 %v3344, %v3345
      %v3347 = vsel %vm422, %v3316, 0.0
      %v3348 = vadd.f32 %v3346, %v3347
      %v3349 = vsel %vm422, %v3318, 0.0
      %v3350 = vadd.f32 %v3348, %v3349
      %v3351 = vsel %vm422, %v3320, 0.0
      %v3352 = vadd.f32 %v3350, %v3351
      %v3353 = vsel %vm422, %v3322, 0.0
      %v3354 = vadd.f32 %v3352, %v3353
      %v3355 = vsel %vm422, %v3324, 0.0
      %v3356 = vadd.f32 %v3354, %v3355
      %v3357 = vsel %vm422, %v3326, 0.0
      %v3358 = vadd.f32 %v3356, %v3357
      %v3359 = vsel %vm422, %v3297, 0.0
      %v3360 = vsel %vm422, %v3299, 0.0
      %v3361 = vadd.f32 %v3359, %v3360
      %v3362 = vsel %vm422, %v3301, 0.0
      %v3363 = vadd.f32 %v3361, %v3362
      %v3364 = vsel %vm422, %v3303, 0.0
      %v3365 = vadd.f32 %v3363, %v3364
      %v3366 = vsel %vm422, %v3305, 0.0
      %v3367 = vadd.f32 %v3365, %v3366
      %v3368 = vsel %vm422, %v3307, 0.0
      %v3369 = vadd.f32 %v3367, %v3368
      %v3370 = vsel %vm422, %v3309, 0.0
      %v3371 = vadd.f32 %v3369, %v3370
      %v3372 = vsel %vm422, %v3311, 0.0
      %v3373 = vadd.f32 %v3371, %v3372
      %v3374 = vsel %vm422, %v3313, 0.0
      %v3375 = vadd.f32 %v3373, %v3374
      %v3376 = vsel %vm422, %v3315, 0.0
      %v3377 = vadd.f32 %v3375, %v3376
      %v3378 = vsel %vm422, %v3317, 0.0
      %v3379 = vadd.f32 %v3377, %v3378
      %v3380 = vsel %vm422, %v3319, 0.0
      %v3381 = vadd.f32 %v3379, %v3380
      %v3382 = vsel %vm422, %v3321, 0.0
      %v3383 = vadd.f32 %v3381, %v3382
      %v3384 = vsel %vm422, %v3323, 0.0
      %v3385 = vadd.f32 %v3383, %v3384
      %v3386 = vsel %vm422, %v3325, 0.0
      %v3387 = vadd.f32 %v3385, %v3386
      %v3388 = vsel %vm422, %v3327, 0.0
      %v3389 = vadd.f32 %v3387, %v3388
      %v3390 = vld [vmem:[%s342 + $0x40] sm:$0xff]
      %v3391 = vld [vmem:[%s342 + $0x48] sm:$0xff]
      %v3392 = vadd.f32 %v3358, %v3390
      %v3393 = vadd.f32 %v3389, %v3391
      %3394 = vst.msk [vmem:[%s364 + $0x40] sm:$0xff] %vm422, %v3392
      %3395 = vst.msk [vmem:[%s364 + $0x48] sm:$0xff] %vm422, %v3393
      %v3396 = vld [vmem:[#allocation2 + $0x50] sm:$0xff]
      %v3397 = vld [vmem:[#allocation2 + $0x58] sm:$0xff]
      %v3398 = vmul.f32 %v3396, %v872
      %v3399 = vmul.f32 %v3397, %v873
      %v3400 = vmul.f32 %v3396, %v874
      %v3401 = vmul.f32 %v3397, %v875
      %v3402 = vmul.f32 %v3396, %v876
      %v3403 = vmul.f32 %v3397, %v877
      %v3404 = vmul.f32 %v3396, %v878
      %v3405 = vmul.f32 %v3397, %v879
      %v3406 = vmul.f32 %v3396, %v880
      %v3407 = vmul.f32 %v3397, %v881
      %v3408 = vmul.f32 %v3396, %v882
      %v3409 = vmul.f32 %v3397, %v883
      %v3410 = vmul.f32 %v3396, %v884
      %v3411 = vmul.f32 %v3397, %v885
      %v3412 = vmul.f32 %v3396, %v886
      %v3413 = vmul.f32 %v3397, %v887
      %v3414 = vmul.f32 %v3396, %v888
      %v3415 = vmul.f32 %v3397, %v889
      %v3416 = vmul.f32 %v3396, %v890
      %v3417 = vmul.f32 %v3397, %v891
      %v3418 = vmul.f32 %v3396, %v892
      %v3419 = vmul.f32 %v3397, %v893
      %v3420 = vmul.f32 %v3396, %v894
      %v3421 = vmul.f32 %v3397, %v895
      %v3422 = vmul.f32 %v3396, %v896
      %v3423 = vmul.f32 %v3397, %v897
      %v3424 = vmul.f32 %v3396, %v898
      %v3425 = vmul.f32 %v3397, %v899
      %v3426 = vmul.f32 %v3396, %v900
      %v3427 = vmul.f32 %v3397, %v901
      %v3428 = vmul.f32 %v3396, %v902
      %v3429 = vmul.f32 %v3397, %v903
      %v3430 = vsel %vm422, %v3398, 0.0
      %v3431 = vsel %vm422, %v3399, 0.0
      %v3432 = vadd.f32 %v3430, %v3431
      %v3433 = vrot.slane %v3432, 4
      %v3434 = vadd.f32 %v3432, %v3433
      %v3435 = vrot.slane %v3434, 2
      %v3436 = vadd.f32 %v3434, %v3435
      %v3437 = vrot.slane %v3436, 1
      %v3438 = vadd.f32 %v3436, %v3437
      %v3439 = vsel %vm422, %v3400, 0.0
      %v3440 = vsel %vm422, %v3401, 0.0
      %v3441 = vadd.f32 %v3439, %v3440
      %v3442 = vrot.slane %v3441, 4
      %v3443 = vadd.f32 %v3441, %v3442
      %v3444 = vrot.slane %v3443, 2
      %v3445 = vadd.f32 %v3443, %v3444
      %v3446 = vrot.slane %v3445, 1
      %v3447 = vadd.f32 %v3445, %v3446
      %v3448 = vsel %vm422, %v3402, 0.0
      %v3449 = vsel %vm422, %v3403, 0.0
      %v3450 = vadd.f32 %v3448, %v3449
      %v3451 = vrot.slane %v3450, 4
      %v3452 = vadd.f32 %v3450, %v3451
      %v3453 = vrot.slane %v3452, 2
      %v3454 = vadd.f32 %v3452, %v3453
      %v3455 = vrot.slane %v3454, 1
      %v3456 = vadd.f32 %v3454, %v3455
      %v3457 = vsel %vm422, %v3404, 0.0
      %v3458 = vsel %vm422, %v3405, 0.0
      %v3459 = vadd.f32 %v3457, %v3458
      %v3460 = vrot.slane %v3459, 4
      %v3461 = vadd.f32 %v3459, %v3460
      %v3462 = vrot.slane %v3461, 2
      %v3463 = vadd.f32 %v3461, %v3462
      %v3464 = vrot.slane %v3463, 1
      %v3465 = vadd.f32 %v3463, %v3464
      %v3466 = vsel %vm422, %v3406, 0.0
      %v3467 = vsel %vm422, %v3407, 0.0
      %v3468 = vadd.f32 %v3466, %v3467
      %v3469 = vrot.slane %v3468, 4
      %v3470 = vadd.f32 %v3468, %v3469
      %v3471 = vrot.slane %v3470, 2
      %v3472 = vadd.f32 %v3470, %v3471
      %v3473 = vrot.slane %v3472, 1
      %v3474 = vadd.f32 %v3472, %v3473
      %v3475 = vsel %vm422, %v3408, 0.0
      %v3476 = vsel %vm422, %v3409, 0.0
      %v3477 = vadd.f32 %v3475, %v3476
      %v3478 = vrot.slane %v3477, 4
      %v3479 = vadd.f32 %v3477, %v3478
      %v3480 = vrot.slane %v3479, 2
      %v3481 = vadd.f32 %v3479, %v3480
      %v3482 = vrot.slane %v3481, 1
      %v3483 = vadd.f32 %v3481, %v3482
      %v3484 = vsel %vm422, %v3410, 0.0
      %v3485 = vsel %vm422, %v3411, 0.0
      %v3486 = vadd.f32 %v3484, %v3485
      %v3487 = vrot.slane %v3486, 4
      %v3488 = vadd.f32 %v3486, %v3487
      %v3489 = vrot.slane %v3488, 2
      %v3490 = vadd.f32 %v3488, %v3489
      %v3491 = vrot.slane %v3490, 1
      %v3492 = vadd.f32 %v3490, %v3491
      %v3493 = vsel %vm422, %v3412, 0.0
      %v3494 = vsel %vm422, %v3413, 0.0
      %v3495 = vadd.f32 %v3493, %v3494
      %v3496 = vrot.slane %v3495, 4
      %v3497 = vadd.f32 %v3495, %v3496
      %v3498 = vrot.slane %v3497, 2
      %v3499 = vadd.f32 %v3497, %v3498
      %v3500 = vrot.slane %v3499, 1
      %v3501 = vadd.f32 %v3499, %v3500
      %v3502 = vsel %vm422, %v3414, 0.0
      %v3503 = vsel %vm422, %v3415, 0.0
      %v3504 = vadd.f32 %v3502, %v3503
      %v3505 = vrot.slane %v3504, 4
      %v3506 = vadd.f32 %v3504, %v3505
      %v3507 = vrot.slane %v3506, 2
      %v3508 = vadd.f32 %v3506, %v3507
      %v3509 = vrot.slane %v3508, 1
      %v3510 = vadd.f32 %v3508, %v3509
      %v3511 = vsel %vm422, %v3416, 0.0
      %v3512 = vsel %vm422, %v3417, 0.0
      %v3513 = vadd.f32 %v3511, %v3512
      %v3514 = vrot.slane %v3513, 4
      %v3515 = vadd.f32 %v3513, %v3514
      %v3516 = vrot.slane %v3515, 2
      %v3517 = vadd.f32 %v3515, %v3516
      %v3518 = vrot.slane %v3517, 1
      %v3519 = vadd.f32 %v3517, %v3518
      %v3520 = vsel %vm422, %v3418, 0.0
      %v3521 = vsel %vm422, %v3419, 0.0
      %v3522 = vadd.f32 %v3520, %v3521
      %v3523 = vrot.slane %v3522, 4
      %v3524 = vadd.f32 %v3522, %v3523
      %v3525 = vrot.slane %v3524, 2
      %v3526 = vadd.f32 %v3524, %v3525
      %v3527 = vrot.slane %v3526, 1
      %v3528 = vadd.f32 %v3526, %v3527
      %v3529 = vsel %vm422, %v3420, 0.0
      %v3530 = vsel %vm422, %v3421, 0.0
      %v3531 = vadd.f32 %v3529, %v3530
      %v3532 = vrot.slane %v3531, 4
      %v3533 = vadd.f32 %v3531, %v3532
      %v3534 = vrot.slane %v3533, 2
      %v3535 = vadd.f32 %v3533, %v3534
      %v3536 = vrot.slane %v3535, 1
      %v3537 = vadd.f32 %v3535, %v3536
      %v3538 = vsel %vm422, %v3422, 0.0
      %v3539 = vsel %vm422, %v3423, 0.0
      %v3540 = vadd.f32 %v3538, %v3539
      %v3541 = vrot.slane %v3540, 4
      %v3542 = vadd.f32 %v3540, %v3541
      %v3543 = vrot.slane %v3542, 2
      %v3544 = vadd.f32 %v3542, %v3543
      %v3545 = vrot.slane %v3544, 1
      %v3546 = vadd.f32 %v3544, %v3545
      %v3547 = vsel %vm422, %v3424, 0.0
      %v3548 = vsel %vm422, %v3425, 0.0
      %v3549 = vadd.f32 %v3547, %v3548
      %v3550 = vrot.slane %v3549, 4
      %v3551 = vadd.f32 %v3549, %v3550
      %v3552 = vrot.slane %v3551, 2
      %v3553 = vadd.f32 %v3551, %v3552
      %v3554 = vrot.slane %v3553, 1
      %v3555 = vadd.f32 %v3553, %v3554
      %v3556 = vsel %vm422, %v3426, 0.0
      %v3557 = vsel %vm422, %v3427, 0.0
      %v3558 = vadd.f32 %v3556, %v3557
      %v3559 = vrot.slane %v3558, 4
      %v3560 = vadd.f32 %v3558, %v3559
      %v3561 = vrot.slane %v3560, 2
      %v3562 = vadd.f32 %v3560, %v3561
      %v3563 = vrot.slane %v3562, 1
      %v3564 = vadd.f32 %v3562, %v3563
      %v3565 = vsel %vm422, %v3428, 0.0
      %v3566 = vsel %vm422, %v3429, 0.0
      %v3567 = vadd.f32 %v3565, %v3566
      %v3568 = vrot.slane %v3567, 4
      %v3569 = vadd.f32 %v3567, %v3568
      %v3570 = vrot.slane %v3569, 2
      %v3571 = vadd.f32 %v3569, %v3570
      %v3572 = vrot.slane %v3571, 1
      %v3573 = vadd.f32 %v3571, %v3572
      %v3574 = vsel %vm422, %v3438, -inf
      %v3575 = vsel %vm422, %v3447, -inf
      %v3576 = vsel %vm422, %v3456, -inf
      %v3577 = vsel %vm422, %v3465, -inf
      %v3578 = vsel %vm422, %v3474, -inf
      %v3579 = vmax.f32 %v3574, %v3578
      %v3580 = vsel %vm422, %v3483, -inf
      %v3581 = vmax.f32 %v3575, %v3580
      %v3582 = vsel %vm422, %v3492, -inf
      %v3583 = vmax.f32 %v3576, %v3582
      %v3584 = vsel %vm422, %v3501, -inf
      %v3585 = vmax.f32 %v3577, %v3584
      %v3586 = vsel %vm422, %v3510, -inf
      %v3587 = vmax.f32 %v3579, %v3586
      %v3588 = vsel %vm422, %v3519, -inf
      %v3589 = vmax.f32 %v3581, %v3588
      %v3590 = vsel %vm422, %v3528, -inf
      %v3591 = vmax.f32 %v3583, %v3590
      %v3592 = vsel %vm422, %v3537, -inf
      %v3593 = vmax.f32 %v3585, %v3592
      %v3594 = vsel %vm422, %v3546, -inf
      %v3595 = vmax.f32 %v3587, %v3594
      %v3596 = vsel %vm422, %v3555, -inf
      %v3597 = vmax.f32 %v3589, %v3596
      %v3598 = vsel %vm422, %v3564, -inf
      %v3599 = vmax.f32 %v3591, %v3598
      %v3600 = vsel %vm422, %v3573, -inf
      %v3601 = vmax.f32 %v3593, %v3600
      %v3602 = vmax.f32 %v3595, %v3597
      %v3603 = vmax.f32 %v3599, %v3601
      %v3604 = vmax.f32 %v3602, %v3603
      %v3605 = vsub.f32 %v3438, %v3604
      %v3606 = vsub.f32 %v3447, %v3604
      %v3607 = vsub.f32 %v3456, %v3604
      %v3608 = vsub.f32 %v3465, %v3604
      %v3609 = vsub.f32 %v3474, %v3604
      %v3610 = vsub.f32 %v3483, %v3604
      %v3611 = vsub.f32 %v3492, %v3604
      %v3612 = vsub.f32 %v3501, %v3604
      %v3613 = vsub.f32 %v3510, %v3604
      %v3614 = vsub.f32 %v3519, %v3604
      %v3615 = vsub.f32 %v3528, %v3604
      %v3616 = vsub.f32 %v3537, %v3604
      %v3617 = vsub.f32 %v3546, %v3604
      %v3618 = vsub.f32 %v3555, %v3604
      %v3619 = vsub.f32 %v3564, %v3604
      %v3620 = vsub.f32 %v3573, %v3604
      %v3621 = vmul.f32 %v3605, 1.442695
      %v3622 = vpow.pop %v3621
      %v3623 = vmul.f32 %v3606, 1.442695
      %v3624 = vpow.pop %v3623
      %v3625 = vmul.f32 %v3607, 1.442695
      %v3626 = vpow.pop %v3625
      %v3627 = vmul.f32 %v3608, 1.442695
      %v3628 = vpow.pop %v3627
      %v3629 = vmul.f32 %v3609, 1.442695
      %v3630 = vpow.pop %v3629
      %v3631 = vmul.f32 %v3610, 1.442695
      %v3632 = vpow.pop %v3631
      %v3633 = vmul.f32 %v3611, 1.442695
      %v3634 = vpow.pop %v3633
      %v3635 = vmul.f32 %v3612, 1.442695
      %v3636 = vpow.pop %v3635
      %v3637 = vmul.f32 %v3613, 1.442695
      %v3638 = vpow.pop %v3637
      %v3639 = vmul.f32 %v3614, 1.442695
      %v3640 = vpow.pop %v3639
      %v3641 = vmul.f32 %v3615, 1.442695
      %v3642 = vpow.pop %v3641
      %v3643 = vmul.f32 %v3616, 1.442695
      %v3644 = vpow.pop %v3643
      %v3645 = vmul.f32 %v3617, 1.442695
      %v3646 = vpow.pop %v3645
      %v3647 = vmul.f32 %v3618, 1.442695
      %v3648 = vpow.pop %v3647
      %v3649 = vmul.f32 %v3619, 1.442695
      %v3650 = vpow.pop %v3649
      %v3651 = vmul.f32 %v3620, 1.442695
      %v3652 = vpow.pop %v3651
      %v3669 = vrot.slane %v3624, 7
      %v3670 = vsel %vm1178, %v3669, %v3622
      %v3671 = vrot.slane %v3626, 6
      %v3672 = vsel %vm1181, %v3671, %v3670
      %v3673 = vrot.slane %v3628, 5
      %v3674 = vsel %vm1184, %v3673, %v3672
      %v3675 = vrot.slane %v3630, 4
      %v3676 = vsel %vm1187, %v3675, %v3674
      %v3677 = vrot.slane %v3632, 3
      %v3678 = vsel %vm1190, %v3677, %v3676
      %v3679 = vrot.slane %v3634, 2
      %v3680 = vsel %vm1193, %v3679, %v3678
      %v3681 = vrot.slane %v3636, 1
      %v3682 = vsel %vm1196, %v3681, %v3680
      %v3683 = vrot.slane %v3640, 7
      %v3684 = vsel %vm1178, %v3683, %v3638
      %v3685 = vrot.slane %v3642, 6
      %v3686 = vsel %vm1181, %v3685, %v3684
      %v3687 = vrot.slane %v3644, 5
      %v3688 = vsel %vm1184, %v3687, %v3686
      %v3689 = vrot.slane %v3646, 4
      %v3690 = vsel %vm1187, %v3689, %v3688
      %v3691 = vrot.slane %v3648, 3
      %v3692 = vsel %vm1190, %v3691, %v3690
      %v3693 = vrot.slane %v3650, 2
      %v3694 = vsel %vm1193, %v3693, %v3692
      %v3695 = vrot.slane %v3652, 1
      %v3696 = vsel %vm1196, %v3695, %v3694
      %v3699 = vsel %vm422, %v3682, 0.0
      %v3700 = vsel %vm422, %v3696, 0.0
      %v3701 = vadd.f32 %v3699, %v3700
      %v3702 = vrot.slane %v3701, 4
      %v3703 = vadd.f32 %v3701, %v3702
      %v3704 = vrot.slane %v3703, 2
      %v3705 = vadd.f32 %v3703, %v3704
      %v3706 = vrot.slane %v3705, 1
      %v3707 = vadd.f32 %v3705, %v3706
      %v3708 = vlaneseq
      %v3709 = vshrl.u32 %v3708, 7
      %v3710 = vsub.s32 0, %v3709
      %v3711 = vrot.slane %v3707, %v3710
      %v3712 = vrcp.pop %v3711
      %v3713 = vmul.f32 %v3622, %v3712
      %v3714 = vmul.f32 %v3624, %v3712
      %v3715 = vmul.f32 %v3626, %v3712
      %v3716 = vmul.f32 %v3628, %v3712
      %v3717 = vmul.f32 %v3630, %v3712
      %v3718 = vmul.f32 %v3632, %v3712
      %v3719 = vmul.f32 %v3634, %v3712
      %v3720 = vmul.f32 %v3636, %v3712
      %v3721 = vmul.f32 %v3638, %v3712
      %v3722 = vmul.f32 %v3640, %v3712
      %v3723 = vmul.f32 %v3642, %v3712
      %v3724 = vmul.f32 %v3644, %v3712
      %v3725 = vmul.f32 %v3646, %v3712
      %v3726 = vmul.f32 %v3648, %v3712
      %v3727 = vmul.f32 %v3650, %v3712
      %v3728 = vmul.f32 %v3652, %v3712
      %v3729 = vlaneseq
      %v3730 = vshrl.u32 %v3729, 7
      %v3731 = vsub.s32 0, %v3730
      %v3732 = vrot.slane %v3713, %v3731
      %v3733 = vlaneseq
      %v3734 = vshrl.u32 %v3733, 7
      %v3735 = vsub.s32 0, %v3734
      %v3736 = vrot.slane %v3714, %v3735
      %v3737 = vlaneseq
      %v3738 = vshrl.u32 %v3737, 7
      %v3739 = vsub.s32 0, %v3738
      %v3740 = vrot.slane %v3715, %v3739
      %v3741 = vlaneseq
      %v3742 = vshrl.u32 %v3741, 7
      %v3743 = vsub.s32 0, %v3742
      %v3744 = vrot.slane %v3716, %v3743
      %v3745 = vlaneseq
      %v3746 = vshrl.u32 %v3745, 7
      %v3747 = vsub.s32 0, %v3746
      %v3748 = vrot.slane %v3717, %v3747
      %v3749 = vlaneseq
      %v3750 = vshrl.u32 %v3749, 7
      %v3751 = vsub.s32 0, %v3750
      %v3752 = vrot.slane %v3718, %v3751
      %v3753 = vlaneseq
      %v3754 = vshrl.u32 %v3753, 7
      %v3755 = vsub.s32 0, %v3754
      %v3756 = vrot.slane %v3719, %v3755
      %v3757 = vlaneseq
      %v3758 = vshrl.u32 %v3757, 7
      %v3759 = vsub.s32 0, %v3758
      %v3760 = vrot.slane %v3720, %v3759
      %v3761 = vlaneseq
      %v3762 = vshrl.u32 %v3761, 7
      %v3763 = vsub.s32 0, %v3762
      %v3764 = vrot.slane %v3721, %v3763
      %v3765 = vlaneseq
      %v3766 = vshrl.u32 %v3765, 7
      %v3767 = vsub.s32 0, %v3766
      %v3768 = vrot.slane %v3722, %v3767
      %v3769 = vlaneseq
      %v3770 = vshrl.u32 %v3769, 7
      %v3771 = vsub.s32 0, %v3770
      %v3772 = vrot.slane %v3723, %v3771
      %v3773 = vlaneseq
      %v3774 = vshrl.u32 %v3773, 7
      %v3775 = vsub.s32 0, %v3774
      %v3776 = vrot.slane %v3724, %v3775
      %v3777 = vlaneseq
      %v3778 = vshrl.u32 %v3777, 7
      %v3779 = vsub.s32 0, %v3778
      %v3780 = vrot.slane %v3725, %v3779
      %v3781 = vlaneseq
      %v3782 = vshrl.u32 %v3781, 7
      %v3783 = vsub.s32 0, %v3782
      %v3784 = vrot.slane %v3726, %v3783
      %v3785 = vlaneseq
      %v3786 = vshrl.u32 %v3785, 7
      %v3787 = vsub.s32 0, %v3786
      %v3788 = vrot.slane %v3727, %v3787
      %v3789 = vlaneseq
      %v3790 = vshrl.u32 %v3789, 7
      %v3791 = vsub.s32 0, %v3790
      %v3792 = vrot.slane %v3728, %v3791
      %v3793 = vmul.f32 %v3732, %v872
      %v3794 = vmul.f32 %v3732, %v873
      %v3795 = vmul.f32 %v3736, %v874
      %v3796 = vmul.f32 %v3736, %v875
      %v3797 = vmul.f32 %v3740, %v876
      %v3798 = vmul.f32 %v3740, %v877
      %v3799 = vmul.f32 %v3744, %v878
      %v3800 = vmul.f32 %v3744, %v879
      %v3801 = vmul.f32 %v3748, %v880
      %v3802 = vmul.f32 %v3748, %v881
      %v3803 = vmul.f32 %v3752, %v882
      %v3804 = vmul.f32 %v3752, %v883
      %v3805 = vmul.f32 %v3756, %v884
      %v3806 = vmul.f32 %v3756, %v885
      %v3807 = vmul.f32 %v3760, %v886
      %v3808 = vmul.f32 %v3760, %v887
      %v3809 = vmul.f32 %v3764, %v888
      %v3810 = vmul.f32 %v3764, %v889
      %v3811 = vmul.f32 %v3768, %v890
      %v3812 = vmul.f32 %v3768, %v891
      %v3813 = vmul.f32 %v3772, %v892
      %v3814 = vmul.f32 %v3772, %v893
      %v3815 = vmul.f32 %v3776, %v894
      %v3816 = vmul.f32 %v3776, %v895
      %v3817 = vmul.f32 %v3780, %v896
      %v3818 = vmul.f32 %v3780, %v897
      %v3819 = vmul.f32 %v3784, %v898
      %v3820 = vmul.f32 %v3784, %v899
      %v3821 = vmul.f32 %v3788, %v900
      %v3822 = vmul.f32 %v3788, %v901
      %v3823 = vmul.f32 %v3792, %v902
      %v3824 = vmul.f32 %v3792, %v903
      %v3825 = vsel %vm422, %v3793, 0.0
      %v3826 = vsel %vm422, %v3795, 0.0
      %v3827 = vadd.f32 %v3825, %v3826
      %v3828 = vsel %vm422, %v3797, 0.0
      %v3829 = vadd.f32 %v3827, %v3828
      %v3830 = vsel %vm422, %v3799, 0.0
      %v3831 = vadd.f32 %v3829, %v3830
      %v3832 = vsel %vm422, %v3801, 0.0
      %v3833 = vadd.f32 %v3831, %v3832
      %v3834 = vsel %vm422, %v3803, 0.0
      %v3835 = vadd.f32 %v3833, %v3834
      %v3836 = vsel %vm422, %v3805, 0.0
      %v3837 = vadd.f32 %v3835, %v3836
      %v3838 = vsel %vm422, %v3807, 0.0
      %v3839 = vadd.f32 %v3837, %v3838
      %v3840 = vsel %vm422, %v3809, 0.0
      %v3841 = vadd.f32 %v3839, %v3840
      %v3842 = vsel %vm422, %v3811, 0.0
      %v3843 = vadd.f32 %v3841, %v3842
      %v3844 = vsel %vm422, %v3813, 0.0
      %v3845 = vadd.f32 %v3843, %v3844
      %v3846 = vsel %vm422, %v3815, 0.0
      %v3847 = vadd.f32 %v3845, %v3846
      %v3848 = vsel %vm422, %v3817, 0.0
      %v3849 = vadd.f32 %v3847, %v3848
      %v3850 = vsel %vm422, %v3819, 0.0
      %v3851 = vadd.f32 %v3849, %v3850
      %v3852 = vsel %vm422, %v3821, 0.0
      %v3853 = vadd.f32 %v3851, %v3852
      %v3854 = vsel %vm422, %v3823, 0.0
      %v3855 = vadd.f32 %v3853, %v3854
      %v3856 = vsel %vm422, %v3794, 0.0
      %v3857 = vsel %vm422, %v3796, 0.0
      %v3858 = vadd.f32 %v3856, %v3857
      %v3859 = vsel %vm422, %v3798, 0.0
      %v3860 = vadd.f32 %v3858, %v3859
      %v3861 = vsel %vm422, %v3800, 0.0
      %v3862 = vadd.f32 %v3860, %v3861
      %v3863 = vsel %vm422, %v3802, 0.0
      %v3864 = vadd.f32 %v3862, %v3863
      %v3865 = vsel %vm422, %v3804, 0.0
      %v3866 = vadd.f32 %v3864, %v3865
      %v3867 = vsel %vm422, %v3806, 0.0
      %v3868 = vadd.f32 %v3866, %v3867
      %v3869 = vsel %vm422, %v3808, 0.0
      %v3870 = vadd.f32 %v3868, %v3869
      %v3871 = vsel %vm422, %v3810, 0.0
      %v3872 = vadd.f32 %v3870, %v3871
      %v3873 = vsel %vm422, %v3812, 0.0
      %v3874 = vadd.f32 %v3872, %v3873
      %v3875 = vsel %vm422, %v3814, 0.0
      %v3876 = vadd.f32 %v3874, %v3875
      %v3877 = vsel %vm422, %v3816, 0.0
      %v3878 = vadd.f32 %v3876, %v3877
      %v3879 = vsel %vm422, %v3818, 0.0
      %v3880 = vadd.f32 %v3878, %v3879
      %v3881 = vsel %vm422, %v3820, 0.0
      %v3882 = vadd.f32 %v3880, %v3881
      %v3883 = vsel %vm422, %v3822, 0.0
      %v3884 = vadd.f32 %v3882, %v3883
      %v3885 = vsel %vm422, %v3824, 0.0
      %v3886 = vadd.f32 %v3884, %v3885
      %v3887 = vld [vmem:[%s342 + $0x50] sm:$0xff]
      %v3888 = vld [vmem:[%s342 + $0x58] sm:$0xff]
      %v3889 = vadd.f32 %v3855, %v3887
      %v3890 = vadd.f32 %v3886, %v3888
      %3891 = vst.msk [vmem:[%s364 + $0x50] sm:$0xff] %vm422, %v3889
      %3892 = vst.msk [vmem:[%s364 + $0x58] sm:$0xff] %vm422, %v3890
      %v3893 = vld [vmem:[#allocation2 + $0x60] sm:$0xff]
      %v3894 = vld [vmem:[#allocation2 + $0x68] sm:$0xff]
      %v3895 = vmul.f32 %v3893, %v872
      %v3896 = vmul.f32 %v3894, %v873
      %v3897 = vmul.f32 %v3893, %v874
      %v3898 = vmul.f32 %v3894, %v875
      %v3899 = vmul.f32 %v3893, %v876
      %v3900 = vmul.f32 %v3894, %v877
      %v3901 = vmul.f32 %v3893, %v878
      %v3902 = vmul.f32 %v3894, %v879
      %v3903 = vmul.f32 %v3893, %v880
      %v3904 = vmul.f32 %v3894, %v881
      %v3905 = vmul.f32 %v3893, %v882
      %v3906 = vmul.f32 %v3894, %v883
      %v3907 = vmul.f32 %v3893, %v884
      %v3908 = vmul.f32 %v3894, %v885
      %v3909 = vmul.f32 %v3893, %v886
      %v3910 = vmul.f32 %v3894, %v887
      %v3911 = vmul.f32 %v3893, %v888
      %v3912 = vmul.f32 %v3894, %v889
      %v3913 = vmul.f32 %v3893, %v890
      %v3914 = vmul.f32 %v3894, %v891
      %v3915 = vmul.f32 %v3893, %v892
      %v3916 = vmul.f32 %v3894, %v893
      %v3917 = vmul.f32 %v3893, %v894
      %v3918 = vmul.f32 %v3894, %v895
      %v3919 = vmul.f32 %v3893, %v896
      %v3920 = vmul.f32 %v3894, %v897
      %v3921 = vmul.f32 %v3893, %v898
      %v3922 = vmul.f32 %v3894, %v899
      %v3923 = vmul.f32 %v3893, %v900
      %v3924 = vmul.f32 %v3894, %v901
      %v3925 = vmul.f32 %v3893, %v902
      %v3926 = vmul.f32 %v3894, %v903
      %v3927 = vsel %vm422, %v3895, 0.0
      %v3928 = vsel %vm422, %v3896, 0.0
      %v3929 = vadd.f32 %v3927, %v3928
      %v3930 = vrot.slane %v3929, 4
      %v3931 = vadd.f32 %v3929, %v3930
      %v3932 = vrot.slane %v3931, 2
      %v3933 = vadd.f32 %v3931, %v3932
      %v3934 = vrot.slane %v3933, 1
      %v3935 = vadd.f32 %v3933, %v3934
      %v3936 = vsel %vm422, %v3897, 0.0
      %v3937 = vsel %vm422, %v3898, 0.0
      %v3938 = vadd.f32 %v3936, %v3937
      %v3939 = vrot.slane %v3938, 4
      %v3940 = vadd.f32 %v3938, %v3939
      %v3941 = vrot.slane %v3940, 2
      %v3942 = vadd.f32 %v3940, %v3941
      %v3943 = vrot.slane %v3942, 1
      %v3944 = vadd.f32 %v3942, %v3943
      %v3945 = vsel %vm422, %v3899, 0.0
      %v3946 = vsel %vm422, %v3900, 0.0
      %v3947 = vadd.f32 %v3945, %v3946
      %v3948 = vrot.slane %v3947, 4
      %v3949 = vadd.f32 %v3947, %v3948
      %v3950 = vrot.slane %v3949, 2
      %v3951 = vadd.f32 %v3949, %v3950
      %v3952 = vrot.slane %v3951, 1
      %v3953 = vadd.f32 %v3951, %v3952
      %v3954 = vsel %vm422, %v3901, 0.0
      %v3955 = vsel %vm422, %v3902, 0.0
      %v3956 = vadd.f32 %v3954, %v3955
      %v3957 = vrot.slane %v3956, 4
      %v3958 = vadd.f32 %v3956, %v3957
      %v3959 = vrot.slane %v3958, 2
      %v3960 = vadd.f32 %v3958, %v3959
      %v3961 = vrot.slane %v3960, 1
      %v3962 = vadd.f32 %v3960, %v3961
      %v3963 = vsel %vm422, %v3903, 0.0
      %v3964 = vsel %vm422, %v3904, 0.0
      %v3965 = vadd.f32 %v3963, %v3964
      %v3966 = vrot.slane %v3965, 4
      %v3967 = vadd.f32 %v3965, %v3966
      %v3968 = vrot.slane %v3967, 2
      %v3969 = vadd.f32 %v3967, %v3968
      %v3970 = vrot.slane %v3969, 1
      %v3971 = vadd.f32 %v3969, %v3970
      %v3972 = vsel %vm422, %v3905, 0.0
      %v3973 = vsel %vm422, %v3906, 0.0
      %v3974 = vadd.f32 %v3972, %v3973
      %v3975 = vrot.slane %v3974, 4
      %v3976 = vadd.f32 %v3974, %v3975
      %v3977 = vrot.slane %v3976, 2
      %v3978 = vadd.f32 %v3976, %v3977
      %v3979 = vrot.slane %v3978, 1
      %v3980 = vadd.f32 %v3978, %v3979
      %v3981 = vsel %vm422, %v3907, 0.0
      %v3982 = vsel %vm422, %v3908, 0.0
      %v3983 = vadd.f32 %v3981, %v3982
      %v3984 = vrot.slane %v3983, 4
      %v3985 = vadd.f32 %v3983, %v3984
      %v3986 = vrot.slane %v3985, 2
      %v3987 = vadd.f32 %v3985, %v3986
      %v3988 = vrot.slane %v3987, 1
      %v3989 = vadd.f32 %v3987, %v3988
      %v3990 = vsel %vm422, %v3909, 0.0
      %v3991 = vsel %vm422, %v3910, 0.0
      %v3992 = vadd.f32 %v3990, %v3991
      %v3993 = vrot.slane %v3992, 4
      %v3994 = vadd.f32 %v3992, %v3993
      %v3995 = vrot.slane %v3994, 2
      %v3996 = vadd.f32 %v3994, %v3995
      %v3997 = vrot.slane %v3996, 1
      %v3998 = vadd.f32 %v3996, %v3997
      %v3999 = vsel %vm422, %v3911, 0.0
      %v4000 = vsel %vm422, %v3912, 0.0
      %v4001 = vadd.f32 %v3999, %v4000
      %v4002 = vrot.slane %v4001, 4
      %v4003 = vadd.f32 %v4001, %v4002
      %v4004 = vrot.slane %v4003, 2
      %v4005 = vadd.f32 %v4003, %v4004
      %v4006 = vrot.slane %v4005, 1
      %v4007 = vadd.f32 %v4005, %v4006
      %v4008 = vsel %vm422, %v3913, 0.0
      %v4009 = vsel %vm422, %v3914, 0.0
      %v4010 = vadd.f32 %v4008, %v4009
      %v4011 = vrot.slane %v4010, 4
      %v4012 = vadd.f32 %v4010, %v4011
      %v4013 = vrot.slane %v4012, 2
      %v4014 = vadd.f32 %v4012, %v4013
      %v4015 = vrot.slane %v4014, 1
      %v4016 = vadd.f32 %v4014, %v4015
      %v4017 = vsel %vm422, %v3915, 0.0
      %v4018 = vsel %vm422, %v3916, 0.0
      %v4019 = vadd.f32 %v4017, %v4018
      %v4020 = vrot.slane %v4019, 4
      %v4021 = vadd.f32 %v4019, %v4020
      %v4022 = vrot.slane %v4021, 2
      %v4023 = vadd.f32 %v4021, %v4022
      %v4024 = vrot.slane %v4023, 1
      %v4025 = vadd.f32 %v4023, %v4024
      %v4026 = vsel %vm422, %v3917, 0.0
      %v4027 = vsel %vm422, %v3918, 0.0
      %v4028 = vadd.f32 %v4026, %v4027
      %v4029 = vrot.slane %v4028, 4
      %v4030 = vadd.f32 %v4028, %v4029
      %v4031 = vrot.slane %v4030, 2
      %v4032 = vadd.f32 %v4030, %v4031
      %v4033 = vrot.slane %v4032, 1
      %v4034 = vadd.f32 %v4032, %v4033
      %v4035 = vsel %vm422, %v3919, 0.0
      %v4036 = vsel %vm422, %v3920, 0.0
      %v4037 = vadd.f32 %v4035, %v4036
      %v4038 = vrot.slane %v4037, 4
      %v4039 = vadd.f32 %v4037, %v4038
      %v4040 = vrot.slane %v4039, 2
      %v4041 = vadd.f32 %v4039, %v4040
      %v4042 = vrot.slane %v4041, 1
      %v4043 = vadd.f32 %v4041, %v4042
      %v4044 = vsel %vm422, %v3921, 0.0
      %v4045 = vsel %vm422, %v3922, 0.0
      %v4046 = vadd.f32 %v4044, %v4045
      %v4047 = vrot.slane %v4046, 4
      %v4048 = vadd.f32 %v4046, %v4047
      %v4049 = vrot.slane %v4048, 2
      %v4050 = vadd.f32 %v4048, %v4049
      %v4051 = vrot.slane %v4050, 1
      %v4052 = vadd.f32 %v4050, %v4051
      %v4053 = vsel %vm422, %v3923, 0.0
      %v4054 = vsel %vm422, %v3924, 0.0
      %v4055 = vadd.f32 %v4053, %v4054
      %v4056 = vrot.slane %v4055, 4
      %v4057 = vadd.f32 %v4055, %v4056
      %v4058 = vrot.slane %v4057, 2
      %v4059 = vadd.f32 %v4057, %v4058
      %v4060 = vrot.slane %v4059, 1
      %v4061 = vadd.f32 %v4059, %v4060
      %v4062 = vsel %vm422, %v3925, 0.0
      %v4063 = vsel %vm422, %v3926, 0.0
      %v4064 = vadd.f32 %v4062, %v4063
      %v4065 = vrot.slane %v4064, 4
      %v4066 = vadd.f32 %v4064, %v4065
      %v4067 = vrot.slane %v4066, 2
      %v4068 = vadd.f32 %v4066, %v4067
      %v4069 = vrot.slane %v4068, 1
      %v4070 = vadd.f32 %v4068, %v4069
      %v4071 = vsel %vm422, %v3935, -inf
      %v4072 = vsel %vm422, %v3944, -inf
      %v4073 = vsel %vm422, %v3953, -inf
      %v4074 = vsel %vm422, %v3962, -inf
      %v4075 = vsel %vm422, %v3971, -inf
      %v4076 = vmax.f32 %v4071, %v4075
      %v4077 = vsel %vm422, %v3980, -inf
      %v4078 = vmax.f32 %v4072, %v4077
      %v4079 = vsel %vm422, %v3989, -inf
      %v4080 = vmax.f32 %v4073, %v4079
      %v4081 = vsel %vm422, %v3998, -inf
      %v4082 = vmax.f32 %v4074, %v4081
      %v4083 = vsel %vm422, %v4007, -inf
      %v4084 = vmax.f32 %v4076, %v4083
      %v4085 = vsel %vm422, %v4016, -inf
      %v4086 = vmax.f32 %v4078, %v4085
      %v4087 = vsel %vm422, %v4025, -inf
      %v4088 = vmax.f32 %v4080, %v4087
      %v4089 = vsel %vm422, %v4034, -inf
      %v4090 = vmax.f32 %v4082, %v4089
      %v4091 = vsel %vm422, %v4043, -inf
      %v4092 = vmax.f32 %v4084, %v4091
      %v4093 = vsel %vm422, %v4052, -inf
      %v4094 = vmax.f32 %v4086, %v4093
      %v4095 = vsel %vm422, %v4061, -inf
      %v4096 = vmax.f32 %v4088, %v4095
      %v4097 = vsel %vm422, %v4070, -inf
      %v4098 = vmax.f32 %v4090, %v4097
      %v4099 = vmax.f32 %v4092, %v4094
      %v4100 = vmax.f32 %v4096, %v4098
      %v4101 = vmax.f32 %v4099, %v4100
      %v4102 = vsub.f32 %v3935, %v4101
      %v4103 = vsub.f32 %v3944, %v4101
      %v4104 = vsub.f32 %v3953, %v4101
      %v4105 = vsub.f32 %v3962, %v4101
      %v4106 = vsub.f32 %v3971, %v4101
      %v4107 = vsub.f32 %v3980, %v4101
      %v4108 = vsub.f32 %v3989, %v4101
      %v4109 = vsub.f32 %v3998, %v4101
      %v4110 = vsub.f32 %v4007, %v4101
      %v4111 = vsub.f32 %v4016, %v4101
      %v4112 = vsub.f32 %v4025, %v4101
      %v4113 = vsub.f32 %v4034, %v4101
      %v4114 = vsub.f32 %v4043, %v4101
      %v4115 = vsub.f32 %v4052, %v4101
      %v4116 = vsub.f32 %v4061, %v4101
      %v4117 = vsub.f32 %v4070, %v4101
      %v4118 = vmul.f32 %v4102, 1.442695
      %v4119 = vpow.pop %v4118
      %v4120 = vmul.f32 %v4103, 1.442695
      %v4121 = vpow.pop %v4120
      %v4122 = vmul.f32 %v4104, 1.442695
      %v4123 = vpow.pop %v4122
      %v4124 = vmul.f32 %v4105, 1.442695
      %v4125 = vpow.pop %v4124
      %v4126 = vmul.f32 %v4106, 1.442695
      %v4127 = vpow.pop %v4126
      %v4128 = vmul.f32 %v4107, 1.442695
      %v4129 = vpow.pop %v4128
      %v4130 = vmul.f32 %v4108, 1.442695
      %v4131 = vpow.pop %v4130
      %v4132 = vmul.f32 %v4109, 1.442695
      %v4133 = vpow.pop %v4132
      %v4134 = vmul.f32 %v4110, 1.442695
      %v4135 = vpow.pop %v4134
      %v4136 = vmul.f32 %v4111, 1.442695
      %v4137 = vpow.pop %v4136
      %v4138 = vmul.f32 %v4112, 1.442695
      %v4139 = vpow.pop %v4138
      %v4140 = vmul.f32 %v4113, 1.442695
      %v4141 = vpow.pop %v4140
      %v4142 = vmul.f32 %v4114, 1.442695
      %v4143 = vpow.pop %v4142
      %v4144 = vmul.f32 %v4115, 1.442695
      %v4145 = vpow.pop %v4144
      %v4146 = vmul.f32 %v4116, 1.442695
      %v4147 = vpow.pop %v4146
      %v4148 = vmul.f32 %v4117, 1.442695
      %v4149 = vpow.pop %v4148
      %v4166 = vrot.slane %v4121, 7
      %v4167 = vsel %vm1178, %v4166, %v4119
      %v4168 = vrot.slane %v4123, 6
      %v4169 = vsel %vm1181, %v4168, %v4167
      %v4170 = vrot.slane %v4125, 5
      %v4171 = vsel %vm1184, %v4170, %v4169
      %v4172 = vrot.slane %v4127, 4
      %v4173 = vsel %vm1187, %v4172, %v4171
      %v4174 = vrot.slane %v4129, 3
      %v4175 = vsel %vm1190, %v4174, %v4173
      %v4176 = vrot.slane %v4131, 2
      %v4177 = vsel %vm1193, %v4176, %v4175
      %v4178 = vrot.slane %v4133, 1
      %v4179 = vsel %vm1196, %v4178, %v4177
      %v4180 = vrot.slane %v4137, 7
      %v4181 = vsel %vm1178, %v4180, %v4135
      %v4182 = vrot.slane %v4139, 6
      %v4183 = vsel %vm1181, %v4182, %v4181
      %v4184 = vrot.slane %v4141, 5
      %v4185 = vsel %vm1184, %v4184, %v4183
      %v4186 = vrot.slane %v4143, 4
      %v4187 = vsel %vm1187, %v4186, %v4185
      %v4188 = vrot.slane %v4145, 3
      %v4189 = vsel %vm1190, %v4188, %v4187
      %v4190 = vrot.slane %v4147, 2
      %v4191 = vsel %vm1193, %v4190, %v4189
      %v4192 = vrot.slane %v4149, 1
      %v4193 = vsel %vm1196, %v4192, %v4191
      %v4196 = vsel %vm422, %v4179, 0.0
      %v4197 = vsel %vm422, %v4193, 0.0
      %v4198 = vadd.f32 %v4196, %v4197
      %v4199 = vrot.slane %v4198, 4
      %v4200 = vadd.f32 %v4198, %v4199
      %v4201 = vrot.slane %v4200, 2
      %v4202 = vadd.f32 %v4200, %v4201
      %v4203 = vrot.slane %v4202, 1
      %v4204 = vadd.f32 %v4202, %v4203
      %v4205 = vlaneseq
      %v4206 = vshrl.u32 %v4205, 7
      %v4207 = vsub.s32 0, %v4206
      %v4208 = vrot.slane %v4204, %v4207
      %v4209 = vrcp.pop %v4208
      %v4210 = vmul.f32 %v4119, %v4209
      %v4211 = vmul.f32 %v4121, %v4209
      %v4212 = vmul.f32 %v4123, %v4209
      %v4213 = vmul.f32 %v4125, %v4209
      %v4214 = vmul.f32 %v4127, %v4209
      %v4215 = vmul.f32 %v4129, %v4209
      %v4216 = vmul.f32 %v4131, %v4209
      %v4217 = vmul.f32 %v4133, %v4209
      %v4218 = vmul.f32 %v4135, %v4209
      %v4219 = vmul.f32 %v4137, %v4209
      %v4220 = vmul.f32 %v4139, %v4209
      %v4221 = vmul.f32 %v4141, %v4209
      %v4222 = vmul.f32 %v4143, %v4209
      %v4223 = vmul.f32 %v4145, %v4209
      %v4224 = vmul.f32 %v4147, %v4209
      %v4225 = vmul.f32 %v4149, %v4209
      %v4226 = vlaneseq
      %v4227 = vshrl.u32 %v4226, 7
      %v4228 = vsub.s32 0, %v4227
      %v4229 = vrot.slane %v4210, %v4228
      %v4230 = vlaneseq
      %v4231 = vshrl.u32 %v4230, 7
      %v4232 = vsub.s32 0, %v4231
      %v4233 = vrot.slane %v4211, %v4232
      %v4234 = vlaneseq
      %v4235 = vshrl.u32 %v4234, 7
      %v4236 = vsub.s32 0, %v4235
      %v4237 = vrot.slane %v4212, %v4236
      %v4238 = vlaneseq
      %v4239 = vshrl.u32 %v4238, 7
      %v4240 = vsub.s32 0, %v4239
      %v4241 = vrot.slane %v4213, %v4240
      %v4242 = vlaneseq
      %v4243 = vshrl.u32 %v4242, 7
      %v4244 = vsub.s32 0, %v4243
      %v4245 = vrot.slane %v4214, %v4244
      %v4246 = vlaneseq
      %v4247 = vshrl.u32 %v4246, 7
      %v4248 = vsub.s32 0, %v4247
      %v4249 = vrot.slane %v4215, %v4248
      %v4250 = vlaneseq
      %v4251 = vshrl.u32 %v4250, 7
      %v4252 = vsub.s32 0, %v4251
      %v4253 = vrot.slane %v4216, %v4252
      %v4254 = vlaneseq
      %v4255 = vshrl.u32 %v4254, 7
      %v4256 = vsub.s32 0, %v4255
      %v4257 = vrot.slane %v4217, %v4256
      %v4258 = vlaneseq
      %v4259 = vshrl.u32 %v4258, 7
      %v4260 = vsub.s32 0, %v4259
      %v4261 = vrot.slane %v4218, %v4260
      %v4262 = vlaneseq
      %v4263 = vshrl.u32 %v4262, 7
      %v4264 = vsub.s32 0, %v4263
      %v4265 = vrot.slane %v4219, %v4264
      %v4266 = vlaneseq
      %v4267 = vshrl.u32 %v4266, 7
      %v4268 = vsub.s32 0, %v4267
      %v4269 = vrot.slane %v4220, %v4268
      %v4270 = vlaneseq
      %v4271 = vshrl.u32 %v4270, 7
      %v4272 = vsub.s32 0, %v4271
      %v4273 = vrot.slane %v4221, %v4272
      %v4274 = vlaneseq
      %v4275 = vshrl.u32 %v4274, 7
      %v4276 = vsub.s32 0, %v4275
      %v4277 = vrot.slane %v4222, %v4276
      %v4278 = vlaneseq
      %v4279 = vshrl.u32 %v4278, 7
      %v4280 = vsub.s32 0, %v4279
      %v4281 = vrot.slane %v4223, %v4280
      %v4282 = vlaneseq
      %v4283 = vshrl.u32 %v4282, 7
      %v4284 = vsub.s32 0, %v4283
      %v4285 = vrot.slane %v4224, %v4284
      %v4286 = vlaneseq
      %v4287 = vshrl.u32 %v4286, 7
      %v4288 = vsub.s32 0, %v4287
      %v4289 = vrot.slane %v4225, %v4288
      %v4290 = vmul.f32 %v4229, %v872
      %v4291 = vmul.f32 %v4229, %v873
      %v4292 = vmul.f32 %v4233, %v874
      %v4293 = vmul.f32 %v4233, %v875
      %v4294 = vmul.f32 %v4237, %v876
      %v4295 = vmul.f32 %v4237, %v877
      %v4296 = vmul.f32 %v4241, %v878
      %v4297 = vmul.f32 %v4241, %v879
      %v4298 = vmul.f32 %v4245, %v880
      %v4299 = vmul.f32 %v4245, %v881
      %v4300 = vmul.f32 %v4249, %v882
      %v4301 = vmul.f32 %v4249, %v883
      %v4302 = vmul.f32 %v4253, %v884
      %v4303 = vmul.f32 %v4253, %v885
      %v4304 = vmul.f32 %v4257, %v886
      %v4305 = vmul.f32 %v4257, %v887
      %v4306 = vmul.f32 %v4261, %v888
      %v4307 = vmul.f32 %v4261, %v889
      %v4308 = vmul.f32 %v4265, %v890
      %v4309 = vmul.f32 %v4265, %v891
      %v4310 = vmul.f32 %v4269, %v892
      %v4311 = vmul.f32 %v4269, %v893
      %v4312 = vmul.f32 %v4273, %v894
      %v4313 = vmul.f32 %v4273, %v895
      %v4314 = vmul.f32 %v4277, %v896
      %v4315 = vmul.f32 %v4277, %v897
      %v4316 = vmul.f32 %v4281, %v898
      %v4317 = vmul.f32 %v4281, %v899
      %v4318 = vmul.f32 %v4285, %v900
      %v4319 = vmul.f32 %v4285, %v901
      %v4320 = vmul.f32 %v4289, %v902
      %v4321 = vmul.f32 %v4289, %v903
      %v4322 = vsel %vm422, %v4290, 0.0
      %v4323 = vsel %vm422, %v4292, 0.0
      %v4324 = vadd.f32 %v4322, %v4323
      %v4325 = vsel %vm422, %v4294, 0.0
      %v4326 = vadd.f32 %v4324, %v4325
      %v4327 = vsel %vm422, %v4296, 0.0
      %v4328 = vadd.f32 %v4326, %v4327
      %v4329 = vsel %vm422, %v4298, 0.0
      %v4330 = vadd.f32 %v4328, %v4329
      %v4331 = vsel %vm422, %v4300, 0.0
      %v4332 = vadd.f32 %v4330, %v4331
      %v4333 = vsel %vm422, %v4302, 0.0
      %v4334 = vadd.f32 %v4332, %v4333
      %v4335 = vsel %vm422, %v4304, 0.0
      %v4336 = vadd.f32 %v4334, %v4335
      %v4337 = vsel %vm422, %v4306, 0.0
      %v4338 = vadd.f32 %v4336, %v4337
      %v4339 = vsel %vm422, %v4308, 0.0
      %v4340 = vadd.f32 %v4338, %v4339
      %v4341 = vsel %vm422, %v4310, 0.0
      %v4342 = vadd.f32 %v4340, %v4341
      %v4343 = vsel %vm422, %v4312, 0.0
      %v4344 = vadd.f32 %v4342, %v4343
      %v4345 = vsel %vm422, %v4314, 0.0
      %v4346 = vadd.f32 %v4344, %v4345
      %v4347 = vsel %vm422, %v4316, 0.0
      %v4348 = vadd.f32 %v4346, %v4347
      %v4349 = vsel %vm422, %v4318, 0.0
      %v4350 = vadd.f32 %v4348, %v4349
      %v4351 = vsel %vm422, %v4320, 0.0
      %v4352 = vadd.f32 %v4350, %v4351
      %v4353 = vsel %vm422, %v4291, 0.0
      %v4354 = vsel %vm422, %v4293, 0.0
      %v4355 = vadd.f32 %v4353, %v4354
      %v4356 = vsel %vm422, %v4295, 0.0
      %v4357 = vadd.f32 %v4355, %v4356
      %v4358 = vsel %vm422, %v4297, 0.0
      %v4359 = vadd.f32 %v4357, %v4358
      %v4360 = vsel %vm422, %v4299, 0.0
      %v4361 = vadd.f32 %v4359, %v4360
      %v4362 = vsel %vm422, %v4301, 0.0
      %v4363 = vadd.f32 %v4361, %v4362
      %v4364 = vsel %vm422, %v4303, 0.0
      %v4365 = vadd.f32 %v4363, %v4364
      %v4366 = vsel %vm422, %v4305, 0.0
      %v4367 = vadd.f32 %v4365, %v4366
      %v4368 = vsel %vm422, %v4307, 0.0
      %v4369 = vadd.f32 %v4367, %v4368
      %v4370 = vsel %vm422, %v4309, 0.0
      %v4371 = vadd.f32 %v4369, %v4370
      %v4372 = vsel %vm422, %v4311, 0.0
      %v4373 = vadd.f32 %v4371, %v4372
      %v4374 = vsel %vm422, %v4313, 0.0
      %v4375 = vadd.f32 %v4373, %v4374
      %v4376 = vsel %vm422, %v4315, 0.0
      %v4377 = vadd.f32 %v4375, %v4376
      %v4378 = vsel %vm422, %v4317, 0.0
      %v4379 = vadd.f32 %v4377, %v4378
      %v4380 = vsel %vm422, %v4319, 0.0
      %v4381 = vadd.f32 %v4379, %v4380
      %v4382 = vsel %vm422, %v4321, 0.0
      %v4383 = vadd.f32 %v4381, %v4382
      %v4384 = vld [vmem:[%s342 + $0x60] sm:$0xff]
      %v4385 = vld [vmem:[%s342 + $0x68] sm:$0xff]
      %v4386 = vadd.f32 %v4352, %v4384
      %v4387 = vadd.f32 %v4383, %v4385
      %4388 = vst.msk [vmem:[%s364 + $0x60] sm:$0xff] %vm422, %v4386
      %4389 = vst.msk [vmem:[%s364 + $0x68] sm:$0xff] %vm422, %v4387
      %v4390 = vld [vmem:[#allocation2 + $0x70] sm:$0xff]
      %v4391 = vld [vmem:[#allocation2 + $0x78] sm:$0xff]
      %v4392 = vmul.f32 %v4390, %v872
      %v4393 = vmul.f32 %v4391, %v873
      %v4394 = vmul.f32 %v4390, %v874
      %v4395 = vmul.f32 %v4391, %v875
      %v4396 = vmul.f32 %v4390, %v876
      %v4397 = vmul.f32 %v4391, %v877
      %v4398 = vmul.f32 %v4390, %v878
      %v4399 = vmul.f32 %v4391, %v879
      %v4400 = vmul.f32 %v4390, %v880
      %v4401 = vmul.f32 %v4391, %v881
      %v4402 = vmul.f32 %v4390, %v882
      %v4403 = vmul.f32 %v4391, %v883
      %v4404 = vmul.f32 %v4390, %v884
      %v4405 = vmul.f32 %v4391, %v885
      %v4406 = vmul.f32 %v4390, %v886
      %v4407 = vmul.f32 %v4391, %v887
      %v4408 = vmul.f32 %v4390, %v888
      %v4409 = vmul.f32 %v4391, %v889
      %v4410 = vmul.f32 %v4390, %v890
      %v4411 = vmul.f32 %v4391, %v891
      %v4412 = vmul.f32 %v4390, %v892
      %v4413 = vmul.f32 %v4391, %v893
      %v4414 = vmul.f32 %v4390, %v894
      %v4415 = vmul.f32 %v4391, %v895
      %v4416 = vmul.f32 %v4390, %v896
      %v4417 = vmul.f32 %v4391, %v897
      %v4418 = vmul.f32 %v4390, %v898
      %v4419 = vmul.f32 %v4391, %v899
      %v4420 = vmul.f32 %v4390, %v900
      %v4421 = vmul.f32 %v4391, %v901
      %v4422 = vmul.f32 %v4390, %v902
      %v4423 = vmul.f32 %v4391, %v903
      %v4424 = vsel %vm422, %v4392, 0.0
      %v4425 = vsel %vm422, %v4393, 0.0
      %v4426 = vadd.f32 %v4424, %v4425
      %v4427 = vrot.slane %v4426, 4
      %v4428 = vadd.f32 %v4426, %v4427
      %v4429 = vrot.slane %v4428, 2
      %v4430 = vadd.f32 %v4428, %v4429
      %v4431 = vrot.slane %v4430, 1
      %v4432 = vadd.f32 %v4430, %v4431
      %v4433 = vsel %vm422, %v4394, 0.0
      %v4434 = vsel %vm422, %v4395, 0.0
      %v4435 = vadd.f32 %v4433, %v4434
      %v4436 = vrot.slane %v4435, 4
      %v4437 = vadd.f32 %v4435, %v4436
      %v4438 = vrot.slane %v4437, 2
      %v4439 = vadd.f32 %v4437, %v4438
      %v4440 = vrot.slane %v4439, 1
      %v4441 = vadd.f32 %v4439, %v4440
      %v4442 = vsel %vm422, %v4396, 0.0
      %v4443 = vsel %vm422, %v4397, 0.0
      %v4444 = vadd.f32 %v4442, %v4443
      %v4445 = vrot.slane %v4444, 4
      %v4446 = vadd.f32 %v4444, %v4445
      %v4447 = vrot.slane %v4446, 2
      %v4448 = vadd.f32 %v4446, %v4447
      %v4449 = vrot.slane %v4448, 1
      %v4450 = vadd.f32 %v4448, %v4449
      %v4451 = vsel %vm422, %v4398, 0.0
      %v4452 = vsel %vm422, %v4399, 0.0
      %v4453 = vadd.f32 %v4451, %v4452
      %v4454 = vrot.slane %v4453, 4
      %v4455 = vadd.f32 %v4453, %v4454
      %v4456 = vrot.slane %v4455, 2
      %v4457 = vadd.f32 %v4455, %v4456
      %v4458 = vrot.slane %v4457, 1
      %v4459 = vadd.f32 %v4457, %v4458
      %v4460 = vsel %vm422, %v4400, 0.0
      %v4461 = vsel %vm422, %v4401, 0.0
      %v4462 = vadd.f32 %v4460, %v4461
      %v4463 = vrot.slane %v4462, 4
      %v4464 = vadd.f32 %v4462, %v4463
      %v4465 = vrot.slane %v4464, 2
      %v4466 = vadd.f32 %v4464, %v4465
      %v4467 = vrot.slane %v4466, 1
      %v4468 = vadd.f32 %v4466, %v4467
      %v4469 = vsel %vm422, %v4402, 0.0
      %v4470 = vsel %vm422, %v4403, 0.0
      %v4471 = vadd.f32 %v4469, %v4470
      %v4472 = vrot.slane %v4471, 4
      %v4473 = vadd.f32 %v4471, %v4472
      %v4474 = vrot.slane %v4473, 2
      %v4475 = vadd.f32 %v4473, %v4474
      %v4476 = vrot.slane %v4475, 1
      %v4477 = vadd.f32 %v4475, %v4476
      %v4478 = vsel %vm422, %v4404, 0.0
      %v4479 = vsel %vm422, %v4405, 0.0
      %v4480 = vadd.f32 %v4478, %v4479
      %v4481 = vrot.slane %v4480, 4
      %v4482 = vadd.f32 %v4480, %v4481
      %v4483 = vrot.slane %v4482, 2
      %v4484 = vadd.f32 %v4482, %v4483
      %v4485 = vrot.slane %v4484, 1
      %v4486 = vadd.f32 %v4484, %v4485
      %v4487 = vsel %vm422, %v4406, 0.0
      %v4488 = vsel %vm422, %v4407, 0.0
      %v4489 = vadd.f32 %v4487, %v4488
      %v4490 = vrot.slane %v4489, 4
      %v4491 = vadd.f32 %v4489, %v4490
      %v4492 = vrot.slane %v4491, 2
      %v4493 = vadd.f32 %v4491, %v4492
      %v4494 = vrot.slane %v4493, 1
      %v4495 = vadd.f32 %v4493, %v4494
      %v4496 = vsel %vm422, %v4408, 0.0
      %v4497 = vsel %vm422, %v4409, 0.0
      %v4498 = vadd.f32 %v4496, %v4497
      %v4499 = vrot.slane %v4498, 4
      %v4500 = vadd.f32 %v4498, %v4499
      %v4501 = vrot.slane %v4500, 2
      %v4502 = vadd.f32 %v4500, %v4501
      %v4503 = vrot.slane %v4502, 1
      %v4504 = vadd.f32 %v4502, %v4503
      %v4505 = vsel %vm422, %v4410, 0.0
      %v4506 = vsel %vm422, %v4411, 0.0
      %v4507 = vadd.f32 %v4505, %v4506
      %v4508 = vrot.slane %v4507, 4
      %v4509 = vadd.f32 %v4507, %v4508
      %v4510 = vrot.slane %v4509, 2
      %v4511 = vadd.f32 %v4509, %v4510
      %v4512 = vrot.slane %v4511, 1
      %v4513 = vadd.f32 %v4511, %v4512
      %v4514 = vsel %vm422, %v4412, 0.0
      %v4515 = vsel %vm422, %v4413, 0.0
      %v4516 = vadd.f32 %v4514, %v4515
      %v4517 = vrot.slane %v4516, 4
      %v4518 = vadd.f32 %v4516, %v4517
      %v4519 = vrot.slane %v4518, 2
      %v4520 = vadd.f32 %v4518, %v4519
      %v4521 = vrot.slane %v4520, 1
      %v4522 = vadd.f32 %v4520, %v4521
      %v4523 = vsel %vm422, %v4414, 0.0
      %v4524 = vsel %vm422, %v4415, 0.0
      %v4525 = vadd.f32 %v4523, %v4524
      %v4526 = vrot.slane %v4525, 4
      %v4527 = vadd.f32 %v4525, %v4526
      %v4528 = vrot.slane %v4527, 2
      %v4529 = vadd.f32 %v4527, %v4528
      %v4530 = vrot.slane %v4529, 1
      %v4531 = vadd.f32 %v4529, %v4530
      %v4532 = vsel %vm422, %v4416, 0.0
      %v4533 = vsel %vm422, %v4417, 0.0
      %v4534 = vadd.f32 %v4532, %v4533
      %v4535 = vrot.slane %v4534, 4
      %v4536 = vadd.f32 %v4534, %v4535
      %v4537 = vrot.slane %v4536, 2
      %v4538 = vadd.f32 %v4536, %v4537
      %v4539 = vrot.slane %v4538, 1
      %v4540 = vadd.f32 %v4538, %v4539
      %v4541 = vsel %vm422, %v4418, 0.0
      %v4542 = vsel %vm422, %v4419, 0.0
      %v4543 = vadd.f32 %v4541, %v4542
      %v4544 = vrot.slane %v4543, 4
      %v4545 = vadd.f32 %v4543, %v4544
      %v4546 = vrot.slane %v4545, 2
      %v4547 = vadd.f32 %v4545, %v4546
      %v4548 = vrot.slane %v4547, 1
      %v4549 = vadd.f32 %v4547, %v4548
      %v4550 = vsel %vm422, %v4420, 0.0
      %v4551 = vsel %vm422, %v4421, 0.0
      %v4552 = vadd.f32 %v4550, %v4551
      %v4553 = vrot.slane %v4552, 4
      %v4554 = vadd.f32 %v4552, %v4553
      %v4555 = vrot.slane %v4554, 2
      %v4556 = vadd.f32 %v4554, %v4555
      %v4557 = vrot.slane %v4556, 1
      %v4558 = vadd.f32 %v4556, %v4557
      %v4559 = vsel %vm422, %v4422, 0.0
      %v4560 = vsel %vm422, %v4423, 0.0
      %v4561 = vadd.f32 %v4559, %v4560
      %v4562 = vrot.slane %v4561, 4
      %v4563 = vadd.f32 %v4561, %v4562
      %v4564 = vrot.slane %v4563, 2
      %v4565 = vadd.f32 %v4563, %v4564
      %v4566 = vrot.slane %v4565, 1
      %v4567 = vadd.f32 %v4565, %v4566
      %v4568 = vsel %vm422, %v4432, -inf
      %v4569 = vsel %vm422, %v4441, -inf
      %v4570 = vsel %vm422, %v4450, -inf
      %v4571 = vsel %vm422, %v4459, -inf
      %v4572 = vsel %vm422, %v4468, -inf
      %v4573 = vmax.f32 %v4568, %v4572
      %v4574 = vsel %vm422, %v4477, -inf
      %v4575 = vmax.f32 %v4569, %v4574
      %v4576 = vsel %vm422, %v4486, -inf
      %v4577 = vmax.f32 %v4570, %v4576
      %v4578 = vsel %vm422, %v4495, -inf
      %v4579 = vmax.f32 %v4571, %v4578
      %v4580 = vsel %vm422, %v4504, -inf
      %v4581 = vmax.f32 %v4573, %v4580
      %v4582 = vsel %vm422, %v4513, -inf
      %v4583 = vmax.f32 %v4575, %v4582
      %v4584 = vsel %vm422, %v4522, -inf
      %v4585 = vmax.f32 %v4577, %v4584
      %v4586 = vsel %vm422, %v4531, -inf
      %v4587 = vmax.f32 %v4579, %v4586
      %v4588 = vsel %vm422, %v4540, -inf
      %v4589 = vmax.f32 %v4581, %v4588
      %v4590 = vsel %vm422, %v4549, -inf
      %v4591 = vmax.f32 %v4583, %v4590
      %v4592 = vsel %vm422, %v4558, -inf
      %v4593 = vmax.f32 %v4585, %v4592
      %v4594 = vsel %vm422, %v4567, -inf
      %v4595 = vmax.f32 %v4587, %v4594
      %v4596 = vmax.f32 %v4589, %v4591
      %v4597 = vmax.f32 %v4593, %v4595
      %v4598 = vmax.f32 %v4596, %v4597
      %v4599 = vsub.f32 %v4432, %v4598
      %v4600 = vsub.f32 %v4441, %v4598
      %v4601 = vsub.f32 %v4450, %v4598
      %v4602 = vsub.f32 %v4459, %v4598
      %v4603 = vsub.f32 %v4468, %v4598
      %v4604 = vsub.f32 %v4477, %v4598
      %v4605 = vsub.f32 %v4486, %v4598
      %v4606 = vsub.f32 %v4495, %v4598
      %v4607 = vsub.f32 %v4504, %v4598
      %v4608 = vsub.f32 %v4513, %v4598
      %v4609 = vsub.f32 %v4522, %v4598
      %v4610 = vsub.f32 %v4531, %v4598
      %v4611 = vsub.f32 %v4540, %v4598
      %v4612 = vsub.f32 %v4549, %v4598
      %v4613 = vsub.f32 %v4558, %v4598
      %v4614 = vsub.f32 %v4567, %v4598
      %v4615 = vmul.f32 %v4599, 1.442695
      %v4616 = vpow.pop %v4615
      %v4617 = vmul.f32 %v4600, 1.442695
      %v4618 = vpow.pop %v4617
      %v4619 = vmul.f32 %v4601, 1.442695
      %v4620 = vpow.pop %v4619
      %v4621 = vmul.f32 %v4602, 1.442695
      %v4622 = vpow.pop %v4621
      %v4623 = vmul.f32 %v4603, 1.442695
      %v4624 = vpow.pop %v4623
      %v4625 = vmul.f32 %v4604, 1.442695
      %v4626 = vpow.pop %v4625
      %v4627 = vmul.f32 %v4605, 1.442695
      %v4628 = vpow.pop %v4627
      %v4629 = vmul.f32 %v4606, 1.442695
      %v4630 = vpow.pop %v4629
      %v4631 = vmul.f32 %v4607, 1.442695
      %v4632 = vpow.pop %v4631
      %v4633 = vmul.f32 %v4608, 1.442695
      %v4634 = vpow.pop %v4633
      %v4635 = vmul.f32 %v4609, 1.442695
      %v4636 = vpow.pop %v4635
      %v4637 = vmul.f32 %v4610, 1.442695
      %v4638 = vpow.pop %v4637
      %v4639 = vmul.f32 %v4611, 1.442695
      %v4640 = vpow.pop %v4639
      %v4641 = vmul.f32 %v4612, 1.442695
      %v4642 = vpow.pop %v4641
      %v4643 = vmul.f32 %v4613, 1.442695
      %v4644 = vpow.pop %v4643
      %v4645 = vmul.f32 %v4614, 1.442695
      %v4646 = vpow.pop %v4645
      %v4663 = vrot.slane %v4618, 7
      %v4664 = vsel %vm1178, %v4663, %v4616
      %v4665 = vrot.slane %v4620, 6
      %v4666 = vsel %vm1181, %v4665, %v4664
      %v4667 = vrot.slane %v4622, 5
      %v4668 = vsel %vm1184, %v4667, %v4666
      %v4669 = vrot.slane %v4624, 4
      %v4670 = vsel %vm1187, %v4669, %v4668
      %v4671 = vrot.slane %v4626, 3
      %v4672 = vsel %vm1190, %v4671, %v4670
      %v4673 = vrot.slane %v4628, 2
      %v4674 = vsel %vm1193, %v4673, %v4672
      %v4675 = vrot.slane %v4630, 1
      %v4676 = vsel %vm1196, %v4675, %v4674
      %v4677 = vrot.slane %v4634, 7
      %v4678 = vsel %vm1178, %v4677, %v4632
      %v4679 = vrot.slane %v4636, 6
      %v4680 = vsel %vm1181, %v4679, %v4678
      %v4681 = vrot.slane %v4638, 5
      %v4682 = vsel %vm1184, %v4681, %v4680
      %v4683 = vrot.slane %v4640, 4
      %v4684 = vsel %vm1187, %v4683, %v4682
      %v4685 = vrot.slane %v4642, 3
      %v4686 = vsel %vm1190, %v4685, %v4684
      %v4687 = vrot.slane %v4644, 2
      %v4688 = vsel %vm1193, %v4687, %v4686
      %v4689 = vrot.slane %v4646, 1
      %v4690 = vsel %vm1196, %v4689, %v4688
      %v4693 = vsel %vm422, %v4676, 0.0
      %v4694 = vsel %vm422, %v4690, 0.0
      %v4695 = vadd.f32 %v4693, %v4694
      %v4696 = vrot.slane %v4695, 4
      %v4697 = vadd.f32 %v4695, %v4696
      %v4698 = vrot.slane %v4697, 2
      %v4699 = vadd.f32 %v4697, %v4698
      %v4700 = vrot.slane %v4699, 1
      %v4701 = vadd.f32 %v4699, %v4700
      %v4702 = vlaneseq
      %v4703 = vshrl.u32 %v4702, 7
      %v4704 = vsub.s32 0, %v4703
      %v4705 = vrot.slane %v4701, %v4704
      %v4706 = vrcp.pop %v4705
      %v4707 = vmul.f32 %v4616, %v4706
      %v4708 = vmul.f32 %v4618, %v4706
      %v4709 = vmul.f32 %v4620, %v4706
      %v4710 = vmul.f32 %v4622, %v4706
      %v4711 = vmul.f32 %v4624, %v4706
      %v4712 = vmul.f32 %v4626, %v4706
      %v4713 = vmul.f32 %v4628, %v4706
      %v4714 = vmul.f32 %v4630, %v4706
      %v4715 = vmul.f32 %v4632, %v4706
      %v4716 = vmul.f32 %v4634, %v4706
      %v4717 = vmul.f32 %v4636, %v4706
      %v4718 = vmul.f32 %v4638, %v4706
      %v4719 = vmul.f32 %v4640, %v4706
      %v4720 = vmul.f32 %v4642, %v4706
      %v4721 = vmul.f32 %v4644, %v4706
      %v4722 = vmul.f32 %v4646, %v4706
      %v4723 = vlaneseq
      %v4724 = vshrl.u32 %v4723, 7
      %v4725 = vsub.s32 0, %v4724
      %v4726 = vrot.slane %v4707, %v4725
      %v4727 = vlaneseq
      %v4728 = vshrl.u32 %v4727, 7
      %v4729 = vsub.s32 0, %v4728
      %v4730 = vrot.slane %v4708, %v4729
      %v4731 = vlaneseq
      %v4732 = vshrl.u32 %v4731, 7
      %v4733 = vsub.s32 0, %v4732
      %v4734 = vrot.slane %v4709, %v4733
      %v4735 = vlaneseq
      %v4736 = vshrl.u32 %v4735, 7
      %v4737 = vsub.s32 0, %v4736
      %v4738 = vrot.slane %v4710, %v4737
      %v4739 = vlaneseq
      %v4740 = vshrl.u32 %v4739, 7
      %v4741 = vsub.s32 0, %v4740
      %v4742 = vrot.slane %v4711, %v4741
      %v4743 = vlaneseq
      %v4744 = vshrl.u32 %v4743, 7
      %v4745 = vsub.s32 0, %v4744
      %v4746 = vrot.slane %v4712, %v4745
      %v4747 = vlaneseq
      %v4748 = vshrl.u32 %v4747, 7
      %v4749 = vsub.s32 0, %v4748
      %v4750 = vrot.slane %v4713, %v4749
      %v4751 = vlaneseq
      %v4752 = vshrl.u32 %v4751, 7
      %v4753 = vsub.s32 0, %v4752
      %v4754 = vrot.slane %v4714, %v4753
      %v4755 = vlaneseq
      %v4756 = vshrl.u32 %v4755, 7
      %v4757 = vsub.s32 0, %v4756
      %v4758 = vrot.slane %v4715, %v4757
      %v4759 = vlaneseq
      %v4760 = vshrl.u32 %v4759, 7
      %v4761 = vsub.s32 0, %v4760
      %v4762 = vrot.slane %v4716, %v4761
      %v4763 = vlaneseq
      %v4764 = vshrl.u32 %v4763, 7
      %v4765 = vsub.s32 0, %v4764
      %v4766 = vrot.slane %v4717, %v4765
      %v4767 = vlaneseq
      %v4768 = vshrl.u32 %v4767, 7
      %v4769 = vsub.s32 0, %v4768
      %v4770 = vrot.slane %v4718, %v4769
      %v4771 = vlaneseq
      %v4772 = vshrl.u32 %v4771, 7
      %v4773 = vsub.s32 0, %v4772
      %v4774 = vrot.slane %v4719, %v4773
      %v4775 = vlaneseq
      %v4776 = vshrl.u32 %v4775, 7
      %v4777 = vsub.s32 0, %v4776
      %v4778 = vrot.slane %v4720, %v4777
      %v4779 = vlaneseq
      %v4780 = vshrl.u32 %v4779, 7
      %v4781 = vsub.s32 0, %v4780
      %v4782 = vrot.slane %v4721, %v4781
      %v4783 = vlaneseq
      %v4784 = vshrl.u32 %v4783, 7
      %v4785 = vsub.s32 0, %v4784
      %v4786 = vrot.slane %v4722, %v4785
      %v4787 = vmul.f32 %v4726, %v872
      %v4788 = vmul.f32 %v4726, %v873
      %v4789 = vmul.f32 %v4730, %v874
      %v4790 = vmul.f32 %v4730, %v875
      %v4791 = vmul.f32 %v4734, %v876
      %v4792 = vmul.f32 %v4734, %v877
      %v4793 = vmul.f32 %v4738, %v878
      %v4794 = vmul.f32 %v4738, %v879
      %v4795 = vmul.f32 %v4742, %v880
      %v4796 = vmul.f32 %v4742, %v881
      %v4797 = vmul.f32 %v4746, %v882
      %v4798 = vmul.f32 %v4746, %v883
      %v4799 = vmul.f32 %v4750, %v884
      %v4800 = vmul.f32 %v4750, %v885
      %v4801 = vmul.f32 %v4754, %v886
      %v4802 = vmul.f32 %v4754, %v887
      %v4803 = vmul.f32 %v4758, %v888
      %v4804 = vmul.f32 %v4758, %v889
      %v4805 = vmul.f32 %v4762, %v890
      %v4806 = vmul.f32 %v4762, %v891
      %v4807 = vmul.f32 %v4766, %v892
      %v4808 = vmul.f32 %v4766, %v893
      %v4809 = vmul.f32 %v4770, %v894
      %v4810 = vmul.f32 %v4770, %v895
      %v4811 = vmul.f32 %v4774, %v896
      %v4812 = vmul.f32 %v4774, %v897
      %v4813 = vmul.f32 %v4778, %v898
      %v4814 = vmul.f32 %v4778, %v899
      %v4815 = vmul.f32 %v4782, %v900
      %v4816 = vmul.f32 %v4782, %v901
      %v4817 = vmul.f32 %v4786, %v902
      %v4818 = vmul.f32 %v4786, %v903
      %v4819 = vsel %vm422, %v4787, 0.0
      %v4820 = vsel %vm422, %v4789, 0.0
      %v4821 = vadd.f32 %v4819, %v4820
      %v4822 = vsel %vm422, %v4791, 0.0
      %v4823 = vadd.f32 %v4821, %v4822
      %v4824 = vsel %vm422, %v4793, 0.0
      %v4825 = vadd.f32 %v4823, %v4824
      %v4826 = vsel %vm422, %v4795, 0.0
      %v4827 = vadd.f32 %v4825, %v4826
      %v4828 = vsel %vm422, %v4797, 0.0
      %v4829 = vadd.f32 %v4827, %v4828
      %v4830 = vsel %vm422, %v4799, 0.0
      %v4831 = vadd.f32 %v4829, %v4830
      %v4832 = vsel %vm422, %v4801, 0.0
      %v4833 = vadd.f32 %v4831, %v4832
      %v4834 = vsel %vm422, %v4803, 0.0
      %v4835 = vadd.f32 %v4833, %v4834
      %v4836 = vsel %vm422, %v4805, 0.0
      %v4837 = vadd.f32 %v4835, %v4836
      %v4838 = vsel %vm422, %v4807, 0.0
      %v4839 = vadd.f32 %v4837, %v4838
      %v4840 = vsel %vm422, %v4809, 0.0
      %v4841 = vadd.f32 %v4839, %v4840
      %v4842 = vsel %vm422, %v4811, 0.0
      %v4843 = vadd.f32 %v4841, %v4842
      %v4844 = vsel %vm422, %v4813, 0.0
      %v4845 = vadd.f32 %v4843, %v4844
      %v4846 = vsel %vm422, %v4815, 0.0
      %v4847 = vadd.f32 %v4845, %v4846
      %v4848 = vsel %vm422, %v4817, 0.0
      %v4849 = vadd.f32 %v4847, %v4848
      %v4850 = vsel %vm422, %v4788, 0.0
      %v4851 = vsel %vm422, %v4790, 0.0
      %v4852 = vadd.f32 %v4850, %v4851
      %v4853 = vsel %vm422, %v4792, 0.0
      %v4854 = vadd.f32 %v4852, %v4853
      %v4855 = vsel %vm422, %v4794, 0.0
      %v4856 = vadd.f32 %v4854, %v4855
      %v4857 = vsel %vm422, %v4796, 0.0
      %v4858 = vadd.f32 %v4856, %v4857
      %v4859 = vsel %vm422, %v4798, 0.0
      %v4860 = vadd.f32 %v4858, %v4859
      %v4861 = vsel %vm422, %v4800, 0.0
      %v4862 = vadd.f32 %v4860, %v4861
      %v4863 = vsel %vm422, %v4802, 0.0
      %v4864 = vadd.f32 %v4862, %v4863
      %v4865 = vsel %vm422, %v4804, 0.0
      %v4866 = vadd.f32 %v4864, %v4865
      %v4867 = vsel %vm422, %v4806, 0.0
      %v4868 = vadd.f32 %v4866, %v4867
      %v4869 = vsel %vm422, %v4808, 0.0
      %v4870 = vadd.f32 %v4868, %v4869
      %v4871 = vsel %vm422, %v4810, 0.0
      %v4872 = vadd.f32 %v4870, %v4871
      %v4873 = vsel %vm422, %v4812, 0.0
      %v4874 = vadd.f32 %v4872, %v4873
      %v4875 = vsel %vm422, %v4814, 0.0
      %v4876 = vadd.f32 %v4874, %v4875
      %v4877 = vsel %vm422, %v4816, 0.0
      %v4878 = vadd.f32 %v4876, %v4877
      %v4879 = vsel %vm422, %v4818, 0.0
      %v4880 = vadd.f32 %v4878, %v4879
      %v4881 = vld [vmem:[%s342 + $0x70] sm:$0xff]
      %v4882 = vld [vmem:[%s342 + $0x78] sm:$0xff]
      %v4883 = vadd.f32 %v4849, %v4881
      %v4884 = vadd.f32 %v4880, %v4882
      %4885 = vst.msk [vmem:[%s364 + $0x70] sm:$0xff] %vm422, %v4883
      %4886 = vst.msk [vmem:[%s364 + $0x78] sm:$0xff] %vm422, %v4884
      %v4887 = vld [vmem:[#allocation2 + $0x80] sm:$0xff]
      %v4888 = vld [vmem:[#allocation2 + $0x88] sm:$0xff]
      %v4889 = vmul.f32 %v4887, %v872
      %v4890 = vmul.f32 %v4888, %v873
      %v4891 = vmul.f32 %v4887, %v874
      %v4892 = vmul.f32 %v4888, %v875
      %v4893 = vmul.f32 %v4887, %v876
      %v4894 = vmul.f32 %v4888, %v877
      %v4895 = vmul.f32 %v4887, %v878
      %v4896 = vmul.f32 %v4888, %v879
      %v4897 = vmul.f32 %v4887, %v880
      %v4898 = vmul.f32 %v4888, %v881
      %v4899 = vmul.f32 %v4887, %v882
      %v4900 = vmul.f32 %v4888, %v883
      %v4901 = vmul.f32 %v4887, %v884
      %v4902 = vmul.f32 %v4888, %v885
      %v4903 = vmul.f32 %v4887, %v886
      %v4904 = vmul.f32 %v4888, %v887
      %v4905 = vmul.f32 %v4887, %v888
      %v4906 = vmul.f32 %v4888, %v889
      %v4907 = vmul.f32 %v4887, %v890
      %v4908 = vmul.f32 %v4888, %v891
      %v4909 = vmul.f32 %v4887, %v892
      %v4910 = vmul.f32 %v4888, %v893
      %v4911 = vmul.f32 %v4887, %v894
      %v4912 = vmul.f32 %v4888, %v895
      %v4913 = vmul.f32 %v4887, %v896
      %v4914 = vmul.f32 %v4888, %v897
      %v4915 = vmul.f32 %v4887, %v898
      %v4916 = vmul.f32 %v4888, %v899
      %v4917 = vmul.f32 %v4887, %v900
      %v4918 = vmul.f32 %v4888, %v901
      %v4919 = vmul.f32 %v4887, %v902
      %v4920 = vmul.f32 %v4888, %v903
      %v4921 = vsel %vm422, %v4889, 0.0
      %v4922 = vsel %vm422, %v4890, 0.0
      %v4923 = vadd.f32 %v4921, %v4922
      %v4924 = vrot.slane %v4923, 4
      %v4925 = vadd.f32 %v4923, %v4924
      %v4926 = vrot.slane %v4925, 2
      %v4927 = vadd.f32 %v4925, %v4926
      %v4928 = vrot.slane %v4927, 1
      %v4929 = vadd.f32 %v4927, %v4928
      %v4930 = vsel %vm422, %v4891, 0.0
      %v4931 = vsel %vm422, %v4892, 0.0
      %v4932 = vadd.f32 %v4930, %v4931
      %v4933 = vrot.slane %v4932, 4
      %v4934 = vadd.f32 %v4932, %v4933
      %v4935 = vrot.slane %v4934, 2
      %v4936 = vadd.f32 %v4934, %v4935
      %v4937 = vrot.slane %v4936, 1
      %v4938 = vadd.f32 %v4936, %v4937
      %v4939 = vsel %vm422, %v4893, 0.0
      %v4940 = vsel %vm422, %v4894, 0.0
      %v4941 = vadd.f32 %v4939, %v4940
      %v4942 = vrot.slane %v4941, 4
      %v4943 = vadd.f32 %v4941, %v4942
      %v4944 = vrot.slane %v4943, 2
      %v4945 = vadd.f32 %v4943, %v4944
      %v4946 = vrot.slane %v4945, 1
      %v4947 = vadd.f32 %v4945, %v4946
      %v4948 = vsel %vm422, %v4895, 0.0
      %v4949 = vsel %vm422, %v4896, 0.0
      %v4950 = vadd.f32 %v4948, %v4949
      %v4951 = vrot.slane %v4950, 4
      %v4952 = vadd.f32 %v4950, %v4951
      %v4953 = vrot.slane %v4952, 2
      %v4954 = vadd.f32 %v4952, %v4953
      %v4955 = vrot.slane %v4954, 1
      %v4956 = vadd.f32 %v4954, %v4955
      %v4957 = vsel %vm422, %v4897, 0.0
      %v4958 = vsel %vm422, %v4898, 0.0
      %v4959 = vadd.f32 %v4957, %v4958
      %v4960 = vrot.slane %v4959, 4
      %v4961 = vadd.f32 %v4959, %v4960
      %v4962 = vrot.slane %v4961, 2
      %v4963 = vadd.f32 %v4961, %v4962
      %v4964 = vrot.slane %v4963, 1
      %v4965 = vadd.f32 %v4963, %v4964
      %v4966 = vsel %vm422, %v4899, 0.0
      %v4967 = vsel %vm422, %v4900, 0.0
      %v4968 = vadd.f32 %v4966, %v4967
      %v4969 = vrot.slane %v4968, 4
      %v4970 = vadd.f32 %v4968, %v4969
      %v4971 = vrot.slane %v4970, 2
      %v4972 = vadd.f32 %v4970, %v4971
      %v4973 = vrot.slane %v4972, 1
      %v4974 = vadd.f32 %v4972, %v4973
      %v4975 = vsel %vm422, %v4901, 0.0
      %v4976 = vsel %vm422, %v4902, 0.0
      %v4977 = vadd.f32 %v4975, %v4976
      %v4978 = vrot.slane %v4977, 4
      %v4979 = vadd.f32 %v4977, %v4978
      %v4980 = vrot.slane %v4979, 2
      %v4981 = vadd.f32 %v4979, %v4980
      %v4982 = vrot.slane %v4981, 1
      %v4983 = vadd.f32 %v4981, %v4982
      %v4984 = vsel %vm422, %v4903, 0.0
      %v4985 = vsel %vm422, %v4904, 0.0
      %v4986 = vadd.f32 %v4984, %v4985
      %v4987 = vrot.slane %v4986, 4
      %v4988 = vadd.f32 %v4986, %v4987
      %v4989 = vrot.slane %v4988, 2
      %v4990 = vadd.f32 %v4988, %v4989
      %v4991 = vrot.slane %v4990, 1
      %v4992 = vadd.f32 %v4990, %v4991
      %v4993 = vsel %vm422, %v4905, 0.0
      %v4994 = vsel %vm422, %v4906, 0.0
      %v4995 = vadd.f32 %v4993, %v4994
      %v4996 = vrot.slane %v4995, 4
      %v4997 = vadd.f32 %v4995, %v4996
      %v4998 = vrot.slane %v4997, 2
      %v4999 = vadd.f32 %v4997, %v4998
      %v5000 = vrot.slane %v4999, 1
      %v5001 = vadd.f32 %v4999, %v5000
      %v5002 = vsel %vm422, %v4907, 0.0
      %v5003 = vsel %vm422, %v4908, 0.0
      %v5004 = vadd.f32 %v5002, %v5003
      %v5005 = vrot.slane %v5004, 4
      %v5006 = vadd.f32 %v5004, %v5005
      %v5007 = vrot.slane %v5006, 2
      %v5008 = vadd.f32 %v5006, %v5007
      %v5009 = vrot.slane %v5008, 1
      %v5010 = vadd.f32 %v5008, %v5009
      %v5011 = vsel %vm422, %v4909, 0.0
      %v5012 = vsel %vm422, %v4910, 0.0
      %v5013 = vadd.f32 %v5011, %v5012
      %v5014 = vrot.slane %v5013, 4
      %v5015 = vadd.f32 %v5013, %v5014
      %v5016 = vrot.slane %v5015, 2
      %v5017 = vadd.f32 %v5015, %v5016
      %v5018 = vrot.slane %v5017, 1
      %v5019 = vadd.f32 %v5017, %v5018
      %v5020 = vsel %vm422, %v4911, 0.0
      %v5021 = vsel %vm422, %v4912, 0.0
      %v5022 = vadd.f32 %v5020, %v5021
      %v5023 = vrot.slane %v5022, 4
      %v5024 = vadd.f32 %v5022, %v5023
      %v5025 = vrot.slane %v5024, 2
      %v5026 = vadd.f32 %v5024, %v5025
      %v5027 = vrot.slane %v5026, 1
      %v5028 = vadd.f32 %v5026, %v5027
      %v5029 = vsel %vm422, %v4913, 0.0
      %v5030 = vsel %vm422, %v4914, 0.0
      %v5031 = vadd.f32 %v5029, %v5030
      %v5032 = vrot.slane %v5031, 4
      %v5033 = vadd.f32 %v5031, %v5032
      %v5034 = vrot.slane %v5033, 2
      %v5035 = vadd.f32 %v5033, %v5034
      %v5036 = vrot.slane %v5035, 1
      %v5037 = vadd.f32 %v5035, %v5036
      %v5038 = vsel %vm422, %v4915, 0.0
      %v5039 = vsel %vm422, %v4916, 0.0
      %v5040 = vadd.f32 %v5038, %v5039
      %v5041 = vrot.slane %v5040, 4
      %v5042 = vadd.f32 %v5040, %v5041
      %v5043 = vrot.slane %v5042, 2
      %v5044 = vadd.f32 %v5042, %v5043
      %v5045 = vrot.slane %v5044, 1
      %v5046 = vadd.f32 %v5044, %v5045
      %v5047 = vsel %vm422, %v4917, 0.0
      %v5048 = vsel %vm422, %v4918, 0.0
      %v5049 = vadd.f32 %v5047, %v5048
      %v5050 = vrot.slane %v5049, 4
      %v5051 = vadd.f32 %v5049, %v5050
      %v5052 = vrot.slane %v5051, 2
      %v5053 = vadd.f32 %v5051, %v5052
      %v5054 = vrot.slane %v5053, 1
      %v5055 = vadd.f32 %v5053, %v5054
      %v5056 = vsel %vm422, %v4919, 0.0
      %v5057 = vsel %vm422, %v4920, 0.0
      %v5058 = vadd.f32 %v5056, %v5057
      %v5059 = vrot.slane %v5058, 4
      %v5060 = vadd.f32 %v5058, %v5059
      %v5061 = vrot.slane %v5060, 2
      %v5062 = vadd.f32 %v5060, %v5061
      %v5063 = vrot.slane %v5062, 1
      %v5064 = vadd.f32 %v5062, %v5063
      %v5065 = vsel %vm422, %v4929, -inf
      %v5066 = vsel %vm422, %v4938, -inf
      %v5067 = vsel %vm422, %v4947, -inf
      %v5068 = vsel %vm422, %v4956, -inf
      %v5069 = vsel %vm422, %v4965, -inf
      %v5070 = vmax.f32 %v5065, %v5069
      %v5071 = vsel %vm422, %v4974, -inf
      %v5072 = vmax.f32 %v5066, %v5071
      %v5073 = vsel %vm422, %v4983, -inf
      %v5074 = vmax.f32 %v5067, %v5073
      %v5075 = vsel %vm422, %v4992, -inf
      %v5076 = vmax.f32 %v5068, %v5075
      %v5077 = vsel %vm422, %v5001, -inf
      %v5078 = vmax.f32 %v5070, %v5077
      %v5079 = vsel %vm422, %v5010, -inf
      %v5080 = vmax.f32 %v5072, %v5079
      %v5081 = vsel %vm422, %v5019, -inf
      %v5082 = vmax.f32 %v5074, %v5081
      %v5083 = vsel %vm422, %v5028, -inf
      %v5084 = vmax.f32 %v5076, %v5083
      %v5085 = vsel %vm422, %v5037, -inf
      %v5086 = vmax.f32 %v5078, %v5085
      %v5087 = vsel %vm422, %v5046, -inf
      %v5088 = vmax.f32 %v5080, %v5087
      %v5089 = vsel %vm422, %v5055, -inf
      %v5090 = vmax.f32 %v5082, %v5089
      %v5091 = vsel %vm422, %v5064, -inf
      %v5092 = vmax.f32 %v5084, %v5091
      %v5093 = vmax.f32 %v5086, %v5088
      %v5094 = vmax.f32 %v5090, %v5092
      %v5095 = vmax.f32 %v5093, %v5094
      %v5096 = vsub.f32 %v4929, %v5095
      %v5097 = vsub.f32 %v4938, %v5095
      %v5098 = vsub.f32 %v4947, %v5095
      %v5099 = vsub.f32 %v4956, %v5095
      %v5100 = vsub.f32 %v4965, %v5095
      %v5101 = vsub.f32 %v4974, %v5095
      %v5102 = vsub.f32 %v4983, %v5095
      %v5103 = vsub.f32 %v4992, %v5095
      %v5104 = vsub.f32 %v5001, %v5095
      %v5105 = vsub.f32 %v5010, %v5095
      %v5106 = vsub.f32 %v5019, %v5095
      %v5107 = vsub.f32 %v5028, %v5095
      %v5108 = vsub.f32 %v5037, %v5095
      %v5109 = vsub.f32 %v5046, %v5095
      %v5110 = vsub.f32 %v5055, %v5095
      %v5111 = vsub.f32 %v5064, %v5095
      %v5112 = vmul.f32 %v5096, 1.442695
      %v5113 = vpow.pop %v5112
      %v5114 = vmul.f32 %v5097, 1.442695
      %v5115 = vpow.pop %v5114
      %v5116 = vmul.f32 %v5098, 1.442695
      %v5117 = vpow.pop %v5116
      %v5118 = vmul.f32 %v5099, 1.442695
      %v5119 = vpow.pop %v5118
      %v5120 = vmul.f32 %v5100, 1.442695
      %v5121 = vpow.pop %v5120
      %v5122 = vmul.f32 %v5101, 1.442695
      %v5123 = vpow.pop %v5122
      %v5124 = vmul.f32 %v5102, 1.442695
      %v5125 = vpow.pop %v5124
      %v5126 = vmul.f32 %v5103, 1.442695
      %v5127 = vpow.pop %v5126
      %v5128 = vmul.f32 %v5104, 1.442695
      %v5129 = vpow.pop %v5128
      %v5130 = vmul.f32 %v5105, 1.442695
      %v5131 = vpow.pop %v5130
      %v5132 = vmul.f32 %v5106, 1.442695
      %v5133 = vpow.pop %v5132
      %v5134 = vmul.f32 %v5107, 1.442695
      %v5135 = vpow.pop %v5134
      %v5136 = vmul.f32 %v5108, 1.442695
      %v5137 = vpow.pop %v5136
      %v5138 = vmul.f32 %v5109, 1.442695
      %v5139 = vpow.pop %v5138
      %v5140 = vmul.f32 %v5110, 1.442695
      %v5141 = vpow.pop %v5140
      %v5142 = vmul.f32 %v5111, 1.442695
      %v5143 = vpow.pop %v5142
      %v5160 = vrot.slane %v5115, 7
      %v5161 = vsel %vm1178, %v5160, %v5113
      %v5162 = vrot.slane %v5117, 6
      %v5163 = vsel %vm1181, %v5162, %v5161
      %v5164 = vrot.slane %v5119, 5
      %v5165 = vsel %vm1184, %v5164, %v5163
      %v5166 = vrot.slane %v5121, 4
      %v5167 = vsel %vm1187, %v5166, %v5165
      %v5168 = vrot.slane %v5123, 3
      %v5169 = vsel %vm1190, %v5168, %v5167
      %v5170 = vrot.slane %v5125, 2
      %v5171 = vsel %vm1193, %v5170, %v5169
      %v5172 = vrot.slane %v5127, 1
      %v5173 = vsel %vm1196, %v5172, %v5171
      %v5174 = vrot.slane %v5131, 7
      %v5175 = vsel %vm1178, %v5174, %v5129
      %v5176 = vrot.slane %v5133, 6
      %v5177 = vsel %vm1181, %v5176, %v5175
      %v5178 = vrot.slane %v5135, 5
      %v5179 = vsel %vm1184, %v5178, %v5177
      %v5180 = vrot.slane %v5137, 4
      %v5181 = vsel %vm1187, %v5180, %v5179
      %v5182 = vrot.slane %v5139, 3
      %v5183 = vsel %vm1190, %v5182, %v5181
      %v5184 = vrot.slane %v5141, 2
      %v5185 = vsel %vm1193, %v5184, %v5183
      %v5186 = vrot.slane %v5143, 1
      %v5187 = vsel %vm1196, %v5186, %v5185
      %v5190 = vsel %vm422, %v5173, 0.0
      %v5191 = vsel %vm422, %v5187, 0.0
      %v5192 = vadd.f32 %v5190, %v5191
      %v5193 = vrot.slane %v5192, 4
      %v5194 = vadd.f32 %v5192, %v5193
      %v5195 = vrot.slane %v5194, 2
      %v5196 = vadd.f32 %v5194, %v5195
      %v5197 = vrot.slane %v5196, 1
      %v5198 = vadd.f32 %v5196, %v5197
      %v5199 = vlaneseq
      %v5200 = vshrl.u32 %v5199, 7
      %v5201 = vsub.s32 0, %v5200
      %v5202 = vrot.slane %v5198, %v5201
      %v5203 = vrcp.pop %v5202
      %v5204 = vmul.f32 %v5113, %v5203
      %v5205 = vmul.f32 %v5115, %v5203
      %v5206 = vmul.f32 %v5117, %v5203
      %v5207 = vmul.f32 %v5119, %v5203
      %v5208 = vmul.f32 %v5121, %v5203
      %v5209 = vmul.f32 %v5123, %v5203
      %v5210 = vmul.f32 %v5125, %v5203
      %v5211 = vmul.f32 %v5127, %v5203
      %v5212 = vmul.f32 %v5129, %v5203
      %v5213 = vmul.f32 %v5131, %v5203
      %v5214 = vmul.f32 %v5133, %v5203
      %v5215 = vmul.f32 %v5135, %v5203
      %v5216 = vmul.f32 %v5137, %v5203
      %v5217 = vmul.f32 %v5139, %v5203
      %v5218 = vmul.f32 %v5141, %v5203
      %v5219 = vmul.f32 %v5143, %v5203
      %v5220 = vlaneseq
      %v5221 = vshrl.u32 %v5220, 7
      %v5222 = vsub.s32 0, %v5221
      %v5223 = vrot.slane %v5204, %v5222
      %v5224 = vlaneseq
      %v5225 = vshrl.u32 %v5224, 7
      %v5226 = vsub.s32 0, %v5225
      %v5227 = vrot.slane %v5205, %v5226
      %v5228 = vlaneseq
      %v5229 = vshrl.u32 %v5228, 7
      %v5230 = vsub.s32 0, %v5229
      %v5231 = vrot.slane %v5206, %v5230
      %v5232 = vlaneseq
      %v5233 = vshrl.u32 %v5232, 7
      %v5234 = vsub.s32 0, %v5233
      %v5235 = vrot.slane %v5207, %v5234
      %v5236 = vlaneseq
      %v5237 = vshrl.u32 %v5236, 7
      %v5238 = vsub.s32 0, %v5237
      %v5239 = vrot.slane %v5208, %v5238
      %v5240 = vlaneseq
      %v5241 = vshrl.u32 %v5240, 7
      %v5242 = vsub.s32 0, %v5241
      %v5243 = vrot.slane %v5209, %v5242
      %v5244 = vlaneseq
      %v5245 = vshrl.u32 %v5244, 7
      %v5246 = vsub.s32 0, %v5245
      %v5247 = vrot.slane %v5210, %v5246
      %v5248 = vlaneseq
      %v5249 = vshrl.u32 %v5248, 7
      %v5250 = vsub.s32 0, %v5249
      %v5251 = vrot.slane %v5211, %v5250
      %v5252 = vlaneseq
      %v5253 = vshrl.u32 %v5252, 7
      %v5254 = vsub.s32 0, %v5253
      %v5255 = vrot.slane %v5212, %v5254
      %v5256 = vlaneseq
      %v5257 = vshrl.u32 %v5256, 7
      %v5258 = vsub.s32 0, %v5257
      %v5259 = vrot.slane %v5213, %v5258
      %v5260 = vlaneseq
      %v5261 = vshrl.u32 %v5260, 7
      %v5262 = vsub.s32 0, %v5261
      %v5263 = vrot.slane %v5214, %v5262
      %v5264 = vlaneseq
      %v5265 = vshrl.u32 %v5264, 7
      %v5266 = vsub.s32 0, %v5265
      %v5267 = vrot.slane %v5215, %v5266
      %v5268 = vlaneseq
      %v5269 = vshrl.u32 %v5268, 7
      %v5270 = vsub.s32 0, %v5269
      %v5271 = vrot.slane %v5216, %v5270
      %v5272 = vlaneseq
      %v5273 = vshrl.u32 %v5272, 7
      %v5274 = vsub.s32 0, %v5273
      %v5275 = vrot.slane %v5217, %v5274
      %v5276 = vlaneseq
      %v5277 = vshrl.u32 %v5276, 7
      %v5278 = vsub.s32 0, %v5277
      %v5279 = vrot.slane %v5218, %v5278
      %v5280 = vlaneseq
      %v5281 = vshrl.u32 %v5280, 7
      %v5282 = vsub.s32 0, %v5281
      %v5283 = vrot.slane %v5219, %v5282
      %v5284 = vmul.f32 %v5223, %v872
      %v5285 = vmul.f32 %v5223, %v873
      %v5286 = vmul.f32 %v5227, %v874
      %v5287 = vmul.f32 %v5227, %v875
      %v5288 = vmul.f32 %v5231, %v876
      %v5289 = vmul.f32 %v5231, %v877
      %v5290 = vmul.f32 %v5235, %v878
      %v5291 = vmul.f32 %v5235, %v879
      %v5292 = vmul.f32 %v5239, %v880
      %v5293 = vmul.f32 %v5239, %v881
      %v5294 = vmul.f32 %v5243, %v882
      %v5295 = vmul.f32 %v5243, %v883
      %v5296 = vmul.f32 %v5247, %v884
      %v5297 = vmul.f32 %v5247, %v885
      %v5298 = vmul.f32 %v5251, %v886
      %v5299 = vmul.f32 %v5251, %v887
      %v5300 = vmul.f32 %v5255, %v888
      %v5301 = vmul.f32 %v5255, %v889
      %v5302 = vmul.f32 %v5259, %v890
      %v5303 = vmul.f32 %v5259, %v891
      %v5304 = vmul.f32 %v5263, %v892
      %v5305 = vmul.f32 %v5263, %v893
      %v5306 = vmul.f32 %v5267, %v894
      %v5307 = vmul.f32 %v5267, %v895
      %v5308 = vmul.f32 %v5271, %v896
      %v5309 = vmul.f32 %v5271, %v897
      %v5310 = vmul.f32 %v5275, %v898
      %v5311 = vmul.f32 %v5275, %v899
      %v5312 = vmul.f32 %v5279, %v900
      %v5313 = vmul.f32 %v5279, %v901
      %v5314 = vmul.f32 %v5283, %v902
      %v5315 = vmul.f32 %v5283, %v903
      %v5316 = vsel %vm422, %v5284, 0.0
      %v5317 = vsel %vm422, %v5286, 0.0
      %v5318 = vadd.f32 %v5316, %v5317
      %v5319 = vsel %vm422, %v5288, 0.0
      %v5320 = vadd.f32 %v5318, %v5319
      %v5321 = vsel %vm422, %v5290, 0.0
      %v5322 = vadd.f32 %v5320, %v5321
      %v5323 = vsel %vm422, %v5292, 0.0
      %v5324 = vadd.f32 %v5322, %v5323
      %v5325 = vsel %vm422, %v5294, 0.0
      %v5326 = vadd.f32 %v5324, %v5325
      %v5327 = vsel %vm422, %v5296, 0.0
      %v5328 = vadd.f32 %v5326, %v5327
      %v5329 = vsel %vm422, %v5298, 0.0
      %v5330 = vadd.f32 %v5328, %v5329
      %v5331 = vsel %vm422, %v5300, 0.0
      %v5332 = vadd.f32 %v5330, %v5331
      %v5333 = vsel %vm422, %v5302, 0.0
      %v5334 = vadd.f32 %v5332, %v5333
      %v5335 = vsel %vm422, %v5304, 0.0
      %v5336 = vadd.f32 %v5334, %v5335
      %v5337 = vsel %vm422, %v5306, 0.0
      %v5338 = vadd.f32 %v5336, %v5337
      %v5339 = vsel %vm422, %v5308, 0.0
      %v5340 = vadd.f32 %v5338, %v5339
      %v5341 = vsel %vm422, %v5310, 0.0
      %v5342 = vadd.f32 %v5340, %v5341
      %v5343 = vsel %vm422, %v5312, 0.0
      %v5344 = vadd.f32 %v5342, %v5343
      %v5345 = vsel %vm422, %v5314, 0.0
      %v5346 = vadd.f32 %v5344, %v5345
      %v5347 = vsel %vm422, %v5285, 0.0
      %v5348 = vsel %vm422, %v5287, 0.0
      %v5349 = vadd.f32 %v5347, %v5348
      %v5350 = vsel %vm422, %v5289, 0.0
      %v5351 = vadd.f32 %v5349, %v5350
      %v5352 = vsel %vm422, %v5291, 0.0
      %v5353 = vadd.f32 %v5351, %v5352
      %v5354 = vsel %vm422, %v5293, 0.0
      %v5355 = vadd.f32 %v5353, %v5354
      %v5356 = vsel %vm422, %v5295, 0.0
      %v5357 = vadd.f32 %v5355, %v5356
      %v5358 = vsel %vm422, %v5297, 0.0
      %v5359 = vadd.f32 %v5357, %v5358
      %v5360 = vsel %vm422, %v5299, 0.0
      %v5361 = vadd.f32 %v5359, %v5360
      %v5362 = vsel %vm422, %v5301, 0.0
      %v5363 = vadd.f32 %v5361, %v5362
      %v5364 = vsel %vm422, %v5303, 0.0
      %v5365 = vadd.f32 %v5363, %v5364
      %v5366 = vsel %vm422, %v5305, 0.0
      %v5367 = vadd.f32 %v5365, %v5366
      %v5368 = vsel %vm422, %v5307, 0.0
      %v5369 = vadd.f32 %v5367, %v5368
      %v5370 = vsel %vm422, %v5309, 0.0
      %v5371 = vadd.f32 %v5369, %v5370
      %v5372 = vsel %vm422, %v5311, 0.0
      %v5373 = vadd.f32 %v5371, %v5372
      %v5374 = vsel %vm422, %v5313, 0.0
      %v5375 = vadd.f32 %v5373, %v5374
      %v5376 = vsel %vm422, %v5315, 0.0
      %v5377 = vadd.f32 %v5375, %v5376
      %v5378 = vld [vmem:[%s342 + $0x80] sm:$0xff]
      %v5379 = vld [vmem:[%s342 + $0x88] sm:$0xff]
      %v5380 = vadd.f32 %v5346, %v5378
      %v5381 = vadd.f32 %v5377, %v5379
      %5382 = vst.msk [vmem:[%s364 + $0x80] sm:$0xff] %vm422, %v5380
      %5383 = vst.msk [vmem:[%s364 + $0x88] sm:$0xff] %vm422, %v5381
      %v5384 = vld [vmem:[#allocation2 + $0x90] sm:$0xff]
      %v5385 = vld [vmem:[#allocation2 + $0x98] sm:$0xff]
      %v5386 = vmul.f32 %v5384, %v872
      %v5387 = vmul.f32 %v5385, %v873
      %v5388 = vmul.f32 %v5384, %v874
      %v5389 = vmul.f32 %v5385, %v875
      %v5390 = vmul.f32 %v5384, %v876
      %v5391 = vmul.f32 %v5385, %v877
      %v5392 = vmul.f32 %v5384, %v878
      %v5393 = vmul.f32 %v5385, %v879
      %v5394 = vmul.f32 %v5384, %v880
      %v5395 = vmul.f32 %v5385, %v881
      %v5396 = vmul.f32 %v5384, %v882
      %v5397 = vmul.f32 %v5385, %v883
      %v5398 = vmul.f32 %v5384, %v884
      %v5399 = vmul.f32 %v5385, %v885
      %v5400 = vmul.f32 %v5384, %v886
      %v5401 = vmul.f32 %v5385, %v887
      %v5402 = vmul.f32 %v5384, %v888
      %v5403 = vmul.f32 %v5385, %v889
      %v5404 = vmul.f32 %v5384, %v890
      %v5405 = vmul.f32 %v5385, %v891
      %v5406 = vmul.f32 %v5384, %v892
      %v5407 = vmul.f32 %v5385, %v893
      %v5408 = vmul.f32 %v5384, %v894
      %v5409 = vmul.f32 %v5385, %v895
      %v5410 = vmul.f32 %v5384, %v896
      %v5411 = vmul.f32 %v5385, %v897
      %v5412 = vmul.f32 %v5384, %v898
      %v5413 = vmul.f32 %v5385, %v899
      %v5414 = vmul.f32 %v5384, %v900
      %v5415 = vmul.f32 %v5385, %v901
      %v5416 = vmul.f32 %v5384, %v902
      %v5417 = vmul.f32 %v5385, %v903
      %v5418 = vsel %vm422, %v5386, 0.0
      %v5419 = vsel %vm422, %v5387, 0.0
      %v5420 = vadd.f32 %v5418, %v5419
      %v5421 = vrot.slane %v5420, 4
      %v5422 = vadd.f32 %v5420, %v5421
      %v5423 = vrot.slane %v5422, 2
      %v5424 = vadd.f32 %v5422, %v5423
      %v5425 = vrot.slane %v5424, 1
      %v5426 = vadd.f32 %v5424, %v5425
      %v5427 = vsel %vm422, %v5388, 0.0
      %v5428 = vsel %vm422, %v5389, 0.0
      %v5429 = vadd.f32 %v5427, %v5428
      %v5430 = vrot.slane %v5429, 4
      %v5431 = vadd.f32 %v5429, %v5430
      %v5432 = vrot.slane %v5431, 2
      %v5433 = vadd.f32 %v5431, %v5432
      %v5434 = vrot.slane %v5433, 1
      %v5435 = vadd.f32 %v5433, %v5434
      %v5436 = vsel %vm422, %v5390, 0.0
      %v5437 = vsel %vm422, %v5391, 0.0
      %v5438 = vadd.f32 %v5436, %v5437
      %v5439 = vrot.slane %v5438, 4
      %v5440 = vadd.f32 %v5438, %v5439
      %v5441 = vrot.slane %v5440, 2
      %v5442 = vadd.f32 %v5440, %v5441
      %v5443 = vrot.slane %v5442, 1
      %v5444 = vadd.f32 %v5442, %v5443
      %v5445 = vsel %vm422, %v5392, 0.0
      %v5446 = vsel %vm422, %v5393, 0.0
      %v5447 = vadd.f32 %v5445, %v5446
      %v5448 = vrot.slane %v5447, 4
      %v5449 = vadd.f32 %v5447, %v5448
      %v5450 = vrot.slane %v5449, 2
      %v5451 = vadd.f32 %v5449, %v5450
      %v5452 = vrot.slane %v5451, 1
      %v5453 = vadd.f32 %v5451, %v5452
      %v5454 = vsel %vm422, %v5394, 0.0
      %v5455 = vsel %vm422, %v5395, 0.0
      %v5456 = vadd.f32 %v5454, %v5455
      %v5457 = vrot.slane %v5456, 4
      %v5458 = vadd.f32 %v5456, %v5457
      %v5459 = vrot.slane %v5458, 2
      %v5460 = vadd.f32 %v5458, %v5459
      %v5461 = vrot.slane %v5460, 1
      %v5462 = vadd.f32 %v5460, %v5461
      %v5463 = vsel %vm422, %v5396, 0.0
      %v5464 = vsel %vm422, %v5397, 0.0
      %v5465 = vadd.f32 %v5463, %v5464
      %v5466 = vrot.slane %v5465, 4
      %v5467 = vadd.f32 %v5465, %v5466
      %v5468 = vrot.slane %v5467, 2
      %v5469 = vadd.f32 %v5467, %v5468
      %v5470 = vrot.slane %v5469, 1
      %v5471 = vadd.f32 %v5469, %v5470
      %v5472 = vsel %vm422, %v5398, 0.0
      %v5473 = vsel %vm422, %v5399, 0.0
      %v5474 = vadd.f32 %v5472, %v5473
      %v5475 = vrot.slane %v5474, 4
      %v5476 = vadd.f32 %v5474, %v5475
      %v5477 = vrot.slane %v5476, 2
      %v5478 = vadd.f32 %v5476, %v5477
      %v5479 = vrot.slane %v5478, 1
      %v5480 = vadd.f32 %v5478, %v5479
      %v5481 = vsel %vm422, %v5400, 0.0
      %v5482 = vsel %vm422, %v5401, 0.0
      %v5483 = vadd.f32 %v5481, %v5482
      %v5484 = vrot.slane %v5483, 4
      %v5485 = vadd.f32 %v5483, %v5484
      %v5486 = vrot.slane %v5485, 2
      %v5487 = vadd.f32 %v5485, %v5486
      %v5488 = vrot.slane %v5487, 1
      %v5489 = vadd.f32 %v5487, %v5488
      %v5490 = vsel %vm422, %v5402, 0.0
      %v5491 = vsel %vm422, %v5403, 0.0
      %v5492 = vadd.f32 %v5490, %v5491
      %v5493 = vrot.slane %v5492, 4
      %v5494 = vadd.f32 %v5492, %v5493
      %v5495 = vrot.slane %v5494, 2
      %v5496 = vadd.f32 %v5494, %v5495
      %v5497 = vrot.slane %v5496, 1
      %v5498 = vadd.f32 %v5496, %v5497
      %v5499 = vsel %vm422, %v5404, 0.0
      %v5500 = vsel %vm422, %v5405, 0.0
      %v5501 = vadd.f32 %v5499, %v5500
      %v5502 = vrot.slane %v5501, 4
      %v5503 = vadd.f32 %v5501, %v5502
      %v5504 = vrot.slane %v5503, 2
      %v5505 = vadd.f32 %v5503, %v5504
      %v5506 = vrot.slane %v5505, 1
      %v5507 = vadd.f32 %v5505, %v5506
      %v5508 = vsel %vm422, %v5406, 0.0
      %v5509 = vsel %vm422, %v5407, 0.0
      %v5510 = vadd.f32 %v5508, %v5509
      %v5511 = vrot.slane %v5510, 4
      %v5512 = vadd.f32 %v5510, %v5511
      %v5513 = vrot.slane %v5512, 2
      %v5514 = vadd.f32 %v5512, %v5513
      %v5515 = vrot.slane %v5514, 1
      %v5516 = vadd.f32 %v5514, %v5515
      %v5517 = vsel %vm422, %v5408, 0.0
      %v5518 = vsel %vm422, %v5409, 0.0
      %v5519 = vadd.f32 %v5517, %v5518
      %v5520 = vrot.slane %v5519, 4
      %v5521 = vadd.f32 %v5519, %v5520
      %v5522 = vrot.slane %v5521, 2
      %v5523 = vadd.f32 %v5521, %v5522
      %v5524 = vrot.slane %v5523, 1
      %v5525 = vadd.f32 %v5523, %v5524
      %v5526 = vsel %vm422, %v5410, 0.0
      %v5527 = vsel %vm422, %v5411, 0.0
      %v5528 = vadd.f32 %v5526, %v5527
      %v5529 = vrot.slane %v5528, 4
      %v5530 = vadd.f32 %v5528, %v5529
      %v5531 = vrot.slane %v5530, 2
      %v5532 = vadd.f32 %v5530, %v5531
      %v5533 = vrot.slane %v5532, 1
      %v5534 = vadd.f32 %v5532, %v5533
      %v5535 = vsel %vm422, %v5412, 0.0
      %v5536 = vsel %vm422, %v5413, 0.0
      %v5537 = vadd.f32 %v5535, %v5536
      %v5538 = vrot.slane %v5537, 4
      %v5539 = vadd.f32 %v5537, %v5538
      %v5540 = vrot.slane %v5539, 2
      %v5541 = vadd.f32 %v5539, %v5540
      %v5542 = vrot.slane %v5541, 1
      %v5543 = vadd.f32 %v5541, %v5542
      %v5544 = vsel %vm422, %v5414, 0.0
      %v5545 = vsel %vm422, %v5415, 0.0
      %v5546 = vadd.f32 %v5544, %v5545
      %v5547 = vrot.slane %v5546, 4
      %v5548 = vadd.f32 %v5546, %v5547
      %v5549 = vrot.slane %v5548, 2
      %v5550 = vadd.f32 %v5548, %v5549
      %v5551 = vrot.slane %v5550, 1
      %v5552 = vadd.f32 %v5550, %v5551
      %v5553 = vsel %vm422, %v5416, 0.0
      %v5554 = vsel %vm422, %v5417, 0.0
      %v5555 = vadd.f32 %v5553, %v5554
      %v5556 = vrot.slane %v5555, 4
      %v5557 = vadd.f32 %v5555, %v5556
      %v5558 = vrot.slane %v5557, 2
      %v5559 = vadd.f32 %v5557, %v5558
      %v5560 = vrot.slane %v5559, 1
      %v5561 = vadd.f32 %v5559, %v5560
      %v5562 = vsel %vm422, %v5426, -inf
      %v5563 = vsel %vm422, %v5435, -inf
      %v5564 = vsel %vm422, %v5444, -inf
      %v5565 = vsel %vm422, %v5453, -inf
      %v5566 = vsel %vm422, %v5462, -inf
      %v5567 = vmax.f32 %v5562, %v5566
      %v5568 = vsel %vm422, %v5471, -inf
      %v5569 = vmax.f32 %v5563, %v5568
      %v5570 = vsel %vm422, %v5480, -inf
      %v5571 = vmax.f32 %v5564, %v5570
      %v5572 = vsel %vm422, %v5489, -inf
      %v5573 = vmax.f32 %v5565, %v5572
      %v5574 = vsel %vm422, %v5498, -inf
      %v5575 = vmax.f32 %v5567, %v5574
      %v5576 = vsel %vm422, %v5507, -inf
      %v5577 = vmax.f32 %v5569, %v5576
      %v5578 = vsel %vm422, %v5516, -inf
      %v5579 = vmax.f32 %v5571, %v5578
      %v5580 = vsel %vm422, %v5525, -inf
      %v5581 = vmax.f32 %v5573, %v5580
      %v5582 = vsel %vm422, %v5534, -inf
      %v5583 = vmax.f32 %v5575, %v5582
      %v5584 = vsel %vm422, %v5543, -inf
      %v5585 = vmax.f32 %v5577, %v5584
      %v5586 = vsel %vm422, %v5552, -inf
      %v5587 = vmax.f32 %v5579, %v5586
      %v5588 = vsel %vm422, %v5561, -inf
      %v5589 = vmax.f32 %v5581, %v5588
      %v5590 = vmax.f32 %v5583, %v5585
      %v5591 = vmax.f32 %v5587, %v5589
      %v5592 = vmax.f32 %v5590, %v5591
      %v5593 = vsub.f32 %v5426, %v5592
      %v5594 = vsub.f32 %v5435, %v5592
      %v5595 = vsub.f32 %v5444, %v5592
      %v5596 = vsub.f32 %v5453, %v5592
      %v5597 = vsub.f32 %v5462, %v5592
      %v5598 = vsub.f32 %v5471, %v5592
      %v5599 = vsub.f32 %v5480, %v5592
      %v5600 = vsub.f32 %v5489, %v5592
      %v5601 = vsub.f32 %v5498, %v5592
      %v5602 = vsub.f32 %v5507, %v5592
      %v5603 = vsub.f32 %v5516, %v5592
      %v5604 = vsub.f32 %v5525, %v5592
      %v5605 = vsub.f32 %v5534, %v5592
      %v5606 = vsub.f32 %v5543, %v5592
      %v5607 = vsub.f32 %v5552, %v5592
      %v5608 = vsub.f32 %v5561, %v5592
      %v5609 = vmul.f32 %v5593, 1.442695
      %v5610 = vpow.pop %v5609
      %v5611 = vmul.f32 %v5594, 1.442695
      %v5612 = vpow.pop %v5611
      %v5613 = vmul.f32 %v5595, 1.442695
      %v5614 = vpow.pop %v5613
      %v5615 = vmul.f32 %v5596, 1.442695
      %v5616 = vpow.pop %v5615
      %v5617 = vmul.f32 %v5597, 1.442695
      %v5618 = vpow.pop %v5617
      %v5619 = vmul.f32 %v5598, 1.442695
      %v5620 = vpow.pop %v5619
      %v5621 = vmul.f32 %v5599, 1.442695
      %v5622 = vpow.pop %v5621
      %v5623 = vmul.f32 %v5600, 1.442695
      %v5624 = vpow.pop %v5623
      %v5625 = vmul.f32 %v5601, 1.442695
      %v5626 = vpow.pop %v5625
      %v5627 = vmul.f32 %v5602, 1.442695
      %v5628 = vpow.pop %v5627
      %v5629 = vmul.f32 %v5603, 1.442695
      %v5630 = vpow.pop %v5629
      %v5631 = vmul.f32 %v5604, 1.442695
      %v5632 = vpow.pop %v5631
      %v5633 = vmul.f32 %v5605, 1.442695
      %v5634 = vpow.pop %v5633
      %v5635 = vmul.f32 %v5606, 1.442695
      %v5636 = vpow.pop %v5635
      %v5637 = vmul.f32 %v5607, 1.442695
      %v5638 = vpow.pop %v5637
      %v5639 = vmul.f32 %v5608, 1.442695
      %v5640 = vpow.pop %v5639
      %v5657 = vrot.slane %v5612, 7
      %v5658 = vsel %vm1178, %v5657, %v5610
      %v5659 = vrot.slane %v5614, 6
      %v5660 = vsel %vm1181, %v5659, %v5658
      %v5661 = vrot.slane %v5616, 5
      %v5662 = vsel %vm1184, %v5661, %v5660
      %v5663 = vrot.slane %v5618, 4
      %v5664 = vsel %vm1187, %v5663, %v5662
      %v5665 = vrot.slane %v5620, 3
      %v5666 = vsel %vm1190, %v5665, %v5664
      %v5667 = vrot.slane %v5622, 2
      %v5668 = vsel %vm1193, %v5667, %v5666
      %v5669 = vrot.slane %v5624, 1
      %v5670 = vsel %vm1196, %v5669, %v5668
      %v5671 = vrot.slane %v5628, 7
      %v5672 = vsel %vm1178, %v5671, %v5626
      %v5673 = vrot.slane %v5630, 6
      %v5674 = vsel %vm1181, %v5673, %v5672
      %v5675 = vrot.slane %v5632, 5
      %v5676 = vsel %vm1184, %v5675, %v5674
      %v5677 = vrot.slane %v5634, 4
      %v5678 = vsel %vm1187, %v5677, %v5676
      %v5679 = vrot.slane %v5636, 3
      %v5680 = vsel %vm1190, %v5679, %v5678
      %v5681 = vrot.slane %v5638, 2
      %v5682 = vsel %vm1193, %v5681, %v5680
      %v5683 = vrot.slane %v5640, 1
      %v5684 = vsel %vm1196, %v5683, %v5682
      %v5687 = vsel %vm422, %v5670, 0.0
      %v5688 = vsel %vm422, %v5684, 0.0
      %v5689 = vadd.f32 %v5687, %v5688
      %v5690 = vrot.slane %v5689, 4
      %v5691 = vadd.f32 %v5689, %v5690
      %v5692 = vrot.slane %v5691, 2
      %v5693 = vadd.f32 %v5691, %v5692
      %v5694 = vrot.slane %v5693, 1
      %v5695 = vadd.f32 %v5693, %v5694
      %v5696 = vlaneseq
      %v5697 = vshrl.u32 %v5696, 7
      %v5698 = vsub.s32 0, %v5697
      %v5699 = vrot.slane %v5695, %v5698
      %v5700 = vrcp.pop %v5699
      %v5701 = vmul.f32 %v5610, %v5700
      %v5702 = vmul.f32 %v5612, %v5700
      %v5703 = vmul.f32 %v5614, %v5700
      %v5704 = vmul.f32 %v5616, %v5700
      %v5705 = vmul.f32 %v5618, %v5700
      %v5706 = vmul.f32 %v5620, %v5700
      %v5707 = vmul.f32 %v5622, %v5700
      %v5708 = vmul.f32 %v5624, %v5700
      %v5709 = vmul.f32 %v5626, %v5700
      %v5710 = vmul.f32 %v5628, %v5700
      %v5711 = vmul.f32 %v5630, %v5700
      %v5712 = vmul.f32 %v5632, %v5700
      %v5713 = vmul.f32 %v5634, %v5700
      %v5714 = vmul.f32 %v5636, %v5700
      %v5715 = vmul.f32 %v5638, %v5700
      %v5716 = vmul.f32 %v5640, %v5700
      %v5717 = vlaneseq
      %v5718 = vshrl.u32 %v5717, 7
      %v5719 = vsub.s32 0, %v5718
      %v5720 = vrot.slane %v5701, %v5719
      %v5721 = vlaneseq
      %v5722 = vshrl.u32 %v5721, 7
      %v5723 = vsub.s32 0, %v5722
      %v5724 = vrot.slane %v5702, %v5723
      %v5725 = vlaneseq
      %v5726 = vshrl.u32 %v5725, 7
      %v5727 = vsub.s32 0, %v5726
      %v5728 = vrot.slane %v5703, %v5727
      %v5729 = vlaneseq
      %v5730 = vshrl.u32 %v5729, 7
      %v5731 = vsub.s32 0, %v5730
      %v5732 = vrot.slane %v5704, %v5731
      %v5733 = vlaneseq
      %v5734 = vshrl.u32 %v5733, 7
      %v5735 = vsub.s32 0, %v5734
      %v5736 = vrot.slane %v5705, %v5735
      %v5737 = vlaneseq
      %v5738 = vshrl.u32 %v5737, 7
      %v5739 = vsub.s32 0, %v5738
      %v5740 = vrot.slane %v5706, %v5739
      %v5741 = vlaneseq
      %v5742 = vshrl.u32 %v5741, 7
      %v5743 = vsub.s32 0, %v5742
      %v5744 = vrot.slane %v5707, %v5743
      %v5745 = vlaneseq
      %v5746 = vshrl.u32 %v5745, 7
      %v5747 = vsub.s32 0, %v5746
      %v5748 = vrot.slane %v5708, %v5747
      %v5749 = vlaneseq
      %v5750 = vshrl.u32 %v5749, 7
      %v5751 = vsub.s32 0, %v5750
      %v5752 = vrot.slane %v5709, %v5751
      %v5753 = vlaneseq
      %v5754 = vshrl.u32 %v5753, 7
      %v5755 = vsub.s32 0, %v5754
      %v5756 = vrot.slane %v5710, %v5755
      %v5757 = vlaneseq
      %v5758 = vshrl.u32 %v5757, 7
      %v5759 = vsub.s32 0, %v5758
      %v5760 = vrot.slane %v5711, %v5759
      %v5761 = vlaneseq
      %v5762 = vshrl.u32 %v5761, 7
      %v5763 = vsub.s32 0, %v5762
      %v5764 = vrot.slane %v5712, %v5763
      %v5765 = vlaneseq
      %v5766 = vshrl.u32 %v5765, 7
      %v5767 = vsub.s32 0, %v5766
      %v5768 = vrot.slane %v5713, %v5767
      %v5769 = vlaneseq
      %v5770 = vshrl.u32 %v5769, 7
      %v5771 = vsub.s32 0, %v5770
      %v5772 = vrot.slane %v5714, %v5771
      %v5773 = vlaneseq
      %v5774 = vshrl.u32 %v5773, 7
      %v5775 = vsub.s32 0, %v5774
      %v5776 = vrot.slane %v5715, %v5775
      %v5777 = vlaneseq
      %v5778 = vshrl.u32 %v5777, 7
      %v5779 = vsub.s32 0, %v5778
      %v5780 = vrot.slane %v5716, %v5779
      %v5781 = vmul.f32 %v5720, %v872
      %v5782 = vmul.f32 %v5720, %v873
      %v5783 = vmul.f32 %v5724, %v874
      %v5784 = vmul.f32 %v5724, %v875
      %v5785 = vmul.f32 %v5728, %v876
      %v5786 = vmul.f32 %v5728, %v877
      %v5787 = vmul.f32 %v5732, %v878
      %v5788 = vmul.f32 %v5732, %v879
      %v5789 = vmul.f32 %v5736, %v880
      %v5790 = vmul.f32 %v5736, %v881
      %v5791 = vmul.f32 %v5740, %v882
      %v5792 = vmul.f32 %v5740, %v883
      %v5793 = vmul.f32 %v5744, %v884
      %v5794 = vmul.f32 %v5744, %v885
      %v5795 = vmul.f32 %v5748, %v886
      %v5796 = vmul.f32 %v5748, %v887
      %v5797 = vmul.f32 %v5752, %v888
      %v5798 = vmul.f32 %v5752, %v889
      %v5799 = vmul.f32 %v5756, %v890
      %v5800 = vmul.f32 %v5756, %v891
      %v5801 = vmul.f32 %v5760, %v892
      %v5802 = vmul.f32 %v5760, %v893
      %v5803 = vmul.f32 %v5764, %v894
      %v5804 = vmul.f32 %v5764, %v895
      %v5805 = vmul.f32 %v5768, %v896
      %v5806 = vmul.f32 %v5768, %v897
      %v5807 = vmul.f32 %v5772, %v898
      %v5808 = vmul.f32 %v5772, %v899
      %v5809 = vmul.f32 %v5776, %v900
      %v5810 = vmul.f32 %v5776, %v901
      %v5811 = vmul.f32 %v5780, %v902
      %v5812 = vmul.f32 %v5780, %v903
      %v5813 = vsel %vm422, %v5781, 0.0
      %v5814 = vsel %vm422, %v5783, 0.0
      %v5815 = vadd.f32 %v5813, %v5814
      %v5816 = vsel %vm422, %v5785, 0.0
      %v5817 = vadd.f32 %v5815, %v5816
      %v5818 = vsel %vm422, %v5787, 0.0
      %v5819 = vadd.f32 %v5817, %v5818
      %v5820 = vsel %vm422, %v5789, 0.0
      %v5821 = vadd.f32 %v5819, %v5820
      %v5822 = vsel %vm422, %v5791, 0.0
      %v5823 = vadd.f32 %v5821, %v5822
      %v5824 = vsel %vm422, %v5793, 0.0
      %v5825 = vadd.f32 %v5823, %v5824
      %v5826 = vsel %vm422, %v5795, 0.0
      %v5827 = vadd.f32 %v5825, %v5826
      %v5828 = vsel %vm422, %v5797, 0.0
      %v5829 = vadd.f32 %v5827, %v5828
      %v5830 = vsel %vm422, %v5799, 0.0
      %v5831 = vadd.f32 %v5829, %v5830
      %v5832 = vsel %vm422, %v5801, 0.0
      %v5833 = vadd.f32 %v5831, %v5832
      %v5834 = vsel %vm422, %v5803, 0.0
      %v5835 = vadd.f32 %v5833, %v5834
      %v5836 = vsel %vm422, %v5805, 0.0
      %v5837 = vadd.f32 %v5835, %v5836
      %v5838 = vsel %vm422, %v5807, 0.0
      %v5839 = vadd.f32 %v5837, %v5838
      %v5840 = vsel %vm422, %v5809, 0.0
      %v5841 = vadd.f32 %v5839, %v5840
      %v5842 = vsel %vm422, %v5811, 0.0
      %v5843 = vadd.f32 %v5841, %v5842
      %v5844 = vsel %vm422, %v5782, 0.0
      %v5845 = vsel %vm422, %v5784, 0.0
      %v5846 = vadd.f32 %v5844, %v5845
      %v5847 = vsel %vm422, %v5786, 0.0
      %v5848 = vadd.f32 %v5846, %v5847
      %v5849 = vsel %vm422, %v5788, 0.0
      %v5850 = vadd.f32 %v5848, %v5849
      %v5851 = vsel %vm422, %v5790, 0.0
      %v5852 = vadd.f32 %v5850, %v5851
      %v5853 = vsel %vm422, %v5792, 0.0
      %v5854 = vadd.f32 %v5852, %v5853
      %v5855 = vsel %vm422, %v5794, 0.0
      %v5856 = vadd.f32 %v5854, %v5855
      %v5857 = vsel %vm422, %v5796, 0.0
      %v5858 = vadd.f32 %v5856, %v5857
      %v5859 = vsel %vm422, %v5798, 0.0
      %v5860 = vadd.f32 %v5858, %v5859
      %v5861 = vsel %vm422, %v5800, 0.0
      %v5862 = vadd.f32 %v5860, %v5861
      %v5863 = vsel %vm422, %v5802, 0.0
      %v5864 = vadd.f32 %v5862, %v5863
      %v5865 = vsel %vm422, %v5804, 0.0
      %v5866 = vadd.f32 %v5864, %v5865
      %v5867 = vsel %vm422, %v5806, 0.0
      %v5868 = vadd.f32 %v5866, %v5867
      %v5869 = vsel %vm422, %v5808, 0.0
      %v5870 = vadd.f32 %v5868, %v5869
      %v5871 = vsel %vm422, %v5810, 0.0
      %v5872 = vadd.f32 %v5870, %v5871
      %v5873 = vsel %vm422, %v5812, 0.0
      %v5874 = vadd.f32 %v5872, %v5873
      %v5875 = vld [vmem:[%s342 + $0x90] sm:$0xff]
      %v5876 = vld [vmem:[%s342 + $0x98] sm:$0xff]
      %v5877 = vadd.f32 %v5843, %v5875
      %v5878 = vadd.f32 %v5874, %v5876
      %5879 = vst.msk [vmem:[%s364 + $0x90] sm:$0xff] %vm422, %v5877
      %5880 = vst.msk [vmem:[%s364 + $0x98] sm:$0xff] %vm422, %v5878
      %v5881 = vld [vmem:[#allocation2 + $0xa0] sm:$0xff]
      %v5882 = vld [vmem:[#allocation2 + $0xa8] sm:$0xff]
      %v5883 = vmul.f32 %v5881, %v872
      %v5884 = vmul.f32 %v5882, %v873
      %v5885 = vmul.f32 %v5881, %v874
      %v5886 = vmul.f32 %v5882, %v875
      %v5887 = vmul.f32 %v5881, %v876
      %v5888 = vmul.f32 %v5882, %v877
      %v5889 = vmul.f32 %v5881, %v878
      %v5890 = vmul.f32 %v5882, %v879
      %v5891 = vmul.f32 %v5881, %v880
      %v5892 = vmul.f32 %v5882, %v881
      %v5893 = vmul.f32 %v5881, %v882
      %v5894 = vmul.f32 %v5882, %v883
      %v5895 = vmul.f32 %v5881, %v884
      %v5896 = vmul.f32 %v5882, %v885
      %v5897 = vmul.f32 %v5881, %v886
      %v5898 = vmul.f32 %v5882, %v887
      %v5899 = vmul.f32 %v5881, %v888
      %v5900 = vmul.f32 %v5882, %v889
      %v5901 = vmul.f32 %v5881, %v890
      %v5902 = vmul.f32 %v5882, %v891
      %v5903 = vmul.f32 %v5881, %v892
      %v5904 = vmul.f32 %v5882, %v893
      %v5905 = vmul.f32 %v5881, %v894
      %v5906 = vmul.f32 %v5882, %v895
      %v5907 = vmul.f32 %v5881, %v896
      %v5908 = vmul.f32 %v5882, %v897
      %v5909 = vmul.f32 %v5881, %v898
      %v5910 = vmul.f32 %v5882, %v899
      %v5911 = vmul.f32 %v5881, %v900
      %v5912 = vmul.f32 %v5882, %v901
      %v5913 = vmul.f32 %v5881, %v902
      %v5914 = vmul.f32 %v5882, %v903
      %v5915 = vsel %vm422, %v5883, 0.0
      %v5916 = vsel %vm422, %v5884, 0.0
      %v5917 = vadd.f32 %v5915, %v5916
      %v5918 = vrot.slane %v5917, 4
      %v5919 = vadd.f32 %v5917, %v5918
      %v5920 = vrot.slane %v5919, 2
      %v5921 = vadd.f32 %v5919, %v5920
      %v5922 = vrot.slane %v5921, 1
      %v5923 = vadd.f32 %v5921, %v5922
      %v5924 = vsel %vm422, %v5885, 0.0
      %v5925 = vsel %vm422, %v5886, 0.0
      %v5926 = vadd.f32 %v5924, %v5925
      %v5927 = vrot.slane %v5926, 4
      %v5928 = vadd.f32 %v5926, %v5927
      %v5929 = vrot.slane %v5928, 2
      %v5930 = vadd.f32 %v5928, %v5929
      %v5931 = vrot.slane %v5930, 1
      %v5932 = vadd.f32 %v5930, %v5931
      %v5933 = vsel %vm422, %v5887, 0.0
      %v5934 = vsel %vm422, %v5888, 0.0
      %v5935 = vadd.f32 %v5933, %v5934
      %v5936 = vrot.slane %v5935, 4
      %v5937 = vadd.f32 %v5935, %v5936
      %v5938 = vrot.slane %v5937, 2
      %v5939 = vadd.f32 %v5937, %v5938
      %v5940 = vrot.slane %v5939, 1
      %v5941 = vadd.f32 %v5939, %v5940
      %v5942 = vsel %vm422, %v5889, 0.0
      %v5943 = vsel %vm422, %v5890, 0.0
      %v5944 = vadd.f32 %v5942, %v5943
      %v5945 = vrot.slane %v5944, 4
      %v5946 = vadd.f32 %v5944, %v5945
      %v5947 = vrot.slane %v5946, 2
      %v5948 = vadd.f32 %v5946, %v5947
      %v5949 = vrot.slane %v5948, 1
      %v5950 = vadd.f32 %v5948, %v5949
      %v5951 = vsel %vm422, %v5891, 0.0
      %v5952 = vsel %vm422, %v5892, 0.0
      %v5953 = vadd.f32 %v5951, %v5952
      %v5954 = vrot.slane %v5953, 4
      %v5955 = vadd.f32 %v5953, %v5954
      %v5956 = vrot.slane %v5955, 2
      %v5957 = vadd.f32 %v5955, %v5956
      %v5958 = vrot.slane %v5957, 1
      %v5959 = vadd.f32 %v5957, %v5958
      %v5960 = vsel %vm422, %v5893, 0.0
      %v5961 = vsel %vm422, %v5894, 0.0
      %v5962 = vadd.f32 %v5960, %v5961
      %v5963 = vrot.slane %v5962, 4
      %v5964 = vadd.f32 %v5962, %v5963
      %v5965 = vrot.slane %v5964, 2
      %v5966 = vadd.f32 %v5964, %v5965
      %v5967 = vrot.slane %v5966, 1
      %v5968 = vadd.f32 %v5966, %v5967
      %v5969 = vsel %vm422, %v5895, 0.0
      %v5970 = vsel %vm422, %v5896, 0.0
      %v5971 = vadd.f32 %v5969, %v5970
      %v5972 = vrot.slane %v5971, 4
      %v5973 = vadd.f32 %v5971, %v5972
      %v5974 = vrot.slane %v5973, 2
      %v5975 = vadd.f32 %v5973, %v5974
      %v5976 = vrot.slane %v5975, 1
      %v5977 = vadd.f32 %v5975, %v5976
      %v5978 = vsel %vm422, %v5897, 0.0
      %v5979 = vsel %vm422, %v5898, 0.0
      %v5980 = vadd.f32 %v5978, %v5979
      %v5981 = vrot.slane %v5980, 4
      %v5982 = vadd.f32 %v5980, %v5981
      %v5983 = vrot.slane %v5982, 2
      %v5984 = vadd.f32 %v5982, %v5983
      %v5985 = vrot.slane %v5984, 1
      %v5986 = vadd.f32 %v5984, %v5985
      %v5987 = vsel %vm422, %v5899, 0.0
      %v5988 = vsel %vm422, %v5900, 0.0
      %v5989 = vadd.f32 %v5987, %v5988
      %v5990 = vrot.slane %v5989, 4
      %v5991 = vadd.f32 %v5989, %v5990
      %v5992 = vrot.slane %v5991, 2
      %v5993 = vadd.f32 %v5991, %v5992
      %v5994 = vrot.slane %v5993, 1
      %v5995 = vadd.f32 %v5993, %v5994
      %v5996 = vsel %vm422, %v5901, 0.0
      %v5997 = vsel %vm422, %v5902, 0.0
      %v5998 = vadd.f32 %v5996, %v5997
      %v5999 = vrot.slane %v5998, 4
      %v6000 = vadd.f32 %v5998, %v5999
      %v6001 = vrot.slane %v6000, 2
      %v6002 = vadd.f32 %v6000, %v6001
      %v6003 = vrot.slane %v6002, 1
      %v6004 = vadd.f32 %v6002, %v6003
      %v6005 = vsel %vm422, %v5903, 0.0
      %v6006 = vsel %vm422, %v5904, 0.0
      %v6007 = vadd.f32 %v6005, %v6006
      %v6008 = vrot.slane %v6007, 4
      %v6009 = vadd.f32 %v6007, %v6008
      %v6010 = vrot.slane %v6009, 2
      %v6011 = vadd.f32 %v6009, %v6010
      %v6012 = vrot.slane %v6011, 1
      %v6013 = vadd.f32 %v6011, %v6012
      %v6014 = vsel %vm422, %v5905, 0.0
      %v6015 = vsel %vm422, %v5906, 0.0
      %v6016 = vadd.f32 %v6014, %v6015
      %v6017 = vrot.slane %v6016, 4
      %v6018 = vadd.f32 %v6016, %v6017
      %v6019 = vrot.slane %v6018, 2
      %v6020 = vadd.f32 %v6018, %v6019
      %v6021 = vrot.slane %v6020, 1
      %v6022 = vadd.f32 %v6020, %v6021
      %v6023 = vsel %vm422, %v5907, 0.0
      %v6024 = vsel %vm422, %v5908, 0.0
      %v6025 = vadd.f32 %v6023, %v6024
      %v6026 = vrot.slane %v6025, 4
      %v6027 = vadd.f32 %v6025, %v6026
      %v6028 = vrot.slane %v6027, 2
      %v6029 = vadd.f32 %v6027, %v6028
      %v6030 = vrot.slane %v6029, 1
      %v6031 = vadd.f32 %v6029, %v6030
      %v6032 = vsel %vm422, %v5909, 0.0
      %v6033 = vsel %vm422, %v5910, 0.0
      %v6034 = vadd.f32 %v6032, %v6033
      %v6035 = vrot.slane %v6034, 4
      %v6036 = vadd.f32 %v6034, %v6035
      %v6037 = vrot.slane %v6036, 2
      %v6038 = vadd.f32 %v6036, %v6037
      %v6039 = vrot.slane %v6038, 1
      %v6040 = vadd.f32 %v6038, %v6039
      %v6041 = vsel %vm422, %v5911, 0.0
      %v6042 = vsel %vm422, %v5912, 0.0
      %v6043 = vadd.f32 %v6041, %v6042
      %v6044 = vrot.slane %v6043, 4
      %v6045 = vadd.f32 %v6043, %v6044
      %v6046 = vrot.slane %v6045, 2
      %v6047 = vadd.f32 %v6045, %v6046
      %v6048 = vrot.slane %v6047, 1
      %v6049 = vadd.f32 %v6047, %v6048
      %v6050 = vsel %vm422, %v5913, 0.0
      %v6051 = vsel %vm422, %v5914, 0.0
      %v6052 = vadd.f32 %v6050, %v6051
      %v6053 = vrot.slane %v6052, 4
      %v6054 = vadd.f32 %v6052, %v6053
      %v6055 = vrot.slane %v6054, 2
      %v6056 = vadd.f32 %v6054, %v6055
      %v6057 = vrot.slane %v6056, 1
      %v6058 = vadd.f32 %v6056, %v6057
      %v6059 = vsel %vm422, %v5923, -inf
      %v6060 = vsel %vm422, %v5932, -inf
      %v6061 = vsel %vm422, %v5941, -inf
      %v6062 = vsel %vm422, %v5950, -inf
      %v6063 = vsel %vm422, %v5959, -inf
      %v6064 = vmax.f32 %v6059, %v6063
      %v6065 = vsel %vm422, %v5968, -inf
      %v6066 = vmax.f32 %v6060, %v6065
      %v6067 = vsel %vm422, %v5977, -inf
      %v6068 = vmax.f32 %v6061, %v6067
      %v6069 = vsel %vm422, %v5986, -inf
      %v6070 = vmax.f32 %v6062, %v6069
      %v6071 = vsel %vm422, %v5995, -inf
      %v6072 = vmax.f32 %v6064, %v6071
      %v6073 = vsel %vm422, %v6004, -inf
      %v6074 = vmax.f32 %v6066, %v6073
      %v6075 = vsel %vm422, %v6013, -inf
      %v6076 = vmax.f32 %v6068, %v6075
      %v6077 = vsel %vm422, %v6022, -inf
      %v6078 = vmax.f32 %v6070, %v6077
      %v6079 = vsel %vm422, %v6031, -inf
      %v6080 = vmax.f32 %v6072, %v6079
      %v6081 = vsel %vm422, %v6040, -inf
      %v6082 = vmax.f32 %v6074, %v6081
      %v6083 = vsel %vm422, %v6049, -inf
      %v6084 = vmax.f32 %v6076, %v6083
      %v6085 = vsel %vm422, %v6058, -inf
      %v6086 = vmax.f32 %v6078, %v6085
      %v6087 = vmax.f32 %v6080, %v6082
      %v6088 = vmax.f32 %v6084, %v6086
      %v6089 = vmax.f32 %v6087, %v6088
      %v6090 = vsub.f32 %v5923, %v6089
      %v6091 = vsub.f32 %v5932, %v6089
      %v6092 = vsub.f32 %v5941, %v6089
      %v6093 = vsub.f32 %v5950, %v6089
      %v6094 = vsub.f32 %v5959, %v6089
      %v6095 = vsub.f32 %v5968, %v6089
      %v6096 = vsub.f32 %v5977, %v6089
      %v6097 = vsub.f32 %v5986, %v6089
      %v6098 = vsub.f32 %v5995, %v6089
      %v6099 = vsub.f32 %v6004, %v6089
      %v6100 = vsub.f32 %v6013, %v6089
      %v6101 = vsub.f32 %v6022, %v6089
      %v6102 = vsub.f32 %v6031, %v6089
      %v6103 = vsub.f32 %v6040, %v6089
      %v6104 = vsub.f32 %v6049, %v6089
      %v6105 = vsub.f32 %v6058, %v6089
      %v6106 = vmul.f32 %v6090, 1.442695
      %v6107 = vpow.pop %v6106
      %v6108 = vmul.f32 %v6091, 1.442695
      %v6109 = vpow.pop %v6108
      %v6110 = vmul.f32 %v6092, 1.442695
      %v6111 = vpow.pop %v6110
      %v6112 = vmul.f32 %v6093, 1.442695
      %v6113 = vpow.pop %v6112
      %v6114 = vmul.f32 %v6094, 1.442695
      %v6115 = vpow.pop %v6114
      %v6116 = vmul.f32 %v6095, 1.442695
      %v6117 = vpow.pop %v6116
      %v6118 = vmul.f32 %v6096, 1.442695
      %v6119 = vpow.pop %v6118
      %v6120 = vmul.f32 %v6097, 1.442695
      %v6121 = vpow.pop %v6120
      %v6122 = vmul.f32 %v6098, 1.442695
      %v6123 = vpow.pop %v6122
      %v6124 = vmul.f32 %v6099, 1.442695
      %v6125 = vpow.pop %v6124
      %v6126 = vmul.f32 %v6100, 1.442695
      %v6127 = vpow.pop %v6126
      %v6128 = vmul.f32 %v6101, 1.442695
      %v6129 = vpow.pop %v6128
      %v6130 = vmul.f32 %v6102, 1.442695
      %v6131 = vpow.pop %v6130
      %v6132 = vmul.f32 %v6103, 1.442695
      %v6133 = vpow.pop %v6132
      %v6134 = vmul.f32 %v6104, 1.442695
      %v6135 = vpow.pop %v6134
      %v6136 = vmul.f32 %v6105, 1.442695
      %v6137 = vpow.pop %v6136
      %v6154 = vrot.slane %v6109, 7
      %v6155 = vsel %vm1178, %v6154, %v6107
      %v6156 = vrot.slane %v6111, 6
      %v6157 = vsel %vm1181, %v6156, %v6155
      %v6158 = vrot.slane %v6113, 5
      %v6159 = vsel %vm1184, %v6158, %v6157
      %v6160 = vrot.slane %v6115, 4
      %v6161 = vsel %vm1187, %v6160, %v6159
      %v6162 = vrot.slane %v6117, 3
      %v6163 = vsel %vm1190, %v6162, %v6161
      %v6164 = vrot.slane %v6119, 2
      %v6165 = vsel %vm1193, %v6164, %v6163
      %v6166 = vrot.slane %v6121, 1
      %v6167 = vsel %vm1196, %v6166, %v6165
      %v6168 = vrot.slane %v6125, 7
      %v6169 = vsel %vm1178, %v6168, %v6123
      %v6170 = vrot.slane %v6127, 6
      %v6171 = vsel %vm1181, %v6170, %v6169
      %v6172 = vrot.slane %v6129, 5
      %v6173 = vsel %vm1184, %v6172, %v6171
      %v6174 = vrot.slane %v6131, 4
      %v6175 = vsel %vm1187, %v6174, %v6173
      %v6176 = vrot.slane %v6133, 3
      %v6177 = vsel %vm1190, %v6176, %v6175
      %v6178 = vrot.slane %v6135, 2
      %v6179 = vsel %vm1193, %v6178, %v6177
      %v6180 = vrot.slane %v6137, 1
      %v6181 = vsel %vm1196, %v6180, %v6179
      %v6184 = vsel %vm422, %v6167, 0.0
      %v6185 = vsel %vm422, %v6181, 0.0
      %v6186 = vadd.f32 %v6184, %v6185
      %v6187 = vrot.slane %v6186, 4
      %v6188 = vadd.f32 %v6186, %v6187
      %v6189 = vrot.slane %v6188, 2
      %v6190 = vadd.f32 %v6188, %v6189
      %v6191 = vrot.slane %v6190, 1
      %v6192 = vadd.f32 %v6190, %v6191
      %v6193 = vlaneseq
      %v6194 = vshrl.u32 %v6193, 7
      %v6195 = vsub.s32 0, %v6194
      %v6196 = vrot.slane %v6192, %v6195
      %v6197 = vrcp.pop %v6196
      %v6198 = vmul.f32 %v6107, %v6197
      %v6199 = vmul.f32 %v6109, %v6197
      %v6200 = vmul.f32 %v6111, %v6197
      %v6201 = vmul.f32 %v6113, %v6197
      %v6202 = vmul.f32 %v6115, %v6197
      %v6203 = vmul.f32 %v6117, %v6197
      %v6204 = vmul.f32 %v6119, %v6197
      %v6205 = vmul.f32 %v6121, %v6197
      %v6206 = vmul.f32 %v6123, %v6197
      %v6207 = vmul.f32 %v6125, %v6197
      %v6208 = vmul.f32 %v6127, %v6197
      %v6209 = vmul.f32 %v6129, %v6197
      %v6210 = vmul.f32 %v6131, %v6197
      %v6211 = vmul.f32 %v6133, %v6197
      %v6212 = vmul.f32 %v6135, %v6197
      %v6213 = vmul.f32 %v6137, %v6197
      %v6214 = vlaneseq
      %v6215 = vshrl.u32 %v6214, 7
      %v6216 = vsub.s32 0, %v6215
      %v6217 = vrot.slane %v6198, %v6216
      %v6218 = vlaneseq
      %v6219 = vshrl.u32 %v6218, 7
      %v6220 = vsub.s32 0, %v6219
      %v6221 = vrot.slane %v6199, %v6220
      %v6222 = vlaneseq
      %v6223 = vshrl.u32 %v6222, 7
      %v6224 = vsub.s32 0, %v6223
      %v6225 = vrot.slane %v6200, %v6224
      %v6226 = vlaneseq
      %v6227 = vshrl.u32 %v6226, 7
      %v6228 = vsub.s32 0, %v6227
      %v6229 = vrot.slane %v6201, %v6228
      %v6230 = vlaneseq
      %v6231 = vshrl.u32 %v6230, 7
      %v6232 = vsub.s32 0, %v6231
      %v6233 = vrot.slane %v6202, %v6232
      %v6234 = vlaneseq
      %v6235 = vshrl.u32 %v6234, 7
      %v6236 = vsub.s32 0, %v6235
      %v6237 = vrot.slane %v6203, %v6236
      %v6238 = vlaneseq
      %v6239 = vshrl.u32 %v6238, 7
      %v6240 = vsub.s32 0, %v6239
      %v6241 = vrot.slane %v6204, %v6240
      %v6242 = vlaneseq
      %v6243 = vshrl.u32 %v6242, 7
      %v6244 = vsub.s32 0, %v6243
      %v6245 = vrot.slane %v6205, %v6244
      %v6246 = vlaneseq
      %v6247 = vshrl.u32 %v6246, 7
      %v6248 = vsub.s32 0, %v6247
      %v6249 = vrot.slane %v6206, %v6248
      %v6250 = vlaneseq
      %v6251 = vshrl.u32 %v6250, 7
      %v6252 = vsub.s32 0, %v6251
      %v6253 = vrot.slane %v6207, %v6252
      %v6254 = vlaneseq
      %v6255 = vshrl.u32 %v6254, 7
      %v6256 = vsub.s32 0, %v6255
      %v6257 = vrot.slane %v6208, %v6256
      %v6258 = vlaneseq
      %v6259 = vshrl.u32 %v6258, 7
      %v6260 = vsub.s32 0, %v6259
      %v6261 = vrot.slane %v6209, %v6260
      %v6262 = vlaneseq
      %v6263 = vshrl.u32 %v6262, 7
      %v6264 = vsub.s32 0, %v6263
      %v6265 = vrot.slane %v6210, %v6264
      %v6266 = vlaneseq
      %v6267 = vshrl.u32 %v6266, 7
      %v6268 = vsub.s32 0, %v6267
      %v6269 = vrot.slane %v6211, %v6268
      %v6270 = vlaneseq
      %v6271 = vshrl.u32 %v6270, 7
      %v6272 = vsub.s32 0, %v6271
      %v6273 = vrot.slane %v6212, %v6272
      %v6274 = vlaneseq
      %v6275 = vshrl.u32 %v6274, 7
      %v6276 = vsub.s32 0, %v6275
      %v6277 = vrot.slane %v6213, %v6276
      %v6278 = vmul.f32 %v6217, %v872
      %v6279 = vmul.f32 %v6217, %v873
      %v6280 = vmul.f32 %v6221, %v874
      %v6281 = vmul.f32 %v6221, %v875
      %v6282 = vmul.f32 %v6225, %v876
      %v6283 = vmul.f32 %v6225, %v877
      %v6284 = vmul.f32 %v6229, %v878
      %v6285 = vmul.f32 %v6229, %v879
      %v6286 = vmul.f32 %v6233, %v880
      %v6287 = vmul.f32 %v6233, %v881
      %v6288 = vmul.f32 %v6237, %v882
      %v6289 = vmul.f32 %v6237, %v883
      %v6290 = vmul.f32 %v6241, %v884
      %v6291 = vmul.f32 %v6241, %v885
      %v6292 = vmul.f32 %v6245, %v886
      %v6293 = vmul.f32 %v6245, %v887
      %v6294 = vmul.f32 %v6249, %v888
      %v6295 = vmul.f32 %v6249, %v889
      %v6296 = vmul.f32 %v6253, %v890
      %v6297 = vmul.f32 %v6253, %v891
      %v6298 = vmul.f32 %v6257, %v892
      %v6299 = vmul.f32 %v6257, %v893
      %v6300 = vmul.f32 %v6261, %v894
      %v6301 = vmul.f32 %v6261, %v895
      %v6302 = vmul.f32 %v6265, %v896
      %v6303 = vmul.f32 %v6265, %v897
      %v6304 = vmul.f32 %v6269, %v898
      %v6305 = vmul.f32 %v6269, %v899
      %v6306 = vmul.f32 %v6273, %v900
      %v6307 = vmul.f32 %v6273, %v901
      %v6308 = vmul.f32 %v6277, %v902
      %v6309 = vmul.f32 %v6277, %v903
      %v6310 = vsel %vm422, %v6278, 0.0
      %v6311 = vsel %vm422, %v6280, 0.0
      %v6312 = vadd.f32 %v6310, %v6311
      %v6313 = vsel %vm422, %v6282, 0.0
      %v6314 = vadd.f32 %v6312, %v6313
      %v6315 = vsel %vm422, %v6284, 0.0
      %v6316 = vadd.f32 %v6314, %v6315
      %v6317 = vsel %vm422, %v6286, 0.0
      %v6318 = vadd.f32 %v6316, %v6317
      %v6319 = vsel %vm422, %v6288, 0.0
      %v6320 = vadd.f32 %v6318, %v6319
      %v6321 = vsel %vm422, %v6290, 0.0
      %v6322 = vadd.f32 %v6320, %v6321
      %v6323 = vsel %vm422, %v6292, 0.0
      %v6324 = vadd.f32 %v6322, %v6323
      %v6325 = vsel %vm422, %v6294, 0.0
      %v6326 = vadd.f32 %v6324, %v6325
      %v6327 = vsel %vm422, %v6296, 0.0
      %v6328 = vadd.f32 %v6326, %v6327
      %v6329 = vsel %vm422, %v6298, 0.0
      %v6330 = vadd.f32 %v6328, %v6329
      %v6331 = vsel %vm422, %v6300, 0.0
      %v6332 = vadd.f32 %v6330, %v6331
      %v6333 = vsel %vm422, %v6302, 0.0
      %v6334 = vadd.f32 %v6332, %v6333
      %v6335 = vsel %vm422, %v6304, 0.0
      %v6336 = vadd.f32 %v6334, %v6335
      %v6337 = vsel %vm422, %v6306, 0.0
      %v6338 = vadd.f32 %v6336, %v6337
      %v6339 = vsel %vm422, %v6308, 0.0
      %v6340 = vadd.f32 %v6338, %v6339
      %v6341 = vsel %vm422, %v6279, 0.0
      %v6342 = vsel %vm422, %v6281, 0.0
      %v6343 = vadd.f32 %v6341, %v6342
      %v6344 = vsel %vm422, %v6283, 0.0
      %v6345 = vadd.f32 %v6343, %v6344
      %v6346 = vsel %vm422, %v6285, 0.0
      %v6347 = vadd.f32 %v6345, %v6346
      %v6348 = vsel %vm422, %v6287, 0.0
      %v6349 = vadd.f32 %v6347, %v6348
      %v6350 = vsel %vm422, %v6289, 0.0
      %v6351 = vadd.f32 %v6349, %v6350
      %v6352 = vsel %vm422, %v6291, 0.0
      %v6353 = vadd.f32 %v6351, %v6352
      %v6354 = vsel %vm422, %v6293, 0.0
      %v6355 = vadd.f32 %v6353, %v6354
      %v6356 = vsel %vm422, %v6295, 0.0
      %v6357 = vadd.f32 %v6355, %v6356
      %v6358 = vsel %vm422, %v6297, 0.0
      %v6359 = vadd.f32 %v6357, %v6358
      %v6360 = vsel %vm422, %v6299, 0.0
      %v6361 = vadd.f32 %v6359, %v6360
      %v6362 = vsel %vm422, %v6301, 0.0
      %v6363 = vadd.f32 %v6361, %v6362
      %v6364 = vsel %vm422, %v6303, 0.0
      %v6365 = vadd.f32 %v6363, %v6364
      %v6366 = vsel %vm422, %v6305, 0.0
      %v6367 = vadd.f32 %v6365, %v6366
      %v6368 = vsel %vm422, %v6307, 0.0
      %v6369 = vadd.f32 %v6367, %v6368
      %v6370 = vsel %vm422, %v6309, 0.0
      %v6371 = vadd.f32 %v6369, %v6370
      %v6372 = vld [vmem:[%s342 + $0xa0] sm:$0xff]
      %v6373 = vld [vmem:[%s342 + $0xa8] sm:$0xff]
      %v6374 = vadd.f32 %v6340, %v6372
      %v6375 = vadd.f32 %v6371, %v6373
      %6376 = vst.msk [vmem:[%s364 + $0xa0] sm:$0xff] %vm422, %v6374
      %6377 = vst.msk [vmem:[%s364 + $0xa8] sm:$0xff] %vm422, %v6375
      %v6378 = vld [vmem:[#allocation2 + $0xb0] sm:$0xff]
      %v6379 = vld [vmem:[#allocation2 + $0xb8] sm:$0xff]
      %v6380 = vmul.f32 %v6378, %v872
      %v6381 = vmul.f32 %v6379, %v873
      %v6382 = vmul.f32 %v6378, %v874
      %v6383 = vmul.f32 %v6379, %v875
      %v6384 = vmul.f32 %v6378, %v876
      %v6385 = vmul.f32 %v6379, %v877
      %v6386 = vmul.f32 %v6378, %v878
      %v6387 = vmul.f32 %v6379, %v879
      %v6388 = vmul.f32 %v6378, %v880
      %v6389 = vmul.f32 %v6379, %v881
      %v6390 = vmul.f32 %v6378, %v882
      %v6391 = vmul.f32 %v6379, %v883
      %v6392 = vmul.f32 %v6378, %v884
      %v6393 = vmul.f32 %v6379, %v885
      %v6394 = vmul.f32 %v6378, %v886
      %v6395 = vmul.f32 %v6379, %v887
      %v6396 = vmul.f32 %v6378, %v888
      %v6397 = vmul.f32 %v6379, %v889
      %v6398 = vmul.f32 %v6378, %v890
      %v6399 = vmul.f32 %v6379, %v891
      %v6400 = vmul.f32 %v6378, %v892
      %v6401 = vmul.f32 %v6379, %v893
      %v6402 = vmul.f32 %v6378, %v894
      %v6403 = vmul.f32 %v6379, %v895
      %v6404 = vmul.f32 %v6378, %v896
      %v6405 = vmul.f32 %v6379, %v897
      %v6406 = vmul.f32 %v6378, %v898
      %v6407 = vmul.f32 %v6379, %v899
      %v6408 = vmul.f32 %v6378, %v900
      %v6409 = vmul.f32 %v6379, %v901
      %v6410 = vmul.f32 %v6378, %v902
      %v6411 = vmul.f32 %v6379, %v903
      %v6412 = vsel %vm422, %v6380, 0.0
      %v6413 = vsel %vm422, %v6381, 0.0
      %v6414 = vadd.f32 %v6412, %v6413
      %v6415 = vrot.slane %v6414, 4
      %v6416 = vadd.f32 %v6414, %v6415
      %v6417 = vrot.slane %v6416, 2
      %v6418 = vadd.f32 %v6416, %v6417
      %v6419 = vrot.slane %v6418, 1
      %v6420 = vadd.f32 %v6418, %v6419
      %v6421 = vsel %vm422, %v6382, 0.0
      %v6422 = vsel %vm422, %v6383, 0.0
      %v6423 = vadd.f32 %v6421, %v6422
      %v6424 = vrot.slane %v6423, 4
      %v6425 = vadd.f32 %v6423, %v6424
      %v6426 = vrot.slane %v6425, 2
      %v6427 = vadd.f32 %v6425, %v6426
      %v6428 = vrot.slane %v6427, 1
      %v6429 = vadd.f32 %v6427, %v6428
      %v6430 = vsel %vm422, %v6384, 0.0
      %v6431 = vsel %vm422, %v6385, 0.0
      %v6432 = vadd.f32 %v6430, %v6431
      %v6433 = vrot.slane %v6432, 4
      %v6434 = vadd.f32 %v6432, %v6433
      %v6435 = vrot.slane %v6434, 2
      %v6436 = vadd.f32 %v6434, %v6435
      %v6437 = vrot.slane %v6436, 1
      %v6438 = vadd.f32 %v6436, %v6437
      %v6439 = vsel %vm422, %v6386, 0.0
      %v6440 = vsel %vm422, %v6387, 0.0
      %v6441 = vadd.f32 %v6439, %v6440
      %v6442 = vrot.slane %v6441, 4
      %v6443 = vadd.f32 %v6441, %v6442
      %v6444 = vrot.slane %v6443, 2
      %v6445 = vadd.f32 %v6443, %v6444
      %v6446 = vrot.slane %v6445, 1
      %v6447 = vadd.f32 %v6445, %v6446
      %v6448 = vsel %vm422, %v6388, 0.0
      %v6449 = vsel %vm422, %v6389, 0.0
      %v6450 = vadd.f32 %v6448, %v6449
      %v6451 = vrot.slane %v6450, 4
      %v6452 = vadd.f32 %v6450, %v6451
      %v6453 = vrot.slane %v6452, 2
      %v6454 = vadd.f32 %v6452, %v6453
      %v6455 = vrot.slane %v6454, 1
      %v6456 = vadd.f32 %v6454, %v6455
      %v6457 = vsel %vm422, %v6390, 0.0
      %v6458 = vsel %vm422, %v6391, 0.0
      %v6459 = vadd.f32 %v6457, %v6458
      %v6460 = vrot.slane %v6459, 4
      %v6461 = vadd.f32 %v6459, %v6460
      %v6462 = vrot.slane %v6461, 2
      %v6463 = vadd.f32 %v6461, %v6462
      %v6464 = vrot.slane %v6463, 1
      %v6465 = vadd.f32 %v6463, %v6464
      %v6466 = vsel %vm422, %v6392, 0.0
      %v6467 = vsel %vm422, %v6393, 0.0
      %v6468 = vadd.f32 %v6466, %v6467
      %v6469 = vrot.slane %v6468, 4
      %v6470 = vadd.f32 %v6468, %v6469
      %v6471 = vrot.slane %v6470, 2
      %v6472 = vadd.f32 %v6470, %v6471
      %v6473 = vrot.slane %v6472, 1
      %v6474 = vadd.f32 %v6472, %v6473
      %v6475 = vsel %vm422, %v6394, 0.0
      %v6476 = vsel %vm422, %v6395, 0.0
      %v6477 = vadd.f32 %v6475, %v6476
      %v6478 = vrot.slane %v6477, 4
      %v6479 = vadd.f32 %v6477, %v6478
      %v6480 = vrot.slane %v6479, 2
      %v6481 = vadd.f32 %v6479, %v6480
      %v6482 = vrot.slane %v6481, 1
      %v6483 = vadd.f32 %v6481, %v6482
      %v6484 = vsel %vm422, %v6396, 0.0
      %v6485 = vsel %vm422, %v6397, 0.0
      %v6486 = vadd.f32 %v6484, %v6485
      %v6487 = vrot.slane %v6486, 4
      %v6488 = vadd.f32 %v6486, %v6487
      %v6489 = vrot.slane %v6488, 2
      %v6490 = vadd.f32 %v6488, %v6489
      %v6491 = vrot.slane %v6490, 1
      %v6492 = vadd.f32 %v6490, %v6491
      %v6493 = vsel %vm422, %v6398, 0.0
      %v6494 = vsel %vm422, %v6399, 0.0
      %v6495 = vadd.f32 %v6493, %v6494
      %v6496 = vrot.slane %v6495, 4
      %v6497 = vadd.f32 %v6495, %v6496
      %v6498 = vrot.slane %v6497, 2
      %v6499 = vadd.f32 %v6497, %v6498
      %v6500 = vrot.slane %v6499, 1
      %v6501 = vadd.f32 %v6499, %v6500
      %v6502 = vsel %vm422, %v6400, 0.0
      %v6503 = vsel %vm422, %v6401, 0.0
      %v6504 = vadd.f32 %v6502, %v6503
      %v6505 = vrot.slane %v6504, 4
      %v6506 = vadd.f32 %v6504, %v6505
      %v6507 = vrot.slane %v6506, 2
      %v6508 = vadd.f32 %v6506, %v6507
      %v6509 = vrot.slane %v6508, 1
      %v6510 = vadd.f32 %v6508, %v6509
      %v6511 = vsel %vm422, %v6402, 0.0
      %v6512 = vsel %vm422, %v6403, 0.0
      %v6513 = vadd.f32 %v6511, %v6512
      %v6514 = vrot.slane %v6513, 4
      %v6515 = vadd.f32 %v6513, %v6514
      %v6516 = vrot.slane %v6515, 2
      %v6517 = vadd.f32 %v6515, %v6516
      %v6518 = vrot.slane %v6517, 1
      %v6519 = vadd.f32 %v6517, %v6518
      %v6520 = vsel %vm422, %v6404, 0.0
      %v6521 = vsel %vm422, %v6405, 0.0
      %v6522 = vadd.f32 %v6520, %v6521
      %v6523 = vrot.slane %v6522, 4
      %v6524 = vadd.f32 %v6522, %v6523
      %v6525 = vrot.slane %v6524, 2
      %v6526 = vadd.f32 %v6524, %v6525
      %v6527 = vrot.slane %v6526, 1
      %v6528 = vadd.f32 %v6526, %v6527
      %v6529 = vsel %vm422, %v6406, 0.0
      %v6530 = vsel %vm422, %v6407, 0.0
      %v6531 = vadd.f32 %v6529, %v6530
      %v6532 = vrot.slane %v6531, 4
      %v6533 = vadd.f32 %v6531, %v6532
      %v6534 = vrot.slane %v6533, 2
      %v6535 = vadd.f32 %v6533, %v6534
      %v6536 = vrot.slane %v6535, 1
      %v6537 = vadd.f32 %v6535, %v6536
      %v6538 = vsel %vm422, %v6408, 0.0
      %v6539 = vsel %vm422, %v6409, 0.0
      %v6540 = vadd.f32 %v6538, %v6539
      %v6541 = vrot.slane %v6540, 4
      %v6542 = vadd.f32 %v6540, %v6541
      %v6543 = vrot.slane %v6542, 2
      %v6544 = vadd.f32 %v6542, %v6543
      %v6545 = vrot.slane %v6544, 1
      %v6546 = vadd.f32 %v6544, %v6545
      %v6547 = vsel %vm422, %v6410, 0.0
      %v6548 = vsel %vm422, %v6411, 0.0
      %v6549 = vadd.f32 %v6547, %v6548
      %v6550 = vrot.slane %v6549, 4
      %v6551 = vadd.f32 %v6549, %v6550
      %v6552 = vrot.slane %v6551, 2
      %v6553 = vadd.f32 %v6551, %v6552
      %v6554 = vrot.slane %v6553, 1
      %v6555 = vadd.f32 %v6553, %v6554
      %v6556 = vsel %vm422, %v6420, -inf
      %v6557 = vsel %vm422, %v6429, -inf
      %v6558 = vsel %vm422, %v6438, -inf
      %v6559 = vsel %vm422, %v6447, -inf
      %v6560 = vsel %vm422, %v6456, -inf
      %v6561 = vmax.f32 %v6556, %v6560
      %v6562 = vsel %vm422, %v6465, -inf
      %v6563 = vmax.f32 %v6557, %v6562
      %v6564 = vsel %vm422, %v6474, -inf
      %v6565 = vmax.f32 %v6558, %v6564
      %v6566 = vsel %vm422, %v6483, -inf
      %v6567 = vmax.f32 %v6559, %v6566
      %v6568 = vsel %vm422, %v6492, -inf
      %v6569 = vmax.f32 %v6561, %v6568
      %v6570 = vsel %vm422, %v6501, -inf
      %v6571 = vmax.f32 %v6563, %v6570
      %v6572 = vsel %vm422, %v6510, -inf
      %v6573 = vmax.f32 %v6565, %v6572
      %v6574 = vsel %vm422, %v6519, -inf
      %v6575 = vmax.f32 %v6567, %v6574
      %v6576 = vsel %vm422, %v6528, -inf
      %v6577 = vmax.f32 %v6569, %v6576
      %v6578 = vsel %vm422, %v6537, -inf
      %v6579 = vmax.f32 %v6571, %v6578
      %v6580 = vsel %vm422, %v6546, -inf
      %v6581 = vmax.f32 %v6573, %v6580
      %v6582 = vsel %vm422, %v6555, -inf
      %v6583 = vmax.f32 %v6575, %v6582
      %v6584 = vmax.f32 %v6577, %v6579
      %v6585 = vmax.f32 %v6581, %v6583
      %v6586 = vmax.f32 %v6584, %v6585
      %v6587 = vsub.f32 %v6420, %v6586
      %v6588 = vsub.f32 %v6429, %v6586
      %v6589 = vsub.f32 %v6438, %v6586
      %v6590 = vsub.f32 %v6447, %v6586
      %v6591 = vsub.f32 %v6456, %v6586
      %v6592 = vsub.f32 %v6465, %v6586
      %v6593 = vsub.f32 %v6474, %v6586
      %v6594 = vsub.f32 %v6483, %v6586
      %v6595 = vsub.f32 %v6492, %v6586
      %v6596 = vsub.f32 %v6501, %v6586
      %v6597 = vsub.f32 %v6510, %v6586
      %v6598 = vsub.f32 %v6519, %v6586
      %v6599 = vsub.f32 %v6528, %v6586
      %v6600 = vsub.f32 %v6537, %v6586
      %v6601 = vsub.f32 %v6546, %v6586
      %v6602 = vsub.f32 %v6555, %v6586
      %v6603 = vmul.f32 %v6587, 1.442695
      %v6604 = vpow.pop %v6603
      %v6605 = vmul.f32 %v6588, 1.442695
      %v6606 = vpow.pop %v6605
      %v6607 = vmul.f32 %v6589, 1.442695
      %v6608 = vpow.pop %v6607
      %v6609 = vmul.f32 %v6590, 1.442695
      %v6610 = vpow.pop %v6609
      %v6611 = vmul.f32 %v6591, 1.442695
      %v6612 = vpow.pop %v6611
      %v6613 = vmul.f32 %v6592, 1.442695
      %v6614 = vpow.pop %v6613
      %v6615 = vmul.f32 %v6593, 1.442695
      %v6616 = vpow.pop %v6615
      %v6617 = vmul.f32 %v6594, 1.442695
      %v6618 = vpow.pop %v6617
      %v6619 = vmul.f32 %v6595, 1.442695
      %v6620 = vpow.pop %v6619
      %v6621 = vmul.f32 %v6596, 1.442695
      %v6622 = vpow.pop %v6621
      %v6623 = vmul.f32 %v6597, 1.442695
      %v6624 = vpow.pop %v6623
      %v6625 = vmul.f32 %v6598, 1.442695
      %v6626 = vpow.pop %v6625
      %v6627 = vmul.f32 %v6599, 1.442695
      %v6628 = vpow.pop %v6627
      %v6629 = vmul.f32 %v6600, 1.442695
      %v6630 = vpow.pop %v6629
      %v6631 = vmul.f32 %v6601, 1.442695
      %v6632 = vpow.pop %v6631
      %v6633 = vmul.f32 %v6602, 1.442695
      %v6634 = vpow.pop %v6633
      %v6651 = vrot.slane %v6606, 7
      %v6652 = vsel %vm1178, %v6651, %v6604
      %v6653 = vrot.slane %v6608, 6
      %v6654 = vsel %vm1181, %v6653, %v6652
      %v6655 = vrot.slane %v6610, 5
      %v6656 = vsel %vm1184, %v6655, %v6654
      %v6657 = vrot.slane %v6612, 4
      %v6658 = vsel %vm1187, %v6657, %v6656
      %v6659 = vrot.slane %v6614, 3
      %v6660 = vsel %vm1190, %v6659, %v6658
      %v6661 = vrot.slane %v6616, 2
      %v6662 = vsel %vm1193, %v6661, %v6660
      %v6663 = vrot.slane %v6618, 1
      %v6664 = vsel %vm1196, %v6663, %v6662
      %v6665 = vrot.slane %v6622, 7
      %v6666 = vsel %vm1178, %v6665, %v6620
      %v6667 = vrot.slane %v6624, 6
      %v6668 = vsel %vm1181, %v6667, %v6666
      %v6669 = vrot.slane %v6626, 5
      %v6670 = vsel %vm1184, %v6669, %v6668
      %v6671 = vrot.slane %v6628, 4
      %v6672 = vsel %vm1187, %v6671, %v6670
      %v6673 = vrot.slane %v6630, 3
      %v6674 = vsel %vm1190, %v6673, %v6672
      %v6675 = vrot.slane %v6632, 2
      %v6676 = vsel %vm1193, %v6675, %v6674
      %v6677 = vrot.slane %v6634, 1
      %v6678 = vsel %vm1196, %v6677, %v6676
      %v6681 = vsel %vm422, %v6664, 0.0
      %v6682 = vsel %vm422, %v6678, 0.0
      %v6683 = vadd.f32 %v6681, %v6682
      %v6684 = vrot.slane %v6683, 4
      %v6685 = vadd.f32 %v6683, %v6684
      %v6686 = vrot.slane %v6685, 2
      %v6687 = vadd.f32 %v6685, %v6686
      %v6688 = vrot.slane %v6687, 1
      %v6689 = vadd.f32 %v6687, %v6688
      %v6690 = vlaneseq
      %v6691 = vshrl.u32 %v6690, 7
      %v6692 = vsub.s32 0, %v6691
      %v6693 = vrot.slane %v6689, %v6692
      %v6694 = vrcp.pop %v6693
      %v6695 = vmul.f32 %v6604, %v6694
      %v6696 = vmul.f32 %v6606, %v6694
      %v6697 = vmul.f32 %v6608, %v6694
      %v6698 = vmul.f32 %v6610, %v6694
      %v6699 = vmul.f32 %v6612, %v6694
      %v6700 = vmul.f32 %v6614, %v6694
      %v6701 = vmul.f32 %v6616, %v6694
      %v6702 = vmul.f32 %v6618, %v6694
      %v6703 = vmul.f32 %v6620, %v6694
      %v6704 = vmul.f32 %v6622, %v6694
      %v6705 = vmul.f32 %v6624, %v6694
      %v6706 = vmul.f32 %v6626, %v6694
      %v6707 = vmul.f32 %v6628, %v6694
      %v6708 = vmul.f32 %v6630, %v6694
      %v6709 = vmul.f32 %v6632, %v6694
      %v6710 = vmul.f32 %v6634, %v6694
      %v6711 = vlaneseq
      %v6712 = vshrl.u32 %v6711, 7
      %v6713 = vsub.s32 0, %v6712
      %v6714 = vrot.slane %v6695, %v6713
      %v6715 = vlaneseq
      %v6716 = vshrl.u32 %v6715, 7
      %v6717 = vsub.s32 0, %v6716
      %v6718 = vrot.slane %v6696, %v6717
      %v6719 = vlaneseq
      %v6720 = vshrl.u32 %v6719, 7
      %v6721 = vsub.s32 0, %v6720
      %v6722 = vrot.slane %v6697, %v6721
      %v6723 = vlaneseq
      %v6724 = vshrl.u32 %v6723, 7
      %v6725 = vsub.s32 0, %v6724
      %v6726 = vrot.slane %v6698, %v6725
      %v6727 = vlaneseq
      %v6728 = vshrl.u32 %v6727, 7
      %v6729 = vsub.s32 0, %v6728
      %v6730 = vrot.slane %v6699, %v6729
      %v6731 = vlaneseq
      %v6732 = vshrl.u32 %v6731, 7
      %v6733 = vsub.s32 0, %v6732
      %v6734 = vrot.slane %v6700, %v6733
      %v6735 = vlaneseq
      %v6736 = vshrl.u32 %v6735, 7
      %v6737 = vsub.s32 0, %v6736
      %v6738 = vrot.slane %v6701, %v6737
      %v6739 = vlaneseq
      %v6740 = vshrl.u32 %v6739, 7
      %v6741 = vsub.s32 0, %v6740
      %v6742 = vrot.slane %v6702, %v6741
      %v6743 = vlaneseq
      %v6744 = vshrl.u32 %v6743, 7
      %v6745 = vsub.s32 0, %v6744
      %v6746 = vrot.slane %v6703, %v6745
      %v6747 = vlaneseq
      %v6748 = vshrl.u32 %v6747, 7
      %v6749 = vsub.s32 0, %v6748
      %v6750 = vrot.slane %v6704, %v6749
      %v6751 = vlaneseq
      %v6752 = vshrl.u32 %v6751, 7
      %v6753 = vsub.s32 0, %v6752
      %v6754 = vrot.slane %v6705, %v6753
      %v6755 = vlaneseq
      %v6756 = vshrl.u32 %v6755, 7
      %v6757 = vsub.s32 0, %v6756
      %v6758 = vrot.slane %v6706, %v6757
      %v6759 = vlaneseq
      %v6760 = vshrl.u32 %v6759, 7
      %v6761 = vsub.s32 0, %v6760
      %v6762 = vrot.slane %v6707, %v6761
      %v6763 = vlaneseq
      %v6764 = vshrl.u32 %v6763, 7
      %v6765 = vsub.s32 0, %v6764
      %v6766 = vrot.slane %v6708, %v6765
      %v6767 = vlaneseq
      %v6768 = vshrl.u32 %v6767, 7
      %v6769 = vsub.s32 0, %v6768
      %v6770 = vrot.slane %v6709, %v6769
      %v6771 = vlaneseq
      %v6772 = vshrl.u32 %v6771, 7
      %v6773 = vsub.s32 0, %v6772
      %v6774 = vrot.slane %v6710, %v6773
      %v6775 = vmul.f32 %v6714, %v872
      %v6776 = vmul.f32 %v6714, %v873
      %v6777 = vmul.f32 %v6718, %v874
      %v6778 = vmul.f32 %v6718, %v875
      %v6779 = vmul.f32 %v6722, %v876
      %v6780 = vmul.f32 %v6722, %v877
      %v6781 = vmul.f32 %v6726, %v878
      %v6782 = vmul.f32 %v6726, %v879
      %v6783 = vmul.f32 %v6730, %v880
      %v6784 = vmul.f32 %v6730, %v881
      %v6785 = vmul.f32 %v6734, %v882
      %v6786 = vmul.f32 %v6734, %v883
      %v6787 = vmul.f32 %v6738, %v884
      %v6788 = vmul.f32 %v6738, %v885
      %v6789 = vmul.f32 %v6742, %v886
      %v6790 = vmul.f32 %v6742, %v887
      %v6791 = vmul.f32 %v6746, %v888
      %v6792 = vmul.f32 %v6746, %v889
      %v6793 = vmul.f32 %v6750, %v890
      %v6794 = vmul.f32 %v6750, %v891
      %v6795 = vmul.f32 %v6754, %v892
      %v6796 = vmul.f32 %v6754, %v893
      %v6797 = vmul.f32 %v6758, %v894
      %v6798 = vmul.f32 %v6758, %v895
      %v6799 = vmul.f32 %v6762, %v896
      %v6800 = vmul.f32 %v6762, %v897
      %v6801 = vmul.f32 %v6766, %v898
      %v6802 = vmul.f32 %v6766, %v899
      %v6803 = vmul.f32 %v6770, %v900
      %v6804 = vmul.f32 %v6770, %v901
      %v6805 = vmul.f32 %v6774, %v902
      %v6806 = vmul.f32 %v6774, %v903
      %v6807 = vsel %vm422, %v6775, 0.0
      %v6808 = vsel %vm422, %v6777, 0.0
      %v6809 = vadd.f32 %v6807, %v6808
      %v6810 = vsel %vm422, %v6779, 0.0
      %v6811 = vadd.f32 %v6809, %v6810
      %v6812 = vsel %vm422, %v6781, 0.0
      %v6813 = vadd.f32 %v6811, %v6812
      %v6814 = vsel %vm422, %v6783, 0.0
      %v6815 = vadd.f32 %v6813, %v6814
      %v6816 = vsel %vm422, %v6785, 0.0
      %v6817 = vadd.f32 %v6815, %v6816
      %v6818 = vsel %vm422, %v6787, 0.0
      %v6819 = vadd.f32 %v6817, %v6818
      %v6820 = vsel %vm422, %v6789, 0.0
      %v6821 = vadd.f32 %v6819, %v6820
      %v6822 = vsel %vm422, %v6791, 0.0
      %v6823 = vadd.f32 %v6821, %v6822
      %v6824 = vsel %vm422, %v6793, 0.0
      %v6825 = vadd.f32 %v6823, %v6824
      %v6826 = vsel %vm422, %v6795, 0.0
      %v6827 = vadd.f32 %v6825, %v6826
      %v6828 = vsel %vm422, %v6797, 0.0
      %v6829 = vadd.f32 %v6827, %v6828
      %v6830 = vsel %vm422, %v6799, 0.0
      %v6831 = vadd.f32 %v6829, %v6830
      %v6832 = vsel %vm422, %v6801, 0.0
      %v6833 = vadd.f32 %v6831, %v6832
      %v6834 = vsel %vm422, %v6803, 0.0
      %v6835 = vadd.f32 %v6833, %v6834
      %v6836 = vsel %vm422, %v6805, 0.0
      %v6837 = vadd.f32 %v6835, %v6836
      %v6838 = vsel %vm422, %v6776, 0.0
      %v6839 = vsel %vm422, %v6778, 0.0
      %v6840 = vadd.f32 %v6838, %v6839
      %v6841 = vsel %vm422, %v6780, 0.0
      %v6842 = vadd.f32 %v6840, %v6841
      %v6843 = vsel %vm422, %v6782, 0.0
      %v6844 = vadd.f32 %v6842, %v6843
      %v6845 = vsel %vm422, %v6784, 0.0
      %v6846 = vadd.f32 %v6844, %v6845
      %v6847 = vsel %vm422, %v6786, 0.0
      %v6848 = vadd.f32 %v6846, %v6847
      %v6849 = vsel %vm422, %v6788, 0.0
      %v6850 = vadd.f32 %v6848, %v6849
      %v6851 = vsel %vm422, %v6790, 0.0
      %v6852 = vadd.f32 %v6850, %v6851
      %v6853 = vsel %vm422, %v6792, 0.0
      %v6854 = vadd.f32 %v6852, %v6853
      %v6855 = vsel %vm422, %v6794, 0.0
      %v6856 = vadd.f32 %v6854, %v6855
      %v6857 = vsel %vm422, %v6796, 0.0
      %v6858 = vadd.f32 %v6856, %v6857
      %v6859 = vsel %vm422, %v6798, 0.0
      %v6860 = vadd.f32 %v6858, %v6859
      %v6861 = vsel %vm422, %v6800, 0.0
      %v6862 = vadd.f32 %v6860, %v6861
      %v6863 = vsel %vm422, %v6802, 0.0
      %v6864 = vadd.f32 %v6862, %v6863
      %v6865 = vsel %vm422, %v6804, 0.0
      %v6866 = vadd.f32 %v6864, %v6865
      %v6867 = vsel %vm422, %v6806, 0.0
      %v6868 = vadd.f32 %v6866, %v6867
      %v6869 = vld [vmem:[%s342 + $0xb0] sm:$0xff]
      %v6870 = vld [vmem:[%s342 + $0xb8] sm:$0xff]
      %v6871 = vadd.f32 %v6837, %v6869
      %v6872 = vadd.f32 %v6868, %v6870
      %6873 = vst.msk [vmem:[%s364 + $0xb0] sm:$0xff] %vm422, %v6871
      %6874 = vst.msk [vmem:[%s364 + $0xb8] sm:$0xff] %vm422, %v6872
      %v6875 = vld [vmem:[#allocation2 + $0xc0] sm:$0xff]
      %v6876 = vld [vmem:[#allocation2 + $0xc8] sm:$0xff]
      %v6877 = vmul.f32 %v6875, %v872
      %v6878 = vmul.f32 %v6876, %v873
      %v6879 = vmul.f32 %v6875, %v874
      %v6880 = vmul.f32 %v6876, %v875
      %v6881 = vmul.f32 %v6875, %v876
      %v6882 = vmul.f32 %v6876, %v877
      %v6883 = vmul.f32 %v6875, %v878
      %v6884 = vmul.f32 %v6876, %v879
      %v6885 = vmul.f32 %v6875, %v880
      %v6886 = vmul.f32 %v6876, %v881
      %v6887 = vmul.f32 %v6875, %v882
      %v6888 = vmul.f32 %v6876, %v883
      %v6889 = vmul.f32 %v6875, %v884
      %v6890 = vmul.f32 %v6876, %v885
      %v6891 = vmul.f32 %v6875, %v886
      %v6892 = vmul.f32 %v6876, %v887
      %v6893 = vmul.f32 %v6875, %v888
      %v6894 = vmul.f32 %v6876, %v889
      %v6895 = vmul.f32 %v6875, %v890
      %v6896 = vmul.f32 %v6876, %v891
      %v6897 = vmul.f32 %v6875, %v892
      %v6898 = vmul.f32 %v6876, %v893
      %v6899 = vmul.f32 %v6875, %v894
      %v6900 = vmul.f32 %v6876, %v895
      %v6901 = vmul.f32 %v6875, %v896
      %v6902 = vmul.f32 %v6876, %v897
      %v6903 = vmul.f32 %v6875, %v898
      %v6904 = vmul.f32 %v6876, %v899
      %v6905 = vmul.f32 %v6875, %v900
      %v6906 = vmul.f32 %v6876, %v901
      %v6907 = vmul.f32 %v6875, %v902
      %v6908 = vmul.f32 %v6876, %v903
      %v6909 = vsel %vm422, %v6877, 0.0
      %v6910 = vsel %vm422, %v6878, 0.0
      %v6911 = vadd.f32 %v6909, %v6910
      %v6912 = vrot.slane %v6911, 4
      %v6913 = vadd.f32 %v6911, %v6912
      %v6914 = vrot.slane %v6913, 2
      %v6915 = vadd.f32 %v6913, %v6914
      %v6916 = vrot.slane %v6915, 1
      %v6917 = vadd.f32 %v6915, %v6916
      %v6918 = vsel %vm422, %v6879, 0.0
      %v6919 = vsel %vm422, %v6880, 0.0
      %v6920 = vadd.f32 %v6918, %v6919
      %v6921 = vrot.slane %v6920, 4
      %v6922 = vadd.f32 %v6920, %v6921
      %v6923 = vrot.slane %v6922, 2
      %v6924 = vadd.f32 %v6922, %v6923
      %v6925 = vrot.slane %v6924, 1
      %v6926 = vadd.f32 %v6924, %v6925
      %v6927 = vsel %vm422, %v6881, 0.0
      %v6928 = vsel %vm422, %v6882, 0.0
      %v6929 = vadd.f32 %v6927, %v6928
      %v6930 = vrot.slane %v6929, 4
      %v6931 = vadd.f32 %v6929, %v6930
      %v6932 = vrot.slane %v6931, 2
      %v6933 = vadd.f32 %v6931, %v6932
      %v6934 = vrot.slane %v6933, 1
      %v6935 = vadd.f32 %v6933, %v6934
      %v6936 = vsel %vm422, %v6883, 0.0
      %v6937 = vsel %vm422, %v6884, 0.0
      %v6938 = vadd.f32 %v6936, %v6937
      %v6939 = vrot.slane %v6938, 4
      %v6940 = vadd.f32 %v6938, %v6939
      %v6941 = vrot.slane %v6940, 2
      %v6942 = vadd.f32 %v6940, %v6941
      %v6943 = vrot.slane %v6942, 1
      %v6944 = vadd.f32 %v6942, %v6943
      %v6945 = vsel %vm422, %v6885, 0.0
      %v6946 = vsel %vm422, %v6886, 0.0
      %v6947 = vadd.f32 %v6945, %v6946
      %v6948 = vrot.slane %v6947, 4
      %v6949 = vadd.f32 %v6947, %v6948
      %v6950 = vrot.slane %v6949, 2
      %v6951 = vadd.f32 %v6949, %v6950
      %v6952 = vrot.slane %v6951, 1
      %v6953 = vadd.f32 %v6951, %v6952
      %v6954 = vsel %vm422, %v6887, 0.0
      %v6955 = vsel %vm422, %v6888, 0.0
      %v6956 = vadd.f32 %v6954, %v6955
      %v6957 = vrot.slane %v6956, 4
      %v6958 = vadd.f32 %v6956, %v6957
      %v6959 = vrot.slane %v6958, 2
      %v6960 = vadd.f32 %v6958, %v6959
      %v6961 = vrot.slane %v6960, 1
      %v6962 = vadd.f32 %v6960, %v6961
      %v6963 = vsel %vm422, %v6889, 0.0
      %v6964 = vsel %vm422, %v6890, 0.0
      %v6965 = vadd.f32 %v6963, %v6964
      %v6966 = vrot.slane %v6965, 4
      %v6967 = vadd.f32 %v6965, %v6966
      %v6968 = vrot.slane %v6967, 2
      %v6969 = vadd.f32 %v6967, %v6968
      %v6970 = vrot.slane %v6969, 1
      %v6971 = vadd.f32 %v6969, %v6970
      %v6972 = vsel %vm422, %v6891, 0.0
      %v6973 = vsel %vm422, %v6892, 0.0
      %v6974 = vadd.f32 %v6972, %v6973
      %v6975 = vrot.slane %v6974, 4
      %v6976 = vadd.f32 %v6974, %v6975
      %v6977 = vrot.slane %v6976, 2
      %v6978 = vadd.f32 %v6976, %v6977
      %v6979 = vrot.slane %v6978, 1
      %v6980 = vadd.f32 %v6978, %v6979
      %v6981 = vsel %vm422, %v6893, 0.0
      %v6982 = vsel %vm422, %v6894, 0.0
      %v6983 = vadd.f32 %v6981, %v6982
      %v6984 = vrot.slane %v6983, 4
      %v6985 = vadd.f32 %v6983, %v6984
      %v6986 = vrot.slane %v6985, 2
      %v6987 = vadd.f32 %v6985, %v6986
      %v6988 = vrot.slane %v6987, 1
      %v6989 = vadd.f32 %v6987, %v6988
      %v6990 = vsel %vm422, %v6895, 0.0
      %v6991 = vsel %vm422, %v6896, 0.0
      %v6992 = vadd.f32 %v6990, %v6991
      %v6993 = vrot.slane %v6992, 4
      %v6994 = vadd.f32 %v6992, %v6993
      %v6995 = vrot.slane %v6994, 2
      %v6996 = vadd.f32 %v6994, %v6995
      %v6997 = vrot.slane %v6996, 1
      %v6998 = vadd.f32 %v6996, %v6997
      %v6999 = vsel %vm422, %v6897, 0.0
      %v7000 = vsel %vm422, %v6898, 0.0
      %v7001 = vadd.f32 %v6999, %v7000
      %v7002 = vrot.slane %v7001, 4
      %v7003 = vadd.f32 %v7001, %v7002
      %v7004 = vrot.slane %v7003, 2
      %v7005 = vadd.f32 %v7003, %v7004
      %v7006 = vrot.slane %v7005, 1
      %v7007 = vadd.f32 %v7005, %v7006
      %v7008 = vsel %vm422, %v6899, 0.0
      %v7009 = vsel %vm422, %v6900, 0.0
      %v7010 = vadd.f32 %v7008, %v7009
      %v7011 = vrot.slane %v7010, 4
      %v7012 = vadd.f32 %v7010, %v7011
      %v7013 = vrot.slane %v7012, 2
      %v7014 = vadd.f32 %v7012, %v7013
      %v7015 = vrot.slane %v7014, 1
      %v7016 = vadd.f32 %v7014, %v7015
      %v7017 = vsel %vm422, %v6901, 0.0
      %v7018 = vsel %vm422, %v6902, 0.0
      %v7019 = vadd.f32 %v7017, %v7018
      %v7020 = vrot.slane %v7019, 4
      %v7021 = vadd.f32 %v7019, %v7020
      %v7022 = vrot.slane %v7021, 2
      %v7023 = vadd.f32 %v7021, %v7022
      %v7024 = vrot.slane %v7023, 1
      %v7025 = vadd.f32 %v7023, %v7024
      %v7026 = vsel %vm422, %v6903, 0.0
      %v7027 = vsel %vm422, %v6904, 0.0
      %v7028 = vadd.f32 %v7026, %v7027
      %v7029 = vrot.slane %v7028, 4
      %v7030 = vadd.f32 %v7028, %v7029
      %v7031 = vrot.slane %v7030, 2
      %v7032 = vadd.f32 %v7030, %v7031
      %v7033 = vrot.slane %v7032, 1
      %v7034 = vadd.f32 %v7032, %v7033
      %v7035 = vsel %vm422, %v6905, 0.0
      %v7036 = vsel %vm422, %v6906, 0.0
      %v7037 = vadd.f32 %v7035, %v7036
      %v7038 = vrot.slane %v7037, 4
      %v7039 = vadd.f32 %v7037, %v7038
      %v7040 = vrot.slane %v7039, 2
      %v7041 = vadd.f32 %v7039, %v7040
      %v7042 = vrot.slane %v7041, 1
      %v7043 = vadd.f32 %v7041, %v7042
      %v7044 = vsel %vm422, %v6907, 0.0
      %v7045 = vsel %vm422, %v6908, 0.0
      %v7046 = vadd.f32 %v7044, %v7045
      %v7047 = vrot.slane %v7046, 4
      %v7048 = vadd.f32 %v7046, %v7047
      %v7049 = vrot.slane %v7048, 2
      %v7050 = vadd.f32 %v7048, %v7049
      %v7051 = vrot.slane %v7050, 1
      %v7052 = vadd.f32 %v7050, %v7051
      %v7053 = vsel %vm422, %v6917, -inf
      %v7054 = vsel %vm422, %v6926, -inf
      %v7055 = vsel %vm422, %v6935, -inf
      %v7056 = vsel %vm422, %v6944, -inf
      %v7057 = vsel %vm422, %v6953, -inf
      %v7058 = vmax.f32 %v7053, %v7057
      %v7059 = vsel %vm422, %v6962, -inf
      %v7060 = vmax.f32 %v7054, %v7059
      %v7061 = vsel %vm422, %v6971, -inf
      %v7062 = vmax.f32 %v7055, %v7061
      %v7063 = vsel %vm422, %v6980, -inf
      %v7064 = vmax.f32 %v7056, %v7063
      %v7065 = vsel %vm422, %v6989, -inf
      %v7066 = vmax.f32 %v7058, %v7065
      %v7067 = vsel %vm422, %v6998, -inf
      %v7068 = vmax.f32 %v7060, %v7067
      %v7069 = vsel %vm422, %v7007, -inf
      %v7070 = vmax.f32 %v7062, %v7069
      %v7071 = vsel %vm422, %v7016, -inf
      %v7072 = vmax.f32 %v7064, %v7071
      %v7073 = vsel %vm422, %v7025, -inf
      %v7074 = vmax.f32 %v7066, %v7073
      %v7075 = vsel %vm422, %v7034, -inf
      %v7076 = vmax.f32 %v7068, %v7075
      %v7077 = vsel %vm422, %v7043, -inf
      %v7078 = vmax.f32 %v7070, %v7077
      %v7079 = vsel %vm422, %v7052, -inf
      %v7080 = vmax.f32 %v7072, %v7079
      %v7081 = vmax.f32 %v7074, %v7076
      %v7082 = vmax.f32 %v7078, %v7080
      %v7083 = vmax.f32 %v7081, %v7082
      %v7084 = vsub.f32 %v6917, %v7083
      %v7085 = vsub.f32 %v6926, %v7083
      %v7086 = vsub.f32 %v6935, %v7083
      %v7087 = vsub.f32 %v6944, %v7083
      %v7088 = vsub.f32 %v6953, %v7083
      %v7089 = vsub.f32 %v6962, %v7083
      %v7090 = vsub.f32 %v6971, %v7083
      %v7091 = vsub.f32 %v6980, %v7083
      %v7092 = vsub.f32 %v6989, %v7083
      %v7093 = vsub.f32 %v6998, %v7083
      %v7094 = vsub.f32 %v7007, %v7083
      %v7095 = vsub.f32 %v7016, %v7083
      %v7096 = vsub.f32 %v7025, %v7083
      %v7097 = vsub.f32 %v7034, %v7083
      %v7098 = vsub.f32 %v7043, %v7083
      %v7099 = vsub.f32 %v7052, %v7083
      %v7100 = vmul.f32 %v7084, 1.442695
      %v7101 = vpow.pop %v7100
      %v7102 = vmul.f32 %v7085, 1.442695
      %v7103 = vpow.pop %v7102
      %v7104 = vmul.f32 %v7086, 1.442695
      %v7105 = vpow.pop %v7104
      %v7106 = vmul.f32 %v7087, 1.442695
      %v7107 = vpow.pop %v7106
      %v7108 = vmul.f32 %v7088, 1.442695
      %v7109 = vpow.pop %v7108
      %v7110 = vmul.f32 %v7089, 1.442695
      %v7111 = vpow.pop %v7110
      %v7112 = vmul.f32 %v7090, 1.442695
      %v7113 = vpow.pop %v7112
      %v7114 = vmul.f32 %v7091, 1.442695
      %v7115 = vpow.pop %v7114
      %v7116 = vmul.f32 %v7092, 1.442695
      %v7117 = vpow.pop %v7116
      %v7118 = vmul.f32 %v7093, 1.442695
      %v7119 = vpow.pop %v7118
      %v7120 = vmul.f32 %v7094, 1.442695
      %v7121 = vpow.pop %v7120
      %v7122 = vmul.f32 %v7095, 1.442695
      %v7123 = vpow.pop %v7122
      %v7124 = vmul.f32 %v7096, 1.442695
      %v7125 = vpow.pop %v7124
      %v7126 = vmul.f32 %v7097, 1.442695
      %v7127 = vpow.pop %v7126
      %v7128 = vmul.f32 %v7098, 1.442695
      %v7129 = vpow.pop %v7128
      %v7130 = vmul.f32 %v7099, 1.442695
      %v7131 = vpow.pop %v7130
      %v7148 = vrot.slane %v7103, 7
      %v7149 = vsel %vm1178, %v7148, %v7101
      %v7150 = vrot.slane %v7105, 6
      %v7151 = vsel %vm1181, %v7150, %v7149
      %v7152 = vrot.slane %v7107, 5
      %v7153 = vsel %vm1184, %v7152, %v7151
      %v7154 = vrot.slane %v7109, 4
      %v7155 = vsel %vm1187, %v7154, %v7153
      %v7156 = vrot.slane %v7111, 3
      %v7157 = vsel %vm1190, %v7156, %v7155
      %v7158 = vrot.slane %v7113, 2
      %v7159 = vsel %vm1193, %v7158, %v7157
      %v7160 = vrot.slane %v7115, 1
      %v7161 = vsel %vm1196, %v7160, %v7159
      %v7162 = vrot.slane %v7119, 7
      %v7163 = vsel %vm1178, %v7162, %v7117
      %v7164 = vrot.slane %v7121, 6
      %v7165 = vsel %vm1181, %v7164, %v7163
      %v7166 = vrot.slane %v7123, 5
      %v7167 = vsel %vm1184, %v7166, %v7165
      %v7168 = vrot.slane %v7125, 4
      %v7169 = vsel %vm1187, %v7168, %v7167
      %v7170 = vrot.slane %v7127, 3
      %v7171 = vsel %vm1190, %v7170, %v7169
      %v7172 = vrot.slane %v7129, 2
      %v7173 = vsel %vm1193, %v7172, %v7171
      %v7174 = vrot.slane %v7131, 1
      %v7175 = vsel %vm1196, %v7174, %v7173
      %v7178 = vsel %vm422, %v7161, 0.0
      %v7179 = vsel %vm422, %v7175, 0.0
      %v7180 = vadd.f32 %v7178, %v7179
      %v7181 = vrot.slane %v7180, 4
      %v7182 = vadd.f32 %v7180, %v7181
      %v7183 = vrot.slane %v7182, 2
      %v7184 = vadd.f32 %v7182, %v7183
      %v7185 = vrot.slane %v7184, 1
      %v7186 = vadd.f32 %v7184, %v7185
      %v7187 = vlaneseq
      %v7188 = vshrl.u32 %v7187, 7
      %v7189 = vsub.s32 0, %v7188
      %v7190 = vrot.slane %v7186, %v7189
      %v7191 = vrcp.pop %v7190
      %v7192 = vmul.f32 %v7101, %v7191
      %v7193 = vmul.f32 %v7103, %v7191
      %v7194 = vmul.f32 %v7105, %v7191
      %v7195 = vmul.f32 %v7107, %v7191
      %v7196 = vmul.f32 %v7109, %v7191
      %v7197 = vmul.f32 %v7111, %v7191
      %v7198 = vmul.f32 %v7113, %v7191
      %v7199 = vmul.f32 %v7115, %v7191
      %v7200 = vmul.f32 %v7117, %v7191
      %v7201 = vmul.f32 %v7119, %v7191
      %v7202 = vmul.f32 %v7121, %v7191
      %v7203 = vmul.f32 %v7123, %v7191
      %v7204 = vmul.f32 %v7125, %v7191
      %v7205 = vmul.f32 %v7127, %v7191
      %v7206 = vmul.f32 %v7129, %v7191
      %v7207 = vmul.f32 %v7131, %v7191
      %v7208 = vlaneseq
      %v7209 = vshrl.u32 %v7208, 7
      %v7210 = vsub.s32 0, %v7209
      %v7211 = vrot.slane %v7192, %v7210
      %v7212 = vlaneseq
      %v7213 = vshrl.u32 %v7212, 7
      %v7214 = vsub.s32 0, %v7213
      %v7215 = vrot.slane %v7193, %v7214
      %v7216 = vlaneseq
      %v7217 = vshrl.u32 %v7216, 7
      %v7218 = vsub.s32 0, %v7217
      %v7219 = vrot.slane %v7194, %v7218
      %v7220 = vlaneseq
      %v7221 = vshrl.u32 %v7220, 7
      %v7222 = vsub.s32 0, %v7221
      %v7223 = vrot.slane %v7195, %v7222
      %v7224 = vlaneseq
      %v7225 = vshrl.u32 %v7224, 7
      %v7226 = vsub.s32 0, %v7225
      %v7227 = vrot.slane %v7196, %v7226
      %v7228 = vlaneseq
      %v7229 = vshrl.u32 %v7228, 7
      %v7230 = vsub.s32 0, %v7229
      %v7231 = vrot.slane %v7197, %v7230
      %v7232 = vlaneseq
      %v7233 = vshrl.u32 %v7232, 7
      %v7234 = vsub.s32 0, %v7233
      %v7235 = vrot.slane %v7198, %v7234
      %v7236 = vlaneseq
      %v7237 = vshrl.u32 %v7236, 7
      %v7238 = vsub.s32 0, %v7237
      %v7239 = vrot.slane %v7199, %v7238
      %v7240 = vlaneseq
      %v7241 = vshrl.u32 %v7240, 7
      %v7242 = vsub.s32 0, %v7241
      %v7243 = vrot.slane %v7200, %v7242
      %v7244 = vlaneseq
      %v7245 = vshrl.u32 %v7244, 7
      %v7246 = vsub.s32 0, %v7245
      %v7247 = vrot.slane %v7201, %v7246
      %v7248 = vlaneseq
      %v7249 = vshrl.u32 %v7248, 7
      %v7250 = vsub.s32 0, %v7249
      %v7251 = vrot.slane %v7202, %v7250
      %v7252 = vlaneseq
      %v7253 = vshrl.u32 %v7252, 7
      %v7254 = vsub.s32 0, %v7253
      %v7255 = vrot.slane %v7203, %v7254
      %v7256 = vlaneseq
      %v7257 = vshrl.u32 %v7256, 7
      %v7258 = vsub.s32 0, %v7257
      %v7259 = vrot.slane %v7204, %v7258
      %v7260 = vlaneseq
      %v7261 = vshrl.u32 %v7260, 7
      %v7262 = vsub.s32 0, %v7261
      %v7263 = vrot.slane %v7205, %v7262
      %v7264 = vlaneseq
      %v7265 = vshrl.u32 %v7264, 7
      %v7266 = vsub.s32 0, %v7265
      %v7267 = vrot.slane %v7206, %v7266
      %v7268 = vlaneseq
      %v7269 = vshrl.u32 %v7268, 7
      %v7270 = vsub.s32 0, %v7269
      %v7271 = vrot.slane %v7207, %v7270
      %v7272 = vmul.f32 %v7211, %v872
      %v7273 = vmul.f32 %v7211, %v873
      %v7274 = vmul.f32 %v7215, %v874
      %v7275 = vmul.f32 %v7215, %v875
      %v7276 = vmul.f32 %v7219, %v876
      %v7277 = vmul.f32 %v7219, %v877
      %v7278 = vmul.f32 %v7223, %v878
      %v7279 = vmul.f32 %v7223, %v879
      %v7280 = vmul.f32 %v7227, %v880
      %v7281 = vmul.f32 %v7227, %v881
      %v7282 = vmul.f32 %v7231, %v882
      %v7283 = vmul.f32 %v7231, %v883
      %v7284 = vmul.f32 %v7235, %v884
      %v7285 = vmul.f32 %v7235, %v885
      %v7286 = vmul.f32 %v7239, %v886
      %v7287 = vmul.f32 %v7239, %v887
      %v7288 = vmul.f32 %v7243, %v888
      %v7289 = vmul.f32 %v7243, %v889
      %v7290 = vmul.f32 %v7247, %v890
      %v7291 = vmul.f32 %v7247, %v891
      %v7292 = vmul.f32 %v7251, %v892
      %v7293 = vmul.f32 %v7251, %v893
      %v7294 = vmul.f32 %v7255, %v894
      %v7295 = vmul.f32 %v7255, %v895
      %v7296 = vmul.f32 %v7259, %v896
      %v7297 = vmul.f32 %v7259, %v897
      %v7298 = vmul.f32 %v7263, %v898
      %v7299 = vmul.f32 %v7263, %v899
      %v7300 = vmul.f32 %v7267, %v900
      %v7301 = vmul.f32 %v7267, %v901
      %v7302 = vmul.f32 %v7271, %v902
      %v7303 = vmul.f32 %v7271, %v903
      %v7304 = vsel %vm422, %v7272, 0.0
      %v7305 = vsel %vm422, %v7274, 0.0
      %v7306 = vadd.f32 %v7304, %v7305
      %v7307 = vsel %vm422, %v7276, 0.0
      %v7308 = vadd.f32 %v7306, %v7307
      %v7309 = vsel %vm422, %v7278, 0.0
      %v7310 = vadd.f32 %v7308, %v7309
      %v7311 = vsel %vm422, %v7280, 0.0
      %v7312 = vadd.f32 %v7310, %v7311
      %v7313 = vsel %vm422, %v7282, 0.0
      %v7314 = vadd.f32 %v7312, %v7313
      %v7315 = vsel %vm422, %v7284, 0.0
      %v7316 = vadd.f32 %v7314, %v7315
      %v7317 = vsel %vm422, %v7286, 0.0
      %v7318 = vadd.f32 %v7316, %v7317
      %v7319 = vsel %vm422, %v7288, 0.0
      %v7320 = vadd.f32 %v7318, %v7319
      %v7321 = vsel %vm422, %v7290, 0.0
      %v7322 = vadd.f32 %v7320, %v7321
      %v7323 = vsel %vm422, %v7292, 0.0
      %v7324 = vadd.f32 %v7322, %v7323
      %v7325 = vsel %vm422, %v7294, 0.0
      %v7326 = vadd.f32 %v7324, %v7325
      %v7327 = vsel %vm422, %v7296, 0.0
      %v7328 = vadd.f32 %v7326, %v7327
      %v7329 = vsel %vm422, %v7298, 0.0
      %v7330 = vadd.f32 %v7328, %v7329
      %v7331 = vsel %vm422, %v7300, 0.0
      %v7332 = vadd.f32 %v7330, %v7331
      %v7333 = vsel %vm422, %v7302, 0.0
      %v7334 = vadd.f32 %v7332, %v7333
      %v7335 = vsel %vm422, %v7273, 0.0
      %v7336 = vsel %vm422, %v7275, 0.0
      %v7337 = vadd.f32 %v7335, %v7336
      %v7338 = vsel %vm422, %v7277, 0.0
      %v7339 = vadd.f32 %v7337, %v7338
      %v7340 = vsel %vm422, %v7279, 0.0
      %v7341 = vadd.f32 %v7339, %v7340
      %v7342 = vsel %vm422, %v7281, 0.0
      %v7343 = vadd.f32 %v7341, %v7342
      %v7344 = vsel %vm422, %v7283, 0.0
      %v7345 = vadd.f32 %v7343, %v7344
      %v7346 = vsel %vm422, %v7285, 0.0
      %v7347 = vadd.f32 %v7345, %v7346
      %v7348 = vsel %vm422, %v7287, 0.0
      %v7349 = vadd.f32 %v7347, %v7348
      %v7350 = vsel %vm422, %v7289, 0.0
      %v7351 = vadd.f32 %v7349, %v7350
      %v7352 = vsel %vm422, %v7291, 0.0
      %v7353 = vadd.f32 %v7351, %v7352
      %v7354 = vsel %vm422, %v7293, 0.0
      %v7355 = vadd.f32 %v7353, %v7354
      %v7356 = vsel %vm422, %v7295, 0.0
      %v7357 = vadd.f32 %v7355, %v7356
      %v7358 = vsel %vm422, %v7297, 0.0
      %v7359 = vadd.f32 %v7357, %v7358
      %v7360 = vsel %vm422, %v7299, 0.0
      %v7361 = vadd.f32 %v7359, %v7360
      %v7362 = vsel %vm422, %v7301, 0.0
      %v7363 = vadd.f32 %v7361, %v7362
      %v7364 = vsel %vm422, %v7303, 0.0
      %v7365 = vadd.f32 %v7363, %v7364
      %v7366 = vld [vmem:[%s342 + $0xc0] sm:$0xff]
      %v7367 = vld [vmem:[%s342 + $0xc8] sm:$0xff]
      %v7368 = vadd.f32 %v7334, %v7366
      %v7369 = vadd.f32 %v7365, %v7367
      %7370 = vst.msk [vmem:[%s364 + $0xc0] sm:$0xff] %vm422, %v7368
      %7371 = vst.msk [vmem:[%s364 + $0xc8] sm:$0xff] %vm422, %v7369
      %v7372 = vld [vmem:[#allocation2 + $0xd0] sm:$0xff]
      %v7373 = vld [vmem:[#allocation2 + $0xd8] sm:$0xff]
      %v7374 = vmul.f32 %v7372, %v872
      %v7375 = vmul.f32 %v7373, %v873
      %v7376 = vmul.f32 %v7372, %v874
      %v7377 = vmul.f32 %v7373, %v875
      %v7378 = vmul.f32 %v7372, %v876
      %v7379 = vmul.f32 %v7373, %v877
      %v7380 = vmul.f32 %v7372, %v878
      %v7381 = vmul.f32 %v7373, %v879
      %v7382 = vmul.f32 %v7372, %v880
      %v7383 = vmul.f32 %v7373, %v881
      %v7384 = vmul.f32 %v7372, %v882
      %v7385 = vmul.f32 %v7373, %v883
      %v7386 = vmul.f32 %v7372, %v884
      %v7387 = vmul.f32 %v7373, %v885
      %v7388 = vmul.f32 %v7372, %v886
      %v7389 = vmul.f32 %v7373, %v887
      %v7390 = vmul.f32 %v7372, %v888
      %v7391 = vmul.f32 %v7373, %v889
      %v7392 = vmul.f32 %v7372, %v890
      %v7393 = vmul.f32 %v7373, %v891
      %v7394 = vmul.f32 %v7372, %v892
      %v7395 = vmul.f32 %v7373, %v893
      %v7396 = vmul.f32 %v7372, %v894
      %v7397 = vmul.f32 %v7373, %v895
      %v7398 = vmul.f32 %v7372, %v896
      %v7399 = vmul.f32 %v7373, %v897
      %v7400 = vmul.f32 %v7372, %v898
      %v7401 = vmul.f32 %v7373, %v899
      %v7402 = vmul.f32 %v7372, %v900
      %v7403 = vmul.f32 %v7373, %v901
      %v7404 = vmul.f32 %v7372, %v902
      %v7405 = vmul.f32 %v7373, %v903
      %v7406 = vsel %vm422, %v7374, 0.0
      %v7407 = vsel %vm422, %v7375, 0.0
      %v7408 = vadd.f32 %v7406, %v7407
      %v7409 = vrot.slane %v7408, 4
      %v7410 = vadd.f32 %v7408, %v7409
      %v7411 = vrot.slane %v7410, 2
      %v7412 = vadd.f32 %v7410, %v7411
      %v7413 = vrot.slane %v7412, 1
      %v7414 = vadd.f32 %v7412, %v7413
      %v7415 = vsel %vm422, %v7376, 0.0
      %v7416 = vsel %vm422, %v7377, 0.0
      %v7417 = vadd.f32 %v7415, %v7416
      %v7418 = vrot.slane %v7417, 4
      %v7419 = vadd.f32 %v7417, %v7418
      %v7420 = vrot.slane %v7419, 2
      %v7421 = vadd.f32 %v7419, %v7420
      %v7422 = vrot.slane %v7421, 1
      %v7423 = vadd.f32 %v7421, %v7422
      %v7424 = vsel %vm422, %v7378, 0.0
      %v7425 = vsel %vm422, %v7379, 0.0
      %v7426 = vadd.f32 %v7424, %v7425
      %v7427 = vrot.slane %v7426, 4
      %v7428 = vadd.f32 %v7426, %v7427
      %v7429 = vrot.slane %v7428, 2
      %v7430 = vadd.f32 %v7428, %v7429
      %v7431 = vrot.slane %v7430, 1
      %v7432 = vadd.f32 %v7430, %v7431
      %v7433 = vsel %vm422, %v7380, 0.0
      %v7434 = vsel %vm422, %v7381, 0.0
      %v7435 = vadd.f32 %v7433, %v7434
      %v7436 = vrot.slane %v7435, 4
      %v7437 = vadd.f32 %v7435, %v7436
      %v7438 = vrot.slane %v7437, 2
      %v7439 = vadd.f32 %v7437, %v7438
      %v7440 = vrot.slane %v7439, 1
      %v7441 = vadd.f32 %v7439, %v7440
      %v7442 = vsel %vm422, %v7382, 0.0
      %v7443 = vsel %vm422, %v7383, 0.0
      %v7444 = vadd.f32 %v7442, %v7443
      %v7445 = vrot.slane %v7444, 4
      %v7446 = vadd.f32 %v7444, %v7445
      %v7447 = vrot.slane %v7446, 2
      %v7448 = vadd.f32 %v7446, %v7447
      %v7449 = vrot.slane %v7448, 1
      %v7450 = vadd.f32 %v7448, %v7449
      %v7451 = vsel %vm422, %v7384, 0.0
      %v7452 = vsel %vm422, %v7385, 0.0
      %v7453 = vadd.f32 %v7451, %v7452
      %v7454 = vrot.slane %v7453, 4
      %v7455 = vadd.f32 %v7453, %v7454
      %v7456 = vrot.slane %v7455, 2
      %v7457 = vadd.f32 %v7455, %v7456
      %v7458 = vrot.slane %v7457, 1
      %v7459 = vadd.f32 %v7457, %v7458
      %v7460 = vsel %vm422, %v7386, 0.0
      %v7461 = vsel %vm422, %v7387, 0.0
      %v7462 = vadd.f32 %v7460, %v7461
      %v7463 = vrot.slane %v7462, 4
      %v7464 = vadd.f32 %v7462, %v7463
      %v7465 = vrot.slane %v7464, 2
      %v7466 = vadd.f32 %v7464, %v7465
      %v7467 = vrot.slane %v7466, 1
      %v7468 = vadd.f32 %v7466, %v7467
      %v7469 = vsel %vm422, %v7388, 0.0
      %v7470 = vsel %vm422, %v7389, 0.0
      %v7471 = vadd.f32 %v7469, %v7470
      %v7472 = vrot.slane %v7471, 4
      %v7473 = vadd.f32 %v7471, %v7472
      %v7474 = vrot.slane %v7473, 2
      %v7475 = vadd.f32 %v7473, %v7474
      %v7476 = vrot.slane %v7475, 1
      %v7477 = vadd.f32 %v7475, %v7476
      %v7478 = vsel %vm422, %v7390, 0.0
      %v7479 = vsel %vm422, %v7391, 0.0
      %v7480 = vadd.f32 %v7478, %v7479
      %v7481 = vrot.slane %v7480, 4
      %v7482 = vadd.f32 %v7480, %v7481
      %v7483 = vrot.slane %v7482, 2
      %v7484 = vadd.f32 %v7482, %v7483
      %v7485 = vrot.slane %v7484, 1
      %v7486 = vadd.f32 %v7484, %v7485
      %v7487 = vsel %vm422, %v7392, 0.0
      %v7488 = vsel %vm422, %v7393, 0.0
      %v7489 = vadd.f32 %v7487, %v7488
      %v7490 = vrot.slane %v7489, 4
      %v7491 = vadd.f32 %v7489, %v7490
      %v7492 = vrot.slane %v7491, 2
      %v7493 = vadd.f32 %v7491, %v7492
      %v7494 = vrot.slane %v7493, 1
      %v7495 = vadd.f32 %v7493, %v7494
      %v7496 = vsel %vm422, %v7394, 0.0
      %v7497 = vsel %vm422, %v7395, 0.0
      %v7498 = vadd.f32 %v7496, %v7497
      %v7499 = vrot.slane %v7498, 4
      %v7500 = vadd.f32 %v7498, %v7499
      %v7501 = vrot.slane %v7500, 2
      %v7502 = vadd.f32 %v7500, %v7501
      %v7503 = vrot.slane %v7502, 1
      %v7504 = vadd.f32 %v7502, %v7503
      %v7505 = vsel %vm422, %v7396, 0.0
      %v7506 = vsel %vm422, %v7397, 0.0
      %v7507 = vadd.f32 %v7505, %v7506
      %v7508 = vrot.slane %v7507, 4
      %v7509 = vadd.f32 %v7507, %v7508
      %v7510 = vrot.slane %v7509, 2
      %v7511 = vadd.f32 %v7509, %v7510
      %v7512 = vrot.slane %v7511, 1
      %v7513 = vadd.f32 %v7511, %v7512
      %v7514 = vsel %vm422, %v7398, 0.0
      %v7515 = vsel %vm422, %v7399, 0.0
      %v7516 = vadd.f32 %v7514, %v7515
      %v7517 = vrot.slane %v7516, 4
      %v7518 = vadd.f32 %v7516, %v7517
      %v7519 = vrot.slane %v7518, 2
      %v7520 = vadd.f32 %v7518, %v7519
      %v7521 = vrot.slane %v7520, 1
      %v7522 = vadd.f32 %v7520, %v7521
      %v7523 = vsel %vm422, %v7400, 0.0
      %v7524 = vsel %vm422, %v7401, 0.0
      %v7525 = vadd.f32 %v7523, %v7524
      %v7526 = vrot.slane %v7525, 4
      %v7527 = vadd.f32 %v7525, %v7526
      %v7528 = vrot.slane %v7527, 2
      %v7529 = vadd.f32 %v7527, %v7528
      %v7530 = vrot.slane %v7529, 1
      %v7531 = vadd.f32 %v7529, %v7530
      %v7532 = vsel %vm422, %v7402, 0.0
      %v7533 = vsel %vm422, %v7403, 0.0
      %v7534 = vadd.f32 %v7532, %v7533
      %v7535 = vrot.slane %v7534, 4
      %v7536 = vadd.f32 %v7534, %v7535
      %v7537 = vrot.slane %v7536, 2
      %v7538 = vadd.f32 %v7536, %v7537
      %v7539 = vrot.slane %v7538, 1
      %v7540 = vadd.f32 %v7538, %v7539
      %v7541 = vsel %vm422, %v7404, 0.0
      %v7542 = vsel %vm422, %v7405, 0.0
      %v7543 = vadd.f32 %v7541, %v7542
      %v7544 = vrot.slane %v7543, 4
      %v7545 = vadd.f32 %v7543, %v7544
      %v7546 = vrot.slane %v7545, 2
      %v7547 = vadd.f32 %v7545, %v7546
      %v7548 = vrot.slane %v7547, 1
      %v7549 = vadd.f32 %v7547, %v7548
      %v7550 = vsel %vm422, %v7414, -inf
      %v7551 = vsel %vm422, %v7423, -inf
      %v7552 = vsel %vm422, %v7432, -inf
      %v7553 = vsel %vm422, %v7441, -inf
      %v7554 = vsel %vm422, %v7450, -inf
      %v7555 = vmax.f32 %v7550, %v7554
      %v7556 = vsel %vm422, %v7459, -inf
      %v7557 = vmax.f32 %v7551, %v7556
      %v7558 = vsel %vm422, %v7468, -inf
      %v7559 = vmax.f32 %v7552, %v7558
      %v7560 = vsel %vm422, %v7477, -inf
      %v7561 = vmax.f32 %v7553, %v7560
      %v7562 = vsel %vm422, %v7486, -inf
      %v7563 = vmax.f32 %v7555, %v7562
      %v7564 = vsel %vm422, %v7495, -inf
      %v7565 = vmax.f32 %v7557, %v7564
      %v7566 = vsel %vm422, %v7504, -inf
      %v7567 = vmax.f32 %v7559, %v7566
      %v7568 = vsel %vm422, %v7513, -inf
      %v7569 = vmax.f32 %v7561, %v7568
      %v7570 = vsel %vm422, %v7522, -inf
      %v7571 = vmax.f32 %v7563, %v7570
      %v7572 = vsel %vm422, %v7531, -inf
      %v7573 = vmax.f32 %v7565, %v7572
      %v7574 = vsel %vm422, %v7540, -inf
      %v7575 = vmax.f32 %v7567, %v7574
      %v7576 = vsel %vm422, %v7549, -inf
      %v7577 = vmax.f32 %v7569, %v7576
      %v7578 = vmax.f32 %v7571, %v7573
      %v7579 = vmax.f32 %v7575, %v7577
      %v7580 = vmax.f32 %v7578, %v7579
      %v7581 = vsub.f32 %v7414, %v7580
      %v7582 = vsub.f32 %v7423, %v7580
      %v7583 = vsub.f32 %v7432, %v7580
      %v7584 = vsub.f32 %v7441, %v7580
      %v7585 = vsub.f32 %v7450, %v7580
      %v7586 = vsub.f32 %v7459, %v7580
      %v7587 = vsub.f32 %v7468, %v7580
      %v7588 = vsub.f32 %v7477, %v7580
      %v7589 = vsub.f32 %v7486, %v7580
      %v7590 = vsub.f32 %v7495, %v7580
      %v7591 = vsub.f32 %v7504, %v7580
      %v7592 = vsub.f32 %v7513, %v7580
      %v7593 = vsub.f32 %v7522, %v7580
      %v7594 = vsub.f32 %v7531, %v7580
      %v7595 = vsub.f32 %v7540, %v7580
      %v7596 = vsub.f32 %v7549, %v7580
      %v7597 = vmul.f32 %v7581, 1.442695
      %v7598 = vpow.pop %v7597
      %v7599 = vmul.f32 %v7582, 1.442695
      %v7600 = vpow.pop %v7599
      %v7601 = vmul.f32 %v7583, 1.442695
      %v7602 = vpow.pop %v7601
      %v7603 = vmul.f32 %v7584, 1.442695
      %v7604 = vpow.pop %v7603
      %v7605 = vmul.f32 %v7585, 1.442695
      %v7606 = vpow.pop %v7605
      %v7607 = vmul.f32 %v7586, 1.442695
      %v7608 = vpow.pop %v7607
      %v7609 = vmul.f32 %v7587, 1.442695
      %v7610 = vpow.pop %v7609
      %v7611 = vmul.f32 %v7588, 1.442695
      %v7612 = vpow.pop %v7611
      %v7613 = vmul.f32 %v7589, 1.442695
      %v7614 = vpow.pop %v7613
      %v7615 = vmul.f32 %v7590, 1.442695
      %v7616 = vpow.pop %v7615
      %v7617 = vmul.f32 %v7591, 1.442695
      %v7618 = vpow.pop %v7617
      %v7619 = vmul.f32 %v7592, 1.442695
      %v7620 = vpow.pop %v7619
      %v7621 = vmul.f32 %v7593, 1.442695
      %v7622 = vpow.pop %v7621
      %v7623 = vmul.f32 %v7594, 1.442695
      %v7624 = vpow.pop %v7623
      %v7625 = vmul.f32 %v7595, 1.442695
      %v7626 = vpow.pop %v7625
      %v7627 = vmul.f32 %v7596, 1.442695
      %v7628 = vpow.pop %v7627
      %v7645 = vrot.slane %v7600, 7
      %v7646 = vsel %vm1178, %v7645, %v7598
      %v7647 = vrot.slane %v7602, 6
      %v7648 = vsel %vm1181, %v7647, %v7646
      %v7649 = vrot.slane %v7604, 5
      %v7650 = vsel %vm1184, %v7649, %v7648
      %v7651 = vrot.slane %v7606, 4
      %v7652 = vsel %vm1187, %v7651, %v7650
      %v7653 = vrot.slane %v7608, 3
      %v7654 = vsel %vm1190, %v7653, %v7652
      %v7655 = vrot.slane %v7610, 2
      %v7656 = vsel %vm1193, %v7655, %v7654
      %v7657 = vrot.slane %v7612, 1
      %v7658 = vsel %vm1196, %v7657, %v7656
      %v7659 = vrot.slane %v7616, 7
      %v7660 = vsel %vm1178, %v7659, %v7614
      %v7661 = vrot.slane %v7618, 6
      %v7662 = vsel %vm1181, %v7661, %v7660
      %v7663 = vrot.slane %v7620, 5
      %v7664 = vsel %vm1184, %v7663, %v7662
      %v7665 = vrot.slane %v7622, 4
      %v7666 = vsel %vm1187, %v7665, %v7664
      %v7667 = vrot.slane %v7624, 3
      %v7668 = vsel %vm1190, %v7667, %v7666
      %v7669 = vrot.slane %v7626, 2
      %v7670 = vsel %vm1193, %v7669, %v7668
      %v7671 = vrot.slane %v7628, 1
      %v7672 = vsel %vm1196, %v7671, %v7670
      %v7675 = vsel %vm422, %v7658, 0.0
      %v7676 = vsel %vm422, %v7672, 0.0
      %v7677 = vadd.f32 %v7675, %v7676
      %v7678 = vrot.slane %v7677, 4
      %v7679 = vadd.f32 %v7677, %v7678
      %v7680 = vrot.slane %v7679, 2
      %v7681 = vadd.f32 %v7679, %v7680
      %v7682 = vrot.slane %v7681, 1
      %v7683 = vadd.f32 %v7681, %v7682
      %v7684 = vlaneseq
      %v7685 = vshrl.u32 %v7684, 7
      %v7686 = vsub.s32 0, %v7685
      %v7687 = vrot.slane %v7683, %v7686
      %v7688 = vrcp.pop %v7687
      %v7689 = vmul.f32 %v7598, %v7688
      %v7690 = vmul.f32 %v7600, %v7688
      %v7691 = vmul.f32 %v7602, %v7688
      %v7692 = vmul.f32 %v7604, %v7688
      %v7693 = vmul.f32 %v7606, %v7688
      %v7694 = vmul.f32 %v7608, %v7688
      %v7695 = vmul.f32 %v7610, %v7688
      %v7696 = vmul.f32 %v7612, %v7688
      %v7697 = vmul.f32 %v7614, %v7688
      %v7698 = vmul.f32 %v7616, %v7688
      %v7699 = vmul.f32 %v7618, %v7688
      %v7700 = vmul.f32 %v7620, %v7688
      %v7701 = vmul.f32 %v7622, %v7688
      %v7702 = vmul.f32 %v7624, %v7688
      %v7703 = vmul.f32 %v7626, %v7688
      %v7704 = vmul.f32 %v7628, %v7688
      %v7705 = vlaneseq
      %v7706 = vshrl.u32 %v7705, 7
      %v7707 = vsub.s32 0, %v7706
      %v7708 = vrot.slane %v7689, %v7707
      %v7709 = vlaneseq
      %v7710 = vshrl.u32 %v7709, 7
      %v7711 = vsub.s32 0, %v7710
      %v7712 = vrot.slane %v7690, %v7711
      %v7713 = vlaneseq
      %v7714 = vshrl.u32 %v7713, 7
      %v7715 = vsub.s32 0, %v7714
      %v7716 = vrot.slane %v7691, %v7715
      %v7717 = vlaneseq
      %v7718 = vshrl.u32 %v7717, 7
      %v7719 = vsub.s32 0, %v7718
      %v7720 = vrot.slane %v7692, %v7719
      %v7721 = vlaneseq
      %v7722 = vshrl.u32 %v7721, 7
      %v7723 = vsub.s32 0, %v7722
      %v7724 = vrot.slane %v7693, %v7723
      %v7725 = vlaneseq
      %v7726 = vshrl.u32 %v7725, 7
      %v7727 = vsub.s32 0, %v7726
      %v7728 = vrot.slane %v7694, %v7727
      %v7729 = vlaneseq
      %v7730 = vshrl.u32 %v7729, 7
      %v7731 = vsub.s32 0, %v7730
      %v7732 = vrot.slane %v7695, %v7731
      %v7733 = vlaneseq
      %v7734 = vshrl.u32 %v7733, 7
      %v7735 = vsub.s32 0, %v7734
      %v7736 = vrot.slane %v7696, %v7735
      %v7737 = vlaneseq
      %v7738 = vshrl.u32 %v7737, 7
      %v7739 = vsub.s32 0, %v7738
      %v7740 = vrot.slane %v7697, %v7739
      %v7741 = vlaneseq
      %v7742 = vshrl.u32 %v7741, 7
      %v7743 = vsub.s32 0, %v7742
      %v7744 = vrot.slane %v7698, %v7743
      %v7745 = vlaneseq
      %v7746 = vshrl.u32 %v7745, 7
      %v7747 = vsub.s32 0, %v7746
      %v7748 = vrot.slane %v7699, %v7747
      %v7749 = vlaneseq
      %v7750 = vshrl.u32 %v7749, 7
      %v7751 = vsub.s32 0, %v7750
      %v7752 = vrot.slane %v7700, %v7751
      %v7753 = vlaneseq
      %v7754 = vshrl.u32 %v7753, 7
      %v7755 = vsub.s32 0, %v7754
      %v7756 = vrot.slane %v7701, %v7755
      %v7757 = vlaneseq
      %v7758 = vshrl.u32 %v7757, 7
      %v7759 = vsub.s32 0, %v7758
      %v7760 = vrot.slane %v7702, %v7759
      %v7761 = vlaneseq
      %v7762 = vshrl.u32 %v7761, 7
      %v7763 = vsub.s32 0, %v7762
      %v7764 = vrot.slane %v7703, %v7763
      %v7765 = vlaneseq
      %v7766 = vshrl.u32 %v7765, 7
      %v7767 = vsub.s32 0, %v7766
      %v7768 = vrot.slane %v7704, %v7767
      %v7769 = vmul.f32 %v7708, %v872
      %v7770 = vmul.f32 %v7708, %v873
      %v7771 = vmul.f32 %v7712, %v874
      %v7772 = vmul.f32 %v7712, %v875
      %v7773 = vmul.f32 %v7716, %v876
      %v7774 = vmul.f32 %v7716, %v877
      %v7775 = vmul.f32 %v7720, %v878
      %v7776 = vmul.f32 %v7720, %v879
      %v7777 = vmul.f32 %v7724, %v880
      %v7778 = vmul.f32 %v7724, %v881
      %v7779 = vmul.f32 %v7728, %v882
      %v7780 = vmul.f32 %v7728, %v883
      %v7781 = vmul.f32 %v7732, %v884
      %v7782 = vmul.f32 %v7732, %v885
      %v7783 = vmul.f32 %v7736, %v886
      %v7784 = vmul.f32 %v7736, %v887
      %v7785 = vmul.f32 %v7740, %v888
      %v7786 = vmul.f32 %v7740, %v889
      %v7787 = vmul.f32 %v7744, %v890
      %v7788 = vmul.f32 %v7744, %v891
      %v7789 = vmul.f32 %v7748, %v892
      %v7790 = vmul.f32 %v7748, %v893
      %v7791 = vmul.f32 %v7752, %v894
      %v7792 = vmul.f32 %v7752, %v895
      %v7793 = vmul.f32 %v7756, %v896
      %v7794 = vmul.f32 %v7756, %v897
      %v7795 = vmul.f32 %v7760, %v898
      %v7796 = vmul.f32 %v7760, %v899
      %v7797 = vmul.f32 %v7764, %v900
      %v7798 = vmul.f32 %v7764, %v901
      %v7799 = vmul.f32 %v7768, %v902
      %v7800 = vmul.f32 %v7768, %v903
      %v7801 = vsel %vm422, %v7769, 0.0
      %v7802 = vsel %vm422, %v7771, 0.0
      %v7803 = vadd.f32 %v7801, %v7802
      %v7804 = vsel %vm422, %v7773, 0.0
      %v7805 = vadd.f32 %v7803, %v7804
      %v7806 = vsel %vm422, %v7775, 0.0
      %v7807 = vadd.f32 %v7805, %v7806
      %v7808 = vsel %vm422, %v7777, 0.0
      %v7809 = vadd.f32 %v7807, %v7808
      %v7810 = vsel %vm422, %v7779, 0.0
      %v7811 = vadd.f32 %v7809, %v7810
      %v7812 = vsel %vm422, %v7781, 0.0
      %v7813 = vadd.f32 %v7811, %v7812
      %v7814 = vsel %vm422, %v7783, 0.0
      %v7815 = vadd.f32 %v7813, %v7814
      %v7816 = vsel %vm422, %v7785, 0.0
      %v7817 = vadd.f32 %v7815, %v7816
      %v7818 = vsel %vm422, %v7787, 0.0
      %v7819 = vadd.f32 %v7817, %v7818
      %v7820 = vsel %vm422, %v7789, 0.0
      %v7821 = vadd.f32 %v7819, %v7820
      %v7822 = vsel %vm422, %v7791, 0.0
      %v7823 = vadd.f32 %v7821, %v7822
      %v7824 = vsel %vm422, %v7793, 0.0
      %v7825 = vadd.f32 %v7823, %v7824
      %v7826 = vsel %vm422, %v7795, 0.0
      %v7827 = vadd.f32 %v7825, %v7826
      %v7828 = vsel %vm422, %v7797, 0.0
      %v7829 = vadd.f32 %v7827, %v7828
      %v7830 = vsel %vm422, %v7799, 0.0
      %v7831 = vadd.f32 %v7829, %v7830
      %v7832 = vsel %vm422, %v7770, 0.0
      %v7833 = vsel %vm422, %v7772, 0.0
      %v7834 = vadd.f32 %v7832, %v7833
      %v7835 = vsel %vm422, %v7774, 0.0
      %v7836 = vadd.f32 %v7834, %v7835
      %v7837 = vsel %vm422, %v7776, 0.0
      %v7838 = vadd.f32 %v7836, %v7837
      %v7839 = vsel %vm422, %v7778, 0.0
      %v7840 = vadd.f32 %v7838, %v7839
      %v7841 = vsel %vm422, %v7780, 0.0
      %v7842 = vadd.f32 %v7840, %v7841
      %v7843 = vsel %vm422, %v7782, 0.0
      %v7844 = vadd.f32 %v7842, %v7843
      %v7845 = vsel %vm422, %v7784, 0.0
      %v7846 = vadd.f32 %v7844, %v7845
      %v7847 = vsel %vm422, %v7786, 0.0
      %v7848 = vadd.f32 %v7846, %v7847
      %v7849 = vsel %vm422, %v7788, 0.0
      %v7850 = vadd.f32 %v7848, %v7849
      %v7851 = vsel %vm422, %v7790, 0.0
      %v7852 = vadd.f32 %v7850, %v7851
      %v7853 = vsel %vm422, %v7792, 0.0
      %v7854 = vadd.f32 %v7852, %v7853
      %v7855 = vsel %vm422, %v7794, 0.0
      %v7856 = vadd.f32 %v7854, %v7855
      %v7857 = vsel %vm422, %v7796, 0.0
      %v7858 = vadd.f32 %v7856, %v7857
      %v7859 = vsel %vm422, %v7798, 0.0
      %v7860 = vadd.f32 %v7858, %v7859
      %v7861 = vsel %vm422, %v7800, 0.0
      %v7862 = vadd.f32 %v7860, %v7861
      %v7863 = vld [vmem:[%s342 + $0xd0] sm:$0xff]
      %v7864 = vld [vmem:[%s342 + $0xd8] sm:$0xff]
      %v7865 = vadd.f32 %v7831, %v7863
      %v7866 = vadd.f32 %v7862, %v7864
      %7867 = vst.msk [vmem:[%s364 + $0xd0] sm:$0xff] %vm422, %v7865
      %7868 = vst.msk [vmem:[%s364 + $0xd8] sm:$0xff] %vm422, %v7866
      %v7869 = vld [vmem:[#allocation2 + $0xe0] sm:$0xff]
      %v7870 = vld [vmem:[#allocation2 + $0xe8] sm:$0xff]
      %v7871 = vmul.f32 %v7869, %v872
      %v7872 = vmul.f32 %v7870, %v873
      %v7873 = vmul.f32 %v7869, %v874
      %v7874 = vmul.f32 %v7870, %v875
      %v7875 = vmul.f32 %v7869, %v876
      %v7876 = vmul.f32 %v7870, %v877
      %v7877 = vmul.f32 %v7869, %v878
      %v7878 = vmul.f32 %v7870, %v879
      %v7879 = vmul.f32 %v7869, %v880
      %v7880 = vmul.f32 %v7870, %v881
      %v7881 = vmul.f32 %v7869, %v882
      %v7882 = vmul.f32 %v7870, %v883
      %v7883 = vmul.f32 %v7869, %v884
      %v7884 = vmul.f32 %v7870, %v885
      %v7885 = vmul.f32 %v7869, %v886
      %v7886 = vmul.f32 %v7870, %v887
      %v7887 = vmul.f32 %v7869, %v888
      %v7888 = vmul.f32 %v7870, %v889
      %v7889 = vmul.f32 %v7869, %v890
      %v7890 = vmul.f32 %v7870, %v891
      %v7891 = vmul.f32 %v7869, %v892
      %v7892 = vmul.f32 %v7870, %v893
      %v7893 = vmul.f32 %v7869, %v894
      %v7894 = vmul.f32 %v7870, %v895
      %v7895 = vmul.f32 %v7869, %v896
      %v7896 = vmul.f32 %v7870, %v897
      %v7897 = vmul.f32 %v7869, %v898
      %v7898 = vmul.f32 %v7870, %v899
      %v7899 = vmul.f32 %v7869, %v900
      %v7900 = vmul.f32 %v7870, %v901
      %v7901 = vmul.f32 %v7869, %v902
      %v7902 = vmul.f32 %v7870, %v903
      %v7903 = vsel %vm422, %v7871, 0.0
      %v7904 = vsel %vm422, %v7872, 0.0
      %v7905 = vadd.f32 %v7903, %v7904
      %v7906 = vrot.slane %v7905, 4
      %v7907 = vadd.f32 %v7905, %v7906
      %v7908 = vrot.slane %v7907, 2
      %v7909 = vadd.f32 %v7907, %v7908
      %v7910 = vrot.slane %v7909, 1
      %v7911 = vadd.f32 %v7909, %v7910
      %v7912 = vsel %vm422, %v7873, 0.0
      %v7913 = vsel %vm422, %v7874, 0.0
      %v7914 = vadd.f32 %v7912, %v7913
      %v7915 = vrot.slane %v7914, 4
      %v7916 = vadd.f32 %v7914, %v7915
      %v7917 = vrot.slane %v7916, 2
      %v7918 = vadd.f32 %v7916, %v7917
      %v7919 = vrot.slane %v7918, 1
      %v7920 = vadd.f32 %v7918, %v7919
      %v7921 = vsel %vm422, %v7875, 0.0
      %v7922 = vsel %vm422, %v7876, 0.0
      %v7923 = vadd.f32 %v7921, %v7922
      %v7924 = vrot.slane %v7923, 4
      %v7925 = vadd.f32 %v7923, %v7924
      %v7926 = vrot.slane %v7925, 2
      %v7927 = vadd.f32 %v7925, %v7926
      %v7928 = vrot.slane %v7927, 1
      %v7929 = vadd.f32 %v7927, %v7928
      %v7930 = vsel %vm422, %v7877, 0.0
      %v7931 = vsel %vm422, %v7878, 0.0
      %v7932 = vadd.f32 %v7930, %v7931
      %v7933 = vrot.slane %v7932, 4
      %v7934 = vadd.f32 %v7932, %v7933
      %v7935 = vrot.slane %v7934, 2
      %v7936 = vadd.f32 %v7934, %v7935
      %v7937 = vrot.slane %v7936, 1
      %v7938 = vadd.f32 %v7936, %v7937
      %v7939 = vsel %vm422, %v7879, 0.0
      %v7940 = vsel %vm422, %v7880, 0.0
      %v7941 = vadd.f32 %v7939, %v7940
      %v7942 = vrot.slane %v7941, 4
      %v7943 = vadd.f32 %v7941, %v7942
      %v7944 = vrot.slane %v7943, 2
      %v7945 = vadd.f32 %v7943, %v7944
      %v7946 = vrot.slane %v7945, 1
      %v7947 = vadd.f32 %v7945, %v7946
      %v7948 = vsel %vm422, %v7881, 0.0
      %v7949 = vsel %vm422, %v7882, 0.0
      %v7950 = vadd.f32 %v7948, %v7949
      %v7951 = vrot.slane %v7950, 4
      %v7952 = vadd.f32 %v7950, %v7951
      %v7953 = vrot.slane %v7952, 2
      %v7954 = vadd.f32 %v7952, %v7953
      %v7955 = vrot.slane %v7954, 1
      %v7956 = vadd.f32 %v7954, %v7955
      %v7957 = vsel %vm422, %v7883, 0.0
      %v7958 = vsel %vm422, %v7884, 0.0
      %v7959 = vadd.f32 %v7957, %v7958
      %v7960 = vrot.slane %v7959, 4
      %v7961 = vadd.f32 %v7959, %v7960
      %v7962 = vrot.slane %v7961, 2
      %v7963 = vadd.f32 %v7961, %v7962
      %v7964 = vrot.slane %v7963, 1
      %v7965 = vadd.f32 %v7963, %v7964
      %v7966 = vsel %vm422, %v7885, 0.0
      %v7967 = vsel %vm422, %v7886, 0.0
      %v7968 = vadd.f32 %v7966, %v7967
      %v7969 = vrot.slane %v7968, 4
      %v7970 = vadd.f32 %v7968, %v7969
      %v7971 = vrot.slane %v7970, 2
      %v7972 = vadd.f32 %v7970, %v7971
      %v7973 = vrot.slane %v7972, 1
      %v7974 = vadd.f32 %v7972, %v7973
      %v7975 = vsel %vm422, %v7887, 0.0
      %v7976 = vsel %vm422, %v7888, 0.0
      %v7977 = vadd.f32 %v7975, %v7976
      %v7978 = vrot.slane %v7977, 4
      %v7979 = vadd.f32 %v7977, %v7978
      %v7980 = vrot.slane %v7979, 2
      %v7981 = vadd.f32 %v7979, %v7980
      %v7982 = vrot.slane %v7981, 1
      %v7983 = vadd.f32 %v7981, %v7982
      %v7984 = vsel %vm422, %v7889, 0.0
      %v7985 = vsel %vm422, %v7890, 0.0
      %v7986 = vadd.f32 %v7984, %v7985
      %v7987 = vrot.slane %v7986, 4
      %v7988 = vadd.f32 %v7986, %v7987
      %v7989 = vrot.slane %v7988, 2
      %v7990 = vadd.f32 %v7988, %v7989
      %v7991 = vrot.slane %v7990, 1
      %v7992 = vadd.f32 %v7990, %v7991
      %v7993 = vsel %vm422, %v7891, 0.0
      %v7994 = vsel %vm422, %v7892, 0.0
      %v7995 = vadd.f32 %v7993, %v7994
      %v7996 = vrot.slane %v7995, 4
      %v7997 = vadd.f32 %v7995, %v7996
      %v7998 = vrot.slane %v7997, 2
      %v7999 = vadd.f32 %v7997, %v7998
      %v8000 = vrot.slane %v7999, 1
      %v8001 = vadd.f32 %v7999, %v8000
      %v8002 = vsel %vm422, %v7893, 0.0
      %v8003 = vsel %vm422, %v7894, 0.0
      %v8004 = vadd.f32 %v8002, %v8003
      %v8005 = vrot.slane %v8004, 4
      %v8006 = vadd.f32 %v8004, %v8005
      %v8007 = vrot.slane %v8006, 2
      %v8008 = vadd.f32 %v8006, %v8007
      %v8009 = vrot.slane %v8008, 1
      %v8010 = vadd.f32 %v8008, %v8009
      %v8011 = vsel %vm422, %v7895, 0.0
      %v8012 = vsel %vm422, %v7896, 0.0
      %v8013 = vadd.f32 %v8011, %v8012
      %v8014 = vrot.slane %v8013, 4
      %v8015 = vadd.f32 %v8013, %v8014
      %v8016 = vrot.slane %v8015, 2
      %v8017 = vadd.f32 %v8015, %v8016
      %v8018 = vrot.slane %v8017, 1
      %v8019 = vadd.f32 %v8017, %v8018
      %v8020 = vsel %vm422, %v7897, 0.0
      %v8021 = vsel %vm422, %v7898, 0.0
      %v8022 = vadd.f32 %v8020, %v8021
      %v8023 = vrot.slane %v8022, 4
      %v8024 = vadd.f32 %v8022, %v8023
      %v8025 = vrot.slane %v8024, 2
      %v8026 = vadd.f32 %v8024, %v8025
      %v8027 = vrot.slane %v8026, 1
      %v8028 = vadd.f32 %v8026, %v8027
      %v8029 = vsel %vm422, %v7899, 0.0
      %v8030 = vsel %vm422, %v7900, 0.0
      %v8031 = vadd.f32 %v8029, %v8030
      %v8032 = vrot.slane %v8031, 4
      %v8033 = vadd.f32 %v8031, %v8032
      %v8034 = vrot.slane %v8033, 2
      %v8035 = vadd.f32 %v8033, %v8034
      %v8036 = vrot.slane %v8035, 1
      %v8037 = vadd.f32 %v8035, %v8036
      %v8038 = vsel %vm422, %v7901, 0.0
      %v8039 = vsel %vm422, %v7902, 0.0
      %v8040 = vadd.f32 %v8038, %v8039
      %v8041 = vrot.slane %v8040, 4
      %v8042 = vadd.f32 %v8040, %v8041
      %v8043 = vrot.slane %v8042, 2
      %v8044 = vadd.f32 %v8042, %v8043
      %v8045 = vrot.slane %v8044, 1
      %v8046 = vadd.f32 %v8044, %v8045
      %v8047 = vsel %vm422, %v7911, -inf
      %v8048 = vsel %vm422, %v7920, -inf
      %v8049 = vsel %vm422, %v7929, -inf
      %v8050 = vsel %vm422, %v7938, -inf
      %v8051 = vsel %vm422, %v7947, -inf
      %v8052 = vmax.f32 %v8047, %v8051
      %v8053 = vsel %vm422, %v7956, -inf
      %v8054 = vmax.f32 %v8048, %v8053
      %v8055 = vsel %vm422, %v7965, -inf
      %v8056 = vmax.f32 %v8049, %v8055
      %v8057 = vsel %vm422, %v7974, -inf
      %v8058 = vmax.f32 %v8050, %v8057
      %v8059 = vsel %vm422, %v7983, -inf
      %v8060 = vmax.f32 %v8052, %v8059
      %v8061 = vsel %vm422, %v7992, -inf
      %v8062 = vmax.f32 %v8054, %v8061
      %v8063 = vsel %vm422, %v8001, -inf
      %v8064 = vmax.f32 %v8056, %v8063
      %v8065 = vsel %vm422, %v8010, -inf
      %v8066 = vmax.f32 %v8058, %v8065
      %v8067 = vsel %vm422, %v8019, -inf
      %v8068 = vmax.f32 %v8060, %v8067
      %v8069 = vsel %vm422, %v8028, -inf
      %v8070 = vmax.f32 %v8062, %v8069
      %v8071 = vsel %vm422, %v8037, -inf
      %v8072 = vmax.f32 %v8064, %v8071
      %v8073 = vsel %vm422, %v8046, -inf
      %v8074 = vmax.f32 %v8066, %v8073
      %v8075 = vmax.f32 %v8068, %v8070
      %v8076 = vmax.f32 %v8072, %v8074
      %v8077 = vmax.f32 %v8075, %v8076
      %v8078 = vsub.f32 %v7911, %v8077
      %v8079 = vsub.f32 %v7920, %v8077
      %v8080 = vsub.f32 %v7929, %v8077
      %v8081 = vsub.f32 %v7938, %v8077
      %v8082 = vsub.f32 %v7947, %v8077
      %v8083 = vsub.f32 %v7956, %v8077
      %v8084 = vsub.f32 %v7965, %v8077
      %v8085 = vsub.f32 %v7974, %v8077
      %v8086 = vsub.f32 %v7983, %v8077
      %v8087 = vsub.f32 %v7992, %v8077
      %v8088 = vsub.f32 %v8001, %v8077
      %v8089 = vsub.f32 %v8010, %v8077
      %v8090 = vsub.f32 %v8019, %v8077
      %v8091 = vsub.f32 %v8028, %v8077
      %v8092 = vsub.f32 %v8037, %v8077
      %v8093 = vsub.f32 %v8046, %v8077
      %v8094 = vmul.f32 %v8078, 1.442695
      %v8095 = vpow.pop %v8094
      %v8096 = vmul.f32 %v8079, 1.442695
      %v8097 = vpow.pop %v8096
      %v8098 = vmul.f32 %v8080, 1.442695
      %v8099 = vpow.pop %v8098
      %v8100 = vmul.f32 %v8081, 1.442695
      %v8101 = vpow.pop %v8100
      %v8102 = vmul.f32 %v8082, 1.442695
      %v8103 = vpow.pop %v8102
      %v8104 = vmul.f32 %v8083, 1.442695
      %v8105 = vpow.pop %v8104
      %v8106 = vmul.f32 %v8084, 1.442695
      %v8107 = vpow.pop %v8106
      %v8108 = vmul.f32 %v8085, 1.442695
      %v8109 = vpow.pop %v8108
      %v8110 = vmul.f32 %v8086, 1.442695
      %v8111 = vpow.pop %v8110
      %v8112 = vmul.f32 %v8087, 1.442695
      %v8113 = vpow.pop %v8112
      %v8114 = vmul.f32 %v8088, 1.442695
      %v8115 = vpow.pop %v8114
      %v8116 = vmul.f32 %v8089, 1.442695
      %v8117 = vpow.pop %v8116
      %v8118 = vmul.f32 %v8090, 1.442695
      %v8119 = vpow.pop %v8118
      %v8120 = vmul.f32 %v8091, 1.442695
      %v8121 = vpow.pop %v8120
      %v8122 = vmul.f32 %v8092, 1.442695
      %v8123 = vpow.pop %v8122
      %v8124 = vmul.f32 %v8093, 1.442695
      %v8125 = vpow.pop %v8124
      %v8142 = vrot.slane %v8097, 7
      %v8143 = vsel %vm1178, %v8142, %v8095
      %v8144 = vrot.slane %v8099, 6
      %v8145 = vsel %vm1181, %v8144, %v8143
      %v8146 = vrot.slane %v8101, 5
      %v8147 = vsel %vm1184, %v8146, %v8145
      %v8148 = vrot.slane %v8103, 4
      %v8149 = vsel %vm1187, %v8148, %v8147
      %v8150 = vrot.slane %v8105, 3
      %v8151 = vsel %vm1190, %v8150, %v8149
      %v8152 = vrot.slane %v8107, 2
      %v8153 = vsel %vm1193, %v8152, %v8151
      %v8154 = vrot.slane %v8109, 1
      %v8155 = vsel %vm1196, %v8154, %v8153
      %v8156 = vrot.slane %v8113, 7
      %v8157 = vsel %vm1178, %v8156, %v8111
      %v8158 = vrot.slane %v8115, 6
      %v8159 = vsel %vm1181, %v8158, %v8157
      %v8160 = vrot.slane %v8117, 5
      %v8161 = vsel %vm1184, %v8160, %v8159
      %v8162 = vrot.slane %v8119, 4
      %v8163 = vsel %vm1187, %v8162, %v8161
      %v8164 = vrot.slane %v8121, 3
      %v8165 = vsel %vm1190, %v8164, %v8163
      %v8166 = vrot.slane %v8123, 2
      %v8167 = vsel %vm1193, %v8166, %v8165
      %v8168 = vrot.slane %v8125, 1
      %v8169 = vsel %vm1196, %v8168, %v8167
      %v8172 = vsel %vm422, %v8155, 0.0
      %v8173 = vsel %vm422, %v8169, 0.0
      %v8174 = vadd.f32 %v8172, %v8173
      %v8175 = vrot.slane %v8174, 4
      %v8176 = vadd.f32 %v8174, %v8175
      %v8177 = vrot.slane %v8176, 2
      %v8178 = vadd.f32 %v8176, %v8177
      %v8179 = vrot.slane %v8178, 1
      %v8180 = vadd.f32 %v8178, %v8179
      %v8181 = vlaneseq
      %v8182 = vshrl.u32 %v8181, 7
      %v8183 = vsub.s32 0, %v8182
      %v8184 = vrot.slane %v8180, %v8183
      %v8185 = vrcp.pop %v8184
      %v8186 = vmul.f32 %v8095, %v8185
      %v8187 = vmul.f32 %v8097, %v8185
      %v8188 = vmul.f32 %v8099, %v8185
      %v8189 = vmul.f32 %v8101, %v8185
      %v8190 = vmul.f32 %v8103, %v8185
      %v8191 = vmul.f32 %v8105, %v8185
      %v8192 = vmul.f32 %v8107, %v8185
      %v8193 = vmul.f32 %v8109, %v8185
      %v8194 = vmul.f32 %v8111, %v8185
      %v8195 = vmul.f32 %v8113, %v8185
      %v8196 = vmul.f32 %v8115, %v8185
      %v8197 = vmul.f32 %v8117, %v8185
      %v8198 = vmul.f32 %v8119, %v8185
      %v8199 = vmul.f32 %v8121, %v8185
      %v8200 = vmul.f32 %v8123, %v8185
      %v8201 = vmul.f32 %v8125, %v8185
      %v8202 = vlaneseq
      %v8203 = vshrl.u32 %v8202, 7
      %v8204 = vsub.s32 0, %v8203
      %v8205 = vrot.slane %v8186, %v8204
      %v8206 = vlaneseq
      %v8207 = vshrl.u32 %v8206, 7
      %v8208 = vsub.s32 0, %v8207
      %v8209 = vrot.slane %v8187, %v8208
      %v8210 = vlaneseq
      %v8211 = vshrl.u32 %v8210, 7
      %v8212 = vsub.s32 0, %v8211
      %v8213 = vrot.slane %v8188, %v8212
      %v8214 = vlaneseq
      %v8215 = vshrl.u32 %v8214, 7
      %v8216 = vsub.s32 0, %v8215
      %v8217 = vrot.slane %v8189, %v8216
      %v8218 = vlaneseq
      %v8219 = vshrl.u32 %v8218, 7
      %v8220 = vsub.s32 0, %v8219
      %v8221 = vrot.slane %v8190, %v8220
      %v8222 = vlaneseq
      %v8223 = vshrl.u32 %v8222, 7
      %v8224 = vsub.s32 0, %v8223
      %v8225 = vrot.slane %v8191, %v8224
      %v8226 = vlaneseq
      %v8227 = vshrl.u32 %v8226, 7
      %v8228 = vsub.s32 0, %v8227
      %v8229 = vrot.slane %v8192, %v8228
      %v8230 = vlaneseq
      %v8231 = vshrl.u32 %v8230, 7
      %v8232 = vsub.s32 0, %v8231
      %v8233 = vrot.slane %v8193, %v8232
      %v8234 = vlaneseq
      %v8235 = vshrl.u32 %v8234, 7
      %v8236 = vsub.s32 0, %v8235
      %v8237 = vrot.slane %v8194, %v8236
      %v8238 = vlaneseq
      %v8239 = vshrl.u32 %v8238, 7
      %v8240 = vsub.s32 0, %v8239
      %v8241 = vrot.slane %v8195, %v8240
      %v8242 = vlaneseq
      %v8243 = vshrl.u32 %v8242, 7
      %v8244 = vsub.s32 0, %v8243
      %v8245 = vrot.slane %v8196, %v8244
      %v8246 = vlaneseq
      %v8247 = vshrl.u32 %v8246, 7
      %v8248 = vsub.s32 0, %v8247
      %v8249 = vrot.slane %v8197, %v8248
      %v8250 = vlaneseq
      %v8251 = vshrl.u32 %v8250, 7
      %v8252 = vsub.s32 0, %v8251
      %v8253 = vrot.slane %v8198, %v8252
      %v8254 = vlaneseq
      %v8255 = vshrl.u32 %v8254, 7
      %v8256 = vsub.s32 0, %v8255
      %v8257 = vrot.slane %v8199, %v8256
      %v8258 = vlaneseq
      %v8259 = vshrl.u32 %v8258, 7
      %v8260 = vsub.s32 0, %v8259
      %v8261 = vrot.slane %v8200, %v8260
      %v8262 = vlaneseq
      %v8263 = vshrl.u32 %v8262, 7
      %v8264 = vsub.s32 0, %v8263
      %v8265 = vrot.slane %v8201, %v8264
      %v8266 = vmul.f32 %v8205, %v872
      %v8267 = vmul.f32 %v8205, %v873
      %v8268 = vmul.f32 %v8209, %v874
      %v8269 = vmul.f32 %v8209, %v875
      %v8270 = vmul.f32 %v8213, %v876
      %v8271 = vmul.f32 %v8213, %v877
      %v8272 = vmul.f32 %v8217, %v878
      %v8273 = vmul.f32 %v8217, %v879
      %v8274 = vmul.f32 %v8221, %v880
      %v8275 = vmul.f32 %v8221, %v881
      %v8276 = vmul.f32 %v8225, %v882
      %v8277 = vmul.f32 %v8225, %v883
      %v8278 = vmul.f32 %v8229, %v884
      %v8279 = vmul.f32 %v8229, %v885
      %v8280 = vmul.f32 %v8233, %v886
      %v8281 = vmul.f32 %v8233, %v887
      %v8282 = vmul.f32 %v8237, %v888
      %v8283 = vmul.f32 %v8237, %v889
      %v8284 = vmul.f32 %v8241, %v890
      %v8285 = vmul.f32 %v8241, %v891
      %v8286 = vmul.f32 %v8245, %v892
      %v8287 = vmul.f32 %v8245, %v893
      %v8288 = vmul.f32 %v8249, %v894
      %v8289 = vmul.f32 %v8249, %v895
      %v8290 = vmul.f32 %v8253, %v896
      %v8291 = vmul.f32 %v8253, %v897
      %v8292 = vmul.f32 %v8257, %v898
      %v8293 = vmul.f32 %v8257, %v899
      %v8294 = vmul.f32 %v8261, %v900
      %v8295 = vmul.f32 %v8261, %v901
      %v8296 = vmul.f32 %v8265, %v902
      %v8297 = vmul.f32 %v8265, %v903
      %v8298 = vsel %vm422, %v8266, 0.0
      %v8299 = vsel %vm422, %v8268, 0.0
      %v8300 = vadd.f32 %v8298, %v8299
      %v8301 = vsel %vm422, %v8270, 0.0
      %v8302 = vadd.f32 %v8300, %v8301
      %v8303 = vsel %vm422, %v8272, 0.0
      %v8304 = vadd.f32 %v8302, %v8303
      %v8305 = vsel %vm422, %v8274, 0.0
      %v8306 = vadd.f32 %v8304, %v8305
      %v8307 = vsel %vm422, %v8276, 0.0
      %v8308 = vadd.f32 %v8306, %v8307
      %v8309 = vsel %vm422, %v8278, 0.0
      %v8310 = vadd.f32 %v8308, %v8309
      %v8311 = vsel %vm422, %v8280, 0.0
      %v8312 = vadd.f32 %v8310, %v8311
      %v8313 = vsel %vm422, %v8282, 0.0
      %v8314 = vadd.f32 %v8312, %v8313
      %v8315 = vsel %vm422, %v8284, 0.0
      %v8316 = vadd.f32 %v8314, %v8315
      %v8317 = vsel %vm422, %v8286, 0.0
      %v8318 = vadd.f32 %v8316, %v8317
      %v8319 = vsel %vm422, %v8288, 0.0
      %v8320 = vadd.f32 %v8318, %v8319
      %v8321 = vsel %vm422, %v8290, 0.0
      %v8322 = vadd.f32 %v8320, %v8321
      %v8323 = vsel %vm422, %v8292, 0.0
      %v8324 = vadd.f32 %v8322, %v8323
      %v8325 = vsel %vm422, %v8294, 0.0
      %v8326 = vadd.f32 %v8324, %v8325
      %v8327 = vsel %vm422, %v8296, 0.0
      %v8328 = vadd.f32 %v8326, %v8327
      %v8329 = vsel %vm422, %v8267, 0.0
      %v8330 = vsel %vm422, %v8269, 0.0
      %v8331 = vadd.f32 %v8329, %v8330
      %v8332 = vsel %vm422, %v8271, 0.0
      %v8333 = vadd.f32 %v8331, %v8332
      %v8334 = vsel %vm422, %v8273, 0.0
      %v8335 = vadd.f32 %v8333, %v8334
      %v8336 = vsel %vm422, %v8275, 0.0
      %v8337 = vadd.f32 %v8335, %v8336
      %v8338 = vsel %vm422, %v8277, 0.0
      %v8339 = vadd.f32 %v8337, %v8338
      %v8340 = vsel %vm422, %v8279, 0.0
      %v8341 = vadd.f32 %v8339, %v8340
      %v8342 = vsel %vm422, %v8281, 0.0
      %v8343 = vadd.f32 %v8341, %v8342
      %v8344 = vsel %vm422, %v8283, 0.0
      %v8345 = vadd.f32 %v8343, %v8344
      %v8346 = vsel %vm422, %v8285, 0.0
      %v8347 = vadd.f32 %v8345, %v8346
      %v8348 = vsel %vm422, %v8287, 0.0
      %v8349 = vadd.f32 %v8347, %v8348
      %v8350 = vsel %vm422, %v8289, 0.0
      %v8351 = vadd.f32 %v8349, %v8350
      %v8352 = vsel %vm422, %v8291, 0.0
      %v8353 = vadd.f32 %v8351, %v8352
      %v8354 = vsel %vm422, %v8293, 0.0
      %v8355 = vadd.f32 %v8353, %v8354
      %v8356 = vsel %vm422, %v8295, 0.0
      %v8357 = vadd.f32 %v8355, %v8356
      %v8358 = vsel %vm422, %v8297, 0.0
      %v8359 = vadd.f32 %v8357, %v8358
      %v8360 = vld [vmem:[%s342 + $0xe0] sm:$0xff]
      %v8361 = vld [vmem:[%s342 + $0xe8] sm:$0xff]
      %v8362 = vadd.f32 %v8328, %v8360
      %v8363 = vadd.f32 %v8359, %v8361
      %8364 = vst.msk [vmem:[%s364 + $0xe0] sm:$0xff] %vm422, %v8362
      %8365 = vst.msk [vmem:[%s364 + $0xe8] sm:$0xff] %vm422, %v8363
      %v8366 = vld [vmem:[#allocation2 + $0xf0] sm:$0xff]
      %v8367 = vld [vmem:[#allocation2 + $0xf8] sm:$0xff]
      %v8368 = vmul.f32 %v8366, %v872
      %v8369 = vmul.f32 %v8367, %v873
      %v8370 = vmul.f32 %v8366, %v874
      %v8371 = vmul.f32 %v8367, %v875
      %v8372 = vmul.f32 %v8366, %v876
      %v8373 = vmul.f32 %v8367, %v877
      %v8374 = vmul.f32 %v8366, %v878
      %v8375 = vmul.f32 %v8367, %v879
      %v8376 = vmul.f32 %v8366, %v880
      %v8377 = vmul.f32 %v8367, %v881
      %v8378 = vmul.f32 %v8366, %v882
      %v8379 = vmul.f32 %v8367, %v883
      %v8380 = vmul.f32 %v8366, %v884
      %v8381 = vmul.f32 %v8367, %v885
      %v8382 = vmul.f32 %v8366, %v886
      %v8383 = vmul.f32 %v8367, %v887
      %v8384 = vmul.f32 %v8366, %v888
      %v8385 = vmul.f32 %v8367, %v889
      %v8386 = vmul.f32 %v8366, %v890
      %v8387 = vmul.f32 %v8367, %v891
      %v8388 = vmul.f32 %v8366, %v892
      %v8389 = vmul.f32 %v8367, %v893
      %v8390 = vmul.f32 %v8366, %v894
      %v8391 = vmul.f32 %v8367, %v895
      %v8392 = vmul.f32 %v8366, %v896
      %v8393 = vmul.f32 %v8367, %v897
      %v8394 = vmul.f32 %v8366, %v898
      %v8395 = vmul.f32 %v8367, %v899
      %v8396 = vmul.f32 %v8366, %v900
      %v8397 = vmul.f32 %v8367, %v901
      %v8398 = vmul.f32 %v8366, %v902
      %v8399 = vmul.f32 %v8367, %v903
      %v8400 = vsel %vm422, %v8368, 0.0
      %v8401 = vsel %vm422, %v8369, 0.0
      %v8402 = vadd.f32 %v8400, %v8401
      %v8403 = vrot.slane %v8402, 4
      %v8404 = vadd.f32 %v8402, %v8403
      %v8405 = vrot.slane %v8404, 2
      %v8406 = vadd.f32 %v8404, %v8405
      %v8407 = vrot.slane %v8406, 1
      %v8408 = vadd.f32 %v8406, %v8407
      %v8409 = vsel %vm422, %v8370, 0.0
      %v8410 = vsel %vm422, %v8371, 0.0
      %v8411 = vadd.f32 %v8409, %v8410
      %v8412 = vrot.slane %v8411, 4
      %v8413 = vadd.f32 %v8411, %v8412
      %v8414 = vrot.slane %v8413, 2
      %v8415 = vadd.f32 %v8413, %v8414
      %v8416 = vrot.slane %v8415, 1
      %v8417 = vadd.f32 %v8415, %v8416
      %v8418 = vsel %vm422, %v8372, 0.0
      %v8419 = vsel %vm422, %v8373, 0.0
      %v8420 = vadd.f32 %v8418, %v8419
      %v8421 = vrot.slane %v8420, 4
      %v8422 = vadd.f32 %v8420, %v8421
      %v8423 = vrot.slane %v8422, 2
      %v8424 = vadd.f32 %v8422, %v8423
      %v8425 = vrot.slane %v8424, 1
      %v8426 = vadd.f32 %v8424, %v8425
      %v8427 = vsel %vm422, %v8374, 0.0
      %v8428 = vsel %vm422, %v8375, 0.0
      %v8429 = vadd.f32 %v8427, %v8428
      %v8430 = vrot.slane %v8429, 4
      %v8431 = vadd.f32 %v8429, %v8430
      %v8432 = vrot.slane %v8431, 2
      %v8433 = vadd.f32 %v8431, %v8432
      %v8434 = vrot.slane %v8433, 1
      %v8435 = vadd.f32 %v8433, %v8434
      %v8436 = vsel %vm422, %v8376, 0.0
      %v8437 = vsel %vm422, %v8377, 0.0
      %v8438 = vadd.f32 %v8436, %v8437
      %v8439 = vrot.slane %v8438, 4
      %v8440 = vadd.f32 %v8438, %v8439
      %v8441 = vrot.slane %v8440, 2
      %v8442 = vadd.f32 %v8440, %v8441
      %v8443 = vrot.slane %v8442, 1
      %v8444 = vadd.f32 %v8442, %v8443
      %v8445 = vsel %vm422, %v8378, 0.0
      %v8446 = vsel %vm422, %v8379, 0.0
      %v8447 = vadd.f32 %v8445, %v8446
      %v8448 = vrot.slane %v8447, 4
      %v8449 = vadd.f32 %v8447, %v8448
      %v8450 = vrot.slane %v8449, 2
      %v8451 = vadd.f32 %v8449, %v8450
      %v8452 = vrot.slane %v8451, 1
      %v8453 = vadd.f32 %v8451, %v8452
      %v8454 = vsel %vm422, %v8380, 0.0
      %v8455 = vsel %vm422, %v8381, 0.0
      %v8456 = vadd.f32 %v8454, %v8455
      %v8457 = vrot.slane %v8456, 4
      %v8458 = vadd.f32 %v8456, %v8457
      %v8459 = vrot.slane %v8458, 2
      %v8460 = vadd.f32 %v8458, %v8459
      %v8461 = vrot.slane %v8460, 1
      %v8462 = vadd.f32 %v8460, %v8461
      %v8463 = vsel %vm422, %v8382, 0.0
      %v8464 = vsel %vm422, %v8383, 0.0
      %v8465 = vadd.f32 %v8463, %v8464
      %v8466 = vrot.slane %v8465, 4
      %v8467 = vadd.f32 %v8465, %v8466
      %v8468 = vrot.slane %v8467, 2
      %v8469 = vadd.f32 %v8467, %v8468
      %v8470 = vrot.slane %v8469, 1
      %v8471 = vadd.f32 %v8469, %v8470
      %v8472 = vsel %vm422, %v8384, 0.0
      %v8473 = vsel %vm422, %v8385, 0.0
      %v8474 = vadd.f32 %v8472, %v8473
      %v8475 = vrot.slane %v8474, 4
      %v8476 = vadd.f32 %v8474, %v8475
      %v8477 = vrot.slane %v8476, 2
      %v8478 = vadd.f32 %v8476, %v8477
      %v8479 = vrot.slane %v8478, 1
      %v8480 = vadd.f32 %v8478, %v8479
      %v8481 = vsel %vm422, %v8386, 0.0
      %v8482 = vsel %vm422, %v8387, 0.0
      %v8483 = vadd.f32 %v8481, %v8482
      %v8484 = vrot.slane %v8483, 4
      %v8485 = vadd.f32 %v8483, %v8484
      %v8486 = vrot.slane %v8485, 2
      %v8487 = vadd.f32 %v8485, %v8486
      %v8488 = vrot.slane %v8487, 1
      %v8489 = vadd.f32 %v8487, %v8488
      %v8490 = vsel %vm422, %v8388, 0.0
      %v8491 = vsel %vm422, %v8389, 0.0
      %v8492 = vadd.f32 %v8490, %v8491
      %v8493 = vrot.slane %v8492, 4
      %v8494 = vadd.f32 %v8492, %v8493
      %v8495 = vrot.slane %v8494, 2
      %v8496 = vadd.f32 %v8494, %v8495
      %v8497 = vrot.slane %v8496, 1
      %v8498 = vadd.f32 %v8496, %v8497
      %v8499 = vsel %vm422, %v8390, 0.0
      %v8500 = vsel %vm422, %v8391, 0.0
      %v8501 = vadd.f32 %v8499, %v8500
      %v8502 = vrot.slane %v8501, 4
      %v8503 = vadd.f32 %v8501, %v8502
      %v8504 = vrot.slane %v8503, 2
      %v8505 = vadd.f32 %v8503, %v8504
      %v8506 = vrot.slane %v8505, 1
      %v8507 = vadd.f32 %v8505, %v8506
      %v8508 = vsel %vm422, %v8392, 0.0
      %v8509 = vsel %vm422, %v8393, 0.0
      %v8510 = vadd.f32 %v8508, %v8509
      %v8511 = vrot.slane %v8510, 4
      %v8512 = vadd.f32 %v8510, %v8511
      %v8513 = vrot.slane %v8512, 2
      %v8514 = vadd.f32 %v8512, %v8513
      %v8515 = vrot.slane %v8514, 1
      %v8516 = vadd.f32 %v8514, %v8515
      %v8517 = vsel %vm422, %v8394, 0.0
      %v8518 = vsel %vm422, %v8395, 0.0
      %v8519 = vadd.f32 %v8517, %v8518
      %v8520 = vrot.slane %v8519, 4
      %v8521 = vadd.f32 %v8519, %v8520
      %v8522 = vrot.slane %v8521, 2
      %v8523 = vadd.f32 %v8521, %v8522
      %v8524 = vrot.slane %v8523, 1
      %v8525 = vadd.f32 %v8523, %v8524
      %v8526 = vsel %vm422, %v8396, 0.0
      %v8527 = vsel %vm422, %v8397, 0.0
      %v8528 = vadd.f32 %v8526, %v8527
      %v8529 = vrot.slane %v8528, 4
      %v8530 = vadd.f32 %v8528, %v8529
      %v8531 = vrot.slane %v8530, 2
      %v8532 = vadd.f32 %v8530, %v8531
      %v8533 = vrot.slane %v8532, 1
      %v8534 = vadd.f32 %v8532, %v8533
      %v8535 = vsel %vm422, %v8398, 0.0
      %v8536 = vsel %vm422, %v8399, 0.0
      %v8537 = vadd.f32 %v8535, %v8536
      %v8538 = vrot.slane %v8537, 4
      %v8539 = vadd.f32 %v8537, %v8538
      %v8540 = vrot.slane %v8539, 2
      %v8541 = vadd.f32 %v8539, %v8540
      %v8542 = vrot.slane %v8541, 1
      %v8543 = vadd.f32 %v8541, %v8542
      %v8544 = vsel %vm422, %v8408, -inf
      %v8545 = vsel %vm422, %v8417, -inf
      %v8546 = vsel %vm422, %v8426, -inf
      %v8547 = vsel %vm422, %v8435, -inf
      %v8548 = vsel %vm422, %v8444, -inf
      %v8549 = vmax.f32 %v8544, %v8548
      %v8550 = vsel %vm422, %v8453, -inf
      %v8551 = vmax.f32 %v8545, %v8550
      %v8552 = vsel %vm422, %v8462, -inf
      %v8553 = vmax.f32 %v8546, %v8552
      %v8554 = vsel %vm422, %v8471, -inf
      %v8555 = vmax.f32 %v8547, %v8554
      %v8556 = vsel %vm422, %v8480, -inf
      %v8557 = vmax.f32 %v8549, %v8556
      %v8558 = vsel %vm422, %v8489, -inf
      %v8559 = vmax.f32 %v8551, %v8558
      %v8560 = vsel %vm422, %v8498, -inf
      %v8561 = vmax.f32 %v8553, %v8560
      %v8562 = vsel %vm422, %v8507, -inf
      %v8563 = vmax.f32 %v8555, %v8562
      %v8564 = vsel %vm422, %v8516, -inf
      %v8565 = vmax.f32 %v8557, %v8564
      %v8566 = vsel %vm422, %v8525, -inf
      %v8567 = vmax.f32 %v8559, %v8566
      %v8568 = vsel %vm422, %v8534, -inf
      %v8569 = vmax.f32 %v8561, %v8568
      %v8570 = vsel %vm422, %v8543, -inf
      %v8571 = vmax.f32 %v8563, %v8570
      %v8572 = vmax.f32 %v8565, %v8567
      %v8573 = vmax.f32 %v8569, %v8571
      %v8574 = vmax.f32 %v8572, %v8573
      %v8575 = vsub.f32 %v8408, %v8574
      %v8576 = vsub.f32 %v8417, %v8574
      %v8577 = vsub.f32 %v8426, %v8574
      %v8578 = vsub.f32 %v8435, %v8574
      %v8579 = vsub.f32 %v8444, %v8574
      %v8580 = vsub.f32 %v8453, %v8574
      %v8581 = vsub.f32 %v8462, %v8574
      %v8582 = vsub.f32 %v8471, %v8574
      %v8583 = vsub.f32 %v8480, %v8574
      %v8584 = vsub.f32 %v8489, %v8574
      %v8585 = vsub.f32 %v8498, %v8574
      %v8586 = vsub.f32 %v8507, %v8574
      %v8587 = vsub.f32 %v8516, %v8574
      %v8588 = vsub.f32 %v8525, %v8574
      %v8589 = vsub.f32 %v8534, %v8574
      %v8590 = vsub.f32 %v8543, %v8574
      %v8591 = vmul.f32 %v8575, 1.442695
      %v8592 = vpow.pop %v8591
      %v8593 = vmul.f32 %v8576, 1.442695
      %v8594 = vpow.pop %v8593
      %v8595 = vmul.f32 %v8577, 1.442695
      %v8596 = vpow.pop %v8595
      %v8597 = vmul.f32 %v8578, 1.442695
      %v8598 = vpow.pop %v8597
      %v8599 = vmul.f32 %v8579, 1.442695
      %v8600 = vpow.pop %v8599
      %v8601 = vmul.f32 %v8580, 1.442695
      %v8602 = vpow.pop %v8601
      %v8603 = vmul.f32 %v8581, 1.442695
      %v8604 = vpow.pop %v8603
      %v8605 = vmul.f32 %v8582, 1.442695
      %v8606 = vpow.pop %v8605
      %v8607 = vmul.f32 %v8583, 1.442695
      %v8608 = vpow.pop %v8607
      %v8609 = vmul.f32 %v8584, 1.442695
      %v8610 = vpow.pop %v8609
      %v8611 = vmul.f32 %v8585, 1.442695
      %v8612 = vpow.pop %v8611
      %v8613 = vmul.f32 %v8586, 1.442695
      %v8614 = vpow.pop %v8613
      %v8615 = vmul.f32 %v8587, 1.442695
      %v8616 = vpow.pop %v8615
      %v8617 = vmul.f32 %v8588, 1.442695
      %v8618 = vpow.pop %v8617
      %v8619 = vmul.f32 %v8589, 1.442695
      %v8620 = vpow.pop %v8619
      %v8621 = vmul.f32 %v8590, 1.442695
      %v8622 = vpow.pop %v8621
      %v8639 = vrot.slane %v8594, 7
      %v8640 = vsel %vm1178, %v8639, %v8592
      %v8641 = vrot.slane %v8596, 6
      %v8642 = vsel %vm1181, %v8641, %v8640
      %v8643 = vrot.slane %v8598, 5
      %v8644 = vsel %vm1184, %v8643, %v8642
      %v8645 = vrot.slane %v8600, 4
      %v8646 = vsel %vm1187, %v8645, %v8644
      %v8647 = vrot.slane %v8602, 3
      %v8648 = vsel %vm1190, %v8647, %v8646
      %v8649 = vrot.slane %v8604, 2
      %v8650 = vsel %vm1193, %v8649, %v8648
      %v8651 = vrot.slane %v8606, 1
      %v8652 = vsel %vm1196, %v8651, %v8650
      %v8653 = vrot.slane %v8610, 7
      %v8654 = vsel %vm1178, %v8653, %v8608
      %v8655 = vrot.slane %v8612, 6
      %v8656 = vsel %vm1181, %v8655, %v8654
      %v8657 = vrot.slane %v8614, 5
      %v8658 = vsel %vm1184, %v8657, %v8656
      %v8659 = vrot.slane %v8616, 4
      %v8660 = vsel %vm1187, %v8659, %v8658
      %v8661 = vrot.slane %v8618, 3
      %v8662 = vsel %vm1190, %v8661, %v8660
      %v8663 = vrot.slane %v8620, 2
      %v8664 = vsel %vm1193, %v8663, %v8662
      %v8665 = vrot.slane %v8622, 1
      %v8666 = vsel %vm1196, %v8665, %v8664
      %v8669 = vsel %vm422, %v8652, 0.0
      %v8670 = vsel %vm422, %v8666, 0.0
      %v8671 = vadd.f32 %v8669, %v8670
      %v8672 = vrot.slane %v8671, 4
      %v8673 = vadd.f32 %v8671, %v8672
      %v8674 = vrot.slane %v8673, 2
      %v8675 = vadd.f32 %v8673, %v8674
      %v8676 = vrot.slane %v8675, 1
      %v8677 = vadd.f32 %v8675, %v8676
      %v8678 = vlaneseq
      %v8679 = vshrl.u32 %v8678, 7
      %v8680 = vsub.s32 0, %v8679
      %v8681 = vrot.slane %v8677, %v8680
      %v8682 = vrcp.pop %v8681
      %v8683 = vmul.f32 %v8592, %v8682
      %v8684 = vmul.f32 %v8594, %v8682
      %v8685 = vmul.f32 %v8596, %v8682
      %v8686 = vmul.f32 %v8598, %v8682
      %v8687 = vmul.f32 %v8600, %v8682
      %v8688 = vmul.f32 %v8602, %v8682
      %v8689 = vmul.f32 %v8604, %v8682
      %v8690 = vmul.f32 %v8606, %v8682
      %v8691 = vmul.f32 %v8608, %v8682
      %v8692 = vmul.f32 %v8610, %v8682
      %v8693 = vmul.f32 %v8612, %v8682
      %v8694 = vmul.f32 %v8614, %v8682
      %v8695 = vmul.f32 %v8616, %v8682
      %v8696 = vmul.f32 %v8618, %v8682
      %v8697 = vmul.f32 %v8620, %v8682
      %v8698 = vmul.f32 %v8622, %v8682
      %v8699 = vlaneseq
      %v8700 = vshrl.u32 %v8699, 7
      %v8701 = vsub.s32 0, %v8700
      %v8702 = vrot.slane %v8683, %v8701
      %v8703 = vlaneseq
      %v8704 = vshrl.u32 %v8703, 7
      %v8705 = vsub.s32 0, %v8704
      %v8706 = vrot.slane %v8684, %v8705
      %v8707 = vlaneseq
      %v8708 = vshrl.u32 %v8707, 7
      %v8709 = vsub.s32 0, %v8708
      %v8710 = vrot.slane %v8685, %v8709
      %v8711 = vlaneseq
      %v8712 = vshrl.u32 %v8711, 7
      %v8713 = vsub.s32 0, %v8712
      %v8714 = vrot.slane %v8686, %v8713
      %v8715 = vlaneseq
      %v8716 = vshrl.u32 %v8715, 7
      %v8717 = vsub.s32 0, %v8716
      %v8718 = vrot.slane %v8687, %v8717
      %v8719 = vlaneseq
      %v8720 = vshrl.u32 %v8719, 7
      %v8721 = vsub.s32 0, %v8720
      %v8722 = vrot.slane %v8688, %v8721
      %v8723 = vlaneseq
      %v8724 = vshrl.u32 %v8723, 7
      %v8725 = vsub.s32 0, %v8724
      %v8726 = vrot.slane %v8689, %v8725
      %v8727 = vlaneseq
      %v8728 = vshrl.u32 %v8727, 7
      %v8729 = vsub.s32 0, %v8728
      %v8730 = vrot.slane %v8690, %v8729
      %v8731 = vlaneseq
      %v8732 = vshrl.u32 %v8731, 7
      %v8733 = vsub.s32 0, %v8732
      %v8734 = vrot.slane %v8691, %v8733
      %v8735 = vlaneseq
      %v8736 = vshrl.u32 %v8735, 7
      %v8737 = vsub.s32 0, %v8736
      %v8738 = vrot.slane %v8692, %v8737
      %v8739 = vlaneseq
      %v8740 = vshrl.u32 %v8739, 7
      %v8741 = vsub.s32 0, %v8740
      %v8742 = vrot.slane %v8693, %v8741
      %v8743 = vlaneseq
      %v8744 = vshrl.u32 %v8743, 7
      %v8745 = vsub.s32 0, %v8744
      %v8746 = vrot.slane %v8694, %v8745
      %v8747 = vlaneseq
      %v8748 = vshrl.u32 %v8747, 7
      %v8749 = vsub.s32 0, %v8748
      %v8750 = vrot.slane %v8695, %v8749
      %v8751 = vlaneseq
      %v8752 = vshrl.u32 %v8751, 7
      %v8753 = vsub.s32 0, %v8752
      %v8754 = vrot.slane %v8696, %v8753
      %v8755 = vlaneseq
      %v8756 = vshrl.u32 %v8755, 7
      %v8757 = vsub.s32 0, %v8756
      %v8758 = vrot.slane %v8697, %v8757
      %v8759 = vlaneseq
      %v8760 = vshrl.u32 %v8759, 7
      %v8761 = vsub.s32 0, %v8760
      %v8762 = vrot.slane %v8698, %v8761
      %v8763 = vmul.f32 %v8702, %v872
      %v8764 = vmul.f32 %v8702, %v873
      %v8765 = vmul.f32 %v8706, %v874
      %v8766 = vmul.f32 %v8706, %v875
      %v8767 = vmul.f32 %v8710, %v876
      %v8768 = vmul.f32 %v8710, %v877
      %v8769 = vmul.f32 %v8714, %v878
      %v8770 = vmul.f32 %v8714, %v879
      %v8771 = vmul.f32 %v8718, %v880
      %v8772 = vmul.f32 %v8718, %v881
      %v8773 = vmul.f32 %v8722, %v882
      %v8774 = vmul.f32 %v8722, %v883
      %v8775 = vmul.f32 %v8726, %v884
      %v8776 = vmul.f32 %v8726, %v885
      %v8777 = vmul.f32 %v8730, %v886
      %v8778 = vmul.f32 %v8730, %v887
      %v8779 = vmul.f32 %v8734, %v888
      %v8780 = vmul.f32 %v8734, %v889
      %v8781 = vmul.f32 %v8738, %v890
      %v8782 = vmul.f32 %v8738, %v891
      %v8783 = vmul.f32 %v8742, %v892
      %v8784 = vmul.f32 %v8742, %v893
      %v8785 = vmul.f32 %v8746, %v894
      %v8786 = vmul.f32 %v8746, %v895
      %v8787 = vmul.f32 %v8750, %v896
      %v8788 = vmul.f32 %v8750, %v897
      %v8789 = vmul.f32 %v8754, %v898
      %v8790 = vmul.f32 %v8754, %v899
      %v8791 = vmul.f32 %v8758, %v900
      %v8792 = vmul.f32 %v8758, %v901
      %v8793 = vmul.f32 %v8762, %v902
      %v8794 = vmul.f32 %v8762, %v903
      %v8795 = vsel %vm422, %v8763, 0.0
      %v8796 = vsel %vm422, %v8765, 0.0
      %v8797 = vadd.f32 %v8795, %v8796
      %v8798 = vsel %vm422, %v8767, 0.0
      %v8799 = vadd.f32 %v8797, %v8798
      %v8800 = vsel %vm422, %v8769, 0.0
      %v8801 = vadd.f32 %v8799, %v8800
      %v8802 = vsel %vm422, %v8771, 0.0
      %v8803 = vadd.f32 %v8801, %v8802
      %v8804 = vsel %vm422, %v8773, 0.0
      %v8805 = vadd.f32 %v8803, %v8804
      %v8806 = vsel %vm422, %v8775, 0.0
      %v8807 = vadd.f32 %v8805, %v8806
      %v8808 = vsel %vm422, %v8777, 0.0
      %v8809 = vadd.f32 %v8807, %v8808
      %v8810 = vsel %vm422, %v8779, 0.0
      %v8811 = vadd.f32 %v8809, %v8810
      %v8812 = vsel %vm422, %v8781, 0.0
      %v8813 = vadd.f32 %v8811, %v8812
      %v8814 = vsel %vm422, %v8783, 0.0
      %v8815 = vadd.f32 %v8813, %v8814
      %v8816 = vsel %vm422, %v8785, 0.0
      %v8817 = vadd.f32 %v8815, %v8816
      %v8818 = vsel %vm422, %v8787, 0.0
      %v8819 = vadd.f32 %v8817, %v8818
      %v8820 = vsel %vm422, %v8789, 0.0
      %v8821 = vadd.f32 %v8819, %v8820
      %v8822 = vsel %vm422, %v8791, 0.0
      %v8823 = vadd.f32 %v8821, %v8822
      %v8824 = vsel %vm422, %v8793, 0.0
      %v8825 = vadd.f32 %v8823, %v8824
      %v8826 = vsel %vm422, %v8764, 0.0
      %v8827 = vsel %vm422, %v8766, 0.0
      %v8828 = vadd.f32 %v8826, %v8827
      %v8829 = vsel %vm422, %v8768, 0.0
      %v8830 = vadd.f32 %v8828, %v8829
      %v8831 = vsel %vm422, %v8770, 0.0
      %v8832 = vadd.f32 %v8830, %v8831
      %v8833 = vsel %vm422, %v8772, 0.0
      %v8834 = vadd.f32 %v8832, %v8833
      %v8835 = vsel %vm422, %v8774, 0.0
      %v8836 = vadd.f32 %v8834, %v8835
      %v8837 = vsel %vm422, %v8776, 0.0
      %v8838 = vadd.f32 %v8836, %v8837
      %v8839 = vsel %vm422, %v8778, 0.0
      %v8840 = vadd.f32 %v8838, %v8839
      %v8841 = vsel %vm422, %v8780, 0.0
      %v8842 = vadd.f32 %v8840, %v8841
      %v8843 = vsel %vm422, %v8782, 0.0
      %v8844 = vadd.f32 %v8842, %v8843
      %v8845 = vsel %vm422, %v8784, 0.0
      %v8846 = vadd.f32 %v8844, %v8845
      %v8847 = vsel %vm422, %v8786, 0.0
      %v8848 = vadd.f32 %v8846, %v8847
      %v8849 = vsel %vm422, %v8788, 0.0
      %v8850 = vadd.f32 %v8848, %v8849
      %v8851 = vsel %vm422, %v8790, 0.0
      %v8852 = vadd.f32 %v8850, %v8851
      %v8853 = vsel %vm422, %v8792, 0.0
      %v8854 = vadd.f32 %v8852, %v8853
      %v8855 = vsel %vm422, %v8794, 0.0
      %v8856 = vadd.f32 %v8854, %v8855
      %v8857 = vld [vmem:[%s342 + $0xf0] sm:$0xff]
      %v8858 = vld [vmem:[%s342 + $0xf8] sm:$0xff]
      %v8859 = vadd.f32 %v8825, %v8857
      %v8860 = vadd.f32 %v8856, %v8858
      %8861 = vst.msk [vmem:[%s364 + $0xf0] sm:$0xff] %vm422, %v8859
      %8862 = vst.msk [vmem:[%s364 + $0xf8] sm:$0xff] %vm422, %v8860
      %p8863 = scmp.lt.s32.totalorder %s22, 1
      %s8864 = scalar_select %p8863, %s22, 1
      %p8865 = scmp.lt.s32.totalorder %s21, 0
      %s8866 = scalar_select %p8865, %s21, 0
      %s8867 = smul.addr %s8864, 32
      %s8868 = sadd.s32 %s8866, %s8867
      %s8869 = smul.addr %s8868, 8
      %s8870 = scalar_lea.vmem %s6, %s8869
      // Predicated region
      $region45: #{tpu_custom_call.1} parent=43 // pred_check
        %p8871 = pneg %p207
      $region46: #{tpu_custom_call.1} parent=43 // pred_check_branch
        %8873 = sbr.rel (%p8871) target = $region48
      $region47: #{tpu_custom_call.1} parent=43 // pred_region
        _
      $region48: #{tpu_custom_call.1} parent=43 // pred_fallthru
        _
    $region44: #{tpu_custom_call.1} parent=5 // pred_fallthru
      _
    %p8874 = scmp.le.s32.totalorder 2, %s12
    // Predicated region
    $region49: #{tpu_custom_call.1} parent=5 // pred_check
      %p8875 = pneg %p8874
    $region50: #{tpu_custom_call.1} parent=5 // pred_check_branch
      %8877 = sbr.rel (%p8875) target = $region52
    $region51: #{tpu_custom_call.1} parent=5 // pred_region
      %s8878 = ssub.s32 %s12, 2
      // Predicated region
      $region53: #{tpu_custom_call.1} parent=51 // pred_check
        %p8879 = pneg %p213
      $region54: #{tpu_custom_call.1} parent=51 // pred_check_branch
        %8881 = sbr.rel (%p8879) target = $region56
      $region55: #{tpu_custom_call.1} parent=51 // pred_region
        %p8882 = scmp.lt.s32.totalorder %s24, 1
        %s8883 = scalar_select %p8882, %s24, 1
        %p8884 = scmp.lt.s32.totalorder %s23, 0
        %s8885 = scalar_select %p8884, %s23, 0
        %s8886 = smul.addr %s8883, 32
        %s8887 = sadd.s32 %s8885, %s8886
        %s8888 = smul.addr %s8887, 8
        %s8889 = scalar_lea.vmem %s6, %s8888
      $region56: #{tpu_custom_call.1} parent=51 // pred_fallthru
        _
    $region52: #{tpu_custom_call.1} parent=5 // pred_fallthru
      _
  $region6: #{tpu_custom_call.1} parent=0 // loop_footer
    %s16 = sadd.s32 1, %s12
  $region7: #{tpu_custom_call.1} parent=0 // loop_footer_branch
    %11 = sbr.rel target = $region3
  $region8: #{tpu_custom_call.1} parent=0 // loop_exit
    _

</llo_original>
